<compile_context>
chip_gen: v7x
topology: tpu7x:2x2x1
jax: 0.10.0
libtpu: 0.0.40
codegen_flags: <defaults>
</compile_context>

<pallas_src>
import math

import jax
import jax.numpy as jnp
import numpy as np
from jax.experimental import pallas as pl
from jax.experimental.pallas import tpu as pltpu

FEATURES = 32  # scaled-down "features" (PyTorch default is 256)


# ----------------------------------------------------------------------------
# The single fused Pallas kernel.
# All refs are full-array VMEM blocks (no grid: one invocation, everything
# resident in VMEM).  All values are 2-D and every op is a plain MXU matmul,
# an elementwise add or a ReLU.
# ----------------------------------------------------------------------------
def _fpn_kernel(
    c3_ref, c4_ref, c5_ref,                  # planar inputs  (N*H, W*Cin)
    bp3_ref, bp4_ref, bp5_ref,               # 1x1 block-diag weights
    bb3_ref, bb4_ref, bb5_ref,               # 1x1 tiled biases (1, W*F)
    ul45_ref, ur45_ref, ul34_ref, ur34_ref,  # nearest-upsample 0/1 operators
    a3_ref, r3_ref, cb3_ref,                 # conv_3    (A[3], R[3], bias)
    a4_ref, r4_ref, cb4_ref,                 # conv_4
    a5_ref, r5_ref, cb5_ref,                 # conv_5
    a6_ref, r6_ref, cb6_ref,                 # conv_out6 (stride 2)
    a7_ref, r7_ref, cb7_ref,                 # conv_out7 (stride 2, ReLU input)
    o3_ref, o4_ref, o5_ref, o6_ref, o7_ref):

  def mm(a, b):
    return jnp.dot(a, b, preferred_element_type=jnp.float32)

  # Lateral 1x1 projections (planar: (N*H, W*Cin) @ (W*Cin, W*F) + bias).
  p5 = mm(c5_ref[...], bp5_ref[...]) + bb5_ref[...]
  p4 = mm(c4_ref[...], bp4_ref[...]) + bb4_ref[...]
  p3 = mm(c3_ref[...], bp3_ref[...]) + bb3_ref[...]

  # Top-down pathway: 2x nearest upsample (0/1 select matmuls) + add, in-VMEM.
  p4 = p4 + mm(ul45_ref[...], mm(p5, ur45_ref[...]))
  p3 = p3 + mm(ul34_ref[...], mm(p4, ur34_ref[...]))

  def conv3x3(x, a_ref, r_ref, b_ref):
    out = b_ref[...]                       # (1, Wout*F), broadcasts over rows
    for ky in range(3):                    # static unroll: 3 vertical taps
      out = out + mm(a_ref[ky], mm(x, r_ref[ky]))
    return out

  p3 = conv3x3(p3, a3_ref, r3_ref, cb3_ref)
  p4 = conv3x3(p4, a4_ref, r4_ref, cb4_ref)
  p5 = conv3x3(p5, a5_ref, r5_ref, cb5_ref)
  p6 = conv3x3(p5, a6_ref, r6_ref, cb6_ref)                    # use_p5=True
  p7 = conv3x3(jnp.maximum(p6, 0.0), a7_ref, r7_ref, cb7_ref)  # fused ReLU

  o3_ref[...] = p3
  o4_ref[...] = p4
  o5_ref[...] = p5
  o6_ref[...] = p6
  o7_ref[...] = p7


# ----------------------------------------------------------------------------
# Host-side (numpy) operator construction from the conv weights.
# ----------------------------------------------------------------------------
def _block_diag_1x1(w_oihw, width):
  """(F, Cin, 1, 1) -> block-diagonal (W*Cin, W*F) for the planar layout."""
  w = np.asarray(w_oihw, np.float32)
  f, cin = w.shape[0], w.shape[1]
  w2 = w[:, :, 0, 0].T                                 # (Cin, F)
  blk = np.zeros((width * cin, width * f), np.float32)
  for j in range(width):
    blk[j * cin:(j + 1) * cin, j * f:(j + 1) * f] = w2
  return blk


def _conv3x3_ops(w_oihw, n, h_in, w_in, stride):
  """3x3 conv (pad=1) as  sum_ky A_ky @ (X @ R_ky)  in the planar layout."""
  w = np.asarray(w_oihw, np.float32)                   # (F, Cin, 3, 3)
  f, cin = w.shape[0], w.shape[1]
  h_out = (h_in + 2 - 3) // stride + 1
  w_out = (w_in + 2 - 3) // stride + 1
  a = np.zeros((3, n * h_out, n * h_in), np.float32)
  r = np.zeros((3, w_in * cin, w_out * f), np.float32)
  for ky in range(3):
    for b in range(n):
      for i in range(h_out):
        ii = i * stride + ky - 1
        if 0 <= ii < h_in:
          a[ky, b * h_out + i, b * h_in + ii] = 1.0
    for kx in range(3):
      tap = w[:, :, ky, kx].T                          # (Cin, F)
      for j in range(w_out):
        jj = j * stride + kx - 1
        if 0 <= jj < w_in:
          r[ky, jj * cin:(jj + 1) * cin, j * f:(j + 1) * f] = tap
  return a, r, (h_out, w_out)


def _upsample_ops(n, h_s, w_s, h_t, w_t, c):
  """Nearest upsample (floor(i*src/dst)) as  UL @ (X @ UR)  0/1 operators."""
  ul = np.zeros((n * h_t, n * h_s), np.float32)
  for b in range(n):
    for i in range(h_t):
      ul[b * h_t + i, b * h_s + (i * h_s) // h_t] = 1.0
  ur = np.zeros((w_s * c, w_t * c), np.float32)
  eye = np.eye(c, dtype=np.float32)
  for j in range(w_t):
    js = (j * w_s) // w_t
    ur[js * c:(js + 1) * c, j * c:(j + 1) * c] = eye
  return ul, ur


def _tiled_bias(b, width):
  return np.tile(np.asarray(b, np.float32), width).reshape(1, -1)


def prepare_fpn_operators(params, n, hw3, hw4, hw5, features=FEATURES):
  (h3, w3), (h4, w4), (h5, w5) = hw3, hw4, hw5
  ops = {}
  ops["bp3"] = _block_diag_1x1(params["prj_3_w"], w3)
  ops["bp4"] = _block_diag_1x1(params["prj_4_w"], w4)
  ops["bp5"] = _block_diag_1x1(params["prj_5_w"], w5)
  ops["bb3"] = _tiled_bias(params["prj_3_b"], w3)
  ops["bb4"] = _tiled_bias(params["prj_4_b"], w4)
  ops["bb5"] = _tiled_bias(params["prj_5_b"], w5)
  ops["ul45"], ops["ur45"] = _upsample_ops(n, h5, w5, h4, w4, features)
  ops["ul34"], ops["ur34"] = _upsample_ops(n, h4, w4, h3, w3, features)
  ops["a3"], ops["r3"], _ = _conv3x3_ops(params["conv_3_w"], n, h3, w3, 1)
  ops["a4"], ops["r4"], _ = _conv3x3_ops(params["conv_4_w"], n, h4, w4, 1)
  ops["a5"], ops["r5"], _ = _conv3x3_ops(params["conv_5_w"], n, h5, w5, 1)
  ops["a6"], ops["r6"], (h6, w6) = _conv3x3_ops(params["conv_out6_w"], n, h5, w5, 2)
  ops["a7"], ops["r7"], (h7, w7) = _conv3x3_ops(params["conv_out7_w"], n, h6, w6, 2)
  ops["cb3"] = _tiled_bias(params["conv_3_b"], w3)
  ops["cb4"] = _tiled_bias(params["conv_4_b"], w4)
  ops["cb5"] = _tiled_bias(params["conv_5_b"], w5)
  ops["cb6"] = _tiled_bias(params["conv_out6_b"], w6)
  ops["cb7"] = _tiled_bias(params["conv_out7_b"], w7)
  ops = {k: jnp.asarray(v, jnp.float32) for k, v in ops.items()}
  out_hw = ((h3, w3), (h4, w4), (h5, w5), (h6, w6), (h7, w7))
  return ops, out_hw


_OP_ORDER = ("bp3", "bp4", "bp5", "bb3", "bb4", "bb5",
             "ul45", "ur45", "ul34", "ur34",
             "a3", "r3", "cb3", "a4", "r4", "cb4", "a5", "r5", "cb5",
             "a6", "r6", "cb6", "a7", "r7", "cb7")


# ----------------------------------------------------------------------------
# Wrapper: NCHW <-> planar layout glue + the single pallas_call.
# ----------------------------------------------------------------------------
def _to_planar(x_nchw):
  n, c, h, w = x_nchw.shape
  return jnp.transpose(x_nchw, (0, 2, 3, 1)).reshape(n * h, w * c)


def _from_planar(x, n, h, w, c):
  return jnp.transpose(x.reshape(n, h, w, c), (0, 3, 1, 2))


def make_fpn_forward(ops, out_hw, features=FEATURES):
  # TODO(synk): at production scale (features=256, large images), add a batch-
  # parallel grid axis so v7x's second TensorCore is used; at these tiny shapes
  # a single-step, fully VMEM-resident kernel is the fastest option.
  @jax.jit
  def fwd(c3_nchw, c4_nchw, c5_nchw, op_arrays):
    n = c3_nchw.shape[0]
    c3p = _to_planar(c3_nchw)
    c4p = _to_planar(c4_nchw)
    c5p = _to_planar(c5_nchw)
    out_shapes = tuple(
        jax.ShapeDtypeStruct((n * h, w * features), jnp.float32)
        for (h, w) in out_hw)
    outs = pl.pallas_call(
        _fpn_kernel,
        out_shape=out_shapes,
        compiler_params=pltpu.CompilerParams(
            vmem_limit_bytes=48 * 1024 * 1024),
    )(c3p, c4p, c5p, *[op_arrays[k] for k in _OP_ORDER])
    return [_from_planar(o, n, h, w, features)
            for o, (h, w) in zip(outs, out_hw)]

  return lambda c3, c4, c5: fwd(c3, c4, c5, ops)


# ----------------------------------------------------------------------------
# Parameter init (matches nn.init.kaiming_uniform_(a=1) + zero bias).
# ----------------------------------------------------------------------------
def _kaiming_uniform(key, cout, cin, kh, kw):
  fan_in = cin * kh * kw
  bound = math.sqrt(3.0 / fan_in)       # kaiming_uniform_(a=1): sqrt(6/(2*fan_in))
  return jax.random.uniform(key, (cout, cin, kh, kw), jnp.float32, -bound, bound)


def init_fpn_params(key, c3_ch, c4_ch, c5_ch, features=FEATURES):
  names_shapes = [
      ("prj_5", (features, c5_ch, 1, 1)),
      ("prj_4", (features, c4_ch, 1, 1)),
      ("prj_3", (features, c3_ch, 1, 1)),
      ("conv_5", (features, features, 3, 3)),
      ("conv_4", (features, features, 3, 3)),
      ("conv_3", (features, features, 3, 3)),
      ("conv_out6", (features, features, 3, 3)),
      ("conv_out7", (features, features, 3, 3)),
  ]
  keys = jax.random.split(key, len(names_shapes))
  params = {}
  for k, (name, (co, ci, kh, kw)) in zip(keys, names_shapes):
    params[name + "_w"] = _kaiming_uniform(k, co, ci, kh, kw)   # OIHW
    params[name + "_b"] = jnp.zeros((co,), jnp.float32)
  return params


# ----------------------------------------------------------------------------
# Pure-JAX NCHW reference (f32) for the correctness check.
# ----------------------------------------------------------------------------
def _conv2d_ref(x, w, b, stride=1, pad=0):
  out = jax.lax.conv_general_dilated(
      x, w, (stride, stride), ((pad, pad), (pad, pad)),
      dimension_numbers=("NCHW", "OIHW", "NCHW"))
  return out + b.reshape(1, -1, 1, 1)


def _upsample_nearest_nchw(src, th, tw):
  n, c, h, w = src.shape
  ri = (jnp.arange(th) * h) // th
  ci = (jnp.arange(tw) * w) // tw
  return src[:, :, ri[:, None], ci[None, :]]


def fpn_forward_ref(params, C3, C4, C5):
  p = params
  P5 = _conv2d_ref(C5, p["prj_5_w"], p["prj_5_b"])
  P4 = _conv2d_ref(C4, p["prj_4_w"], p["prj_4_b"])
  P3 = _conv2d_ref(C3, p["prj_3_w"], p["prj_3_b"])
  P4 = P4 + _upsample_nearest_nchw(P5, C4.shape[2], C4.shape[3])
  P3 = P3 + _upsample_nearest_nchw(P4, C3.shape[2], C3.shape[3])
  P3 = _conv2d_ref(P3, p["conv_3_w"], p["conv_3_b"], pad=1)
  P4 = _conv2d_ref(P4, p["conv_4_w"], p["conv_4_b"], pad=1)
  P5 = _conv2d_ref(P5, p["conv_5_w"], p["conv_5_b"], pad=1)
  P6 = _conv2d_ref(P5, p["conv_out6_w"], p["conv_out6_b"], stride=2, pad=1)
  P7 = _conv2d_ref(jnp.maximum(P6, 0.0), p["conv_out7_w"], p["conv_out7_b"],
                   stride=2, pad=1)
  return [P3, P4, P5, P6, P7]


# ----------------------------------------------------------------------------
if __name__ == "__main__":
  key = jax.random.PRNGKey(0)
  k_c3, k_c4, k_c5, k_param = jax.random.split(key, 4)

  # Scaled-down ResNet50-style pyramid: Cin ratios 2/4/8 x features.
  N = 2
  C3_CH, C4_CH, C5_CH = 2 * FEATURES, 4 * FEATURES, 8 * FEATURES   # 64,128,256
  C3 = jax.random.normal(k_c3, (N, C3_CH, 16, 16), jnp.float32)    # NCHW
  C4 = jax.random.normal(k_c4, (N, C4_CH, 8, 8), jnp.float32)
  C5 = jax.random.normal(k_c5, (N, C5_CH, 4, 4), jnp.float32)

  params = init_fpn_params(k_param, C3_CH, C4_CH, C5_CH, FEATURES)
  ops, out_hw = prepare_fpn_operators(
      params, N, (16, 16), (8, 8), (4, 4), FEATURES)
  fpn_forward = make_fpn_forward(ops, out_hw, FEATURES)

  outs = fpn_forward(C3, C4, C5)                 # single fused Pallas kernel
  outs = [jax.block_until_ready(o) for o in outs]

  # Correctness check vs. pure-JAX f32 NCHW reference.
  refs = fpn_forward_ref(params, C3, C4, C5)
  for o, r in zip(outs, refs):
    np.testing.assert_allclose(np.asarray(o), np.asarray(r),
                               atol=2e-3, rtol=2e-3)

  print("KERNEL_OK")
</pallas_src>

<mosaic_0001>
module attributes {stable_mosaic.version = 11 : i64} {
  func.func @_fpn_kernel(%arg0: memref<32x1024xf32, #tpu.memory_space<vmem>>, %arg1: memref<16x1024xf32, #tpu.memory_space<vmem>>, %arg2: memref<8x1024xf32, #tpu.memory_space<vmem>>, %arg3: memref<1024x512xf32, #tpu.memory_space<vmem>>, %arg4: memref<1024x256xf32, #tpu.memory_space<vmem>>, %arg5: memref<1024x128xf32, #tpu.memory_space<vmem>>, %arg6: memref<1x512xf32, #tpu.memory_space<vmem>>, %arg7: memref<1x256xf32, #tpu.memory_space<vmem>>, %arg8: memref<1x128xf32, #tpu.memory_space<vmem>>, %arg9: memref<16x8xf32, #tpu.memory_space<vmem>>, %arg10: memref<128x256xf32, #tpu.memory_space<vmem>>, %arg11: memref<32x16xf32, #tpu.memory_space<vmem>>, %arg12: memref<256x512xf32, #tpu.memory_space<vmem>>, %arg13: memref<3x32x32xf32, #tpu.memory_space<vmem>>, %arg14: memref<3x512x512xf32, #tpu.memory_space<vmem>>, %arg15: memref<1x512xf32, #tpu.memory_space<vmem>>, %arg16: memref<3x16x16xf32, #tpu.memory_space<vmem>>, %arg17: memref<3x256x256xf32, #tpu.memory_space<vmem>>, %arg18: memref<1x256xf32, #tpu.memory_space<vmem>>, %arg19: memref<3x8x8xf32, #tpu.memory_space<vmem>>, %arg20: memref<3x128x128xf32, #tpu.memory_space<vmem>>, %arg21: memref<1x128xf32, #tpu.memory_space<vmem>>, %arg22: memref<3x4x8xf32, #tpu.memory_space<vmem>>, %arg23: memref<3x128x64xf32, #tpu.memory_space<vmem>>, %arg24: memref<1x64xf32, #tpu.memory_space<vmem>>, %arg25: memref<3x2x4xf32, #tpu.memory_space<vmem>>, %arg26: memref<3x64x32xf32, #tpu.memory_space<vmem>>, %arg27: memref<1x32xf32, #tpu.memory_space<vmem>>, %arg28: memref<32x512xf32, #tpu.memory_space<vmem>>, %arg29: memref<16x256xf32, #tpu.memory_space<vmem>>, %arg30: memref<8x128xf32, #tpu.memory_space<vmem>>, %arg31: memref<4x64xf32, #tpu.memory_space<vmem>>, %arg32: memref<2x32xf32, #tpu.memory_space<vmem>>) attributes {dimension_semantics = [], scalar_prefetch = 0 : i64, scratch_operands = 0 : i64, tpu.core_type = #tpu.core_type<tc>} {
    %c0 = arith.constant 0 : index
    %c0_0 = arith.constant 0 : index
    %0 = vector.load %arg2[%c0, %c0_0] : memref<8x1024xf32, #tpu.memory_space<vmem>>, vector<8x1024xf32>
    %c0_1 = arith.constant 0 : index
    %c0_2 = arith.constant 0 : index
    %1 = vector.load %arg5[%c0_1, %c0_2] : memref<1024x128xf32, #tpu.memory_space<vmem>>, vector<1024x128xf32>
    %cst = arith.constant dense<0.000000e+00> : vector<8x128xf32>
    %2 = tpu.matmul %0, %1, %cst {dimension_numbers = #tpu.dot_dimension_numbers<[1], [0], [0], [1], [0, 0, 1, 1], [], []>} : vector<8x1024xf32>, vector<1024x128xf32>, vector<8x128xf32> -> vector<8x128xf32>
    %c0_3 = arith.constant 0 : index
    %c0_4 = arith.constant 0 : index
    %3 = vector.load %arg8[%c0_3, %c0_4] : memref<1x128xf32, #tpu.memory_space<vmem>>, vector<1x128xf32>
    %4 = vector.broadcast %3 : vector<1x128xf32> to vector<8x128xf32>
    %5 = arith.addf %2, %4 : vector<8x128xf32>
    %c0_5 = arith.constant 0 : index
    %c0_6 = arith.constant 0 : index
    %6 = vector.load %arg1[%c0_5, %c0_6] : memref<16x1024xf32, #tpu.memory_space<vmem>>, vector<16x1024xf32>
    %c0_7 = arith.constant 0 : index
    %c0_8 = arith.constant 0 : index
    %7 = vector.load %arg4[%c0_7, %c0_8] : memref<1024x256xf32, #tpu.memory_space<vmem>>, vector<1024x256xf32>
    %cst_9 = arith.constant dense<0.000000e+00> : vector<16x256xf32>
    %8 = tpu.matmul %6, %7, %cst_9 {dimension_numbers = #tpu.dot_dimension_numbers<[1], [0], [0], [1], [0, 0, 1, 1], [], []>} : vector<16x1024xf32>, vector<1024x256xf32>, vector<16x256xf32> -> vector<16x256xf32>
    %c0_10 = arith.constant 0 : index
    %c0_11 = arith.constant 0 : index
    %9 = vector.load %arg7[%c0_10, %c0_11] : memref<1x256xf32, #tpu.memory_space<vmem>>, vector<1x256xf32>
    %10 = vector.broadcast %9 : vector<1x256xf32> to vector<16x256xf32>
    %11 = arith.addf %8, %10 : vector<16x256xf32>
    %c0_12 = arith.constant 0 : index
    %c0_13 = arith.constant 0 : index
    %12 = vector.load %arg0[%c0_12, %c0_13] : memref<32x1024xf32, #tpu.memory_space<vmem>>, vector<32x1024xf32>
    %c0_14 = arith.constant 0 : index
    %c0_15 = arith.constant 0 : index
    %13 = vector.load %arg3[%c0_14, %c0_15] : memref<1024x512xf32, #tpu.memory_space<vmem>>, vector<1024x512xf32>
    %cst_16 = arith.constant dense<0.000000e+00> : vector<32x512xf32>
    %14 = tpu.matmul %12, %13, %cst_16 {dimension_numbers = #tpu.dot_dimension_numbers<[1], [0], [0], [1], [0, 0, 1, 1], [], []>} : vector<32x1024xf32>, vector<1024x512xf32>, vector<32x512xf32> -> vector<32x512xf32>
    %c0_17 = arith.constant 0 : index
    %c0_18 = arith.constant 0 : index
    %15 = vector.load %arg6[%c0_17, %c0_18] : memref<1x512xf32, #tpu.memory_space<vmem>>, vector<1x512xf32>
    %16 = vector.broadcast %15 : vector<1x512xf32> to vector<32x512xf32>
    %17 = arith.addf %14, %16 : vector<32x512xf32>
    %c0_19 = arith.constant 0 : index
    %c0_20 = arith.constant 0 : index
    %18 = vector.load %arg9[%c0_19, %c0_20] : memref<16x8xf32, #tpu.memory_space<vmem>>, vector<16x8xf32>
    %c0_21 = arith.constant 0 : index
    %c0_22 = arith.constant 0 : index
    %19 = vector.load %arg10[%c0_21, %c0_22] : memref<128x256xf32, #tpu.memory_space<vmem>>, vector<128x256xf32>
    %cst_23 = arith.constant dense<0.000000e+00> : vector<8x256xf32>
    %20 = tpu.matmul %5, %19, %cst_23 {dimension_numbers = #tpu.dot_dimension_numbers<[1], [0], [0], [1], [0, 0, 1, 1], [], []>} : vector<8x128xf32>, vector<128x256xf32>, vector<8x256xf32> -> vector<8x256xf32>
    %cst_24 = arith.constant dense<0.000000e+00> : vector<16x256xf32>
    %21 = tpu.matmul %18, %20, %cst_24 {dimension_numbers = #tpu.dot_dimension_numbers<[1], [0], [0], [1], [0, 0, 1, 1], [], []>} : vector<16x8xf32>, vector<8x256xf32>, vector<16x256xf32> -> vector<16x256xf32>
    %22 = arith.addf %11, %21 : vector<16x256xf32>
    %c0_25 = arith.constant 0 : index
    %c0_26 = arith.constant 0 : index
    %23 = vector.load %arg11[%c0_25, %c0_26] : memref<32x16xf32, #tpu.memory_space<vmem>>, vector<32x16xf32>
    %c0_27 = arith.constant 0 : index
    %c0_28 = arith.constant 0 : index
    %24 = vector.load %arg12[%c0_27, %c0_28] : memref<256x512xf32, #tpu.memory_space<vmem>>, vector<256x512xf32>
    %cst_29 = arith.constant dense<0.000000e+00> : vector<16x512xf32>
    %25 = tpu.matmul %22, %24, %cst_29 {dimension_numbers = #tpu.dot_dimension_numbers<[1], [0], [0], [1], [0, 0, 1, 1], [], []>} : vector<16x256xf32>, vector<256x512xf32>, vector<16x512xf32> -> vector<16x512xf32>
    %cst_30 = arith.constant dense<0.000000e+00> : vector<32x512xf32>
    %26 = tpu.matmul %23, %25, %cst_30 {dimension_numbers = #tpu.dot_dimension_numbers<[1], [0], [0], [1], [0, 0, 1, 1], [], []>} : vector<32x16xf32>, vector<16x512xf32>, vector<32x512xf32> -> vector<32x512xf32>
    %27 = arith.addf %17, %26 : vector<32x512xf32>
    %c0_31 = arith.constant 0 : index
    %c0_32 = arith.constant 0 : index
    %28 = vector.load %arg15[%c0_31, %c0_32] : memref<1x512xf32, #tpu.memory_space<vmem>>, vector<1x512xf32>
    %c0_33 = arith.constant 0 : index
    %c0_34 = arith.constant 0 : index
    %c0_35 = arith.constant 0 : index
    %29 = vector.load %arg13[%c0_33, %c0_34, %c0_35] : memref<3x32x32xf32, #tpu.memory_space<vmem>>, vector<1x32x32xf32>
    %30 = vector.shape_cast %29 : vector<1x32x32xf32> to vector<32x32xf32>
    %c0_36 = arith.constant 0 : index
    %c0_37 = arith.constant 0 : index
    %c0_38 = arith.constant 0 : index
    %31 = vector.load %arg14[%c0_36, %c0_37, %c0_38] : memref<3x512x512xf32, #tpu.memory_space<vmem>>, vector<1x512x512xf32>
    %32 = vector.shape_cast %31 : vector<1x512x512xf32> to vector<512x512xf32>
    %cst_39 = arith.constant dense<0.000000e+00> : vector<32x512xf32>
    %33 = tpu.matmul %27, %32, %cst_39 {dimension_numbers = #tpu.dot_dimension_numbers<[1], [0], [0], [1], [0, 0, 1, 1], [], []>} : vector<32x512xf32>, vector<512x512xf32>, vector<32x512xf32> -> vector<32x512xf32>
    %cst_40 = arith.constant dense<0.000000e+00> : vector<32x512xf32>
    %34 = tpu.matmul %30, %33, %cst_40 {dimension_numbers = #tpu.dot_dimension_numbers<[1], [0], [0], [1], [0, 0, 1, 1], [], []>} : vector<32x32xf32>, vector<32x512xf32>, vector<32x512xf32> -> vector<32x512xf32>
    %35 = vector.broadcast %28 : vector<1x512xf32> to vector<32x512xf32>
    %36 = arith.addf %35, %34 : vector<32x512xf32>
    %c1 = arith.constant 1 : index
    %c0_41 = arith.constant 0 : index
    %c0_42 = arith.constant 0 : index
    %37 = vector.load %arg13[%c1, %c0_41, %c0_42] : memref<3x32x32xf32, #tpu.memory_space<vmem>>, vector<1x32x32xf32>
    %38 = vector.shape_cast %37 : vector<1x32x32xf32> to vector<32x32xf32>
    %c1_43 = arith.constant 1 : index
    %c0_44 = arith.constant 0 : index
    %c0_45 = arith.constant 0 : index
    %39 = vector.load %arg14[%c1_43, %c0_44, %c0_45] : memref<3x512x512xf32, #tpu.memory_space<vmem>>, vector<1x512x512xf32>
    %40 = vector.shape_cast %39 : vector<1x512x512xf32> to vector<512x512xf32>
    %cst_46 = arith.constant dense<0.000000e+00> : vector<32x512xf32>
    %41 = tpu.matmul %27, %40, %cst_46 {dimension_numbers = #tpu.dot_dimension_numbers<[1], [0], [0], [1], [0, 0, 1, 1], [], []>} : vector<32x512xf32>, vector<512x512xf32>, vector<32x512xf32> -> vector<32x512xf32>
    %cst_47 = arith.constant dense<0.000000e+00> : vector<32x512xf32>
    %42 = tpu.matmul %38, %41, %cst_47 {dimension_numbers = #tpu.dot_dimension_numbers<[1], [0], [0], [1], [0, 0, 1, 1], [], []>} : vector<32x32xf32>, vector<32x512xf32>, vector<32x512xf32> -> vector<32x512xf32>
    %43 = arith.addf %36, %42 : vector<32x512xf32>
    %c2 = arith.constant 2 : index
    %c0_48 = arith.constant 0 : index
    %c0_49 = arith.constant 0 : index
    %44 = vector.load %arg13[%c2, %c0_48, %c0_49] : memref<3x32x32xf32, #tpu.memory_space<vmem>>, vector<1x32x32xf32>
    %45 = vector.shape_cast %44 : vector<1x32x32xf32> to vector<32x32xf32>
    %c2_50 = arith.constant 2 : index
    %c0_51 = arith.constant 0 : index
    %c0_52 = arith.constant 0 : index
    %46 = vector.load %arg14[%c2_50, %c0_51, %c0_52] : memref<3x512x512xf32, #tpu.memory_space<vmem>>, vector<1x512x512xf32>
    %47 = vector.shape_cast %46 : vector<1x512x512xf32> to vector<512x512xf32>
    %cst_53 = arith.constant dense<0.000000e+00> : vector<32x512xf32>
    %48 = tpu.matmul %27, %47, %cst_53 {dimension_numbers = #tpu.dot_dimension_numbers<[1], [0], [0], [1], [0, 0, 1, 1], [], []>} : vector<32x512xf32>, vector<512x512xf32>, vector<32x512xf32> -> vector<32x512xf32>
    %cst_54 = arith.constant dense<0.000000e+00> : vector<32x512xf32>
    %49 = tpu.matmul %45, %48, %cst_54 {dimension_numbers = #tpu.dot_dimension_numbers<[1], [0], [0], [1], [0, 0, 1, 1], [], []>} : vector<32x32xf32>, vector<32x512xf32>, vector<32x512xf32> -> vector<32x512xf32>
    %50 = arith.addf %43, %49 : vector<32x512xf32>
    %c0_55 = arith.constant 0 : index
    %c0_56 = arith.constant 0 : index
    %51 = vector.load %arg18[%c0_55, %c0_56] : memref<1x256xf32, #tpu.memory_space<vmem>>, vector<1x256xf32>
    %c0_57 = arith.constant 0 : index
    %c0_58 = arith.constant 0 : index
    %c0_59 = arith.constant 0 : index
    %52 = vector.load %arg16[%c0_57, %c0_58, %c0_59] : memref<3x16x16xf32, #tpu.memory_space<vmem>>, vector<1x16x16xf32>
    %53 = vector.shape_cast %52 : vector<1x16x16xf32> to vector<16x16xf32>
    %c0_60 = arith.constant 0 : index
    %c0_61 = arith.constant 0 : index
    %c0_62 = arith.constant 0 : index
    %54 = vector.load %arg17[%c0_60, %c0_61, %c0_62] : memref<3x256x256xf32, #tpu.memory_space<vmem>>, vector<1x256x256xf32>
    %55 = vector.shape_cast %54 : vector<1x256x256xf32> to vector<256x256xf32>
    %cst_63 = arith.constant dense<0.000000e+00> : vector<16x256xf32>
    %56 = tpu.matmul %22, %55, %cst_63 {dimension_numbers = #tpu.dot_dimension_numbers<[1], [0], [0], [1], [0, 0, 1, 1], [], []>} : vector<16x256xf32>, vector<256x256xf32>, vector<16x256xf32> -> vector<16x256xf32>
    %cst_64 = arith.constant dense<0.000000e+00> : vector<16x256xf32>
    %57 = tpu.matmul %53, %56, %cst_64 {dimension_numbers = #tpu.dot_dimension_numbers<[1], [0], [0], [1], [0, 0, 1, 1], [], []>} : vector<16x16xf32>, vector<16x256xf32>, vector<16x256xf32> -> vector<16x256xf32>
    %58 = vector.broadcast %51 : vector<1x256xf32> to vector<16x256xf32>
    %59 = arith.addf %58, %57 : vector<16x256xf32>
    %c1_65 = arith.constant 1 : index
    %c0_66 = arith.constant 0 : index
    %c0_67 = arith.constant 0 : index
    %60 = vector.load %arg16[%c1_65, %c0_66, %c0_67] : memref<3x16x16xf32, #tpu.memory_space<vmem>>, vector<1x16x16xf32>
    %61 = vector.shape_cast %60 : vector<1x16x16xf32> to vector<16x16xf32>
    %c1_68 = arith.constant 1 : index
    %c0_69 = arith.constant 0 : index
    %c0_70 = arith.constant 0 : index
    %62 = vector.load %arg17[%c1_68, %c0_69, %c0_70] : memref<3x256x256xf32, #tpu.memory_space<vmem>>, vector<1x256x256xf32>
    %63 = vector.shape_cast %62 : vector<1x256x256xf32> to vector<256x256xf32>
    %cst_71 = arith.constant dense<0.000000e+00> : vector<16x256xf32>
    %64 = tpu.matmul %22, %63, %cst_71 {dimension_numbers = #tpu.dot_dimension_numbers<[1], [0], [0], [1], [0, 0, 1, 1], [], []>} : vector<16x256xf32>, vector<256x256xf32>, vector<16x256xf32> -> vector<16x256xf32>
    %cst_72 = arith.constant dense<0.000000e+00> : vector<16x256xf32>
    %65 = tpu.matmul %61, %64, %cst_72 {dimension_numbers = #tpu.dot_dimension_numbers<[1], [0], [0], [1], [0, 0, 1, 1], [], []>} : vector<16x16xf32>, vector<16x256xf32>, vector<16x256xf32> -> vector<16x256xf32>
    %66 = arith.addf %59, %65 : vector<16x256xf32>
    %c2_73 = arith.constant 2 : index
    %c0_74 = arith.constant 0 : index
    %c0_75 = arith.constant 0 : index
    %67 = vector.load %arg16[%c2_73, %c0_74, %c0_75] : memref<3x16x16xf32, #tpu.memory_space<vmem>>, vector<1x16x16xf32>
    %68 = vector.shape_cast %67 : vector<1x16x16xf32> to vector<16x16xf32>
    %c2_76 = arith.constant 2 : index
    %c0_77 = arith.constant 0 : index
    %c0_78 = arith.constant 0 : index
    %69 = vector.load %arg17[%c2_76, %c0_77, %c0_78] : memref<3x256x256xf32, #tpu.memory_space<vmem>>, vector<1x256x256xf32>
    %70 = vector.shape_cast %69 : vector<1x256x256xf32> to vector<256x256xf32>
    %cst_79 = arith.constant dense<0.000000e+00> : vector<16x256xf32>
    %71 = tpu.matmul %22, %70, %cst_79 {dimension_numbers = #tpu.dot_dimension_numbers<[1], [0], [0], [1], [0, 0, 1, 1], [], []>} : vector<16x256xf32>, vector<256x256xf32>, vector<16x256xf32> -> vector<16x256xf32>
    %cst_80 = arith.constant dense<0.000000e+00> : vector<16x256xf32>
    %72 = tpu.matmul %68, %71, %cst_80 {dimension_numbers = #tpu.dot_dimension_numbers<[1], [0], [0], [1], [0, 0, 1, 1], [], []>} : vector<16x16xf32>, vector<16x256xf32>, vector<16x256xf32> -> vector<16x256xf32>
    %73 = arith.addf %66, %72 : vector<16x256xf32>
    %c0_81 = arith.constant 0 : index
    %c0_82 = arith.constant 0 : index
    %74 = vector.load %arg21[%c0_81, %c0_82] : memref<1x128xf32, #tpu.memory_space<vmem>>, vector<1x128xf32>
    %c0_83 = arith.constant 0 : index
    %c0_84 = arith.constant 0 : index
    %c0_85 = arith.constant 0 : index
    %75 = vector.load %arg19[%c0_83, %c0_84, %c0_85] : memref<3x8x8xf32, #tpu.memory_space<vmem>>, vector<1x8x8xf32>
    %76 = vector.shape_cast %75 : vector<1x8x8xf32> to vector<8x8xf32>
    %c0_86 = arith.constant 0 : index
    %c0_87 = arith.constant 0 : index
    %c0_88 = arith.constant 0 : index
    %77 = vector.load %arg20[%c0_86, %c0_87, %c0_88] : memref<3x128x128xf32, #tpu.memory_space<vmem>>, vector<1x128x128xf32>
    %78 = vector.shape_cast %77 : vector<1x128x128xf32> to vector<128x128xf32>
    %cst_89 = arith.constant dense<0.000000e+00> : vector<8x128xf32>
    %79 = tpu.matmul %5, %78, %cst_89 {dimension_numbers = #tpu.dot_dimension_numbers<[1], [0], [0], [1], [0, 0, 1, 1], [], []>} : vector<8x128xf32>, vector<128x128xf32>, vector<8x128xf32> -> vector<8x128xf32>
    %cst_90 = arith.constant dense<0.000000e+00> : vector<8x128xf32>
    %80 = tpu.matmul %76, %79, %cst_90 {dimension_numbers = #tpu.dot_dimension_numbers<[1], [0], [0], [1], [0, 0, 1, 1], [], []>} : vector<8x8xf32>, vector<8x128xf32>, vector<8x128xf32> -> vector<8x128xf32>
    %81 = vector.broadcast %74 : vector<1x128xf32> to vector<8x128xf32>
    %82 = arith.addf %81, %80 : vector<8x128xf32>
    %c1_91 = arith.constant 1 : index
    %c0_92 = arith.constant 0 : index
    %c0_93 = arith.constant 0 : index
    %83 = vector.load %arg19[%c1_91, %c0_92, %c0_93] : memref<3x8x8xf32, #tpu.memory_space<vmem>>, vector<1x8x8xf32>
    %84 = vector.shape_cast %83 : vector<1x8x8xf32> to vector<8x8xf32>
    %c1_94 = arith.constant 1 : index
    %c0_95 = arith.constant 0 : index
    %c0_96 = arith.constant 0 : index
    %85 = vector.load %arg20[%c1_94, %c0_95, %c0_96] : memref<3x128x128xf32, #tpu.memory_space<vmem>>, vector<1x128x128xf32>
    %86 = vector.shape_cast %85 : vector<1x128x128xf32> to vector<128x128xf32>
    %cst_97 = arith.constant dense<0.000000e+00> : vector<8x128xf32>
    %87 = tpu.matmul %5, %86, %cst_97 {dimension_numbers = #tpu.dot_dimension_numbers<[1], [0], [0], [1], [0, 0, 1, 1], [], []>} : vector<8x128xf32>, vector<128x128xf32>, vector<8x128xf32> -> vector<8x128xf32>
    %cst_98 = arith.constant dense<0.000000e+00> : vector<8x128xf32>
    %88 = tpu.matmul %84, %87, %cst_98 {dimension_numbers = #tpu.dot_dimension_numbers<[1], [0], [0], [1], [0, 0, 1, 1], [], []>} : vector<8x8xf32>, vector<8x128xf32>, vector<8x128xf32> -> vector<8x128xf32>
    %89 = arith.addf %82, %88 : vector<8x128xf32>
    %c2_99 = arith.constant 2 : index
    %c0_100 = arith.constant 0 : index
    %c0_101 = arith.constant 0 : index
    %90 = vector.load %arg19[%c2_99, %c0_100, %c0_101] : memref<3x8x8xf32, #tpu.memory_space<vmem>>, vector<1x8x8xf32>
    %91 = vector.shape_cast %90 : vector<1x8x8xf32> to vector<8x8xf32>
    %c2_102 = arith.constant 2 : index
    %c0_103 = arith.constant 0 : index
    %c0_104 = arith.constant 0 : index
    %92 = vector.load %arg20[%c2_102, %c0_103, %c0_104] : memref<3x128x128xf32, #tpu.memory_space<vmem>>, vector<1x128x128xf32>
    %93 = vector.shape_cast %92 : vector<1x128x128xf32> to vector<128x128xf32>
    %cst_105 = arith.constant dense<0.000000e+00> : vector<8x128xf32>
    %94 = tpu.matmul %5, %93, %cst_105 {dimension_numbers = #tpu.dot_dimension_numbers<[1], [0], [0], [1], [0, 0, 1, 1], [], []>} : vector<8x128xf32>, vector<128x128xf32>, vector<8x128xf32> -> vector<8x128xf32>
    %cst_106 = arith.constant dense<0.000000e+00> : vector<8x128xf32>
    %95 = tpu.matmul %91, %94, %cst_106 {dimension_numbers = #tpu.dot_dimension_numbers<[1], [0], [0], [1], [0, 0, 1, 1], [], []>} : vector<8x8xf32>, vector<8x128xf32>, vector<8x128xf32> -> vector<8x128xf32>
    %96 = arith.addf %89, %95 : vector<8x128xf32>
    %c0_107 = arith.constant 0 : index
    %c0_108 = arith.constant 0 : index
    %97 = vector.load %arg24[%c0_107, %c0_108] : memref<1x64xf32, #tpu.memory_space<vmem>>, vector<1x64xf32>
    %c0_109 = arith.constant 0 : index
    %c0_110 = arith.constant 0 : index
    %c0_111 = arith.constant 0 : index
    %98 = vector.load %arg22[%c0_109, %c0_110, %c0_111] : memref<3x4x8xf32, #tpu.memory_space<vmem>>, vector<1x4x8xf32>
    %99 = vector.shape_cast %98 : vector<1x4x8xf32> to vector<4x8xf32>
    %c0_112 = arith.constant 0 : index
    %c0_113 = arith.constant 0 : index
    %c0_114 = arith.constant 0 : index
    %100 = vector.load %arg23[%c0_112, %c0_113, %c0_114] : memref<3x128x64xf32, #tpu.memory_space<vmem>>, vector<1x128x64xf32>
    %101 = vector.shape_cast %100 : vector<1x128x64xf32> to vector<128x64xf32>
    %cst_115 = arith.constant dense<0.000000e+00> : vector<8x64xf32>
    %102 = tpu.matmul %96, %101, %cst_115 {dimension_numbers = #tpu.dot_dimension_numbers<[1], [0], [0], [1], [0, 0, 1, 1], [], []>} : vector<8x128xf32>, vector<128x64xf32>, vector<8x64xf32> -> vector<8x64xf32>
    %cst_116 = arith.constant dense<0.000000e+00> : vector<4x64xf32>
    %103 = tpu.matmul %99, %102, %cst_116 {dimension_numbers = #tpu.dot_dimension_numbers<[1], [0], [0], [1], [0, 0, 1, 1], [], []>} : vector<4x8xf32>, vector<8x64xf32>, vector<4x64xf32> -> vector<4x64xf32>
    %104 = vector.broadcast %97 : vector<1x64xf32> to vector<4x64xf32>
    %105 = arith.addf %104, %103 : vector<4x64xf32>
    %c1_117 = arith.constant 1 : index
    %c0_118 = arith.constant 0 : index
    %c0_119 = arith.constant 0 : index
    %106 = vector.load %arg22[%c1_117, %c0_118, %c0_119] : memref<3x4x8xf32, #tpu.memory_space<vmem>>, vector<1x4x8xf32>
    %107 = vector.shape_cast %106 : vector<1x4x8xf32> to vector<4x8xf32>
    %c1_120 = arith.constant 1 : index
    %c0_121 = arith.constant 0 : index
    %c0_122 = arith.constant 0 : index
    %108 = vector.load %arg23[%c1_120, %c0_121, %c0_122] : memref<3x128x64xf32, #tpu.memory_space<vmem>>, vector<1x128x64xf32>
    %109 = vector.shape_cast %108 : vector<1x128x64xf32> to vector<128x64xf32>
    %cst_123 = arith.constant dense<0.000000e+00> : vector<8x64xf32>
    %110 = tpu.matmul %96, %109, %cst_123 {dimension_numbers = #tpu.dot_dimension_numbers<[1], [0], [0], [1], [0, 0, 1, 1], [], []>} : vector<8x128xf32>, vector<128x64xf32>, vector<8x64xf32> -> vector<8x64xf32>
    %cst_124 = arith.constant dense<0.000000e+00> : vector<4x64xf32>
    %111 = tpu.matmul %107, %110, %cst_124 {dimension_numbers = #tpu.dot_dimension_numbers<[1], [0], [0], [1], [0, 0, 1, 1], [], []>} : vector<4x8xf32>, vector<8x64xf32>, vector<4x64xf32> -> vector<4x64xf32>
    %112 = arith.addf %105, %111 : vector<4x64xf32>
    %c2_125 = arith.constant 2 : index
    %c0_126 = arith.constant 0 : index
    %c0_127 = arith.constant 0 : index
    %113 = vector.load %arg22[%c2_125, %c0_126, %c0_127] : memref<3x4x8xf32, #tpu.memory_space<vmem>>, vector<1x4x8xf32>
    %114 = vector.shape_cast %113 : vector<1x4x8xf32> to vector<4x8xf32>
    %c2_128 = arith.constant 2 : index
    %c0_129 = arith.constant 0 : index
    %c0_130 = arith.constant 0 : index
    %115 = vector.load %arg23[%c2_128, %c0_129, %c0_130] : memref<3x128x64xf32, #tpu.memory_space<vmem>>, vector<1x128x64xf32>
    %116 = vector.shape_cast %115 : vector<1x128x64xf32> to vector<128x64xf32>
    %cst_131 = arith.constant dense<0.000000e+00> : vector<8x64xf32>
    %117 = tpu.matmul %96, %116, %cst_131 {dimension_numbers = #tpu.dot_dimension_numbers<[1], [0], [0], [1], [0, 0, 1, 1], [], []>} : vector<8x128xf32>, vector<128x64xf32>, vector<8x64xf32> -> vector<8x64xf32>
    %cst_132 = arith.constant dense<0.000000e+00> : vector<4x64xf32>
    %118 = tpu.matmul %114, %117, %cst_132 {dimension_numbers = #tpu.dot_dimension_numbers<[1], [0], [0], [1], [0, 0, 1, 1], [], []>} : vector<4x8xf32>, vector<8x64xf32>, vector<4x64xf32> -> vector<4x64xf32>
    %119 = arith.addf %112, %118 : vector<4x64xf32>
    %cst_133 = arith.constant 0.000000e+00 : f32
    %120 = vector.broadcast %cst_133 : f32 to vector<4x64xf32>
    %121 = arith.maximumf %119, %120 : vector<4x64xf32>
    %c0_134 = arith.constant 0 : index
    %c0_135 = arith.constant 0 : index
    %122 = vector.load %arg27[%c0_134, %c0_135] : memref<1x32xf32, #tpu.memory_space<vmem>>, vector<1x32xf32>
    %c0_136 = arith.constant 0 : index
    %c0_137 = arith.constant 0 : index
    %c0_138 = arith.constant 0 : index
    %123 = vector.load %arg25[%c0_136, %c0_137, %c0_138] : memref<3x2x4xf32, #tpu.memory_space<vmem>>, vector<1x2x4xf32>
    %124 = vector.shape_cast %123 : vector<1x2x4xf32> to vector<2x4xf32>
    %c0_139 = arith.constant 0 : index
    %c0_140 = arith.constant 0 : index
    %c0_141 = arith.constant 0 : index
    %125 = vector.load %arg26[%c0_139, %c0_140, %c0_141] : memref<3x64x32xf32, #tpu.memory_space<vmem>>, vector<1x64x32xf32>
    %126 = vector.shape_cast %125 : vector<1x64x32xf32> to vector<64x32xf32>
    %cst_142 = arith.constant dense<0.000000e+00> : vector<4x32xf32>
    %127 = tpu.matmul %121, %126, %cst_142 {dimension_numbers = #tpu.dot_dimension_numbers<[1], [0], [0], [1], [0, 0, 1, 1], [], []>} : vector<4x64xf32>, vector<64x32xf32>, vector<4x32xf32> -> vector<4x32xf32>
    %cst_143 = arith.constant dense<0.000000e+00> : vector<2x32xf32>
    %128 = tpu.matmul %124, %127, %cst_143 {dimension_numbers = #tpu.dot_dimension_numbers<[1], [0], [0], [1], [0, 0, 1, 1], [], []>} : vector<2x4xf32>, vector<4x32xf32>, vector<2x32xf32> -> vector<2x32xf32>
    %129 = vector.broadcast %122 : vector<1x32xf32> to vector<2x32xf32>
    %130 = arith.addf %129, %128 : vector<2x32xf32>
    %c1_144 = arith.constant 1 : index
    %c0_145 = arith.constant 0 : index
    %c0_146 = arith.constant 0 : index
    %131 = vector.load %arg25[%c1_144, %c0_145, %c0_146] : memref<3x2x4xf32, #tpu.memory_space<vmem>>, vector<1x2x4xf32>
    %132 = vector.shape_cast %131 : vector<1x2x4xf32> to vector<2x4xf32>
    %c1_147 = arith.constant 1 : index
    %c0_148 = arith.constant 0 : index
    %c0_149 = arith.constant 0 : index
    %133 = vector.load %arg26[%c1_147, %c0_148, %c0_149] : memref<3x64x32xf32, #tpu.memory_space<vmem>>, vector<1x64x32xf32>
    %134 = vector.shape_cast %133 : vector<1x64x32xf32> to vector<64x32xf32>
    %cst_150 = arith.constant dense<0.000000e+00> : vector<4x32xf32>
    %135 = tpu.matmul %121, %134, %cst_150 {dimension_numbers = #tpu.dot_dimension_numbers<[1], [0], [0], [1], [0, 0, 1, 1], [], []>} : vector<4x64xf32>, vector<64x32xf32>, vector<4x32xf32> -> vector<4x32xf32>
    %cst_151 = arith.constant dense<0.000000e+00> : vector<2x32xf32>
    %136 = tpu.matmul %132, %135, %cst_151 {dimension_numbers = #tpu.dot_dimension_numbers<[1], [0], [0], [1], [0, 0, 1, 1], [], []>} : vector<2x4xf32>, vector<4x32xf32>, vector<2x32xf32> -> vector<2x32xf32>
    %137 = arith.addf %130, %136 : vector<2x32xf32>
    %c2_152 = arith.constant 2 : index
    %c0_153 = arith.constant 0 : index
    %c0_154 = arith.constant 0 : index
    %138 = vector.load %arg25[%c2_152, %c0_153, %c0_154] : memref<3x2x4xf32, #tpu.memory_space<vmem>>, vector<1x2x4xf32>
    %139 = vector.shape_cast %138 : vector<1x2x4xf32> to vector<2x4xf32>
    %c2_155 = arith.constant 2 : index
    %c0_156 = arith.constant 0 : index
    %c0_157 = arith.constant 0 : index
    %140 = vector.load %arg26[%c2_155, %c0_156, %c0_157] : memref<3x64x32xf32, #tpu.memory_space<vmem>>, vector<1x64x32xf32>
    %141 = vector.shape_cast %140 : vector<1x64x32xf32> to vector<64x32xf32>
    %cst_158 = arith.constant dense<0.000000e+00> : vector<4x32xf32>
    %142 = tpu.matmul %121, %141, %cst_158 {dimension_numbers = #tpu.dot_dimension_numbers<[1], [0], [0], [1], [0, 0, 1, 1], [], []>} : vector<4x64xf32>, vector<64x32xf32>, vector<4x32xf32> -> vector<4x32xf32>
    %cst_159 = arith.constant dense<0.000000e+00> : vector<2x32xf32>
    %143 = tpu.matmul %139, %142, %cst_159 {dimension_numbers = #tpu.dot_dimension_numbers<[1], [0], [0], [1], [0, 0, 1, 1], [], []>} : vector<2x4xf32>, vector<4x32xf32>, vector<2x32xf32> -> vector<2x32xf32>
    %144 = arith.addf %137, %143 : vector<2x32xf32>
    %c0_160 = arith.constant 0 : index
    %c0_161 = arith.constant 0 : index
    %145 = vector.load %arg28[%c0_160, %c0_161] : memref<32x512xf32, #tpu.memory_space<vmem>>, vector<32x512xf32>
    tpu.vector_store %arg28[%c0_160, %c0_161], %50 {strides = array<i32>} : memref<32x512xf32, #tpu.memory_space<vmem>>, vector<32x512xf32>,
    %c0_162 = arith.constant 0 : index
    %c0_163 = arith.constant 0 : index
    %146 = vector.load %arg29[%c0_162, %c0_163] : memref<16x256xf32, #tpu.memory_space<vmem>>, vector<16x256xf32>
    tpu.vector_store %arg29[%c0_162, %c0_163], %73 {strides = array<i32>} : memref<16x256xf32, #tpu.memory_space<vmem>>, vector<16x256xf32>,
    %c0_164 = arith.constant 0 : index
    %c0_165 = arith.constant 0 : index
    %147 = vector.load %arg30[%c0_164, %c0_165] : memref<8x128xf32, #tpu.memory_space<vmem>>, vector<8x128xf32>
    tpu.vector_store %arg30[%c0_164, %c0_165], %96 {strides = array<i32>} : memref<8x128xf32, #tpu.memory_space<vmem>>, vector<8x128xf32>,
    %c0_166 = arith.constant 0 : index
    %c0_167 = arith.constant 0 : index
    %148 = vector.load %arg31[%c0_166, %c0_167] : memref<4x64xf32, #tpu.memory_space<vmem>>, vector<4x64xf32>
    tpu.vector_store %arg31[%c0_166, %c0_167], %119 {strides = array<i32>} : memref<4x64xf32, #tpu.memory_space<vmem>>, vector<4x64xf32>,
    %c0_168 = arith.constant 0 : index
    %c0_169 = arith.constant 0 : index
    %149 = vector.load %arg32[%c0_168, %c0_169] : memref<2x32xf32, #tpu.memory_space<vmem>>, vector<2x32xf32>
    tpu.vector_store %arg32[%c0_168, %c0_169], %144 {strides = array<i32>} : memref<2x32xf32, #tpu.memory_space<vmem>>, vector<2x32xf32>,
    return
  }
}

</mosaic_0001>

<llo_original>
// kernel: fwd.1
$region0: #{fwd.1}
  #allocation0 [shape = 'u32[]', space=smem, size = 0x4, offset = 0x4, fixed_abs, tag = 'smem constant byte address 0x4 - core index']
  #allocation1 [shape = 'u32[144,128]{1,0:T(1,128)}', space=vmem, size = 0x12000, scoped, tag = 'internal scratch']
  %s0 = inlined_call_operand.smem [shape: u32[33], index: -1, kind: input, shape index: {}]
  %s1 = sld [smem:[%s0]]
  %s2 = scalar_lea.smem %s0, 1
  %s3 = sld [smem:[%s2]]
  %s4 = scalar_lea.smem %s0, 2
  %s5 = sld [smem:[%s4]]
  %s6 = scalar_lea.smem %s0, 3
  %s7 = sld [smem:[%s6]]
  %s8 = scalar_lea.smem %s0, 4
  %s9 = sld [smem:[%s8]]
  %s10 = scalar_lea.smem %s0, 5
  %s11 = sld [smem:[%s10]]
  %s12 = scalar_lea.smem %s0, 6
  %s13 = sld [smem:[%s12]]
  %s14 = scalar_lea.smem %s0, 7
  %s15 = sld [smem:[%s14]]
  %s16 = scalar_lea.smem %s0, 8
  %s17 = sld [smem:[%s16]]
  %s18 = scalar_lea.smem %s0, 9
  %s19 = sld [smem:[%s18]]
  %s20 = scalar_lea.smem %s0, 10
  %s21 = sld [smem:[%s20]]
  %s22 = scalar_lea.smem %s0, 11
  %s23 = sld [smem:[%s22]]
  %s24 = scalar_lea.smem %s0, 12
  %s25 = sld [smem:[%s24]]
  %s26 = scalar_lea.smem %s0, 13
  %s27 = sld [smem:[%s26]]
  %s28 = scalar_lea.smem %s0, 14
  %s29 = sld [smem:[%s28]]
  %s30 = scalar_lea.smem %s0, 15
  %s31 = sld [smem:[%s30]]
  %s32 = scalar_lea.smem %s0, 16
  %s33 = sld [smem:[%s32]]
  %s34 = scalar_lea.smem %s0, 17
  %s35 = sld [smem:[%s34]]
  %s36 = scalar_lea.smem %s0, 18
  %s37 = sld [smem:[%s36]]
  %s38 = scalar_lea.smem %s0, 19
  %s39 = sld [smem:[%s38]]
  %s40 = scalar_lea.smem %s0, 20
  %s41 = sld [smem:[%s40]]
  %s42 = scalar_lea.smem %s0, 21
  %s43 = sld [smem:[%s42]]
  %s44 = scalar_lea.smem %s0, 22
  %s45 = sld [smem:[%s44]]
  %s46 = scalar_lea.smem %s0, 23
  %s47 = sld [smem:[%s46]]
  %s48 = scalar_lea.smem %s0, 24
  %s49 = sld [smem:[%s48]]
  %s50 = scalar_lea.smem %s0, 25
  %s51 = sld [smem:[%s50]]
  %s52 = scalar_lea.smem %s0, 26
  %s53 = sld [smem:[%s52]]
  %s54 = scalar_lea.smem %s0, 27
  %s55 = sld [smem:[%s54]]
  %s56 = scalar_lea.smem %s0, 28
  %s57 = sld [smem:[%s56]]
  %s58 = scalar_lea.smem %s0, 29
  %s59 = sld [smem:[%s58]]
  %s60 = scalar_lea.smem %s0, 30
  %s61 = sld [smem:[%s60]]
  %s62 = scalar_lea.smem %s0, 31
  %s63 = sld [smem:[%s62]]
  %s64 = scalar_lea.smem %s0, 32
  %s65 = sld [smem:[%s64]]
  %66 = xla_tuple %s57, %s59, %s61, %s63, %s65
  %s67 = sld [smem:[#allocation0]]
  $region238: #{fwd.1} parent=0
    _
  %s69 = ssub.s32 1, %s67
  %s70 = scalar_select 0, %s69, %s67
  $region1: #{fwd.1} parent=0
    #allocation2 [shape = 'u8[2097152]{0}', space=vmem, size = 0x200000, scoped, tag = 'input window, operand 3, single buffered']
    #allocation3 [shape = 's32[1]{0}', space=sflag, size = 0x4, scoped, tag = 'scoped memory for fwd.1']
    #allocation4 [shape = 's32[1]{0}', space=sflag, size = 0x4, scoped, tag = 'scoped memory for fwd.1']
    #allocation5 [shape = 'u8[1048576]{0}', space=vmem, size = 0x100000, scoped, tag = 'input window, operand 4, single buffered']
    #allocation6 [shape = 's32[1]{0}', space=sflag, size = 0x4, scoped, tag = 'scoped memory for fwd.1']
    #allocation7 [shape = 'u8[524288]{0}', space=vmem, size = 0x80000, scoped, tag = 'input window, operand 5, single buffered']
    #allocation8 [shape = 'u8[2048]{0}', space=vmem, size = 0x800, scoped, tag = 'input window, operand 6, single buffered']
    #allocation9 [shape = 's32[1]{0}', space=sflag, size = 0x4, scoped, tag = 'scoped memory for fwd.1']
    #allocation10 [shape = 'u8[1024]{0}', space=vmem, size = 0x400, scoped, tag = 'input window, operand 7, single buffered']
    #allocation11 [shape = 'u8[512]{0}', space=vmem, size = 0x400, scoped, tag = 'input window, operand 8, single buffered']
    #allocation12 [shape = 's32[1]{0}', space=sflag, size = 0x4, scoped, tag = 'scoped memory for fwd.1']
    #allocation13 [shape = 'u8[131072]{0}', space=vmem, size = 0x20000, scoped, tag = 'input window, operand 10, single buffered']
    #allocation14 [shape = 'u8[524288]{0}', space=vmem, size = 0x80000, scoped, tag = 'input window, operand 12, single buffered']
    #allocation15 [shape = 's32[1]{0}', space=sflag, size = 0x4, scoped, tag = 'scoped memory for fwd.1']
    #allocation16 [shape = 'u8[49152]{0}', space=vmem, size = 0xc000, scoped, tag = 'input window, operand 13, single buffered']
    #allocation17 [shape = 'u8[3145728]{0}', space=vmem, size = 0x300000, scoped, tag = 'input window, operand 14, single buffered']
    #allocation18 [shape = 's32[1]{0}', space=sflag, size = 0x4, scoped, tag = 'scoped memory for fwd.1']
    #allocation19 [shape = 'u8[2048]{0}', space=vmem, size = 0x800, scoped, tag = 'input window, operand 15, single buffered']
    #allocation20 [shape = 'u8[24576]{0}', space=vmem, size = 0x6000, scoped, tag = 'input window, operand 16, single buffered']
    #allocation21 [shape = 's32[1]{0}', space=sflag, size = 0x4, scoped, tag = 'scoped memory for fwd.1']
    #allocation22 [shape = 'u8[786432]{0}', space=vmem, size = 0xc0000, scoped, tag = 'input window, operand 17, single buffered']
    #allocation23 [shape = 'u8[1024]{0}', space=vmem, size = 0x400, scoped, tag = 'input window, operand 18, single buffered']
    #allocation24 [shape = 's32[1]{0}', space=sflag, size = 0x4, scoped, tag = 'scoped memory for fwd.1']
    #allocation25 [shape = 'u8[12288]{0}', space=vmem, size = 0x3000, scoped, tag = 'input window, operand 19, single buffered']
    #allocation26 [shape = 'u8[196608]{0}', space=vmem, size = 0x30000, scoped, tag = 'input window, operand 20, single buffered']
    #allocation27 [shape = 's32[1]{0}', space=sflag, size = 0x4, scoped, tag = 'scoped memory for fwd.1']
    #allocation28 [shape = 'u8[512]{0}', space=vmem, size = 0x400, scoped, tag = 'input window, operand 21, single buffered']
    #allocation29 [shape = 'u8[6144]{0}', space=vmem, size = 0x1800, scoped, tag = 'input window, operand 22, single buffered']
    #allocation30 [shape = 's32[1]{0}', space=sflag, size = 0x4, scoped, tag = 'scoped memory for fwd.1']
    #allocation31 [shape = 'u8[512]{0}', space=vmem, size = 0x400, scoped, tag = 'input window, operand 24, single buffered']
    #allocation32 [shape = 'u8[3072]{0}', space=vmem, size = 0xc00, scoped, tag = 'input window, operand 25, single buffered']
    #allocation33 [shape = 's32[1]{0}', space=sflag, size = 0x4, scoped, tag = 'scoped memory for fwd.1']
    #allocation34 [shape = 'u8[512]{0}', space=vmem, size = 0x400, scoped, tag = 'input window, operand 27, single buffered']
    #allocation35 [shape = 'u8[1024]{0}', space=vmem, size = 0x400, scoped, tag = 'output window, operand 4, single buffered']
    %71 = vsyncpa [#allocation3], 0
    %72 = vsyncpa [#allocation6], 0
    %73 = vsyncpa [#allocation9], 0
    %74 = vsyncpa [#allocation12], 0
    %75 = vsyncpa [#allocation15], 0
    %76 = vsyncpa [#allocation18], 0
    %77 = vsyncpa [#allocation21], 0
    %78 = vsyncpa [#allocation24], 0
    %79 = vsyncpa [#allocation27], 0
    %80 = vsyncpa [#allocation30], 0
    %81 = vsyncpa [#allocation33], 0
    %82 = vsyncpa [#allocation4], 0
    // Predicated region
    $region2: #{fwd.1} parent=1 // pred_check
      _
    $region3: #{fwd.1} parent=1 // pred_check_branch
      %84 = sbr.rel (0) target = $region5
    $region4: #{fwd.1} parent=1 // pred_region
      _
    $region5: #{fwd.1} parent=1 // pred_fallthru
      _
    // Predicated region
    $region6: #{fwd.1} parent=1 // pred_check
      _
    $region7: #{fwd.1} parent=1 // pred_check_branch
      %86 = sbr.rel (0) target = $region9
    $region8: #{fwd.1} parent=1 // pred_region
      _
    $region9: #{fwd.1} parent=1 // pred_fallthru
      _
    // Predicated region
    $region10: #{fwd.1} parent=1 // pred_check
      _
    $region11: #{fwd.1} parent=1 // pred_check_branch
      %88 = sbr.rel (0) target = $region13
    $region12: #{fwd.1} parent=1 // pred_region
      _
    $region13: #{fwd.1} parent=1 // pred_fallthru
      _
    // Predicated region
    $region14: #{fwd.1} parent=1 // pred_check
      _
    $region15: #{fwd.1} parent=1 // pred_check_branch
      %90 = sbr.rel (0) target = $region17
    $region16: #{fwd.1} parent=1 // pred_region
      %s92 = ssub.s32 65536, 65536
      %93 = vsyncadd [#allocation3], %s92
      %s94 = sshll.u32 [#allocation2], 4
      %s95 = int_to_ptr.vmem [resolvable:$true] %s94
      %100 = dma.hbm_to_vmem [thread:$0]  %s7, 65536, %s95, [#allocation3], 512, 512, 32
    $region17: #{fwd.1} parent=1 // pred_fallthru
      _
    // Predicated region
    $region18: #{fwd.1} parent=1 // pred_check
      _
    $region19: #{fwd.1} parent=1 // pred_check_branch
      %102 = sbr.rel (0) target = $region21
    $region20: #{fwd.1} parent=1 // pred_region
      %s104 = ssub.s32 32768, 32768
      %105 = vsyncadd [#allocation6], %s104
      %s106 = sshll.u32 [#allocation5], 4
      %s107 = int_to_ptr.vmem [resolvable:$true] %s106
      %112 = dma.hbm_to_vmem [thread:$0]  %s9, 32768, %s107, [#allocation6], 256, 256, 16
    $region21: #{fwd.1} parent=1 // pred_fallthru
      _
    // Predicated region
    $region22: #{fwd.1} parent=1 // pred_check
      _
    $region23: #{fwd.1} parent=1 // pred_check_branch
      %114 = sbr.rel (0) target = $region25
    $region24: #{fwd.1} parent=1 // pred_region
      %s116 = ssub.s32 16384, 16384
      %117 = vsyncadd [#allocation6], %s116
      %s118 = sshll.u32 [#allocation7], 4
      %s119 = int_to_ptr.vmem [resolvable:$true] %s118
      %124 = dma.hbm_to_vmem [thread:$0]  %s11, 16384, %s119, [#allocation6], 128, 128, 8
    $region25: #{fwd.1} parent=1 // pred_fallthru
      _
    // Predicated region
    $region26: #{fwd.1} parent=1 // pred_check
      _
    $region27: #{fwd.1} parent=1 // pred_check_branch
      %126 = sbr.rel (0) target = $region29
    $region28: #{fwd.1} parent=1 // pred_region
      %s128 = ssub.s32 64, 64
      %129 = vsyncadd [#allocation9], %s128
      %s131 = sshll.u32 [#allocation8], 4
      %s132 = int_to_ptr.vmem [resolvable:$true] %s131
      %134 = dma.hbm_to_vmem [thread:$0]  %s13, 64, %s132, [#allocation9]
    $region29: #{fwd.1} parent=1 // pred_fallthru
      _
    // Predicated region
    $region30: #{fwd.1} parent=1 // pred_check
      _
    $region31: #{fwd.1} parent=1 // pred_check_branch
      %136 = sbr.rel (0) target = $region33
    $region32: #{fwd.1} parent=1 // pred_region
      %s138 = ssub.s32 32, 32
      %139 = vsyncadd [#allocation9], %s138
      %s141 = sshll.u32 [#allocation10], 4
      %s142 = int_to_ptr.vmem [resolvable:$true] %s141
      %144 = dma.hbm_to_vmem [thread:$0]  %s15, 32, %s142, [#allocation9]
    $region33: #{fwd.1} parent=1 // pred_fallthru
      _
    // Predicated region
    $region34: #{fwd.1} parent=1 // pred_check
      _
    $region35: #{fwd.1} parent=1 // pred_check_branch
      %146 = sbr.rel (0) target = $region37
    $region36: #{fwd.1} parent=1 // pred_region
      %s148 = ssub.s32 16, 16
      %149 = vsyncadd [#allocation12], %s148
      %s151 = sshll.u32 [#allocation11], 4
      %s152 = int_to_ptr.vmem [resolvable:$true] %s151
      %154 = dma.hbm_to_vmem [thread:$0]  %s17, 16, %s152, [#allocation12]
    $region37: #{fwd.1} parent=1 // pred_fallthru
      _
    // Predicated region
    $region38: #{fwd.1} parent=1 // pred_check
      _
    $region39: #{fwd.1} parent=1 // pred_check_branch
      %156 = sbr.rel (0) target = $region41
    $region40: #{fwd.1} parent=1 // pred_region
      _
    $region41: #{fwd.1} parent=1 // pred_fallthru
      _
    // Predicated region
    $region42: #{fwd.1} parent=1 // pred_check
      _
    $region43: #{fwd.1} parent=1 // pred_check_branch
      %158 = sbr.rel (0) target = $region45
    $region44: #{fwd.1} parent=1 // pred_region
      %s160 = ssub.s32 4096, 4096
      %161 = vsyncadd [#allocation12], %s160
      %s162 = sshll.u32 [#allocation13], 4
      %s163 = int_to_ptr.vmem [resolvable:$true] %s162
      %168 = dma.hbm_to_vmem [thread:$0]  %s21, 4096, %s163, [#allocation12], 256, 256, 16
    $region45: #{fwd.1} parent=1 // pred_fallthru
      _
    // Predicated region
    $region46: #{fwd.1} parent=1 // pred_check
      _
    $region47: #{fwd.1} parent=1 // pred_check_branch
      %170 = sbr.rel (0) target = $region49
    $region48: #{fwd.1} parent=1 // pred_region
      _
    $region49: #{fwd.1} parent=1 // pred_fallthru
      _
    // Predicated region
    $region50: #{fwd.1} parent=1 // pred_check
      _
    $region51: #{fwd.1} parent=1 // pred_check_branch
      %172 = sbr.rel (0) target = $region53
    $region52: #{fwd.1} parent=1 // pred_region
      %s174 = ssub.s32 16384, 16384
      %175 = vsyncadd [#allocation15], %s174
      %s176 = sshll.u32 [#allocation14], 4
      %s177 = int_to_ptr.vmem [resolvable:$true] %s176
      %182 = dma.hbm_to_vmem [thread:$0]  %s25, 16384, %s177, [#allocation15], 512, 512, 32
    $region53: #{fwd.1} parent=1 // pred_fallthru
      _
    // Predicated region
    $region54: #{fwd.1} parent=1 // pred_check
      _
    $region55: #{fwd.1} parent=1 // pred_check_branch
      %184 = sbr.rel (0) target = $region57
    $region56: #{fwd.1} parent=1 // pred_region
      %s186 = ssub.s32 1536, 1536
      %187 = vsyncadd [#allocation15], %s186
      %s188 = sshll.u32 [#allocation16], 4
      %s189 = int_to_ptr.vmem [resolvable:$true] %s188
      %194 = dma.hbm_to_vmem [thread:$0]  %s27, 1536, %s189, [#allocation15], 128, 128, 8
    $region57: #{fwd.1} parent=1 // pred_fallthru
      _
    // Predicated region
    $region58: #{fwd.1} parent=1 // pred_check
      _
    $region59: #{fwd.1} parent=1 // pred_check_branch
      %196 = sbr.rel (0) target = $region61
    $region60: #{fwd.1} parent=1 // pred_region
      %s198 = ssub.s32 98304, 98304
      %199 = vsyncadd [#allocation18], %s198
      %s200 = sshll.u32 [#allocation17], 4
      %s201 = int_to_ptr.vmem [resolvable:$true] %s200
      %206 = dma.hbm_to_vmem [thread:$0]  %s29, 98304, %s201, [#allocation18], 512, 512, 32
    $region61: #{fwd.1} parent=1 // pred_fallthru
      _
    // Predicated region
    $region62: #{fwd.1} parent=1 // pred_check
      _
    $region63: #{fwd.1} parent=1 // pred_check_branch
      %208 = sbr.rel (0) target = $region65
    $region64: #{fwd.1} parent=1 // pred_region
      %s210 = ssub.s32 64, 64
      %211 = vsyncadd [#allocation18], %s210
      %s213 = sshll.u32 [#allocation19], 4
      %s214 = int_to_ptr.vmem [resolvable:$true] %s213
      %216 = dma.hbm_to_vmem [thread:$0]  %s31, 64, %s214, [#allocation18]
    $region65: #{fwd.1} parent=1 // pred_fallthru
      _
    // Predicated region
    $region66: #{fwd.1} parent=1 // pred_check
      _
    $region67: #{fwd.1} parent=1 // pred_check_branch
      %218 = sbr.rel (0) target = $region69
    $region68: #{fwd.1} parent=1 // pred_region
      %s220 = ssub.s32 768, 768
      %221 = vsyncadd [#allocation21], %s220
      %s222 = sshll.u32 [#allocation20], 4
      %s223 = int_to_ptr.vmem [resolvable:$true] %s222
      %228 = dma.hbm_to_vmem [thread:$0]  %s33, 768, %s223, [#allocation21], 128, 128, 8
    $region69: #{fwd.1} parent=1 // pred_fallthru
      _
    // Predicated region
    $region70: #{fwd.1} parent=1 // pred_check
      _
    $region71: #{fwd.1} parent=1 // pred_check_branch
      %230 = sbr.rel (0) target = $region73
    $region72: #{fwd.1} parent=1 // pred_region
      %s232 = ssub.s32 24576, 24576
      %233 = vsyncadd [#allocation21], %s232
      %s234 = sshll.u32 [#allocation22], 4
      %s235 = int_to_ptr.vmem [resolvable:$true] %s234
      %240 = dma.hbm_to_vmem [thread:$0]  %s35, 24576, %s235, [#allocation21], 256, 256, 16
    $region73: #{fwd.1} parent=1 // pred_fallthru
      _
    // Predicated region
    $region74: #{fwd.1} parent=1 // pred_check
      _
    $region75: #{fwd.1} parent=1 // pred_check_branch
      %242 = sbr.rel (0) target = $region77
    $region76: #{fwd.1} parent=1 // pred_region
      %s244 = ssub.s32 32, 32
      %245 = vsyncadd [#allocation24], %s244
      %s247 = sshll.u32 [#allocation23], 4
      %s248 = int_to_ptr.vmem [resolvable:$true] %s247
      %250 = dma.hbm_to_vmem [thread:$0]  %s37, 32, %s248, [#allocation24]
    $region77: #{fwd.1} parent=1 // pred_fallthru
      _
    // Predicated region
    $region78: #{fwd.1} parent=1 // pred_check
      _
    $region79: #{fwd.1} parent=1 // pred_check_branch
      %252 = sbr.rel (0) target = $region81
    $region80: #{fwd.1} parent=1 // pred_region
      %s254 = ssub.s32 384, 384
      %255 = vsyncadd [#allocation24], %s254
      %s256 = sshll.u32 [#allocation25], 4
      %s257 = int_to_ptr.vmem [resolvable:$true] %s256
      %262 = dma.hbm_to_vmem [thread:$0]  %s39, 384, %s257, [#allocation24], 128, 128, 8
    $region81: #{fwd.1} parent=1 // pred_fallthru
      _
    // Predicated region
    $region82: #{fwd.1} parent=1 // pred_check
      _
    $region83: #{fwd.1} parent=1 // pred_check_branch
      %264 = sbr.rel (0) target = $region85
    $region84: #{fwd.1} parent=1 // pred_region
      %s266 = ssub.s32 6144, 6144
      %267 = vsyncadd [#allocation27], %s266
      %s268 = sshll.u32 [#allocation26], 4
      %s269 = int_to_ptr.vmem [resolvable:$true] %s268
      %274 = dma.hbm_to_vmem [thread:$0]  %s41, 6144, %s269, [#allocation27], 128, 128, 8
    $region85: #{fwd.1} parent=1 // pred_fallthru
      _
    // Predicated region
    $region86: #{fwd.1} parent=1 // pred_check
      _
    $region87: #{fwd.1} parent=1 // pred_check_branch
      %276 = sbr.rel (0) target = $region89
    $region88: #{fwd.1} parent=1 // pred_region
      %s278 = ssub.s32 16, 16
      %279 = vsyncadd [#allocation27], %s278
      %s281 = sshll.u32 [#allocation28], 4
      %s282 = int_to_ptr.vmem [resolvable:$true] %s281
      %284 = dma.hbm_to_vmem [thread:$0]  %s43, 16, %s282, [#allocation27]
    $region89: #{fwd.1} parent=1 // pred_fallthru
      _
    // Predicated region
    $region90: #{fwd.1} parent=1 // pred_check
      _
    $region91: #{fwd.1} parent=1 // pred_check_branch
      %286 = sbr.rel (0) target = $region93
    $region92: #{fwd.1} parent=1 // pred_region
      %s288 = ssub.s32 192, 192
      %289 = vsyncadd [#allocation30], %s288
      %s290 = sshll.u32 [#allocation29], 4
      %s291 = int_to_ptr.vmem [resolvable:$true] %s290
      %296 = dma.hbm_to_vmem [thread:$0]  %s45, 192, %s291, [#allocation30], 64, 64, 4
    $region93: #{fwd.1} parent=1 // pred_fallthru
      _
    // Predicated region
    $region94: #{fwd.1} parent=1 // pred_check
      _
    $region95: #{fwd.1} parent=1 // pred_check_branch
      %298 = sbr.rel (0) target = $region97
    $region96: #{fwd.1} parent=1 // pred_region
      _
    $region97: #{fwd.1} parent=1 // pred_fallthru
      _
    // Predicated region
    $region98: #{fwd.1} parent=1 // pred_check
      _
    $region99: #{fwd.1} parent=1 // pred_check_branch
      %300 = sbr.rel (0) target = $region101
    $region100: #{fwd.1} parent=1 // pred_region
      %s302 = ssub.s32 16, 16
      %303 = vsyncadd [#allocation30], %s302
      %s305 = sshll.u32 [#allocation31], 4
      %s306 = int_to_ptr.vmem [resolvable:$true] %s305
      %308 = dma.hbm_to_vmem [thread:$0]  %s49, 16, %s306, [#allocation30]
    $region101: #{fwd.1} parent=1 // pred_fallthru
      _
    // Predicated region
    $region102: #{fwd.1} parent=1 // pred_check
      _
    $region103: #{fwd.1} parent=1 // pred_check_branch
      %310 = sbr.rel (0) target = $region105
    $region104: #{fwd.1} parent=1 // pred_region
      %s312 = ssub.s32 96, 96
      %313 = vsyncadd [#allocation33], %s312
      %s314 = sshll.u32 [#allocation32], 4
      %s315 = int_to_ptr.vmem [resolvable:$true] %s314
      %320 = dma.hbm_to_vmem [thread:$0]  %s51, 96, %s315, [#allocation33], 32, 32, 2
    $region105: #{fwd.1} parent=1 // pred_fallthru
      _
    // Predicated region
    $region106: #{fwd.1} parent=1 // pred_check
      _
    $region107: #{fwd.1} parent=1 // pred_check_branch
      %322 = sbr.rel (0) target = $region109
    $region108: #{fwd.1} parent=1 // pred_region
      _
    $region109: #{fwd.1} parent=1 // pred_fallthru
      _
    // Predicated region
    $region110: #{fwd.1} parent=1 // pred_check
      _
    $region111: #{fwd.1} parent=1 // pred_check_branch
      %324 = sbr.rel (0) target = $region113
    $region112: #{fwd.1} parent=1 // pred_region
      %s326 = ssub.s32 16, 16
      %327 = vsyncadd [#allocation33], %s326
      %s329 = sshll.u32 [#allocation34], 4
      %s330 = int_to_ptr.vmem [resolvable:$true] %s329
      %332 = dma.hbm_to_vmem [thread:$0]  %s55, 16, %s330, [#allocation33]
    $region113: #{fwd.1} parent=1 // pred_fallthru
      _
    // Predicated region
    $region114: #{fwd.1} parent=1 // pred_check
      _
    $region115: #{fwd.1} parent=1 // pred_check_branch
      %334 = sbr.rel (0) target = $region117
    $region116: #{fwd.1} parent=1 // pred_region
      %335 = dma.done [#allocation3], 65536
    $region117: #{fwd.1} parent=1 // pred_fallthru
      _
    // Predicated region
    $region118: #{fwd.1} parent=1 // pred_check
      _
    $region119: #{fwd.1} parent=1 // pred_check_branch
      %337 = sbr.rel (0) target = $region121
    $region120: #{fwd.1} parent=1 // pred_region
      %338 = dma.done [#allocation6], 32768
    $region121: #{fwd.1} parent=1 // pred_fallthru
      _
    // Predicated region
    $region122: #{fwd.1} parent=1 // pred_check
      _
    $region123: #{fwd.1} parent=1 // pred_check_branch
      %340 = sbr.rel (0) target = $region125
    $region124: #{fwd.1} parent=1 // pred_region
      %341 = dma.done [#allocation6], 16384
    $region125: #{fwd.1} parent=1 // pred_fallthru
      _
    // Predicated region
    $region126: #{fwd.1} parent=1 // pred_check
      _
    $region127: #{fwd.1} parent=1 // pred_check_branch
      %343 = sbr.rel (0) target = $region129
    $region128: #{fwd.1} parent=1 // pred_region
      %344 = dma.done [#allocation9], 64
    $region129: #{fwd.1} parent=1 // pred_fallthru
      _
    // Predicated region
    $region130: #{fwd.1} parent=1 // pred_check
      _
    $region131: #{fwd.1} parent=1 // pred_check_branch
      %346 = sbr.rel (0) target = $region133
    $region132: #{fwd.1} parent=1 // pred_region
      %347 = dma.done [#allocation9], 32
    $region133: #{fwd.1} parent=1 // pred_fallthru
      _
    // Predicated region
    $region134: #{fwd.1} parent=1 // pred_check
      _
    $region135: #{fwd.1} parent=1 // pred_check_branch
      %349 = sbr.rel (0) target = $region137
    $region136: #{fwd.1} parent=1 // pred_region
      %350 = dma.done [#allocation12], 16
    $region137: #{fwd.1} parent=1 // pred_fallthru
      _
    // Predicated region
    $region138: #{fwd.1} parent=1 // pred_check
      _
    $region139: #{fwd.1} parent=1 // pred_check_branch
      %352 = sbr.rel (0) target = $region141
    $region140: #{fwd.1} parent=1 // pred_region
      %353 = dma.done [#allocation12], 4096
    $region141: #{fwd.1} parent=1 // pred_fallthru
      _
    // Predicated region
    $region142: #{fwd.1} parent=1 // pred_check
      _
    $region143: #{fwd.1} parent=1 // pred_check_branch
      %355 = sbr.rel (0) target = $region145
    $region144: #{fwd.1} parent=1 // pred_region
      %356 = dma.done [#allocation15], 16384
    $region145: #{fwd.1} parent=1 // pred_fallthru
      _
    // Predicated region
    $region146: #{fwd.1} parent=1 // pred_check
      _
    $region147: #{fwd.1} parent=1 // pred_check_branch
      %358 = sbr.rel (0) target = $region149
    $region148: #{fwd.1} parent=1 // pred_region
      %359 = dma.done [#allocation15], 1536
    $region149: #{fwd.1} parent=1 // pred_fallthru
      _
    // Predicated region
    $region150: #{fwd.1} parent=1 // pred_check
      _
    $region151: #{fwd.1} parent=1 // pred_check_branch
      %361 = sbr.rel (0) target = $region153
    $region152: #{fwd.1} parent=1 // pred_region
      %362 = dma.done [#allocation18], 98304
    $region153: #{fwd.1} parent=1 // pred_fallthru
      _
    // Predicated region
    $region154: #{fwd.1} parent=1 // pred_check
      _
    $region155: #{fwd.1} parent=1 // pred_check_branch
      %364 = sbr.rel (0) target = $region157
    $region156: #{fwd.1} parent=1 // pred_region
      %365 = dma.done [#allocation18], 64
    $region157: #{fwd.1} parent=1 // pred_fallthru
      _
    // Predicated region
    $region158: #{fwd.1} parent=1 // pred_check
      _
    $region159: #{fwd.1} parent=1 // pred_check_branch
      %367 = sbr.rel (0) target = $region161
    $region160: #{fwd.1} parent=1 // pred_region
      %368 = dma.done [#allocation21], 768
    $region161: #{fwd.1} parent=1 // pred_fallthru
      _
    // Predicated region
    $region162: #{fwd.1} parent=1 // pred_check
      _
    $region163: #{fwd.1} parent=1 // pred_check_branch
      %370 = sbr.rel (0) target = $region165
    $region164: #{fwd.1} parent=1 // pred_region
      %371 = dma.done [#allocation21], 24576
    $region165: #{fwd.1} parent=1 // pred_fallthru
      _
    // Predicated region
    $region166: #{fwd.1} parent=1 // pred_check
      _
    $region167: #{fwd.1} parent=1 // pred_check_branch
      %373 = sbr.rel (0) target = $region169
    $region168: #{fwd.1} parent=1 // pred_region
      %374 = dma.done [#allocation24], 32
    $region169: #{fwd.1} parent=1 // pred_fallthru
      _
    // Predicated region
    $region170: #{fwd.1} parent=1 // pred_check
      _
    $region171: #{fwd.1} parent=1 // pred_check_branch
      %376 = sbr.rel (0) target = $region173
    $region172: #{fwd.1} parent=1 // pred_region
      %377 = dma.done [#allocation24], 384
    $region173: #{fwd.1} parent=1 // pred_fallthru
      _
    // Predicated region
    $region174: #{fwd.1} parent=1 // pred_check
      _
    $region175: #{fwd.1} parent=1 // pred_check_branch
      %379 = sbr.rel (0) target = $region177
    $region176: #{fwd.1} parent=1 // pred_region
      %380 = dma.done [#allocation27], 6144
    $region177: #{fwd.1} parent=1 // pred_fallthru
      _
    // Predicated region
    $region178: #{fwd.1} parent=1 // pred_check
      _
    $region179: #{fwd.1} parent=1 // pred_check_branch
      %382 = sbr.rel (0) target = $region181
    $region180: #{fwd.1} parent=1 // pred_region
      %383 = dma.done [#allocation27], 16
    $region181: #{fwd.1} parent=1 // pred_fallthru
      _
    // Predicated region
    $region182: #{fwd.1} parent=1 // pred_check
      _
    $region183: #{fwd.1} parent=1 // pred_check_branch
      %385 = sbr.rel (0) target = $region185
    $region184: #{fwd.1} parent=1 // pred_region
      %386 = dma.done [#allocation30], 192
    $region185: #{fwd.1} parent=1 // pred_fallthru
      _
    // Predicated region
    $region186: #{fwd.1} parent=1 // pred_check
      _
    $region187: #{fwd.1} parent=1 // pred_check_branch
      %388 = sbr.rel (0) target = $region189
    $region188: #{fwd.1} parent=1 // pred_region
      %389 = dma.done [#allocation30], 16
    $region189: #{fwd.1} parent=1 // pred_fallthru
      _
    // Predicated region
    $region190: #{fwd.1} parent=1 // pred_check
      _
    $region191: #{fwd.1} parent=1 // pred_check_branch
      %391 = sbr.rel (0) target = $region193
    $region192: #{fwd.1} parent=1 // pred_region
      %392 = dma.done [#allocation33], 96
    $region193: #{fwd.1} parent=1 // pred_fallthru
      _
    // Predicated region
    $region194: #{fwd.1} parent=1 // pred_check
      _
    $region195: #{fwd.1} parent=1 // pred_check_branch
      %394 = sbr.rel (0) target = $region197
    $region196: #{fwd.1} parent=1 // pred_region
      %395 = dma.done [#allocation33], 16
    $region197: #{fwd.1} parent=1 // pred_fallthru
      _
    %v396 = vld [vmem:[%s5] sm:$0xff]
    %v397 = vld [vmem:[%s5 + $0x8] sm:$0xff]
    %v398 = vld [vmem:[%s5 + $0x10] sm:$0xff]
    %v399 = vld [vmem:[%s5 + $0x18] sm:$0xff]
    %v400 = vld [vmem:[%s5 + $0x20] sm:$0xff]
    %v401 = vld [vmem:[%s5 + $0x28] sm:$0xff]
    %v402 = vld [vmem:[%s5 + $0x30] sm:$0xff]
    %v403 = vld [vmem:[%s5 + $0x38] sm:$0xff]
    %v404 = vld [vmem:[#allocation7] sm:$0xff]
    %v405 = vld [vmem:[#allocation7 + $0x8] sm:$0xff]
    %v406 = vld [vmem:[#allocation7 + $0x10] sm:$0xff]
    %v407 = vld [vmem:[#allocation7 + $0x18] sm:$0xff]
    %v408 = vld [vmem:[#allocation7 + $0x20] sm:$0xff]
    %v409 = vld [vmem:[#allocation7 + $0x28] sm:$0xff]
    %v410 = vld [vmem:[#allocation7 + $0x30] sm:$0xff]
    %v411 = vld [vmem:[#allocation7 + $0x38] sm:$0xff]
    %v412 = vld [vmem:[#allocation7 + $0x40] sm:$0xff]
    %v413 = vld [vmem:[#allocation7 + $0x48] sm:$0xff]
    %v414 = vld [vmem:[#allocation7 + $0x50] sm:$0xff]
    %v415 = vld [vmem:[#allocation7 + $0x58] sm:$0xff]
    %v416 = vld [vmem:[#allocation7 + $0x60] sm:$0xff]
    %v417 = vld [vmem:[#allocation7 + $0x68] sm:$0xff]
    %v418 = vld [vmem:[#allocation7 + $0x70] sm:$0xff]
    %v419 = vld [vmem:[#allocation7 + $0x78] sm:$0xff]
    %v420 = vld [vmem:[#allocation7 + $0x80] sm:$0xff]
    %v421 = vld [vmem:[#allocation7 + $0x88] sm:$0xff]
    %v422 = vld [vmem:[#allocation7 + $0x90] sm:$0xff]
    %v423 = vld [vmem:[#allocation7 + $0x98] sm:$0xff]
    %v424 = vld [vmem:[#allocation7 + $0xa0] sm:$0xff]
    %v425 = vld [vmem:[#allocation7 + $0xa8] sm:$0xff]
    %v426 = vld [vmem:[#allocation7 + $0xb0] sm:$0xff]
    %v427 = vld [vmem:[#allocation7 + $0xb8] sm:$0xff]
    %v428 = vld [vmem:[#allocation7 + $0xc0] sm:$0xff]
    %v429 = vld [vmem:[#allocation7 + $0xc8] sm:$0xff]
    %v430 = vld [vmem:[#allocation7 + $0xd0] sm:$0xff]
    %v431 = vld [vmem:[#allocation7 + $0xd8] sm:$0xff]
    %v432 = vld [vmem:[#allocation7 + $0xe0] sm:$0xff]
    %v433 = vld [vmem:[#allocation7 + $0xe8] sm:$0xff]
    %v434 = vld [vmem:[#allocation7 + $0xf0] sm:$0xff]
    %v435 = vld [vmem:[#allocation7 + $0xf8] sm:$0xff]
    %v436 = vld [vmem:[#allocation7 + $0x100] sm:$0xff]
    %v437 = vld [vmem:[#allocation7 + $0x108] sm:$0xff]
    %v438 = vld [vmem:[#allocation7 + $0x110] sm:$0xff]
    %v439 = vld [vmem:[#allocation7 + $0x118] sm:$0xff]
    %v440 = vld [vmem:[#allocation7 + $0x120] sm:$0xff]
    %v441 = vld [vmem:[#allocation7 + $0x128] sm:$0xff]
    %v442 = vld [vmem:[#allocation7 + $0x130] sm:$0xff]
    %v443 = vld [vmem:[#allocation7 + $0x138] sm:$0xff]
    %v444 = vld [vmem:[#allocation7 + $0x140] sm:$0xff]
    %v445 = vld [vmem:[#allocation7 + $0x148] sm:$0xff]
    %v446 = vld [vmem:[#allocation7 + $0x150] sm:$0xff]
    %v447 = vld [vmem:[#allocation7 + $0x158] sm:$0xff]
    %v448 = vld [vmem:[#allocation7 + $0x160] sm:$0xff]
    %v449 = vld [vmem:[#allocation7 + $0x168] sm:$0xff]
    %v450 = vld [vmem:[#allocation7 + $0x170] sm:$0xff]
    %v451 = vld [vmem:[#allocation7 + $0x178] sm:$0xff]
    %v452 = vld [vmem:[#allocation7 + $0x180] sm:$0xff]
    %v453 = vld [vmem:[#allocation7 + $0x188] sm:$0xff]
    %v454 = vld [vmem:[#allocation7 + $0x190] sm:$0xff]
    %v455 = vld [vmem:[#allocation7 + $0x198] sm:$0xff]
    %v456 = vld [vmem:[#allocation7 + $0x1a0] sm:$0xff]
    %v457 = vld [vmem:[#allocation7 + $0x1a8] sm:$0xff]
    %v458 = vld [vmem:[#allocation7 + $0x1b0] sm:$0xff]
    %v459 = vld [vmem:[#allocation7 + $0x1b8] sm:$0xff]
    %v460 = vld [vmem:[#allocation7 + $0x1c0] sm:$0xff]
    %v461 = vld [vmem:[#allocation7 + $0x1c8] sm:$0xff]
    %v462 = vld [vmem:[#allocation7 + $0x1d0] sm:$0xff]
    %v463 = vld [vmem:[#allocation7 + $0x1d8] sm:$0xff]
    %v464 = vld [vmem:[#allocation7 + $0x1e0] sm:$0xff]
    %v465 = vld [vmem:[#allocation7 + $0x1e8] sm:$0xff]
    %v466 = vld [vmem:[#allocation7 + $0x1f0] sm:$0xff]
    %v467 = vld [vmem:[#allocation7 + $0x1f8] sm:$0xff]
    %v468 = vld [vmem:[#allocation7 + $0x200] sm:$0xff]
    %v469 = vld [vmem:[#allocation7 + $0x208] sm:$0xff]
    %v470 = vld [vmem:[#allocation7 + $0x210] sm:$0xff]
    %v471 = vld [vmem:[#allocation7 + $0x218] sm:$0xff]
    %v472 = vld [vmem:[#allocation7 + $0x220] sm:$0xff]
    %v473 = vld [vmem:[#allocation7 + $0x228] sm:$0xff]
    %v474 = vld [vmem:[#allocation7 + $0x230] sm:$0xff]
    %v475 = vld [vmem:[#allocation7 + $0x238] sm:$0xff]
    %v476 = vld [vmem:[#allocation7 + $0x240] sm:$0xff]
    %v477 = vld [vmem:[#allocation7 + $0x248] sm:$0xff]
    %v478 = vld [vmem:[#allocation7 + $0x250] sm:$0xff]
    %v479 = vld [vmem:[#allocation7 + $0x258] sm:$0xff]
    %v480 = vld [vmem:[#allocation7 + $0x260] sm:$0xff]
    %v481 = vld [vmem:[#allocation7 + $0x268] sm:$0xff]
    %v482 = vld [vmem:[#allocation7 + $0x270] sm:$0xff]
    %v483 = vld [vmem:[#allocation7 + $0x278] sm:$0xff]
    %v484 = vld [vmem:[#allocation7 + $0x280] sm:$0xff]
    %v485 = vld [vmem:[#allocation7 + $0x288] sm:$0xff]
    %v486 = vld [vmem:[#allocation7 + $0x290] sm:$0xff]
    %v487 = vld [vmem:[#allocation7 + $0x298] sm:$0xff]
    %v488 = vld [vmem:[#allocation7 + $0x2a0] sm:$0xff]
    %v489 = vld [vmem:[#allocation7 + $0x2a8] sm:$0xff]
    %v490 = vld [vmem:[#allocation7 + $0x2b0] sm:$0xff]
    %v491 = vld [vmem:[#allocation7 + $0x2b8] sm:$0xff]
    %v492 = vld [vmem:[#allocation7 + $0x2c0] sm:$0xff]
    %v493 = vld [vmem:[#allocation7 + $0x2c8] sm:$0xff]
    %v494 = vld [vmem:[#allocation7 + $0x2d0] sm:$0xff]
    %v495 = vld [vmem:[#allocation7 + $0x2d8] sm:$0xff]
    %v496 = vld [vmem:[#allocation7 + $0x2e0] sm:$0xff]
    %v497 = vld [vmem:[#allocation7 + $0x2e8] sm:$0xff]
    %v498 = vld [vmem:[#allocation7 + $0x2f0] sm:$0xff]
    %v499 = vld [vmem:[#allocation7 + $0x2f8] sm:$0xff]
    %v500 = vld [vmem:[#allocation7 + $0x300] sm:$0xff]
    %v501 = vld [vmem:[#allocation7 + $0x308] sm:$0xff]
    %v502 = vld [vmem:[#allocation7 + $0x310] sm:$0xff]
    %v503 = vld [vmem:[#allocation7 + $0x318] sm:$0xff]
    %v504 = vld [vmem:[#allocation7 + $0x320] sm:$0xff]
    %v505 = vld [vmem:[#allocation7 + $0x328] sm:$0xff]
    %v506 = vld [vmem:[#allocation7 + $0x330] sm:$0xff]
    %v507 = vld [vmem:[#allocation7 + $0x338] sm:$0xff]
    %v508 = vld [vmem:[#allocation7 + $0x340] sm:$0xff]
    %v509 = vld [vmem:[#allocation7 + $0x348] sm:$0xff]
    %v510 = vld [vmem:[#allocation7 + $0x350] sm:$0xff]
    %v511 = vld [vmem:[#allocation7 + $0x358] sm:$0xff]
    %v512 = vld [vmem:[#allocation7 + $0x360] sm:$0xff]
    %v513 = vld [vmem:[#allocation7 + $0x368] sm:$0xff]
    %v514 = vld [vmem:[#allocation7 + $0x370] sm:$0xff]
    %v515 = vld [vmem:[#allocation7 + $0x378] sm:$0xff]
    %v516 = vld [vmem:[#allocation7 + $0x380] sm:$0xff]
    %v517 = vld [vmem:[#allocation7 + $0x388] sm:$0xff]
    %v518 = vld [vmem:[#allocation7 + $0x390] sm:$0xff]
    %v519 = vld [vmem:[#allocation7 + $0x398] sm:$0xff]
    %v520 = vld [vmem:[#allocation7 + $0x3a0] sm:$0xff]
    %v521 = vld [vmem:[#allocation7 + $0x3a8] sm:$0xff]
    %v522 = vld [vmem:[#allocation7 + $0x3b0] sm:$0xff]
    %v523 = vld [vmem:[#allocation7 + $0x3b8] sm:$0xff]
    %v524 = vld [vmem:[#allocation7 + $0x3c0] sm:$0xff]
    %v525 = vld [vmem:[#allocation7 + $0x3c8] sm:$0xff]
    %v526 = vld [vmem:[#allocation7 + $0x3d0] sm:$0xff]
    %v527 = vld [vmem:[#allocation7 + $0x3d8] sm:$0xff]
    %v528 = vld [vmem:[#allocation7 + $0x3e0] sm:$0xff]
    %v529 = vld [vmem:[#allocation7 + $0x3e8] sm:$0xff]
    %v530 = vld [vmem:[#allocation7 + $0x3f0] sm:$0xff]
    %v531 = vld [vmem:[#allocation7 + $0x3f8] sm:$0xff]
    %v532 = vld [vmem:[#allocation11] sm:$0x1]
    %v534 = vlaneseq
    %v535 = vshrl.u32 %v534, 7
    %v536 = vsub.s32 0, %v535
    %v537 = vrot.slane %v532, %v536
    %539 = vmatprep.subr.mxu0 0.0
    %540 = vmatpush1.msra.mxu0 %v404
    %541 = vmatprep.subr.mxu0 0.0
    %542 = vmatpush1.msra.mxu0 %v405
    %543 = vmatprep.subr.mxu0 0.0
    %544 = vmatpush1.msra.mxu0 %v406
    %545 = vmatprep.subr.mxu0 0.0
    %546 = vmatpush1.msra.mxu0 %v407
    %547 = vmatprep.subr.mxu0 0.0
    %548 = vmatpush1.msra.mxu0 %v408
    %549 = vmatprep.subr.mxu0 0.0
    %550 = vmatpush1.msra.mxu0 %v409
    %551 = vmatprep.subr.mxu0 0.0
    %552 = vmatpush1.msra.mxu0 %v410
    %553 = vmatprep.subr.mxu0 0.0
    %554 = vmatpush1.msra.mxu0 %v411
    %555 = vmatprep.subr.mxu0 0.0
    %556 = vmatpush1.msra.mxu0 %v412
    %557 = vmatprep.subr.mxu0 0.0
    %558 = vmatpush1.msra.mxu0 %v413
    %559 = vmatprep.subr.mxu0 0.0
    %560 = vmatpush1.msra.mxu0 %v414
    %561 = vmatprep.subr.mxu0 0.0
    %562 = vmatpush1.msra.mxu0 %v415
    %563 = vmatprep.subr.mxu0 0.0
    %564 = vmatpush1.msra.mxu0 %v416
    %565 = vmatprep.subr.mxu0 0.0
    %566 = vmatpush1.msra.mxu0 %v417
    %567 = vmatprep.subr.mxu0 0.0
    %568 = vmatpush1.msra.mxu0 %v418
    %569 = vmatprep.subr.mxu0 0.0
    %570 = vmatpush1.msra.mxu0 %v419
    %571 = vmatprep.subr.mxu0 0.0
    %572 = vmatpush1.msra.mxu0 %v420
    %573 = vmatprep.subr.mxu0 0.0
    %574 = vmatpush1.msra.mxu0 %v421
    %575 = vmatprep.subr.mxu0 0.0
    %576 = vmatpush1.msra.mxu0 %v422
    %577 = vmatprep.subr.mxu0 0.0
    %578 = vmatpush1.msra.mxu0 %v423
    %579 = vmatprep.subr.mxu0 0.0
    %580 = vmatpush1.msra.mxu0 %v424
    %581 = vmatprep.subr.mxu0 0.0
    %582 = vmatpush1.msra.mxu0 %v425
    %583 = vmatprep.subr.mxu0 0.0
    %584 = vmatpush1.msra.mxu0 %v426
    %585 = vmatprep.subr.mxu0 0.0
    %586 = vmatpush1.msra.mxu0 %v427
    %587 = vmatprep.subr.mxu0 0.0
    %588 = vmatpush1.msra.mxu0 %v428
    %589 = vmatprep.subr.mxu0 0.0
    %590 = vmatpush1.msra.mxu0 %v429
    %591 = vmatprep.subr.mxu0 0.0
    %592 = vmatpush1.msra.mxu0 %v430
    %593 = vmatprep.subr.mxu0 0.0
    %594 = vmatpush1.msra.mxu0 %v431
    %595 = vmatprep.subr.mxu0 0.0
    %596 = vmatpush1.msra.mxu0 %v432
    %597 = vmatprep.subr.mxu0 0.0
    %598 = vmatpush1.msra.mxu0 %v433
    %599 = vmatprep.subr.mxu0 0.0
    %600 = vmatpush1.msra.mxu0 %v434
    %601 = vmatprep.subr.mxu0 0.0
    %602 = vmatpush1.msra.mxu0 %v435
    %603 = vmatprep.mubr.f32.mxu0 %v397
    %604 = vmatmul.mubr.f32.gmra.mrb[0].mxu0 %v396
    %v605 = vpop.f32.mrb[0].mxu0
    %v606 = vadd.f32 %v537, %v605
    %v607 = vpop.f32.mrb[0].mxu0
    %608 = vdwg.mxu0
    %609 = vmatprep.subr.mxu0 0.0
    %610 = vmatpush1.msra.mxu0 %v436
    %611 = vmatprep.subr.mxu0 0.0
    %612 = vmatpush1.msra.mxu0 %v437
    %613 = vmatprep.subr.mxu0 0.0
    %614 = vmatpush1.msra.mxu0 %v438
    %615 = vmatprep.subr.mxu0 0.0
    %616 = vmatpush1.msra.mxu0 %v439
    %617 = vmatprep.subr.mxu0 0.0
    %618 = vmatpush1.msra.mxu0 %v440
    %619 = vmatprep.subr.mxu0 0.0
    %620 = vmatpush1.msra.mxu0 %v441
    %621 = vmatprep.subr.mxu0 0.0
    %622 = vmatpush1.msra.mxu0 %v442
    %623 = vmatprep.subr.mxu0 0.0
    %624 = vmatpush1.msra.mxu0 %v443
    %625 = vmatprep.subr.mxu0 0.0
    %626 = vmatpush1.msra.mxu0 %v444
    %627 = vmatprep.subr.mxu0 0.0
    %628 = vmatpush1.msra.mxu0 %v445
    %629 = vmatprep.subr.mxu0 0.0
    %630 = vmatpush1.msra.mxu0 %v446
    %631 = vmatprep.subr.mxu0 0.0
    %632 = vmatpush1.msra.mxu0 %v447
    %633 = vmatprep.subr.mxu0 0.0
    %634 = vmatpush1.msra.mxu0 %v448
    %635 = vmatprep.subr.mxu0 0.0
    %636 = vmatpush1.msra.mxu0 %v449
    %637 = vmatprep.subr.mxu0 0.0
    %638 = vmatpush1.msra.mxu0 %v450
    %639 = vmatprep.subr.mxu0 0.0
    %640 = vmatpush1.msra.mxu0 %v451
    %641 = vmatprep.subr.mxu0 0.0
    %642 = vmatpush1.msra.mxu0 %v452
    %643 = vmatprep.subr.mxu0 0.0
    %644 = vmatpush1.msra.mxu0 %v453
    %645 = vmatprep.subr.mxu0 0.0
    %646 = vmatpush1.msra.mxu0 %v454
    %647 = vmatprep.subr.mxu0 0.0
    %648 = vmatpush1.msra.mxu0 %v455
    %649 = vmatprep.subr.mxu0 0.0
    %650 = vmatpush1.msra.mxu0 %v456
    %651 = vmatprep.subr.mxu0 0.0
    %652 = vmatpush1.msra.mxu0 %v457
    %653 = vmatprep.subr.mxu0 0.0
    %654 = vmatpush1.msra.mxu0 %v458
    %655 = vmatprep.subr.mxu0 0.0
    %656 = vmatpush1.msra.mxu0 %v459
    %657 = vmatprep.subr.mxu0 0.0
    %658 = vmatpush1.msra.mxu0 %v460
    %659 = vmatprep.subr.mxu0 0.0
    %660 = vmatpush1.msra.mxu0 %v461
    %661 = vmatprep.subr.mxu0 0.0
    %662 = vmatpush1.msra.mxu0 %v462
    %663 = vmatprep.subr.mxu0 0.0
    %664 = vmatpush1.msra.mxu0 %v463
    %665 = vmatprep.subr.mxu0 0.0
    %666 = vmatpush1.msra.mxu0 %v464
    %667 = vmatprep.subr.mxu0 0.0
    %668 = vmatpush1.msra.mxu0 %v465
    %669 = vmatprep.subr.mxu0 0.0
    %670 = vmatpush1.msra.mxu0 %v466
    %671 = vmatprep.subr.mxu0 0.0
    %672 = vmatpush1.msra.mxu0 %v467
    %673 = vmatprep.mubr.f32.mxu0 %v399
    %674 = vmatmul.mubr.f32.gmra.mrb[0].mxu0 %v398
    %v675 = vpop.f32.mrb[0].mxu0
    %v676 = vadd.f32 %v606, %v675
    %v677 = vpop.f32.mrb[0].mxu0
    %678 = vdwg.mxu0
    %679 = vmatprep.subr.mxu0 0.0
    %680 = vmatpush1.msra.mxu0 %v468
    %681 = vmatprep.subr.mxu0 0.0
    %682 = vmatpush1.msra.mxu0 %v469
    %683 = vmatprep.subr.mxu0 0.0
    %684 = vmatpush1.msra.mxu0 %v470
    %685 = vmatprep.subr.mxu0 0.0
    %686 = vmatpush1.msra.mxu0 %v471
    %687 = vmatprep.subr.mxu0 0.0
    %688 = vmatpush1.msra.mxu0 %v472
    %689 = vmatprep.subr.mxu0 0.0
    %690 = vmatpush1.msra.mxu0 %v473
    %691 = vmatprep.subr.mxu0 0.0
    %692 = vmatpush1.msra.mxu0 %v474
    %693 = vmatprep.subr.mxu0 0.0
    %694 = vmatpush1.msra.mxu0 %v475
    %695 = vmatprep.subr.mxu0 0.0
    %696 = vmatpush1.msra.mxu0 %v476
    %697 = vmatprep.subr.mxu0 0.0
    %698 = vmatpush1.msra.mxu0 %v477
    %699 = vmatprep.subr.mxu0 0.0
    %700 = vmatpush1.msra.mxu0 %v478
    %701 = vmatprep.subr.mxu0 0.0
    %702 = vmatpush1.msra.mxu0 %v479
    %703 = vmatprep.subr.mxu0 0.0
    %704 = vmatpush1.msra.mxu0 %v480
    %705 = vmatprep.subr.mxu0 0.0
    %706 = vmatpush1.msra.mxu0 %v481
    %707 = vmatprep.subr.mxu0 0.0
    %708 = vmatpush1.msra.mxu0 %v482
    %709 = vmatprep.subr.mxu0 0.0
    %710 = vmatpush1.msra.mxu0 %v483
    %711 = vmatprep.subr.mxu0 0.0
    %712 = vmatpush1.msra.mxu0 %v484
    %713 = vmatprep.subr.mxu0 0.0
    %714 = vmatpush1.msra.mxu0 %v485
    %715 = vmatprep.subr.mxu0 0.0
    %716 = vmatpush1.msra.mxu0 %v486
    %717 = vmatprep.subr.mxu0 0.0
    %718 = vmatpush1.msra.mxu0 %v487
    %719 = vmatprep.subr.mxu0 0.0
    %720 = vmatpush1.msra.mxu0 %v488
    %721 = vmatprep.subr.mxu0 0.0
    %722 = vmatpush1.msra.mxu0 %v489
    %723 = vmatprep.subr.mxu0 0.0
    %724 = vmatpush1.msra.mxu0 %v490
    %725 = vmatprep.subr.mxu0 0.0
    %726 = vmatpush1.msra.mxu0 %v491
    %727 = vmatprep.subr.mxu0 0.0
    %728 = vmatpush1.msra.mxu0 %v492
    %729 = vmatprep.subr.mxu0 0.0
    %730 = vmatpush1.msra.mxu0 %v493
    %731 = vmatprep.subr.mxu0 0.0
    %732 = vmatpush1.msra.mxu0 %v494
    %733 = vmatprep.subr.mxu0 0.0
    %734 = vmatpush1.msra.mxu0 %v495
    %735 = vmatprep.subr.mxu0 0.0
    %736 = vmatpush1.msra.mxu0 %v496
    %737 = vmatprep.subr.mxu0 0.0
    %738 = vmatpush1.msra.mxu0 %v497
    %739 = vmatprep.subr.mxu0 0.0
    %740 = vmatpush1.msra.mxu0 %v498
    %741 = vmatprep.subr.mxu0 0.0
    %742 = vmatpush1.msra.mxu0 %v499
    %743 = vmatprep.mubr.f32.mxu0 %v401
    %744 = vmatmul.mubr.f32.gmra.mrb[0].mxu0 %v400
    %v745 = vpop.f32.mrb[0].mxu0
    %v746 = vadd.f32 %v676, %v745
    %v747 = vpop.f32.mrb[0].mxu0
    %748 = vdwg.mxu0
    %749 = vmatprep.subr.mxu0 0.0
    %750 = vmatpush1.msra.mxu0 %v500
    %751 = vmatprep.subr.mxu0 0.0
    %752 = vmatpush1.msra.mxu0 %v501
    %753 = vmatprep.subr.mxu0 0.0
    %754 = vmatpush1.msra.mxu0 %v502
    %755 = vmatprep.subr.mxu0 0.0
    %756 = vmatpush1.msra.mxu0 %v503
    %757 = vmatprep.subr.mxu0 0.0
    %758 = vmatpush1.msra.mxu0 %v504
    %759 = vmatprep.subr.mxu0 0.0
    %760 = vmatpush1.msra.mxu0 %v505
    %761 = vmatprep.subr.mxu0 0.0
    %762 = vmatpush1.msra.mxu0 %v506
    %763 = vmatprep.subr.mxu0 0.0
    %764 = vmatpush1.msra.mxu0 %v507
    %765 = vmatprep.subr.mxu0 0.0
    %766 = vmatpush1.msra.mxu0 %v508
    %767 = vmatprep.subr.mxu0 0.0
    %768 = vmatpush1.msra.mxu0 %v509
    %769 = vmatprep.subr.mxu0 0.0
    %770 = vmatpush1.msra.mxu0 %v510
    %771 = vmatprep.subr.mxu0 0.0
    %772 = vmatpush1.msra.mxu0 %v511
    %773 = vmatprep.subr.mxu0 0.0
    %774 = vmatpush1.msra.mxu0 %v512
    %775 = vmatprep.subr.mxu0 0.0
    %776 = vmatpush1.msra.mxu0 %v513
    %777 = vmatprep.subr.mxu0 0.0
    %778 = vmatpush1.msra.mxu0 %v514
    %779 = vmatprep.subr.mxu0 0.0
    %780 = vmatpush1.msra.mxu0 %v515
    %781 = vmatprep.subr.mxu0 0.0
    %782 = vmatpush1.msra.mxu0 %v516
    %783 = vmatprep.subr.mxu0 0.0
    %784 = vmatpush1.msra.mxu0 %v517
    %785 = vmatprep.subr.mxu0 0.0
    %786 = vmatpush1.msra.mxu0 %v518
    %787 = vmatprep.subr.mxu0 0.0
    %788 = vmatpush1.msra.mxu0 %v519
    %789 = vmatprep.subr.mxu0 0.0
    %790 = vmatpush1.msra.mxu0 %v520
    %791 = vmatprep.subr.mxu0 0.0
    %792 = vmatpush1.msra.mxu0 %v521
    %793 = vmatprep.subr.mxu0 0.0
    %794 = vmatpush1.msra.mxu0 %v522
    %795 = vmatprep.subr.mxu0 0.0
    %796 = vmatpush1.msra.mxu0 %v523
    %797 = vmatprep.subr.mxu0 0.0
    %798 = vmatpush1.msra.mxu0 %v524
    %799 = vmatprep.subr.mxu0 0.0
    %800 = vmatpush1.msra.mxu0 %v525
    %801 = vmatprep.subr.mxu0 0.0
    %802 = vmatpush1.msra.mxu0 %v526
    %803 = vmatprep.subr.mxu0 0.0
    %804 = vmatpush1.msra.mxu0 %v527
    %805 = vmatprep.subr.mxu0 0.0
    %806 = vmatpush1.msra.mxu0 %v528
    %807 = vmatprep.subr.mxu0 0.0
    %808 = vmatpush1.msra.mxu0 %v529
    %809 = vmatprep.subr.mxu0 0.0
    %810 = vmatpush1.msra.mxu0 %v530
    %811 = vmatprep.subr.mxu0 0.0
    %812 = vmatpush1.msra.mxu0 %v531
    %813 = vmatprep.mubr.f32.mxu0 %v403
    %814 = vmatmul.mubr.f32.gmra.mrb[0].mxu0 %v402
    %v815 = vpop.f32.mrb[0].mxu0
    %v816 = vadd.f32 %v746, %v815
    %v817 = vpop.f32.mrb[0].mxu0
    %818 = vdwg.mxu0
    %v819 = vld [vmem:[%s3] sm:$0xff]
    %v820 = vld [vmem:[%s3 + $0x8] sm:$0xff]
    %v821 = vld [vmem:[%s3 + $0x10] sm:$0xff]
    %v822 = vld [vmem:[%s3 + $0x18] sm:$0xff]
    %v823 = vld [vmem:[%s3 + $0x20] sm:$0xff]
    %v824 = vld [vmem:[%s3 + $0x28] sm:$0xff]
    %v825 = vld [vmem:[%s3 + $0x30] sm:$0xff]
    %v826 = vld [vmem:[%s3 + $0x38] sm:$0xff]
    %v827 = vld [vmem:[%s3 + $0x40] sm:$0xff]
    %v828 = vld [vmem:[%s3 + $0x48] sm:$0xff]
    %v829 = vld [vmem:[%s3 + $0x50] sm:$0xff]
    %v830 = vld [vmem:[%s3 + $0x58] sm:$0xff]
    %v831 = vld [vmem:[%s3 + $0x60] sm:$0xff]
    %v832 = vld [vmem:[%s3 + $0x68] sm:$0xff]
    %v833 = vld [vmem:[%s3 + $0x70] sm:$0xff]
    %v834 = vld [vmem:[%s3 + $0x78] sm:$0xff]
    %v835 = vld [vmem:[#allocation5] sm:$0xff]
    %v836 = vld [vmem:[#allocation5 + $0x8] sm:$0xff]
    %v837 = vld [vmem:[#allocation5 + $0x10] sm:$0xff]
    %v838 = vld [vmem:[#allocation5 + $0x18] sm:$0xff]
    %v839 = vld [vmem:[#allocation5 + $0x20] sm:$0xff]
    %v840 = vld [vmem:[#allocation5 + $0x28] sm:$0xff]
    %v841 = vld [vmem:[#allocation5 + $0x30] sm:$0xff]
    %v842 = vld [vmem:[#allocation5 + $0x38] sm:$0xff]
    %v843 = vld [vmem:[#allocation5 + $0x40] sm:$0xff]
    %v844 = vld [vmem:[#allocation5 + $0x48] sm:$0xff]
    %v845 = vld [vmem:[#allocation5 + $0x50] sm:$0xff]
    %v846 = vld [vmem:[#allocation5 + $0x58] sm:$0xff]
    %v847 = vld [vmem:[#allocation5 + $0x60] sm:$0xff]
    %v848 = vld [vmem:[#allocation5 + $0x68] sm:$0xff]
    %v849 = vld [vmem:[#allocation5 + $0x70] sm:$0xff]
    %v850 = vld [vmem:[#allocation5 + $0x78] sm:$0xff]
    %v851 = vld [vmem:[#allocation5 + $0x80] sm:$0xff]
    %v852 = vld [vmem:[#allocation5 + $0x88] sm:$0xff]
    %v853 = vld [vmem:[#allocation5 + $0x90] sm:$0xff]
    %v854 = vld [vmem:[#allocation5 + $0x98] sm:$0xff]
    %v855 = vld [vmem:[#allocation5 + $0xa0] sm:$0xff]
    %v856 = vld [vmem:[#allocation5 + $0xa8] sm:$0xff]
    %v857 = vld [vmem:[#allocation5 + $0xb0] sm:$0xff]
    %v858 = vld [vmem:[#allocation5 + $0xb8] sm:$0xff]
    %v859 = vld [vmem:[#allocation5 + $0xc0] sm:$0xff]
    %v860 = vld [vmem:[#allocation5 + $0xc8] sm:$0xff]
    %v861 = vld [vmem:[#allocation5 + $0xd0] sm:$0xff]
    %v862 = vld [vmem:[#allocation5 + $0xd8] sm:$0xff]
    %v863 = vld [vmem:[#allocation5 + $0xe0] sm:$0xff]
    %v864 = vld [vmem:[#allocation5 + $0xe8] sm:$0xff]
    %v865 = vld [vmem:[#allocation5 + $0xf0] sm:$0xff]
    %v866 = vld [vmem:[#allocation5 + $0xf8] sm:$0xff]
    %v867 = vld [vmem:[#allocation5 + $0x100] sm:$0xff]
    %v868 = vld [vmem:[#allocation5 + $0x108] sm:$0xff]
    %v869 = vld [vmem:[#allocation5 + $0x110] sm:$0xff]
    %v870 = vld [vmem:[#allocation5 + $0x118] sm:$0xff]
    %v871 = vld [vmem:[#allocation5 + $0x120] sm:$0xff]
    %v872 = vld [vmem:[#allocation5 + $0x128] sm:$0xff]
    %v873 = vld [vmem:[#allocation5 + $0x130] sm:$0xff]
    %v874 = vld [vmem:[#allocation5 + $0x138] sm:$0xff]
    %v875 = vld [vmem:[#allocation5 + $0x140] sm:$0xff]
    %v876 = vld [vmem:[#allocation5 + $0x148] sm:$0xff]
    %v877 = vld [vmem:[#allocation5 + $0x150] sm:$0xff]
    %v878 = vld [vmem:[#allocation5 + $0x158] sm:$0xff]
    %v879 = vld [vmem:[#allocation5 + $0x160] sm:$0xff]
    %v880 = vld [vmem:[#allocation5 + $0x168] sm:$0xff]
    %v881 = vld [vmem:[#allocation5 + $0x170] sm:$0xff]
    %v882 = vld [vmem:[#allocation5 + $0x178] sm:$0xff]
    %v883 = vld [vmem:[#allocation5 + $0x180] sm:$0xff]
    %v884 = vld [vmem:[#allocation5 + $0x188] sm:$0xff]
    %v885 = vld [vmem:[#allocation5 + $0x190] sm:$0xff]
    %v886 = vld [vmem:[#allocation5 + $0x198] sm:$0xff]
    %v887 = vld [vmem:[#allocation5 + $0x1a0] sm:$0xff]
    %v888 = vld [vmem:[#allocation5 + $0x1a8] sm:$0xff]
    %v889 = vld [vmem:[#allocation5 + $0x1b0] sm:$0xff]
    %v890 = vld [vmem:[#allocation5 + $0x1b8] sm:$0xff]
    %v891 = vld [vmem:[#allocation5 + $0x1c0] sm:$0xff]
    %v892 = vld [vmem:[#allocation5 + $0x1c8] sm:$0xff]
    %v893 = vld [vmem:[#allocation5 + $0x1d0] sm:$0xff]
    %v894 = vld [vmem:[#allocation5 + $0x1d8] sm:$0xff]
    %v895 = vld [vmem:[#allocation5 + $0x1e0] sm:$0xff]
    %v896 = vld [vmem:[#allocation5 + $0x1e8] sm:$0xff]
    %v897 = vld [vmem:[#allocation5 + $0x1f0] sm:$0xff]
    %v898 = vld [vmem:[#allocation5 + $0x1f8] sm:$0xff]
    %v899 = vld [vmem:[#allocation5 + $0x200] sm:$0xff]
    %v900 = vld [vmem:[#allocation5 + $0x208] sm:$0xff]
    %v901 = vld [vmem:[#allocation5 + $0x210] sm:$0xff]
    %v902 = vld [vmem:[#allocation5 + $0x218] sm:$0xff]
    %v903 = vld [vmem:[#allocation5 + $0x220] sm:$0xff]
    %v904 = vld [vmem:[#allocation5 + $0x228] sm:$0xff]
    %v905 = vld [vmem:[#allocation5 + $0x230] sm:$0xff]
    %v906 = vld [vmem:[#allocation5 + $0x238] sm:$0xff]
    %v907 = vld [vmem:[#allocation5 + $0x240] sm:$0xff]
    %v908 = vld [vmem:[#allocation5 + $0x248] sm:$0xff]
    %v909 = vld [vmem:[#allocation5 + $0x250] sm:$0xff]
    %v910 = vld [vmem:[#allocation5 + $0x258] sm:$0xff]
    %v911 = vld [vmem:[#allocation5 + $0x260] sm:$0xff]
    %v912 = vld [vmem:[#allocation5 + $0x268] sm:$0xff]
    %v913 = vld [vmem:[#allocation5 + $0x270] sm:$0xff]
    %v914 = vld [vmem:[#allocation5 + $0x278] sm:$0xff]
    %v915 = vld [vmem:[#allocation5 + $0x280] sm:$0xff]
    %v916 = vld [vmem:[#allocation5 + $0x288] sm:$0xff]
    %v917 = vld [vmem:[#allocation5 + $0x290] sm:$0xff]
    %v918 = vld [vmem:[#allocation5 + $0x298] sm:$0xff]
    %v919 = vld [vmem:[#allocation5 + $0x2a0] sm:$0xff]
    %v920 = vld [vmem:[#allocation5 + $0x2a8] sm:$0xff]
    %v921 = vld [vmem:[#allocation5 + $0x2b0] sm:$0xff]
    %v922 = vld [vmem:[#allocation5 + $0x2b8] sm:$0xff]
    %v923 = vld [vmem:[#allocation5 + $0x2c0] sm:$0xff]
    %v924 = vld [vmem:[#allocation5 + $0x2c8] sm:$0xff]
    %v925 = vld [vmem:[#allocation5 + $0x2d0] sm:$0xff]
    %v926 = vld [vmem:[#allocation5 + $0x2d8] sm:$0xff]
    %v927 = vld [vmem:[#allocation5 + $0x2e0] sm:$0xff]
    %v928 = vld [vmem:[#allocation5 + $0x2e8] sm:$0xff]
    %v929 = vld [vmem:[#allocation5 + $0x2f0] sm:$0xff]
    %v930 = vld [vmem:[#allocation5 + $0x2f8] sm:$0xff]
    %v931 = vld [vmem:[#allocation5 + $0x300] sm:$0xff]
    %v932 = vld [vmem:[#allocation5 + $0x308] sm:$0xff]
    %v933 = vld [vmem:[#allocation5 + $0x310] sm:$0xff]
    %v934 = vld [vmem:[#allocation5 + $0x318] sm:$0xff]
    %v935 = vld [vmem:[#allocation5 + $0x320] sm:$0xff]
    %v936 = vld [vmem:[#allocation5 + $0x328] sm:$0xff]
    %v937 = vld [vmem:[#allocation5 + $0x330] sm:$0xff]
    %v938 = vld [vmem:[#allocation5 + $0x338] sm:$0xff]
    %v939 = vld [vmem:[#allocation5 + $0x340] sm:$0xff]
    %v940 = vld [vmem:[#allocation5 + $0x348] sm:$0xff]
    %v941 = vld [vmem:[#allocation5 + $0x350] sm:$0xff]
    %v942 = vld [vmem:[#allocation5 + $0x358] sm:$0xff]
    %v943 = vld [vmem:[#allocation5 + $0x360] sm:$0xff]
    %v944 = vld [vmem:[#allocation5 + $0x368] sm:$0xff]
    %v945 = vld [vmem:[#allocation5 + $0x370] sm:$0xff]
    %v946 = vld [vmem:[#allocation5 + $0x378] sm:$0xff]
    %v947 = vld [vmem:[#allocation5 + $0x380] sm:$0xff]
    %v948 = vld [vmem:[#allocation5 + $0x388] sm:$0xff]
    %v949 = vld [vmem:[#allocation5 + $0x390] sm:$0xff]
    %v950 = vld [vmem:[#allocation5 + $0x398] sm:$0xff]
    %v951 = vld [vmem:[#allocation5 + $0x3a0] sm:$0xff]
    %v952 = vld [vmem:[#allocation5 + $0x3a8] sm:$0xff]
    %v953 = vld [vmem:[#allocation5 + $0x3b0] sm:$0xff]
    %v954 = vld [vmem:[#allocation5 + $0x3b8] sm:$0xff]
    %v955 = vld [vmem:[#allocation5 + $0x3c0] sm:$0xff]
    %v956 = vld [vmem:[#allocation5 + $0x3c8] sm:$0xff]
    %v957 = vld [vmem:[#allocation5 + $0x3d0] sm:$0xff]
    %v958 = vld [vmem:[#allocation5 + $0x3d8] sm:$0xff]
    %v959 = vld [vmem:[#allocation5 + $0x3e0] sm:$0xff]
    %v960 = vld [vmem:[#allocation5 + $0x3e8] sm:$0xff]
    %v961 = vld [vmem:[#allocation5 + $0x3f0] sm:$0xff]
    %v962 = vld [vmem:[#allocation5 + $0x3f8] sm:$0xff]
    %v963 = vld [vmem:[#allocation5 + $0x400] sm:$0xff]
    %v964 = vld [vmem:[#allocation5 + $0x408] sm:$0xff]
    %v965 = vld [vmem:[#allocation5 + $0x410] sm:$0xff]
    %v966 = vld [vmem:[#allocation5 + $0x418] sm:$0xff]
    %v967 = vld [vmem:[#allocation5 + $0x420] sm:$0xff]
    %v968 = vld [vmem:[#allocation5 + $0x428] sm:$0xff]
    %v969 = vld [vmem:[#allocation5 + $0x430] sm:$0xff]
    %v970 = vld [vmem:[#allocation5 + $0x438] sm:$0xff]
    %v971 = vld [vmem:[#allocation5 + $0x440] sm:$0xff]
    %v972 = vld [vmem:[#allocation5 + $0x448] sm:$0xff]
    %v973 = vld [vmem:[#allocation5 + $0x450] sm:$0xff]
    %v974 = vld [vmem:[#allocation5 + $0x458] sm:$0xff]
    %v975 = vld [vmem:[#allocation5 + $0x460] sm:$0xff]
    %v976 = vld [vmem:[#allocation5 + $0x468] sm:$0xff]
    %v977 = vld [vmem:[#allocation5 + $0x470] sm:$0xff]
    %v978 = vld [vmem:[#allocation5 + $0x478] sm:$0xff]
    %v979 = vld [vmem:[#allocation5 + $0x480] sm:$0xff]
    %v980 = vld [vmem:[#allocation5 + $0x488] sm:$0xff]
    %v981 = vld [vmem:[#allocation5 + $0x490] sm:$0xff]
    %v982 = vld [vmem:[#allocation5 + $0x498] sm:$0xff]
    %v983 = vld [vmem:[#allocation5 + $0x4a0] sm:$0xff]
    %v984 = vld [vmem:[#allocation5 + $0x4a8] sm:$0xff]
    %v985 = vld [vmem:[#allocation5 + $0x4b0] sm:$0xff]
    %v986 = vld [vmem:[#allocation5 + $0x4b8] sm:$0xff]
    %v987 = vld [vmem:[#allocation5 + $0x4c0] sm:$0xff]
    %v988 = vld [vmem:[#allocation5 + $0x4c8] sm:$0xff]
    %v989 = vld [vmem:[#allocation5 + $0x4d0] sm:$0xff]
    %v990 = vld [vmem:[#allocation5 + $0x4d8] sm:$0xff]
    %v991 = vld [vmem:[#allocation5 + $0x4e0] sm:$0xff]
    %v992 = vld [vmem:[#allocation5 + $0x4e8] sm:$0xff]
    %v993 = vld [vmem:[#allocation5 + $0x4f0] sm:$0xff]
    %v994 = vld [vmem:[#allocation5 + $0x4f8] sm:$0xff]
    %v995 = vld [vmem:[#allocation5 + $0x500] sm:$0xff]
    %v996 = vld [vmem:[#allocation5 + $0x508] sm:$0xff]
    %v997 = vld [vmem:[#allocation5 + $0x510] sm:$0xff]
    %v998 = vld [vmem:[#allocation5 + $0x518] sm:$0xff]
    %v999 = vld [vmem:[#allocation5 + $0x520] sm:$0xff]
    %v1000 = vld [vmem:[#allocation5 + $0x528] sm:$0xff]
    %v1001 = vld [vmem:[#allocation5 + $0x530] sm:$0xff]
    %v1002 = vld [vmem:[#allocation5 + $0x538] sm:$0xff]
    %v1003 = vld [vmem:[#allocation5 + $0x540] sm:$0xff]
    %v1004 = vld [vmem:[#allocation5 + $0x548] sm:$0xff]
    %v1005 = vld [vmem:[#allocation5 + $0x550] sm:$0xff]
    %v1006 = vld [vmem:[#allocation5 + $0x558] sm:$0xff]
    %v1007 = vld [vmem:[#allocation5 + $0x560] sm:$0xff]
    %v1008 = vld [vmem:[#allocation5 + $0x568] sm:$0xff]
    %v1009 = vld [vmem:[#allocation5 + $0x570] sm:$0xff]
    %v1010 = vld [vmem:[#allocation5 + $0x578] sm:$0xff]
    %v1011 = vld [vmem:[#allocation5 + $0x580] sm:$0xff]
    %v1012 = vld [vmem:[#allocation5 + $0x588] sm:$0xff]
    %v1013 = vld [vmem:[#allocation5 + $0x590] sm:$0xff]
    %v1014 = vld [vmem:[#allocation5 + $0x598] sm:$0xff]
    %v1015 = vld [vmem:[#allocation5 + $0x5a0] sm:$0xff]
    %v1016 = vld [vmem:[#allocation5 + $0x5a8] sm:$0xff]
    %v1017 = vld [vmem:[#allocation5 + $0x5b0] sm:$0xff]
    %v1018 = vld [vmem:[#allocation5 + $0x5b8] sm:$0xff]
    %v1019 = vld [vmem:[#allocation5 + $0x5c0] sm:$0xff]
    %v1020 = vld [vmem:[#allocation5 + $0x5c8] sm:$0xff]
    %v1021 = vld [vmem:[#allocation5 + $0x5d0] sm:$0xff]
    %v1022 = vld [vmem:[#allocation5 + $0x5d8] sm:$0xff]
    %v1023 = vld [vmem:[#allocation5 + $0x5e0] sm:$0xff]
    %v1024 = vld [vmem:[#allocation5 + $0x5e8] sm:$0xff]
    %v1025 = vld [vmem:[#allocation5 + $0x5f0] sm:$0xff]
    %v1026 = vld [vmem:[#allocation5 + $0x5f8] sm:$0xff]
    %v1027 = vld [vmem:[#allocation5 + $0x600] sm:$0xff]
    %v1028 = vld [vmem:[#allocation5 + $0x608] sm:$0xff]
    %v1029 = vld [vmem:[#allocation5 + $0x610] sm:$0xff]
    %v1030 = vld [vmem:[#allocation5 + $0x618] sm:$0xff]
    %v1031 = vld [vmem:[#allocation5 + $0x620] sm:$0xff]
    %v1032 = vld [vmem:[#allocation5 + $0x628] sm:$0xff]
    %v1033 = vld [vmem:[#allocation5 + $0x630] sm:$0xff]
    %v1034 = vld [vmem:[#allocation5 + $0x638] sm:$0xff]
    %v1035 = vld [vmem:[#allocation5 + $0x640] sm:$0xff]
    %v1036 = vld [vmem:[#allocation5 + $0x648] sm:$0xff]
    %v1037 = vld [vmem:[#allocation5 + $0x650] sm:$0xff]
    %v1038 = vld [vmem:[#allocation5 + $0x658] sm:$0xff]
    %v1039 = vld [vmem:[#allocation5 + $0x660] sm:$0xff]
    %v1040 = vld [vmem:[#allocation5 + $0x668] sm:$0xff]
    %v1041 = vld [vmem:[#allocation5 + $0x670] sm:$0xff]
    %v1042 = vld [vmem:[#allocation5 + $0x678] sm:$0xff]
    %v1043 = vld [vmem:[#allocation5 + $0x680] sm:$0xff]
    %v1044 = vld [vmem:[#allocation5 + $0x688] sm:$0xff]
    %v1045 = vld [vmem:[#allocation5 + $0x690] sm:$0xff]
    %v1046 = vld [vmem:[#allocation5 + $0x698] sm:$0xff]
    %v1047 = vld [vmem:[#allocation5 + $0x6a0] sm:$0xff]
    %v1048 = vld [vmem:[#allocation5 + $0x6a8] sm:$0xff]
    %v1049 = vld [vmem:[#allocation5 + $0x6b0] sm:$0xff]
    %v1050 = vld [vmem:[#allocation5 + $0x6b8] sm:$0xff]
    %v1051 = vld [vmem:[#allocation5 + $0x6c0] sm:$0xff]
    %v1052 = vld [vmem:[#allocation5 + $0x6c8] sm:$0xff]
    %v1053 = vld [vmem:[#allocation5 + $0x6d0] sm:$0xff]
    %v1054 = vld [vmem:[#allocation5 + $0x6d8] sm:$0xff]
    %v1055 = vld [vmem:[#allocation5 + $0x6e0] sm:$0xff]
    %v1056 = vld [vmem:[#allocation5 + $0x6e8] sm:$0xff]
    %v1057 = vld [vmem:[#allocation5 + $0x6f0] sm:$0xff]
    %v1058 = vld [vmem:[#allocation5 + $0x6f8] sm:$0xff]
    %v1059 = vld [vmem:[#allocation5 + $0x700] sm:$0xff]
    %v1060 = vld [vmem:[#allocation5 + $0x708] sm:$0xff]
    %v1061 = vld [vmem:[#allocation5 + $0x710] sm:$0xff]
    %v1062 = vld [vmem:[#allocation5 + $0x718] sm:$0xff]
    %v1063 = vld [vmem:[#allocation5 + $0x720] sm:$0xff]
    %v1064 = vld [vmem:[#allocation5 + $0x728] sm:$0xff]
    %v1065 = vld [vmem:[#allocation5 + $0x730] sm:$0xff]
    %v1066 = vld [vmem:[#allocation5 + $0x738] sm:$0xff]
    %v1067 = vld [vmem:[#allocation5 + $0x740] sm:$0xff]
    %v1068 = vld [vmem:[#allocation5 + $0x748] sm:$0xff]
    %v1069 = vld [vmem:[#allocation5 + $0x750] sm:$0xff]
    %v1070 = vld [vmem:[#allocation5 + $0x758] sm:$0xff]
    %v1071 = vld [vmem:[#allocation5 + $0x760] sm:$0xff]
    %v1072 = vld [vmem:[#allocation5 + $0x768] sm:$0xff]
    %v1073 = vld [vmem:[#allocation5 + $0x770] sm:$0xff]
    %v1074 = vld [vmem:[#allocation5 + $0x778] sm:$0xff]
    %v1075 = vld [vmem:[#allocation5 + $0x780] sm:$0xff]
    %v1076 = vld [vmem:[#allocation5 + $0x788] sm:$0xff]
    %v1077 = vld [vmem:[#allocation5 + $0x790] sm:$0xff]
    %v1078 = vld [vmem:[#allocation5 + $0x798] sm:$0xff]
    %v1079 = vld [vmem:[#allocation5 + $0x7a0] sm:$0xff]
    %v1080 = vld [vmem:[#allocation5 + $0x7a8] sm:$0xff]
    %v1081 = vld [vmem:[#allocation5 + $0x7b0] sm:$0xff]
    %v1082 = vld [vmem:[#allocation5 + $0x7b8] sm:$0xff]
    %v1083 = vld [vmem:[#allocation5 + $0x7c0] sm:$0xff]
    %v1084 = vld [vmem:[#allocation5 + $0x7c8] sm:$0xff]
    %v1085 = vld [vmem:[#allocation5 + $0x7d0] sm:$0xff]
    %v1086 = vld [vmem:[#allocation5 + $0x7d8] sm:$0xff]
    %v1087 = vld [vmem:[#allocation5 + $0x7e0] sm:$0xff]
    %v1088 = vld [vmem:[#allocation5 + $0x7e8] sm:$0xff]
    %v1089 = vld [vmem:[#allocation5 + $0x7f0] sm:$0xff]
    %v1090 = vld [vmem:[#allocation5 + $0x7f8] sm:$0xff]
    %v1091 = vld [vmem:[#allocation10] sm:$0x3]
    %v1093 = vlaneseq
    %v1094 = vshrl.u32 %v1093, 7
    %v1095 = vsub.s32 0, %v1094
    %v1096 = vrot.slane %v1091, %v1095
    %v1097 = vlaneseq
    %v1098 = vshrl.u32 %v1097, 7
    %v1099 = vsub.s32 1, %v1098
    %v1100 = vrot.slane %v1091, %v1099
    %1103 = vmatprep.subr.mxu0 %v836
    %1104 = vmatpush1.msra.mxu0 %v835
    %1105 = vmatprep.subr.mxu0 %v838
    %1106 = vmatpush1.msra.mxu0 %v837
    %1107 = vmatprep.subr.mxu0 %v840
    %1108 = vmatpush1.msra.mxu0 %v839
    %1109 = vmatprep.subr.mxu0 %v842
    %1110 = vmatpush1.msra.mxu0 %v841
    %1111 = vmatprep.subr.mxu0 %v844
    %1112 = vmatpush1.msra.mxu0 %v843
    %1113 = vmatprep.subr.mxu0 %v846
    %1114 = vmatpush1.msra.mxu0 %v845
    %1115 = vmatprep.subr.mxu0 %v848
    %1116 = vmatpush1.msra.mxu0 %v847
    %1117 = vmatprep.subr.mxu0 %v850
    %1118 = vmatpush1.msra.mxu0 %v849
    %1119 = vmatprep.subr.mxu0 %v852
    %1120 = vmatpush1.msra.mxu0 %v851
    %1121 = vmatprep.subr.mxu0 %v854
    %1122 = vmatpush1.msra.mxu0 %v853
    %1123 = vmatprep.subr.mxu0 %v856
    %1124 = vmatpush1.msra.mxu0 %v855
    %1125 = vmatprep.subr.mxu0 %v858
    %1126 = vmatpush1.msra.mxu0 %v857
    %1127 = vmatprep.subr.mxu0 %v860
    %1128 = vmatpush1.msra.mxu0 %v859
    %1129 = vmatprep.subr.mxu0 %v862
    %1130 = vmatpush1.msra.mxu0 %v861
    %1131 = vmatprep.subr.mxu0 %v864
    %1132 = vmatpush1.msra.mxu0 %v863
    %1133 = vmatprep.subr.mxu0 %v866
    %1134 = vmatpush1.msra.mxu0 %v865
    %1135 = vmatprep.subr.mxu0 %v868
    %1136 = vmatpush1.msra.mxu0 %v867
    %1137 = vmatprep.subr.mxu0 %v870
    %1138 = vmatpush1.msra.mxu0 %v869
    %1139 = vmatprep.subr.mxu0 %v872
    %1140 = vmatpush1.msra.mxu0 %v871
    %1141 = vmatprep.subr.mxu0 %v874
    %1142 = vmatpush1.msra.mxu0 %v873
    %1143 = vmatprep.subr.mxu0 %v876
    %1144 = vmatpush1.msra.mxu0 %v875
    %1145 = vmatprep.subr.mxu0 %v878
    %1146 = vmatpush1.msra.mxu0 %v877
    %1147 = vmatprep.subr.mxu0 %v880
    %1148 = vmatpush1.msra.mxu0 %v879
    %1149 = vmatprep.subr.mxu0 %v882
    %1150 = vmatpush1.msra.mxu0 %v881
    %1151 = vmatprep.subr.mxu0 %v884
    %1152 = vmatpush1.msra.mxu0 %v883
    %1153 = vmatprep.subr.mxu0 %v886
    %1154 = vmatpush1.msra.mxu0 %v885
    %1155 = vmatprep.subr.mxu0 %v888
    %1156 = vmatpush1.msra.mxu0 %v887
    %1157 = vmatprep.subr.mxu0 %v890
    %1158 = vmatpush1.msra.mxu0 %v889
    %1159 = vmatprep.subr.mxu0 %v892
    %1160 = vmatpush1.msra.mxu0 %v891
    %1161 = vmatprep.subr.mxu0 %v894
    %1162 = vmatpush1.msra.mxu0 %v893
    %1163 = vmatprep.subr.mxu0 %v896
    %1164 = vmatpush1.msra.mxu0 %v895
    %1165 = vmatprep.subr.mxu0 %v898
    %1166 = vmatpush1.msra.mxu0 %v897
    %1167 = vmatprep.mubr.f32.mxu0 %v820
    %1168 = vmatmul.mubr.f32.gmra.mrb[0].mxu0 %v819
    %v1169 = vpop.f32.mrb[0].mxu0
    %v1170 = vadd.f32 %v1096, %v1169
    %v1171 = vpop.f32.mrb[0].mxu0
    %v1172 = vadd.f32 %v1100, %v1171
    %1173 = vmatprep.mubr.f32.mxu0 %v828
    %1174 = vmatmul.mubr.f32.gmra.mrb[0].mxu0 %v827
    %v1175 = vpop.f32.mrb[0].mxu0
    %v1176 = vadd.f32 %v1096, %v1175
    %v1177 = vpop.f32.mrb[0].mxu0
    %v1178 = vadd.f32 %v1100, %v1177
    %1179 = vdwg.mxu0
    %1180 = vmatprep.subr.mxu0 %v900
    %1181 = vmatpush1.msra.mxu0 %v899
    %1182 = vmatprep.subr.mxu0 %v902
    %1183 = vmatpush1.msra.mxu0 %v901
    %1184 = vmatprep.subr.mxu0 %v904
    %1185 = vmatpush1.msra.mxu0 %v903
    %1186 = vmatprep.subr.mxu0 %v906
    %1187 = vmatpush1.msra.mxu0 %v905
    %1188 = vmatprep.subr.mxu0 %v908
    %1189 = vmatpush1.msra.mxu0 %v907
    %1190 = vmatprep.subr.mxu0 %v910
    %1191 = vmatpush1.msra.mxu0 %v909
    %1192 = vmatprep.subr.mxu0 %v912
    %1193 = vmatpush1.msra.mxu0 %v911
    %1194 = vmatprep.subr.mxu0 %v914
    %1195 = vmatpush1.msra.mxu0 %v913
    %1196 = vmatprep.subr.mxu0 %v916
    %1197 = vmatpush1.msra.mxu0 %v915
    %1198 = vmatprep.subr.mxu0 %v918
    %1199 = vmatpush1.msra.mxu0 %v917
    %1200 = vmatprep.subr.mxu0 %v920
    %1201 = vmatpush1.msra.mxu0 %v919
    %1202 = vmatprep.subr.mxu0 %v922
    %1203 = vmatpush1.msra.mxu0 %v921
    %1204 = vmatprep.subr.mxu0 %v924
    %1205 = vmatpush1.msra.mxu0 %v923
    %1206 = vmatprep.subr.mxu0 %v926
    %1207 = vmatpush1.msra.mxu0 %v925
    %1208 = vmatprep.subr.mxu0 %v928
    %1209 = vmatpush1.msra.mxu0 %v927
    %1210 = vmatprep.subr.mxu0 %v930
    %1211 = vmatpush1.msra.mxu0 %v929
    %1212 = vmatprep.subr.mxu0 %v932
    %1213 = vmatpush1.msra.mxu0 %v931
    %1214 = vmatprep.subr.mxu0 %v934
    %1215 = vmatpush1.msra.mxu0 %v933
    %1216 = vmatprep.subr.mxu0 %v936
    %1217 = vmatpush1.msra.mxu0 %v935
    %1218 = vmatprep.subr.mxu0 %v938
    %1219 = vmatpush1.msra.mxu0 %v937
    %1220 = vmatprep.subr.mxu0 %v940
    %1221 = vmatpush1.msra.mxu0 %v939
    %1222 = vmatprep.subr.mxu0 %v942
    %1223 = vmatpush1.msra.mxu0 %v941
    %1224 = vmatprep.subr.mxu0 %v944
    %1225 = vmatpush1.msra.mxu0 %v943
    %1226 = vmatprep.subr.mxu0 %v946
    %1227 = vmatpush1.msra.mxu0 %v945
    %1228 = vmatprep.subr.mxu0 %v948
    %1229 = vmatpush1.msra.mxu0 %v947
    %1230 = vmatprep.subr.mxu0 %v950
    %1231 = vmatpush1.msra.mxu0 %v949
    %1232 = vmatprep.subr.mxu0 %v952
    %1233 = vmatpush1.msra.mxu0 %v951
    %1234 = vmatprep.subr.mxu0 %v954
    %1235 = vmatpush1.msra.mxu0 %v953
    %1236 = vmatprep.subr.mxu0 %v956
    %1237 = vmatpush1.msra.mxu0 %v955
    %1238 = vmatprep.subr.mxu0 %v958
    %1239 = vmatpush1.msra.mxu0 %v957
    %1240 = vmatprep.subr.mxu0 %v960
    %1241 = vmatpush1.msra.mxu0 %v959
    %1242 = vmatprep.subr.mxu0 %v962
    %1243 = vmatpush1.msra.mxu0 %v961
    %1244 = vmatprep.mubr.f32.mxu0 %v822
    %1245 = vmatmul.mubr.f32.gmra.mrb[0].mxu0 %v821
    %v1246 = vpop.f32.mrb[0].mxu0
    %v1247 = vadd.f32 %v1170, %v1246
    %v1248 = vpop.f32.mrb[0].mxu0
    %v1249 = vadd.f32 %v1172, %v1248
    %1250 = vmatprep.mubr.f32.mxu0 %v830
    %1251 = vmatmul.mubr.f32.gmra.mrb[0].mxu0 %v829
    %v1252 = vpop.f32.mrb[0].mxu0
    %v1253 = vadd.f32 %v1176, %v1252
    %v1254 = vpop.f32.mrb[0].mxu0
    %v1255 = vadd.f32 %v1178, %v1254
    %1256 = vdwg.mxu0
    %1257 = vmatprep.subr.mxu0 %v964
    %1258 = vmatpush1.msra.mxu0 %v963
    %1259 = vmatprep.subr.mxu0 %v966
    %1260 = vmatpush1.msra.mxu0 %v965
    %1261 = vmatprep.subr.mxu0 %v968
    %1262 = vmatpush1.msra.mxu0 %v967
    %1263 = vmatprep.subr.mxu0 %v970
    %1264 = vmatpush1.msra.mxu0 %v969
    %1265 = vmatprep.subr.mxu0 %v972
    %1266 = vmatpush1.msra.mxu0 %v971
    %1267 = vmatprep.subr.mxu0 %v974
    %1268 = vmatpush1.msra.mxu0 %v973
    %1269 = vmatprep.subr.mxu0 %v976
    %1270 = vmatpush1.msra.mxu0 %v975
    %1271 = vmatprep.subr.mxu0 %v978
    %1272 = vmatpush1.msra.mxu0 %v977
    %1273 = vmatprep.subr.mxu0 %v980
    %1274 = vmatpush1.msra.mxu0 %v979
    %1275 = vmatprep.subr.mxu0 %v982
    %1276 = vmatpush1.msra.mxu0 %v981
    %1277 = vmatprep.subr.mxu0 %v984
    %1278 = vmatpush1.msra.mxu0 %v983
    %1279 = vmatprep.subr.mxu0 %v986
    %1280 = vmatpush1.msra.mxu0 %v985
    %1281 = vmatprep.subr.mxu0 %v988
    %1282 = vmatpush1.msra.mxu0 %v987
    %1283 = vmatprep.subr.mxu0 %v990
    %1284 = vmatpush1.msra.mxu0 %v989
    %1285 = vmatprep.subr.mxu0 %v992
    %1286 = vmatpush1.msra.mxu0 %v991
    %1287 = vmatprep.subr.mxu0 %v994
    %1288 = vmatpush1.msra.mxu0 %v993
    %1289 = vmatprep.subr.mxu0 %v996
    %1290 = vmatpush1.msra.mxu0 %v995
    %1291 = vmatprep.subr.mxu0 %v998
    %1292 = vmatpush1.msra.mxu0 %v997
    %1293 = vmatprep.subr.mxu0 %v1000
    %1294 = vmatpush1.msra.mxu0 %v999
    %1295 = vmatprep.subr.mxu0 %v1002
    %1296 = vmatpush1.msra.mxu0 %v1001
    %1297 = vmatprep.subr.mxu0 %v1004
    %1298 = vmatpush1.msra.mxu0 %v1003
    %1299 = vmatprep.subr.mxu0 %v1006
    %1300 = vmatpush1.msra.mxu0 %v1005
    %1301 = vmatprep.subr.mxu0 %v1008
    %1302 = vmatpush1.msra.mxu0 %v1007
    %1303 = vmatprep.subr.mxu0 %v1010
    %1304 = vmatpush1.msra.mxu0 %v1009
    %1305 = vmatprep.subr.mxu0 %v1012
    %1306 = vmatpush1.msra.mxu0 %v1011
    %1307 = vmatprep.subr.mxu0 %v1014
    %1308 = vmatpush1.msra.mxu0 %v1013
    %1309 = vmatprep.subr.mxu0 %v1016
    %1310 = vmatpush1.msra.mxu0 %v1015
    %1311 = vmatprep.subr.mxu0 %v1018
    %1312 = vmatpush1.msra.mxu0 %v1017
    %1313 = vmatprep.subr.mxu0 %v1020
    %1314 = vmatpush1.msra.mxu0 %v1019
    %1315 = vmatprep.subr.mxu0 %v1022
    %1316 = vmatpush1.msra.mxu0 %v1021
    %1317 = vmatprep.subr.mxu0 %v1024
    %1318 = vmatpush1.msra.mxu0 %v1023
    %1319 = vmatprep.subr.mxu0 %v1026
    %1320 = vmatpush1.msra.mxu0 %v1025
    %1321 = vmatprep.mubr.f32.mxu0 %v824
    %1322 = vmatmul.mubr.f32.gmra.mrb[0].mxu0 %v823
    %v1323 = vpop.f32.mrb[0].mxu0
    %v1324 = vadd.f32 %v1247, %v1323
    %v1325 = vpop.f32.mrb[0].mxu0
    %v1326 = vadd.f32 %v1249, %v1325
    %1327 = vmatprep.mubr.f32.mxu0 %v832
    %1328 = vmatmul.mubr.f32.gmra.mrb[0].mxu0 %v831
    %v1329 = vpop.f32.mrb[0].mxu0
    %v1330 = vadd.f32 %v1253, %v1329
    %v1331 = vpop.f32.mrb[0].mxu0
    %v1332 = vadd.f32 %v1255, %v1331
    %1333 = vdwg.mxu0
    %1334 = vmatprep.subr.mxu0 %v1028
    %1335 = vmatpush1.msra.mxu0 %v1027
    %1336 = vmatprep.subr.mxu0 %v1030
    %1337 = vmatpush1.msra.mxu0 %v1029
    %1338 = vmatprep.subr.mxu0 %v1032
    %1339 = vmatpush1.msra.mxu0 %v1031
    %1340 = vmatprep.subr.mxu0 %v1034
    %1341 = vmatpush1.msra.mxu0 %v1033
    %1342 = vmatprep.subr.mxu0 %v1036
    %1343 = vmatpush1.msra.mxu0 %v1035
    %1344 = vmatprep.subr.mxu0 %v1038
    %1345 = vmatpush1.msra.mxu0 %v1037
    %1346 = vmatprep.subr.mxu0 %v1040
    %1347 = vmatpush1.msra.mxu0 %v1039
    %1348 = vmatprep.subr.mxu0 %v1042
    %1349 = vmatpush1.msra.mxu0 %v1041
    %1350 = vmatprep.subr.mxu0 %v1044
    %1351 = vmatpush1.msra.mxu0 %v1043
    %1352 = vmatprep.subr.mxu0 %v1046
    %1353 = vmatpush1.msra.mxu0 %v1045
    %1354 = vmatprep.subr.mxu0 %v1048
    %1355 = vmatpush1.msra.mxu0 %v1047
    %1356 = vmatprep.subr.mxu0 %v1050
    %1357 = vmatpush1.msra.mxu0 %v1049
    %1358 = vmatprep.subr.mxu0 %v1052
    %1359 = vmatpush1.msra.mxu0 %v1051
    %1360 = vmatprep.subr.mxu0 %v1054
    %1361 = vmatpush1.msra.mxu0 %v1053
    %1362 = vmatprep.subr.mxu0 %v1056
    %1363 = vmatpush1.msra.mxu0 %v1055
    %1364 = vmatprep.subr.mxu0 %v1058
    %1365 = vmatpush1.msra.mxu0 %v1057
    %1366 = vmatprep.subr.mxu0 %v1060
    %1367 = vmatpush1.msra.mxu0 %v1059
    %1368 = vmatprep.subr.mxu0 %v1062
    %1369 = vmatpush1.msra.mxu0 %v1061
    %1370 = vmatprep.subr.mxu0 %v1064
    %1371 = vmatpush1.msra.mxu0 %v1063
    %1372 = vmatprep.subr.mxu0 %v1066
    %1373 = vmatpush1.msra.mxu0 %v1065
    %1374 = vmatprep.subr.mxu0 %v1068
    %1375 = vmatpush1.msra.mxu0 %v1067
    %1376 = vmatprep.subr.mxu0 %v1070
    %1377 = vmatpush1.msra.mxu0 %v1069
    %1378 = vmatprep.subr.mxu0 %v1072
    %1379 = vmatpush1.msra.mxu0 %v1071
    %1380 = vmatprep.subr.mxu0 %v1074
    %1381 = vmatpush1.msra.mxu0 %v1073
    %1382 = vmatprep.subr.mxu0 %v1076
    %1383 = vmatpush1.msra.mxu0 %v1075
    %1384 = vmatprep.subr.mxu0 %v1078
    %1385 = vmatpush1.msra.mxu0 %v1077
    %1386 = vmatprep.subr.mxu0 %v1080
    %1387 = vmatpush1.msra.mxu0 %v1079
    %1388 = vmatprep.subr.mxu0 %v1082
    %1389 = vmatpush1.msra.mxu0 %v1081
    %1390 = vmatprep.subr.mxu0 %v1084
    %1391 = vmatpush1.msra.mxu0 %v1083
    %1392 = vmatprep.subr.mxu0 %v1086
    %1393 = vmatpush1.msra.mxu0 %v1085
    %1394 = vmatprep.subr.mxu0 %v1088
    %1395 = vmatpush1.msra.mxu0 %v1087
    %1396 = vmatprep.subr.mxu0 %v1090
    %1397 = vmatpush1.msra.mxu0 %v1089
    %1398 = vmatprep.mubr.f32.mxu0 %v826
    %1399 = vmatmul.mubr.f32.gmra.mrb[0].mxu0 %v825
    %v1400 = vpop.f32.mrb[0].mxu0
    %v1401 = vadd.f32 %v1324, %v1400
    %v1402 = vpop.f32.mrb[0].mxu0
    %v1403 = vadd.f32 %v1326, %v1402
    %1404 = vmatprep.mubr.f32.mxu0 %v834
    %1405 = vmatmul.mubr.f32.gmra.mrb[0].mxu0 %v833
    %v1406 = vpop.f32.mrb[0].mxu0
    %v1407 = vadd.f32 %v1330, %v1406
    %v1408 = vpop.f32.mrb[0].mxu0
    %v1409 = vadd.f32 %v1332, %v1408
    %1410 = vdwg.mxu0
    %v1411 = vld [vmem:[%s1] sm:$0xff]
    %v1412 = vld [vmem:[%s1 + $0x8] sm:$0xff]
    %v1413 = vld [vmem:[%s1 + $0x10] sm:$0xff]
    %v1414 = vld [vmem:[%s1 + $0x18] sm:$0xff]
    %v1415 = vld [vmem:[%s1 + $0x20] sm:$0xff]
    %v1416 = vld [vmem:[%s1 + $0x28] sm:$0xff]
    %v1417 = vld [vmem:[%s1 + $0x30] sm:$0xff]
    %v1418 = vld [vmem:[%s1 + $0x38] sm:$0xff]
    %v1419 = vld [vmem:[%s1 + $0x40] sm:$0xff]
    %v1420 = vld [vmem:[%s1 + $0x48] sm:$0xff]
    %v1421 = vld [vmem:[%s1 + $0x50] sm:$0xff]
    %v1422 = vld [vmem:[%s1 + $0x58] sm:$0xff]
    %v1423 = vld [vmem:[%s1 + $0x60] sm:$0xff]
    %v1424 = vld [vmem:[%s1 + $0x68] sm:$0xff]
    %v1425 = vld [vmem:[%s1 + $0x70] sm:$0xff]
    %v1426 = vld [vmem:[%s1 + $0x78] sm:$0xff]
    %v1427 = vld [vmem:[%s1 + $0x80] sm:$0xff]
    %v1428 = vld [vmem:[%s1 + $0x88] sm:$0xff]
    %v1429 = vld [vmem:[%s1 + $0x90] sm:$0xff]
    %v1430 = vld [vmem:[%s1 + $0x98] sm:$0xff]
    %v1431 = vld [vmem:[%s1 + $0xa0] sm:$0xff]
    %v1432 = vld [vmem:[%s1 + $0xa8] sm:$0xff]
    %v1433 = vld [vmem:[%s1 + $0xb0] sm:$0xff]
    %v1434 = vld [vmem:[%s1 + $0xb8] sm:$0xff]
    %v1435 = vld [vmem:[%s1 + $0xc0] sm:$0xff]
    %v1436 = vld [vmem:[%s1 + $0xc8] sm:$0xff]
    %v1437 = vld [vmem:[%s1 + $0xd0] sm:$0xff]
    %v1438 = vld [vmem:[%s1 + $0xd8] sm:$0xff]
    %v1439 = vld [vmem:[%s1 + $0xe0] sm:$0xff]
    %v1440 = vld [vmem:[%s1 + $0xe8] sm:$0xff]
    %v1441 = vld [vmem:[%s1 + $0xf0] sm:$0xff]
    %v1442 = vld [vmem:[%s1 + $0xf8] sm:$0xff]
    %v1443 = vld [vmem:[#allocation2] sm:$0xff]
    %v1444 = vld [vmem:[#allocation2 + $0x8] sm:$0xff]
    %v1445 = vld [vmem:[#allocation2 + $0x10] sm:$0xff]
    %v1446 = vld [vmem:[#allocation2 + $0x18] sm:$0xff]
    %v1447 = vld [vmem:[#allocation2 + $0x20] sm:$0xff]
    %v1448 = vld [vmem:[#allocation2 + $0x28] sm:$0xff]
    %v1449 = vld [vmem:[#allocation2 + $0x30] sm:$0xff]
    %v1450 = vld [vmem:[#allocation2 + $0x38] sm:$0xff]
    %v1451 = vld [vmem:[#allocation2 + $0x40] sm:$0xff]
    %v1452 = vld [vmem:[#allocation2 + $0x48] sm:$0xff]
    %v1453 = vld [vmem:[#allocation2 + $0x50] sm:$0xff]
    %v1454 = vld [vmem:[#allocation2 + $0x58] sm:$0xff]
    %v1455 = vld [vmem:[#allocation2 + $0x60] sm:$0xff]
    %v1456 = vld [vmem:[#allocation2 + $0x68] sm:$0xff]
    %v1457 = vld [vmem:[#allocation2 + $0x70] sm:$0xff]
    %v1458 = vld [vmem:[#allocation2 + $0x78] sm:$0xff]
    %v1459 = vld [vmem:[#allocation2 + $0x80] sm:$0xff]
    %v1460 = vld [vmem:[#allocation2 + $0x88] sm:$0xff]
    %v1461 = vld [vmem:[#allocation2 + $0x90] sm:$0xff]
    %v1462 = vld [vmem:[#allocation2 + $0x98] sm:$0xff]
    %v1463 = vld [vmem:[#allocation2 + $0xa0] sm:$0xff]
    %v1464 = vld [vmem:[#allocation2 + $0xa8] sm:$0xff]
    %v1465 = vld [vmem:[#allocation2 + $0xb0] sm:$0xff]
    %v1466 = vld [vmem:[#allocation2 + $0xb8] sm:$0xff]
    %v1467 = vld [vmem:[#allocation2 + $0xc0] sm:$0xff]
    %v1468 = vld [vmem:[#allocation2 + $0xc8] sm:$0xff]
    %v1469 = vld [vmem:[#allocation2 + $0xd0] sm:$0xff]
    %v1470 = vld [vmem:[#allocation2 + $0xd8] sm:$0xff]
    %v1471 = vld [vmem:[#allocation2 + $0xe0] sm:$0xff]
    %v1472 = vld [vmem:[#allocation2 + $0xe8] sm:$0xff]
    %v1473 = vld [vmem:[#allocation2 + $0xf0] sm:$0xff]
    %v1474 = vld [vmem:[#allocation2 + $0xf8] sm:$0xff]
    %v1475 = vld [vmem:[#allocation2 + $0x100] sm:$0xff]
    %v1476 = vld [vmem:[#allocation2 + $0x108] sm:$0xff]
    %v1477 = vld [vmem:[#allocation2 + $0x110] sm:$0xff]
    %v1478 = vld [vmem:[#allocation2 + $0x118] sm:$0xff]
    %v1479 = vld [vmem:[#allocation2 + $0x120] sm:$0xff]
    %v1480 = vld [vmem:[#allocation2 + $0x128] sm:$0xff]
    %v1481 = vld [vmem:[#allocation2 + $0x130] sm:$0xff]
    %v1482 = vld [vmem:[#allocation2 + $0x138] sm:$0xff]
    %v1483 = vld [vmem:[#allocation2 + $0x140] sm:$0xff]
    %v1484 = vld [vmem:[#allocation2 + $0x148] sm:$0xff]
    %v1485 = vld [vmem:[#allocation2 + $0x150] sm:$0xff]
    %v1486 = vld [vmem:[#allocation2 + $0x158] sm:$0xff]
    %v1487 = vld [vmem:[#allocation2 + $0x160] sm:$0xff]
    %v1488 = vld [vmem:[#allocation2 + $0x168] sm:$0xff]
    %v1489 = vld [vmem:[#allocation2 + $0x170] sm:$0xff]
    %v1490 = vld [vmem:[#allocation2 + $0x178] sm:$0xff]
    %v1491 = vld [vmem:[#allocation2 + $0x180] sm:$0xff]
    %v1492 = vld [vmem:[#allocation2 + $0x188] sm:$0xff]
    %v1493 = vld [vmem:[#allocation2 + $0x190] sm:$0xff]
    %v1494 = vld [vmem:[#allocation2 + $0x198] sm:$0xff]
    %v1495 = vld [vmem:[#allocation2 + $0x1a0] sm:$0xff]
    %v1496 = vld [vmem:[#allocation2 + $0x1a8] sm:$0xff]
    %v1497 = vld [vmem:[#allocation2 + $0x1b0] sm:$0xff]
    %v1498 = vld [vmem:[#allocation2 + $0x1b8] sm:$0xff]
    %v1499 = vld [vmem:[#allocation2 + $0x1c0] sm:$0xff]
    %v1500 = vld [vmem:[#allocation2 + $0x1c8] sm:$0xff]
    %v1501 = vld [vmem:[#allocation2 + $0x1d0] sm:$0xff]
    %v1502 = vld [vmem:[#allocation2 + $0x1d8] sm:$0xff]
    %v1503 = vld [vmem:[#allocation2 + $0x1e0] sm:$0xff]
    %v1504 = vld [vmem:[#allocation2 + $0x1e8] sm:$0xff]
    %v1505 = vld [vmem:[#allocation2 + $0x1f0] sm:$0xff]
    %v1506 = vld [vmem:[#allocation2 + $0x1f8] sm:$0xff]
    %v1507 = vld [vmem:[#allocation2 + $0x200] sm:$0xff]
    %v1508 = vld [vmem:[#allocation2 + $0x208] sm:$0xff]
    %v1509 = vld [vmem:[#allocation2 + $0x210] sm:$0xff]
    %v1510 = vld [vmem:[#allocation2 + $0x218] sm:$0xff]
    %v1511 = vld [vmem:[#allocation2 + $0x220] sm:$0xff]
    %v1512 = vld [vmem:[#allocation2 + $0x228] sm:$0xff]
    %v1513 = vld [vmem:[#allocation2 + $0x230] sm:$0xff]
    %v1514 = vld [vmem:[#allocation2 + $0x238] sm:$0xff]
    %v1515 = vld [vmem:[#allocation2 + $0x240] sm:$0xff]
    %v1516 = vld [vmem:[#allocation2 + $0x248] sm:$0xff]
    %v1517 = vld [vmem:[#allocation2 + $0x250] sm:$0xff]
    %v1518 = vld [vmem:[#allocation2 + $0x258] sm:$0xff]
    %v1519 = vld [vmem:[#allocation2 + $0x260] sm:$0xff]
    %v1520 = vld [vmem:[#allocation2 + $0x268] sm:$0xff]
    %v1521 = vld [vmem:[#allocation2 + $0x270] sm:$0xff]
    %v1522 = vld [vmem:[#allocation2 + $0x278] sm:$0xff]
    %v1523 = vld [vmem:[#allocation2 + $0x280] sm:$0xff]
    %v1524 = vld [vmem:[#allocation2 + $0x288] sm:$0xff]
    %v1525 = vld [vmem:[#allocation2 + $0x290] sm:$0xff]
    %v1526 = vld [vmem:[#allocation2 + $0x298] sm:$0xff]
    %v1527 = vld [vmem:[#allocation2 + $0x2a0] sm:$0xff]
    %v1528 = vld [vmem:[#allocation2 + $0x2a8] sm:$0xff]
    %v1529 = vld [vmem:[#allocation2 + $0x2b0] sm:$0xff]
    %v1530 = vld [vmem:[#allocation2 + $0x2b8] sm:$0xff]
    %v1531 = vld [vmem:[#allocation2 + $0x2c0] sm:$0xff]
    %v1532 = vld [vmem:[#allocation2 + $0x2c8] sm:$0xff]
    %v1533 = vld [vmem:[#allocation2 + $0x2d0] sm:$0xff]
    %v1534 = vld [vmem:[#allocation2 + $0x2d8] sm:$0xff]
    %v1535 = vld [vmem:[#allocation2 + $0x2e0] sm:$0xff]
    %v1536 = vld [vmem:[#allocation2 + $0x2e8] sm:$0xff]
    %v1537 = vld [vmem:[#allocation2 + $0x2f0] sm:$0xff]
    %v1538 = vld [vmem:[#allocation2 + $0x2f8] sm:$0xff]
    %v1539 = vld [vmem:[#allocation2 + $0x300] sm:$0xff]
    %v1540 = vld [vmem:[#allocation2 + $0x308] sm:$0xff]
    %v1541 = vld [vmem:[#allocation2 + $0x310] sm:$0xff]
    %v1542 = vld [vmem:[#allocation2 + $0x318] sm:$0xff]
    %v1543 = vld [vmem:[#allocation2 + $0x320] sm:$0xff]
    %v1544 = vld [vmem:[#allocation2 + $0x328] sm:$0xff]
    %v1545 = vld [vmem:[#allocation2 + $0x330] sm:$0xff]
    %v1546 = vld [vmem:[#allocation2 + $0x338] sm:$0xff]
    %v1547 = vld [vmem:[#allocation2 + $0x340] sm:$0xff]
    %v1548 = vld [vmem:[#allocation2 + $0x348] sm:$0xff]
    %v1549 = vld [vmem:[#allocation2 + $0x350] sm:$0xff]
    %v1550 = vld [vmem:[#allocation2 + $0x358] sm:$0xff]
    %v1551 = vld [vmem:[#allocation2 + $0x360] sm:$0xff]
    %v1552 = vld [vmem:[#allocation2 + $0x368] sm:$0xff]
    %v1553 = vld [vmem:[#allocation2 + $0x370] sm:$0xff]
    %v1554 = vld [vmem:[#allocation2 + $0x378] sm:$0xff]
    %v1555 = vld [vmem:[#allocation2 + $0x380] sm:$0xff]
    %v1556 = vld [vmem:[#allocation2 + $0x388] sm:$0xff]
    %v1557 = vld [vmem:[#allocation2 + $0x390] sm:$0xff]
    %v1558 = vld [vmem:[#allocation2 + $0x398] sm:$0xff]
    %v1559 = vld [vmem:[#allocation2 + $0x3a0] sm:$0xff]
    %v1560 = vld [vmem:[#allocation2 + $0x3a8] sm:$0xff]
    %v1561 = vld [vmem:[#allocation2 + $0x3b0] sm:$0xff]
    %v1562 = vld [vmem:[#allocation2 + $0x3b8] sm:$0xff]
    %v1563 = vld [vmem:[#allocation2 + $0x3c0] sm:$0xff]
    %v1564 = vld [vmem:[#allocation2 + $0x3c8] sm:$0xff]
    %v1565 = vld [vmem:[#allocation2 + $0x3d0] sm:$0xff]
    %v1566 = vld [vmem:[#allocation2 + $0x3d8] sm:$0xff]
    %v1567 = vld [vmem:[#allocation2 + $0x3e0] sm:$0xff]
    %v1568 = vld [vmem:[#allocation2 + $0x3e8] sm:$0xff]
    %v1569 = vld [vmem:[#allocation2 + $0x3f0] sm:$0xff]
    %v1570 = vld [vmem:[#allocation2 + $0x3f8] sm:$0xff]
    %v1571 = vld [vmem:[#allocation2 + $0x400] sm:$0xff]
    %v1572 = vld [vmem:[#allocation2 + $0x408] sm:$0xff]
    %v1573 = vld [vmem:[#allocation2 + $0x410] sm:$0xff]
    %v1574 = vld [vmem:[#allocation2 + $0x418] sm:$0xff]
    %v1575 = vld [vmem:[#allocation2 + $0x420] sm:$0xff]
    %v1576 = vld [vmem:[#allocation2 + $0x428] sm:$0xff]
    %v1577 = vld [vmem:[#allocation2 + $0x430] sm:$0xff]
    %v1578 = vld [vmem:[#allocation2 + $0x438] sm:$0xff]
    %v1579 = vld [vmem:[#allocation2 + $0x440] sm:$0xff]
    %v1580 = vld [vmem:[#allocation2 + $0x448] sm:$0xff]
    %v1581 = vld [vmem:[#allocation2 + $0x450] sm:$0xff]
    %v1582 = vld [vmem:[#allocation2 + $0x458] sm:$0xff]
    %v1583 = vld [vmem:[#allocation2 + $0x460] sm:$0xff]
    %v1584 = vld [vmem:[#allocation2 + $0x468] sm:$0xff]
    %v1585 = vld [vmem:[#allocation2 + $0x470] sm:$0xff]
    %v1586 = vld [vmem:[#allocation2 + $0x478] sm:$0xff]
    %v1587 = vld [vmem:[#allocation2 + $0x480] sm:$0xff]
    %v1588 = vld [vmem:[#allocation2 + $0x488] sm:$0xff]
    %v1589 = vld [vmem:[#allocation2 + $0x490] sm:$0xff]
    %v1590 = vld [vmem:[#allocation2 + $0x498] sm:$0xff]
    %v1591 = vld [vmem:[#allocation2 + $0x4a0] sm:$0xff]
    %v1592 = vld [vmem:[#allocation2 + $0x4a8] sm:$0xff]
    %v1593 = vld [vmem:[#allocation2 + $0x4b0] sm:$0xff]
    %v1594 = vld [vmem:[#allocation2 + $0x4b8] sm:$0xff]
    %v1595 = vld [vmem:[#allocation2 + $0x4c0] sm:$0xff]
    %v1596 = vld [vmem:[#allocation2 + $0x4c8] sm:$0xff]
    %v1597 = vld [vmem:[#allocation2 + $0x4d0] sm:$0xff]
    %v1598 = vld [vmem:[#allocation2 + $0x4d8] sm:$0xff]
    %v1599 = vld [vmem:[#allocation2 + $0x4e0] sm:$0xff]
    %v1600 = vld [vmem:[#allocation2 + $0x4e8] sm:$0xff]
    %v1601 = vld [vmem:[#allocation2 + $0x4f0] sm:$0xff]
    %v1602 = vld [vmem:[#allocation2 + $0x4f8] sm:$0xff]
    %v1603 = vld [vmem:[#allocation2 + $0x500] sm:$0xff]
    %v1604 = vld [vmem:[#allocation2 + $0x508] sm:$0xff]
    %v1605 = vld [vmem:[#allocation2 + $0x510] sm:$0xff]
    %v1606 = vld [vmem:[#allocation2 + $0x518] sm:$0xff]
    %v1607 = vld [vmem:[#allocation2 + $0x520] sm:$0xff]
    %v1608 = vld [vmem:[#allocation2 + $0x528] sm:$0xff]
    %v1609 = vld [vmem:[#allocation2 + $0x530] sm:$0xff]
    %v1610 = vld [vmem:[#allocation2 + $0x538] sm:$0xff]
    %v1611 = vld [vmem:[#allocation2 + $0x540] sm:$0xff]
    %v1612 = vld [vmem:[#allocation2 + $0x548] sm:$0xff]
    %v1613 = vld [vmem:[#allocation2 + $0x550] sm:$0xff]
    %v1614 = vld [vmem:[#allocation2 + $0x558] sm:$0xff]
    %v1615 = vld [vmem:[#allocation2 + $0x560] sm:$0xff]
    %v1616 = vld [vmem:[#allocation2 + $0x568] sm:$0xff]
    %v1617 = vld [vmem:[#allocation2 + $0x570] sm:$0xff]
    %v1618 = vld [vmem:[#allocation2 + $0x578] sm:$0xff]
    %v1619 = vld [vmem:[#allocation2 + $0x580] sm:$0xff]
    %v1620 = vld [vmem:[#allocation2 + $0x588] sm:$0xff]
    %v1621 = vld [vmem:[#allocation2 + $0x590] sm:$0xff]
    %v1622 = vld [vmem:[#allocation2 + $0x598] sm:$0xff]
    %v1623 = vld [vmem:[#allocation2 + $0x5a0] sm:$0xff]
    %v1624 = vld [vmem:[#allocation2 + $0x5a8] sm:$0xff]
    %v1625 = vld [vmem:[#allocation2 + $0x5b0] sm:$0xff]
    %v1626 = vld [vmem:[#allocation2 + $0x5b8] sm:$0xff]
    %v1627 = vld [vmem:[#allocation2 + $0x5c0] sm:$0xff]
    %v1628 = vld [vmem:[#allocation2 + $0x5c8] sm:$0xff]
    %v1629 = vld [vmem:[#allocation2 + $0x5d0] sm:$0xff]
    %v1630 = vld [vmem:[#allocation2 + $0x5d8] sm:$0xff]
    %v1631 = vld [vmem:[#allocation2 + $0x5e0] sm:$0xff]
    %v1632 = vld [vmem:[#allocation2 + $0x5e8] sm:$0xff]
    %v1633 = vld [vmem:[#allocation2 + $0x5f0] sm:$0xff]
    %v1634 = vld [vmem:[#allocation2 + $0x5f8] sm:$0xff]
    %v1635 = vld [vmem:[#allocation2 + $0x600] sm:$0xff]
    %v1636 = vld [vmem:[#allocation2 + $0x608] sm:$0xff]
    %v1637 = vld [vmem:[#allocation2 + $0x610] sm:$0xff]
    %v1638 = vld [vmem:[#allocation2 + $0x618] sm:$0xff]
    %v1639 = vld [vmem:[#allocation2 + $0x620] sm:$0xff]
    %v1640 = vld [vmem:[#allocation2 + $0x628] sm:$0xff]
    %v1641 = vld [vmem:[#allocation2 + $0x630] sm:$0xff]
    %v1642 = vld [vmem:[#allocation2 + $0x638] sm:$0xff]
    %v1643 = vld [vmem:[#allocation2 + $0x640] sm:$0xff]
    %v1644 = vld [vmem:[#allocation2 + $0x648] sm:$0xff]
    %v1645 = vld [vmem:[#allocation2 + $0x650] sm:$0xff]
    %v1646 = vld [vmem:[#allocation2 + $0x658] sm:$0xff]
    %v1647 = vld [vmem:[#allocation2 + $0x660] sm:$0xff]
    %v1648 = vld [vmem:[#allocation2 + $0x668] sm:$0xff]
    %v1649 = vld [vmem:[#allocation2 + $0x670] sm:$0xff]
    %v1650 = vld [vmem:[#allocation2 + $0x678] sm:$0xff]
    %v1651 = vld [vmem:[#allocation2 + $0x680] sm:$0xff]
    %v1652 = vld [vmem:[#allocation2 + $0x688] sm:$0xff]
    %v1653 = vld [vmem:[#allocation2 + $0x690] sm:$0xff]
    %v1654 = vld [vmem:[#allocation2 + $0x698] sm:$0xff]
    %v1655 = vld [vmem:[#allocation2 + $0x6a0] sm:$0xff]
    %v1656 = vld [vmem:[#allocation2 + $0x6a8] sm:$0xff]
    %v1657 = vld [vmem:[#allocation2 + $0x6b0] sm:$0xff]
    %v1658 = vld [vmem:[#allocation2 + $0x6b8] sm:$0xff]
    %v1659 = vld [vmem:[#allocation2 + $0x6c0] sm:$0xff]
    %v1660 = vld [vmem:[#allocation2 + $0x6c8] sm:$0xff]
    %v1661 = vld [vmem:[#allocation2 + $0x6d0] sm:$0xff]
    %v1662 = vld [vmem:[#allocation2 + $0x6d8] sm:$0xff]
    %v1663 = vld [vmem:[#allocation2 + $0x6e0] sm:$0xff]
    %v1664 = vld [vmem:[#allocation2 + $0x6e8] sm:$0xff]
    %v1665 = vld [vmem:[#allocation2 + $0x6f0] sm:$0xff]
    %v1666 = vld [vmem:[#allocation2 + $0x6f8] sm:$0xff]
    %v1667 = vld [vmem:[#allocation2 + $0x700] sm:$0xff]
    %v1668 = vld [vmem:[#allocation2 + $0x708] sm:$0xff]
    %v1669 = vld [vmem:[#allocation2 + $0x710] sm:$0xff]
    %v1670 = vld [vmem:[#allocation2 + $0x718] sm:$0xff]
    %v1671 = vld [vmem:[#allocation2 + $0x720] sm:$0xff]
    %v1672 = vld [vmem:[#allocation2 + $0x728] sm:$0xff]
    %v1673 = vld [vmem:[#allocation2 + $0x730] sm:$0xff]
    %v1674 = vld [vmem:[#allocation2 + $0x738] sm:$0xff]
    %v1675 = vld [vmem:[#allocation2 + $0x740] sm:$0xff]
    %v1676 = vld [vmem:[#allocation2 + $0x748] sm:$0xff]
    %v1677 = vld [vmem:[#allocation2 + $0x750] sm:$0xff]
    %v1678 = vld [vmem:[#allocation2 + $0x758] sm:$0xff]
    %v1679 = vld [vmem:[#allocation2 + $0x760] sm:$0xff]
    %v1680 = vld [vmem:[#allocation2 + $0x768] sm:$0xff]
    %v1681 = vld [vmem:[#allocation2 + $0x770] sm:$0xff]
    %v1682 = vld [vmem:[#allocation2 + $0x778] sm:$0xff]
    %v1683 = vld [vmem:[#allocation2 + $0x780] sm:$0xff]
    %v1684 = vld [vmem:[#allocation2 + $0x788] sm:$0xff]
    %v1685 = vld [vmem:[#allocation2 + $0x790] sm:$0xff]
    %v1686 = vld [vmem:[#allocation2 + $0x798] sm:$0xff]
    %v1687 = vld [vmem:[#allocation2 + $0x7a0] sm:$0xff]
    %v1688 = vld [vmem:[#allocation2 + $0x7a8] sm:$0xff]
    %v1689 = vld [vmem:[#allocation2 + $0x7b0] sm:$0xff]
    %v1690 = vld [vmem:[#allocation2 + $0x7b8] sm:$0xff]
    %v1691 = vld [vmem:[#allocation2 + $0x7c0] sm:$0xff]
    %v1692 = vld [vmem:[#allocation2 + $0x7c8] sm:$0xff]
    %v1693 = vld [vmem:[#allocation2 + $0x7d0] sm:$0xff]
    %v1694 = vld [vmem:[#allocation2 + $0x7d8] sm:$0xff]
    %v1695 = vld [vmem:[#allocation2 + $0x7e0] sm:$0xff]
    %v1696 = vld [vmem:[#allocation2 + $0x7e8] sm:$0xff]
    %v1697 = vld [vmem:[#allocation2 + $0x7f0] sm:$0xff]
    %v1698 = vld [vmem:[#allocation2 + $0x7f8] sm:$0xff]
    %v1699 = vld [vmem:[#allocation2 + $0x800] sm:$0xff]
    %v1700 = vld [vmem:[#allocation2 + $0x808] sm:$0xff]
    %v1701 = vld [vmem:[#allocation2 + $0x810] sm:$0xff]
    %v1702 = vld [vmem:[#allocation2 + $0x818] sm:$0xff]
    %v1703 = vld [vmem:[#allocation2 + $0x820] sm:$0xff]
    %v1704 = vld [vmem:[#allocation2 + $0x828] sm:$0xff]
    %v1705 = vld [vmem:[#allocation2 + $0x830] sm:$0xff]
    %v1706 = vld [vmem:[#allocation2 + $0x838] sm:$0xff]
    %v1707 = vld [vmem:[#allocation2 + $0x840] sm:$0xff]
    %v1708 = vld [vmem:[#allocation2 + $0x848] sm:$0xff]
    %v1709 = vld [vmem:[#allocation2 + $0x850] sm:$0xff]
    %v1710 = vld [vmem:[#allocation2 + $0x858] sm:$0xff]
    %v1711 = vld [vmem:[#allocation2 + $0x860] sm:$0xff]
    %v1712 = vld [vmem:[#allocation2 + $0x868] sm:$0xff]
    %v1713 = vld [vmem:[#allocation2 + $0x870] sm:$0xff]
    %v1714 = vld [vmem:[#allocation2 + $0x878] sm:$0xff]
    %v1715 = vld [vmem:[#allocation2 + $0x880] sm:$0xff]
    %v1716 = vld [vmem:[#allocation2 + $0x888] sm:$0xff]
    %v1717 = vld [vmem:[#allocation2 + $0x890] sm:$0xff]
    %v1718 = vld [vmem:[#allocation2 + $0x898] sm:$0xff]
    %v1719 = vld [vmem:[#allocation2 + $0x8a0] sm:$0xff]
    %v1720 = vld [vmem:[#allocation2 + $0x8a8] sm:$0xff]
    %v1721 = vld [vmem:[#allocation2 + $0x8b0] sm:$0xff]
    %v1722 = vld [vmem:[#allocation2 + $0x8b8] sm:$0xff]
    %v1723 = vld [vmem:[#allocation2 + $0x8c0] sm:$0xff]
    %v1724 = vld [vmem:[#allocation2 + $0x8c8] sm:$0xff]
    %v1725 = vld [vmem:[#allocation2 + $0x8d0] sm:$0xff]
    %v1726 = vld [vmem:[#allocation2 + $0x8d8] sm:$0xff]
    %v1727 = vld [vmem:[#allocation2 + $0x8e0] sm:$0xff]
    %v1728 = vld [vmem:[#allocation2 + $0x8e8] sm:$0xff]
    %v1729 = vld [vmem:[#allocation2 + $0x8f0] sm:$0xff]
    %v1730 = vld [vmem:[#allocation2 + $0x8f8] sm:$0xff]
    %v1731 = vld [vmem:[#allocation2 + $0x900] sm:$0xff]
    %v1732 = vld [vmem:[#allocation2 + $0x908] sm:$0xff]
    %v1733 = vld [vmem:[#allocation2 + $0x910] sm:$0xff]
    %v1734 = vld [vmem:[#allocation2 + $0x918] sm:$0xff]
    %v1735 = vld [vmem:[#allocation2 + $0x920] sm:$0xff]
    %v1736 = vld [vmem:[#allocation2 + $0x928] sm:$0xff]
    %v1737 = vld [vmem:[#allocation2 + $0x930] sm:$0xff]
    %v1738 = vld [vmem:[#allocation2 + $0x938] sm:$0xff]
    %v1739 = vld [vmem:[#allocation2 + $0x940] sm:$0xff]
    %v1740 = vld [vmem:[#allocation2 + $0x948] sm:$0xff]
    %v1741 = vld [vmem:[#allocation2 + $0x950] sm:$0xff]
    %v1742 = vld [vmem:[#allocation2 + $0x958] sm:$0xff]
    %v1743 = vld [vmem:[#allocation2 + $0x960] sm:$0xff]
    %v1744 = vld [vmem:[#allocation2 + $0x968] sm:$0xff]
    %v1745 = vld [vmem:[#allocation2 + $0x970] sm:$0xff]
    %v1746 = vld [vmem:[#allocation2 + $0x978] sm:$0xff]
    %v1747 = vld [vmem:[#allocation2 + $0x980] sm:$0xff]
    %v1748 = vld [vmem:[#allocation2 + $0x988] sm:$0xff]
    %v1749 = vld [vmem:[#allocation2 + $0x990] sm:$0xff]
    %v1750 = vld [vmem:[#allocation2 + $0x998] sm:$0xff]
    %v1751 = vld [vmem:[#allocation2 + $0x9a0] sm:$0xff]
    %v1752 = vld [vmem:[#allocation2 + $0x9a8] sm:$0xff]
    %v1753 = vld [vmem:[#allocation2 + $0x9b0] sm:$0xff]
    %v1754 = vld [vmem:[#allocation2 + $0x9b8] sm:$0xff]
    %v1755 = vld [vmem:[#allocation2 + $0x9c0] sm:$0xff]
    %v1756 = vld [vmem:[#allocation2 + $0x9c8] sm:$0xff]
    %v1757 = vld [vmem:[#allocation2 + $0x9d0] sm:$0xff]
    %v1758 = vld [vmem:[#allocation2 + $0x9d8] sm:$0xff]
    %v1759 = vld [vmem:[#allocation2 + $0x9e0] sm:$0xff]
    %v1760 = vld [vmem:[#allocation2 + $0x9e8] sm:$0xff]
    %v1761 = vld [vmem:[#allocation2 + $0x9f0] sm:$0xff]
    %v1762 = vld [vmem:[#allocation2 + $0x9f8] sm:$0xff]
    %v1763 = vld [vmem:[#allocation2 + $0xa00] sm:$0xff]
    %v1764 = vld [vmem:[#allocation2 + $0xa08] sm:$0xff]
    %v1765 = vld [vmem:[#allocation2 + $0xa10] sm:$0xff]
    %v1766 = vld [vmem:[#allocation2 + $0xa18] sm:$0xff]
    %v1767 = vld [vmem:[#allocation2 + $0xa20] sm:$0xff]
    %v1768 = vld [vmem:[#allocation2 + $0xa28] sm:$0xff]
    %v1769 = vld [vmem:[#allocation2 + $0xa30] sm:$0xff]
    %v1770 = vld [vmem:[#allocation2 + $0xa38] sm:$0xff]
    %v1771 = vld [vmem:[#allocation2 + $0xa40] sm:$0xff]
    %v1772 = vld [vmem:[#allocation2 + $0xa48] sm:$0xff]
    %v1773 = vld [vmem:[#allocation2 + $0xa50] sm:$0xff]
    %v1774 = vld [vmem:[#allocation2 + $0xa58] sm:$0xff]
    %v1775 = vld [vmem:[#allocation2 + $0xa60] sm:$0xff]
    %v1776 = vld [vmem:[#allocation2 + $0xa68] sm:$0xff]
    %v1777 = vld [vmem:[#allocation2 + $0xa70] sm:$0xff]
    %v1778 = vld [vmem:[#allocation2 + $0xa78] sm:$0xff]
    %v1779 = vld [vmem:[#allocation2 + $0xa80] sm:$0xff]
    %v1780 = vld [vmem:[#allocation2 + $0xa88] sm:$0xff]
    %v1781 = vld [vmem:[#allocation2 + $0xa90] sm:$0xff]
    %v1782 = vld [vmem:[#allocation2 + $0xa98] sm:$0xff]
    %v1783 = vld [vmem:[#allocation2 + $0xaa0] sm:$0xff]
    %v1784 = vld [vmem:[#allocation2 + $0xaa8] sm:$0xff]
    %v1785 = vld [vmem:[#allocation2 + $0xab0] sm:$0xff]
    %v1786 = vld [vmem:[#allocation2 + $0xab8] sm:$0xff]
    %v1787 = vld [vmem:[#allocation2 + $0xac0] sm:$0xff]
    %v1788 = vld [vmem:[#allocation2 + $0xac8] sm:$0xff]
    %v1789 = vld [vmem:[#allocation2 + $0xad0] sm:$0xff]
    %v1790 = vld [vmem:[#allocation2 + $0xad8] sm:$0xff]
    %v1791 = vld [vmem:[#allocation2 + $0xae0] sm:$0xff]
    %v1792 = vld [vmem:[#allocation2 + $0xae8] sm:$0xff]
    %v1793 = vld [vmem:[#allocation2 + $0xaf0] sm:$0xff]
    %v1794 = vld [vmem:[#allocation2 + $0xaf8] sm:$0xff]
    %v1795 = vld [vmem:[#allocation2 + $0xb00] sm:$0xff]
    %v1796 = vld [vmem:[#allocation2 + $0xb08] sm:$0xff]
    %v1797 = vld [vmem:[#allocation2 + $0xb10] sm:$0xff]
    %v1798 = vld [vmem:[#allocation2 + $0xb18] sm:$0xff]
    %v1799 = vld [vmem:[#allocation2 + $0xb20] sm:$0xff]
    %v1800 = vld [vmem:[#allocation2 + $0xb28] sm:$0xff]
    %v1801 = vld [vmem:[#allocation2 + $0xb30] sm:$0xff]
    %v1802 = vld [vmem:[#allocation2 + $0xb38] sm:$0xff]
    %v1803 = vld [vmem:[#allocation2 + $0xb40] sm:$0xff]
    %v1804 = vld [vmem:[#allocation2 + $0xb48] sm:$0xff]
    %v1805 = vld [vmem:[#allocation2 + $0xb50] sm:$0xff]
    %v1806 = vld [vmem:[#allocation2 + $0xb58] sm:$0xff]
    %v1807 = vld [vmem:[#allocation2 + $0xb60] sm:$0xff]
    %v1808 = vld [vmem:[#allocation2 + $0xb68] sm:$0xff]
    %v1809 = vld [vmem:[#allocation2 + $0xb70] sm:$0xff]
    %v1810 = vld [vmem:[#allocation2 + $0xb78] sm:$0xff]
    %v1811 = vld [vmem:[#allocation2 + $0xb80] sm:$0xff]
    %v1812 = vld [vmem:[#allocation2 + $0xb88] sm:$0xff]
    %v1813 = vld [vmem:[#allocation2 + $0xb90] sm:$0xff]
    %v1814 = vld [vmem:[#allocation2 + $0xb98] sm:$0xff]
    %v1815 = vld [vmem:[#allocation2 + $0xba0] sm:$0xff]
    %v1816 = vld [vmem:[#allocation2 + $0xba8] sm:$0xff]
    %v1817 = vld [vmem:[#allocation2 + $0xbb0] sm:$0xff]
    %v1818 = vld [vmem:[#allocation2 + $0xbb8] sm:$0xff]
    %v1819 = vld [vmem:[#allocation2 + $0xbc0] sm:$0xff]
    %v1820 = vld [vmem:[#allocation2 + $0xbc8] sm:$0xff]
    %v1821 = vld [vmem:[#allocation2 + $0xbd0] sm:$0xff]
    %v1822 = vld [vmem:[#allocation2 + $0xbd8] sm:$0xff]
    %v1823 = vld [vmem:[#allocation2 + $0xbe0] sm:$0xff]
    %v1824 = vld [vmem:[#allocation2 + $0xbe8] sm:$0xff]
    %v1825 = vld [vmem:[#allocation2 + $0xbf0] sm:$0xff]
    %v1826 = vld [vmem:[#allocation2 + $0xbf8] sm:$0xff]
    %v1827 = vld [vmem:[#allocation2 + $0xc00] sm:$0xff]
    %v1828 = vld [vmem:[#allocation2 + $0xc08] sm:$0xff]
    %v1829 = vld [vmem:[#allocation2 + $0xc10] sm:$0xff]
    %v1830 = vld [vmem:[#allocation2 + $0xc18] sm:$0xff]
    %v1831 = vld [vmem:[#allocation2 + $0xc20] sm:$0xff]
    %v1832 = vld [vmem:[#allocation2 + $0xc28] sm:$0xff]
    %v1833 = vld [vmem:[#allocation2 + $0xc30] sm:$0xff]
    %v1834 = vld [vmem:[#allocation2 + $0xc38] sm:$0xff]
    %v1835 = vld [vmem:[#allocation2 + $0xc40] sm:$0xff]
    %v1836 = vld [vmem:[#allocation2 + $0xc48] sm:$0xff]
    %v1837 = vld [vmem:[#allocation2 + $0xc50] sm:$0xff]
    %v1838 = vld [vmem:[#allocation2 + $0xc58] sm:$0xff]
    %v1839 = vld [vmem:[#allocation2 + $0xc60] sm:$0xff]
    %v1840 = vld [vmem:[#allocation2 + $0xc68] sm:$0xff]
    %v1841 = vld [vmem:[#allocation2 + $0xc70] sm:$0xff]
    %v1842 = vld [vmem:[#allocation2 + $0xc78] sm:$0xff]
    %v1843 = vld [vmem:[#allocation2 + $0xc80] sm:$0xff]
    %v1844 = vld [vmem:[#allocation2 + $0xc88] sm:$0xff]
    %v1845 = vld [vmem:[#allocation2 + $0xc90] sm:$0xff]
    %v1846 = vld [vmem:[#allocation2 + $0xc98] sm:$0xff]
    %v1847 = vld [vmem:[#allocation2 + $0xca0] sm:$0xff]
    %v1848 = vld [vmem:[#allocation2 + $0xca8] sm:$0xff]
    %v1849 = vld [vmem:[#allocation2 + $0xcb0] sm:$0xff]
    %v1850 = vld [vmem:[#allocation2 + $0xcb8] sm:$0xff]
    %v1851 = vld [vmem:[#allocation2 + $0xcc0] sm:$0xff]
    %v1852 = vld [vmem:[#allocation2 + $0xcc8] sm:$0xff]
    %v1853 = vld [vmem:[#allocation2 + $0xcd0] sm:$0xff]
    %v1854 = vld [vmem:[#allocation2 + $0xcd8] sm:$0xff]
    %v1855 = vld [vmem:[#allocation2 + $0xce0] sm:$0xff]
    %v1856 = vld [vmem:[#allocation2 + $0xce8] sm:$0xff]
    %v1857 = vld [vmem:[#allocation2 + $0xcf0] sm:$0xff]
    %v1858 = vld [vmem:[#allocation2 + $0xcf8] sm:$0xff]
    %v1859 = vld [vmem:[#allocation2 + $0xd00] sm:$0xff]
    %v1860 = vld [vmem:[#allocation2 + $0xd08] sm:$0xff]
    %v1861 = vld [vmem:[#allocation2 + $0xd10] sm:$0xff]
    %v1862 = vld [vmem:[#allocation2 + $0xd18] sm:$0xff]
    %v1863 = vld [vmem:[#allocation2 + $0xd20] sm:$0xff]
    %v1864 = vld [vmem:[#allocation2 + $0xd28] sm:$0xff]
    %v1865 = vld [vmem:[#allocation2 + $0xd30] sm:$0xff]
    %v1866 = vld [vmem:[#allocation2 + $0xd38] sm:$0xff]
    %v1867 = vld [vmem:[#allocation2 + $0xd40] sm:$0xff]
    %v1868 = vld [vmem:[#allocation2 + $0xd48] sm:$0xff]
    %v1869 = vld [vmem:[#allocation2 + $0xd50] sm:$0xff]
    %v1870 = vld [vmem:[#allocation2 + $0xd58] sm:$0xff]
    %v1871 = vld [vmem:[#allocation2 + $0xd60] sm:$0xff]
    %v1872 = vld [vmem:[#allocation2 + $0xd68] sm:$0xff]
    %v1873 = vld [vmem:[#allocation2 + $0xd70] sm:$0xff]
    %v1874 = vld [vmem:[#allocation2 + $0xd78] sm:$0xff]
    %v1875 = vld [vmem:[#allocation2 + $0xd80] sm:$0xff]
    %v1876 = vld [vmem:[#allocation2 + $0xd88] sm:$0xff]
    %v1877 = vld [vmem:[#allocation2 + $0xd90] sm:$0xff]
    %v1878 = vld [vmem:[#allocation2 + $0xd98] sm:$0xff]
    %v1879 = vld [vmem:[#allocation2 + $0xda0] sm:$0xff]
    %v1880 = vld [vmem:[#allocation2 + $0xda8] sm:$0xff]
    %v1881 = vld [vmem:[#allocation2 + $0xdb0] sm:$0xff]
    %v1882 = vld [vmem:[#allocation2 + $0xdb8] sm:$0xff]
    %v1883 = vld [vmem:[#allocation2 + $0xdc0] sm:$0xff]
    %v1884 = vld [vmem:[#allocation2 + $0xdc8] sm:$0xff]
    %v1885 = vld [vmem:[#allocation2 + $0xdd0] sm:$0xff]
    %v1886 = vld [vmem:[#allocation2 + $0xdd8] sm:$0xff]
    %v1887 = vld [vmem:[#allocation2 + $0xde0] sm:$0xff]
    %v1888 = vld [vmem:[#allocation2 + $0xde8] sm:$0xff]
    %v1889 = vld [vmem:[#allocation2 + $0xdf0] sm:$0xff]
    %v1890 = vld [vmem:[#allocation2 + $0xdf8] sm:$0xff]
    %v1891 = vld [vmem:[#allocation2 + $0xe00] sm:$0xff]
    %v1892 = vld [vmem:[#allocation2 + $0xe08] sm:$0xff]
    %v1893 = vld [vmem:[#allocation2 + $0xe10] sm:$0xff]
    %v1894 = vld [vmem:[#allocation2 + $0xe18] sm:$0xff]
    %v1895 = vld [vmem:[#allocation2 + $0xe20] sm:$0xff]
    %v1896 = vld [vmem:[#allocation2 + $0xe28] sm:$0xff]
    %v1897 = vld [vmem:[#allocation2 + $0xe30] sm:$0xff]
    %v1898 = vld [vmem:[#allocation2 + $0xe38] sm:$0xff]
    %v1899 = vld [vmem:[#allocation2 + $0xe40] sm:$0xff]
    %v1900 = vld [vmem:[#allocation2 + $0xe48] sm:$0xff]
    %v1901 = vld [vmem:[#allocation2 + $0xe50] sm:$0xff]
    %v1902 = vld [vmem:[#allocation2 + $0xe58] sm:$0xff]
    %v1903 = vld [vmem:[#allocation2 + $0xe60] sm:$0xff]
    %v1904 = vld [vmem:[#allocation2 + $0xe68] sm:$0xff]
    %v1905 = vld [vmem:[#allocation2 + $0xe70] sm:$0xff]
    %v1906 = vld [vmem:[#allocation2 + $0xe78] sm:$0xff]
    %v1907 = vld [vmem:[#allocation2 + $0xe80] sm:$0xff]
    %v1908 = vld [vmem:[#allocation2 + $0xe88] sm:$0xff]
    %v1909 = vld [vmem:[#allocation2 + $0xe90] sm:$0xff]
    %v1910 = vld [vmem:[#allocation2 + $0xe98] sm:$0xff]
    %v1911 = vld [vmem:[#allocation2 + $0xea0] sm:$0xff]
    %v1912 = vld [vmem:[#allocation2 + $0xea8] sm:$0xff]
    %v1913 = vld [vmem:[#allocation2 + $0xeb0] sm:$0xff]
    %v1914 = vld [vmem:[#allocation2 + $0xeb8] sm:$0xff]
    %v1915 = vld [vmem:[#allocation2 + $0xec0] sm:$0xff]
    %v1916 = vld [vmem:[#allocation2 + $0xec8] sm:$0xff]
    %v1917 = vld [vmem:[#allocation2 + $0xed0] sm:$0xff]
    %v1918 = vld [vmem:[#allocation2 + $0xed8] sm:$0xff]
    %v1919 = vld [vmem:[#allocation2 + $0xee0] sm:$0xff]
    %v1920 = vld [vmem:[#allocation2 + $0xee8] sm:$0xff]
    %v1921 = vld [vmem:[#allocation2 + $0xef0] sm:$0xff]
    %v1922 = vld [vmem:[#allocation2 + $0xef8] sm:$0xff]
    %v1923 = vld [vmem:[#allocation2 + $0xf00] sm:$0xff]
    %v1924 = vld [vmem:[#allocation2 + $0xf08] sm:$0xff]
    %v1925 = vld [vmem:[#allocation2 + $0xf10] sm:$0xff]
    %v1926 = vld [vmem:[#allocation2 + $0xf18] sm:$0xff]
    %v1927 = vld [vmem:[#allocation2 + $0xf20] sm:$0xff]
    %v1928 = vld [vmem:[#allocation2 + $0xf28] sm:$0xff]
    %v1929 = vld [vmem:[#allocation2 + $0xf30] sm:$0xff]
    %v1930 = vld [vmem:[#allocation2 + $0xf38] sm:$0xff]
    %v1931 = vld [vmem:[#allocation2 + $0xf40] sm:$0xff]
    %v1932 = vld [vmem:[#allocation2 + $0xf48] sm:$0xff]
    %v1933 = vld [vmem:[#allocation2 + $0xf50] sm:$0xff]
    %v1934 = vld [vmem:[#allocation2 + $0xf58] sm:$0xff]
    %v1935 = vld [vmem:[#allocation2 + $0xf60] sm:$0xff]
    %v1936 = vld [vmem:[#allocation2 + $0xf68] sm:$0xff]
    %v1937 = vld [vmem:[#allocation2 + $0xf70] sm:$0xff]
    %v1938 = vld [vmem:[#allocation2 + $0xf78] sm:$0xff]
    %v1939 = vld [vmem:[#allocation2 + $0xf80] sm:$0xff]
    %v1940 = vld [vmem:[#allocation2 + $0xf88] sm:$0xff]
    %v1941 = vld [vmem:[#allocation2 + $0xf90] sm:$0xff]
    %v1942 = vld [vmem:[#allocation2 + $0xf98] sm:$0xff]
    %v1943 = vld [vmem:[#allocation2 + $0xfa0] sm:$0xff]
    %v1944 = vld [vmem:[#allocation2 + $0xfa8] sm:$0xff]
    %v1945 = vld [vmem:[#allocation2 + $0xfb0] sm:$0xff]
    %v1946 = vld [vmem:[#allocation2 + $0xfb8] sm:$0xff]
    %v1947 = vld [vmem:[#allocation2 + $0xfc0] sm:$0xff]
    %v1948 = vld [vmem:[#allocation2 + $0xfc8] sm:$0xff]
    %v1949 = vld [vmem:[#allocation2 + $0xfd0] sm:$0xff]
    %v1950 = vld [vmem:[#allocation2 + $0xfd8] sm:$0xff]
    %v1951 = vld [vmem:[#allocation2 + $0xfe0] sm:$0xff]
    %v1952 = vld [vmem:[#allocation2 + $0xfe8] sm:$0xff]
    %v1953 = vld [vmem:[#allocation2 + $0xff0] sm:$0xff]
    %v1954 = vld [vmem:[#allocation2 + $0xff8] sm:$0xff]
    %v1955 = vld [vmem:[#allocation8] sm:$0xf]
    %v1957 = vlaneseq
    %v1958 = vshrl.u32 %v1957, 7
    %v1959 = vsub.s32 0, %v1958
    %v1960 = vrot.slane %v1955, %v1959
    %v1961 = vlaneseq
    %v1962 = vshrl.u32 %v1961, 7
    %v1963 = vsub.s32 1, %v1962
    %v1964 = vrot.slane %v1955, %v1963
    %v1965 = vlaneseq
    %v1966 = vshrl.u32 %v1965, 7
    %v1967 = vsub.s32 2, %v1966
    %v1968 = vrot.slane %v1955, %v1967
    %v1969 = vlaneseq
    %v1970 = vshrl.u32 %v1969, 7
    %v1971 = vsub.s32 3, %v1970
    %v1972 = vrot.slane %v1955, %v1971
    %1977 = vmatprep.subr.mxu0 %v1444
    %1978 = vmatpush1.msra.mxu0 %v1443
    %1979 = vmatprep.subr.mxu0 %v1448
    %1980 = vmatpush1.msra.mxu0 %v1447
    %1981 = vmatprep.subr.mxu0 %v1452
    %1982 = vmatpush1.msra.mxu0 %v1451
    %1983 = vmatprep.subr.mxu0 %v1456
    %1984 = vmatpush1.msra.mxu0 %v1455
    %1985 = vmatprep.subr.mxu0 %v1460
    %1986 = vmatpush1.msra.mxu0 %v1459
    %1987 = vmatprep.subr.mxu0 %v1464
    %1988 = vmatpush1.msra.mxu0 %v1463
    %1989 = vmatprep.subr.mxu0 %v1468
    %1990 = vmatpush1.msra.mxu0 %v1467
    %1991 = vmatprep.subr.mxu0 %v1472
    %1992 = vmatpush1.msra.mxu0 %v1471
    %1993 = vmatprep.subr.mxu0 %v1476
    %1994 = vmatpush1.msra.mxu0 %v1475
    %1995 = vmatprep.subr.mxu0 %v1480
    %1996 = vmatpush1.msra.mxu0 %v1479
    %1997 = vmatprep.subr.mxu0 %v1484
    %1998 = vmatpush1.msra.mxu0 %v1483
    %1999 = vmatprep.subr.mxu0 %v1488
    %2000 = vmatpush1.msra.mxu0 %v1487
    %2001 = vmatprep.subr.mxu0 %v1492
    %2002 = vmatpush1.msra.mxu0 %v1491
    %2003 = vmatprep.subr.mxu0 %v1496
    %2004 = vmatpush1.msra.mxu0 %v1495
    %2005 = vmatprep.subr.mxu0 %v1500
    %2006 = vmatpush1.msra.mxu0 %v1499
    %2007 = vmatprep.subr.mxu0 %v1504
    %2008 = vmatpush1.msra.mxu0 %v1503
    %2009 = vmatprep.subr.mxu0 %v1508
    %2010 = vmatpush1.msra.mxu0 %v1507
    %2011 = vmatprep.subr.mxu0 %v1512
    %2012 = vmatpush1.msra.mxu0 %v1511
    %2013 = vmatprep.subr.mxu0 %v1516
    %2014 = vmatpush1.msra.mxu0 %v1515
    %2015 = vmatprep.subr.mxu0 %v1520
    %2016 = vmatpush1.msra.mxu0 %v1519
    %2017 = vmatprep.subr.mxu0 %v1524
    %2018 = vmatpush1.msra.mxu0 %v1523
    %2019 = vmatprep.subr.mxu0 %v1528
    %2020 = vmatpush1.msra.mxu0 %v1527
    %2021 = vmatprep.subr.mxu0 %v1532
    %2022 = vmatpush1.msra.mxu0 %v1531
    %2023 = vmatprep.subr.mxu0 %v1536
    %2024 = vmatpush1.msra.mxu0 %v1535
    %2025 = vmatprep.subr.mxu0 %v1540
    %2026 = vmatpush1.msra.mxu0 %v1539
    %2027 = vmatprep.subr.mxu0 %v1544
    %2028 = vmatpush1.msra.mxu0 %v1543
    %2029 = vmatprep.subr.mxu0 %v1548
    %2030 = vmatpush1.msra.mxu0 %v1547
    %2031 = vmatprep.subr.mxu0 %v1552
    %2032 = vmatpush1.msra.mxu0 %v1551
    %2033 = vmatprep.subr.mxu0 %v1556
    %2034 = vmatpush1.msra.mxu0 %v1555
    %2035 = vmatprep.subr.mxu0 %v1560
    %2036 = vmatpush1.msra.mxu0 %v1559
    %2037 = vmatprep.subr.mxu0 %v1564
    %2038 = vmatpush1.msra.mxu0 %v1563
    %2039 = vmatprep.subr.mxu0 %v1568
    %2040 = vmatpush1.msra.mxu0 %v1567
    %2041 = vmatprep.mubr.f32.mxu0 %v1412
    %2042 = vmatmul.mubr.f32.gmra.mrb[0].mxu0 %v1411
    %v2043 = vpop.f32.mrb[0].mxu0
    %v2044 = vadd.f32 %v1960, %v2043
    %v2045 = vpop.f32.mrb[0].mxu0
    %v2046 = vadd.f32 %v1964, %v2045
    %2047 = vmatprep.mubr.f32.mxu0 %v1420
    %2048 = vmatmul.mubr.f32.gmra.mrb[0].mxu0 %v1419
    %v2049 = vpop.f32.mrb[0].mxu0
    %v2050 = vadd.f32 %v1960, %v2049
    %v2051 = vpop.f32.mrb[0].mxu0
    %v2052 = vadd.f32 %v1964, %v2051
    %2053 = vmatprep.mubr.f32.mxu0 %v1428
    %2054 = vmatmul.mubr.f32.gmra.mrb[0].mxu0 %v1427
    %v2055 = vpop.f32.mrb[0].mxu0
    %v2056 = vadd.f32 %v1960, %v2055
    %v2057 = vpop.f32.mrb[0].mxu0
    %v2058 = vadd.f32 %v1964, %v2057
    %2059 = vmatprep.mubr.f32.mxu0 %v1436
    %2060 = vmatmul.mubr.f32.gmra.mrb[0].mxu0 %v1435
    %v2061 = vpop.f32.mrb[0].mxu0
    %v2062 = vadd.f32 %v1960, %v2061
    %v2063 = vpop.f32.mrb[0].mxu0
    %v2064 = vadd.f32 %v1964, %v2063
    %2065 = vdwg.mxu0
    %2066 = vmatprep.subr.mxu0 %v1572
    %2067 = vmatpush1.msra.mxu0 %v1571
    %2068 = vmatprep.subr.mxu0 %v1576
    %2069 = vmatpush1.msra.mxu0 %v1575
    %2070 = vmatprep.subr.mxu0 %v1580
    %2071 = vmatpush1.msra.mxu0 %v1579
    %2072 = vmatprep.subr.mxu0 %v1584
    %2073 = vmatpush1.msra.mxu0 %v1583
    %2074 = vmatprep.subr.mxu0 %v1588
    %2075 = vmatpush1.msra.mxu0 %v1587
    %2076 = vmatprep.subr.mxu0 %v1592
    %2077 = vmatpush1.msra.mxu0 %v1591
    %2078 = vmatprep.subr.mxu0 %v1596
    %2079 = vmatpush1.msra.mxu0 %v1595
    %2080 = vmatprep.subr.mxu0 %v1600
    %2081 = vmatpush1.msra.mxu0 %v1599
    %2082 = vmatprep.subr.mxu0 %v1604
    %2083 = vmatpush1.msra.mxu0 %v1603
    %2084 = vmatprep.subr.mxu0 %v1608
    %2085 = vmatpush1.msra.mxu0 %v1607
    %2086 = vmatprep.subr.mxu0 %v1612
    %2087 = vmatpush1.msra.mxu0 %v1611
    %2088 = vmatprep.subr.mxu0 %v1616
    %2089 = vmatpush1.msra.mxu0 %v1615
    %2090 = vmatprep.subr.mxu0 %v1620
    %2091 = vmatpush1.msra.mxu0 %v1619
    %2092 = vmatprep.subr.mxu0 %v1624
    %2093 = vmatpush1.msra.mxu0 %v1623
    %2094 = vmatprep.subr.mxu0 %v1628
    %2095 = vmatpush1.msra.mxu0 %v1627
    %2096 = vmatprep.subr.mxu0 %v1632
    %2097 = vmatpush1.msra.mxu0 %v1631
    %2098 = vmatprep.subr.mxu0 %v1636
    %2099 = vmatpush1.msra.mxu0 %v1635
    %2100 = vmatprep.subr.mxu0 %v1640
    %2101 = vmatpush1.msra.mxu0 %v1639
    %2102 = vmatprep.subr.mxu0 %v1644
    %2103 = vmatpush1.msra.mxu0 %v1643
    %2104 = vmatprep.subr.mxu0 %v1648
    %2105 = vmatpush1.msra.mxu0 %v1647
    %2106 = vmatprep.subr.mxu0 %v1652
    %2107 = vmatpush1.msra.mxu0 %v1651
    %2108 = vmatprep.subr.mxu0 %v1656
    %2109 = vmatpush1.msra.mxu0 %v1655
    %2110 = vmatprep.subr.mxu0 %v1660
    %2111 = vmatpush1.msra.mxu0 %v1659
    %2112 = vmatprep.subr.mxu0 %v1664
    %2113 = vmatpush1.msra.mxu0 %v1663
    %2114 = vmatprep.subr.mxu0 %v1668
    %2115 = vmatpush1.msra.mxu0 %v1667
    %2116 = vmatprep.subr.mxu0 %v1672
    %2117 = vmatpush1.msra.mxu0 %v1671
    %2118 = vmatprep.subr.mxu0 %v1676
    %2119 = vmatpush1.msra.mxu0 %v1675
    %2120 = vmatprep.subr.mxu0 %v1680
    %2121 = vmatpush1.msra.mxu0 %v1679
    %2122 = vmatprep.subr.mxu0 %v1684
    %2123 = vmatpush1.msra.mxu0 %v1683
    %2124 = vmatprep.subr.mxu0 %v1688
    %2125 = vmatpush1.msra.mxu0 %v1687
    %2126 = vmatprep.subr.mxu0 %v1692
    %2127 = vmatpush1.msra.mxu0 %v1691
    %2128 = vmatprep.subr.mxu0 %v1696
    %2129 = vmatpush1.msra.mxu0 %v1695
    %2130 = vmatprep.mubr.f32.mxu0 %v1414
    %2131 = vmatmul.mubr.f32.gmra.mrb[0].mxu0 %v1413
    %v2132 = vpop.f32.mrb[0].mxu0
    %v2133 = vadd.f32 %v2044, %v2132
    %v2134 = vpop.f32.mrb[0].mxu0
    %v2135 = vadd.f32 %v2046, %v2134
    %2136 = vmatprep.mubr.f32.mxu0 %v1422
    %2137 = vmatmul.mubr.f32.gmra.mrb[0].mxu0 %v1421
    %v2138 = vpop.f32.mrb[0].mxu0
    %v2139 = vadd.f32 %v2050, %v2138
    %v2140 = vpop.f32.mrb[0].mxu0
    %v2141 = vadd.f32 %v2052, %v2140
    %2142 = vmatprep.mubr.f32.mxu0 %v1430
    %2143 = vmatmul.mubr.f32.gmra.mrb[0].mxu0 %v1429
    %v2144 = vpop.f32.mrb[0].mxu0
    %v2145 = vadd.f32 %v2056, %v2144
    %v2146 = vpop.f32.mrb[0].mxu0
    %v2147 = vadd.f32 %v2058, %v2146
    %2148 = vmatprep.mubr.f32.mxu0 %v1438
    %2149 = vmatmul.mubr.f32.gmra.mrb[0].mxu0 %v1437
    %v2150 = vpop.f32.mrb[0].mxu0
    %v2151 = vadd.f32 %v2062, %v2150
    %v2152 = vpop.f32.mrb[0].mxu0
    %v2153 = vadd.f32 %v2064, %v2152
    %2154 = vdwg.mxu0
    %2155 = vmatprep.subr.mxu0 %v1700
    %2156 = vmatpush1.msra.mxu0 %v1699
    %2157 = vmatprep.subr.mxu0 %v1704
    %2158 = vmatpush1.msra.mxu0 %v1703
    %2159 = vmatprep.subr.mxu0 %v1708
    %2160 = vmatpush1.msra.mxu0 %v1707
    %2161 = vmatprep.subr.mxu0 %v1712
    %2162 = vmatpush1.msra.mxu0 %v1711
    %2163 = vmatprep.subr.mxu0 %v1716
    %2164 = vmatpush1.msra.mxu0 %v1715
    %2165 = vmatprep.subr.mxu0 %v1720
    %2166 = vmatpush1.msra.mxu0 %v1719
    %2167 = vmatprep.subr.mxu0 %v1724
    %2168 = vmatpush1.msra.mxu0 %v1723
    %2169 = vmatprep.subr.mxu0 %v1728
    %2170 = vmatpush1.msra.mxu0 %v1727
    %2171 = vmatprep.subr.mxu0 %v1732
    %2172 = vmatpush1.msra.mxu0 %v1731
    %2173 = vmatprep.subr.mxu0 %v1736
    %2174 = vmatpush1.msra.mxu0 %v1735
    %2175 = vmatprep.subr.mxu0 %v1740
    %2176 = vmatpush1.msra.mxu0 %v1739
    %2177 = vmatprep.subr.mxu0 %v1744
    %2178 = vmatpush1.msra.mxu0 %v1743
    %2179 = vmatprep.subr.mxu0 %v1748
    %2180 = vmatpush1.msra.mxu0 %v1747
    %2181 = vmatprep.subr.mxu0 %v1752
    %2182 = vmatpush1.msra.mxu0 %v1751
    %2183 = vmatprep.subr.mxu0 %v1756
    %2184 = vmatpush1.msra.mxu0 %v1755
    %2185 = vmatprep.subr.mxu0 %v1760
    %2186 = vmatpush1.msra.mxu0 %v1759
    %2187 = vmatprep.subr.mxu0 %v1764
    %2188 = vmatpush1.msra.mxu0 %v1763
    %2189 = vmatprep.subr.mxu0 %v1768
    %2190 = vmatpush1.msra.mxu0 %v1767
    %2191 = vmatprep.subr.mxu0 %v1772
    %2192 = vmatpush1.msra.mxu0 %v1771
    %2193 = vmatprep.subr.mxu0 %v1776
    %2194 = vmatpush1.msra.mxu0 %v1775
    %2195 = vmatprep.subr.mxu0 %v1780
    %2196 = vmatpush1.msra.mxu0 %v1779
    %2197 = vmatprep.subr.mxu0 %v1784
    %2198 = vmatpush1.msra.mxu0 %v1783
    %2199 = vmatprep.subr.mxu0 %v1788
    %2200 = vmatpush1.msra.mxu0 %v1787
    %2201 = vmatprep.subr.mxu0 %v1792
    %2202 = vmatpush1.msra.mxu0 %v1791
    %2203 = vmatprep.subr.mxu0 %v1796
    %2204 = vmatpush1.msra.mxu0 %v1795
    %2205 = vmatprep.subr.mxu0 %v1800
    %2206 = vmatpush1.msra.mxu0 %v1799
    %2207 = vmatprep.subr.mxu0 %v1804
    %2208 = vmatpush1.msra.mxu0 %v1803
    %2209 = vmatprep.subr.mxu0 %v1808
    %2210 = vmatpush1.msra.mxu0 %v1807
    %2211 = vmatprep.subr.mxu0 %v1812
    %2212 = vmatpush1.msra.mxu0 %v1811
    %2213 = vmatprep.subr.mxu0 %v1816
    %2214 = vmatpush1.msra.mxu0 %v1815
    %2215 = vmatprep.subr.mxu0 %v1820
    %2216 = vmatpush1.msra.mxu0 %v1819
    %2217 = vmatprep.subr.mxu0 %v1824
    %2218 = vmatpush1.msra.mxu0 %v1823
    %2219 = vmatprep.mubr.f32.mxu0 %v1416
    %2220 = vmatmul.mubr.f32.gmra.mrb[0].mxu0 %v1415
    %v2221 = vpop.f32.mrb[0].mxu0
    %v2222 = vadd.f32 %v2133, %v2221
    %v2223 = vpop.f32.mrb[0].mxu0
    %v2224 = vadd.f32 %v2135, %v2223
    %2225 = vmatprep.mubr.f32.mxu0 %v1424
    %2226 = vmatmul.mubr.f32.gmra.mrb[0].mxu0 %v1423
    %v2227 = vpop.f32.mrb[0].mxu0
    %v2228 = vadd.f32 %v2139, %v2227
    %v2229 = vpop.f32.mrb[0].mxu0
    %v2230 = vadd.f32 %v2141, %v2229
    %2231 = vmatprep.mubr.f32.mxu0 %v1432
    %2232 = vmatmul.mubr.f32.gmra.mrb[0].mxu0 %v1431
    %v2233 = vpop.f32.mrb[0].mxu0
    %v2234 = vadd.f32 %v2145, %v2233
    %v2235 = vpop.f32.mrb[0].mxu0
    %v2236 = vadd.f32 %v2147, %v2235
    %2237 = vmatprep.mubr.f32.mxu0 %v1440
    %2238 = vmatmul.mubr.f32.gmra.mrb[0].mxu0 %v1439
    %v2239 = vpop.f32.mrb[0].mxu0
    %v2240 = vadd.f32 %v2151, %v2239
    %v2241 = vpop.f32.mrb[0].mxu0
    %v2242 = vadd.f32 %v2153, %v2241
    %2243 = vdwg.mxu0
    %2244 = vmatprep.subr.mxu0 %v1828
    %2245 = vmatpush1.msra.mxu0 %v1827
    %2246 = vmatprep.subr.mxu0 %v1832
    %2247 = vmatpush1.msra.mxu0 %v1831
    %2248 = vmatprep.subr.mxu0 %v1836
    %2249 = vmatpush1.msra.mxu0 %v1835
    %2250 = vmatprep.subr.mxu0 %v1840
    %2251 = vmatpush1.msra.mxu0 %v1839
    %2252 = vmatprep.subr.mxu0 %v1844
    %2253 = vmatpush1.msra.mxu0 %v1843
    %2254 = vmatprep.subr.mxu0 %v1848
    %2255 = vmatpush1.msra.mxu0 %v1847
    %2256 = vmatprep.subr.mxu0 %v1852
    %2257 = vmatpush1.msra.mxu0 %v1851
    %2258 = vmatprep.subr.mxu0 %v1856
    %2259 = vmatpush1.msra.mxu0 %v1855
    %2260 = vmatprep.subr.mxu0 %v1860
    %2261 = vmatpush1.msra.mxu0 %v1859
    %2262 = vmatprep.subr.mxu0 %v1864
    %2263 = vmatpush1.msra.mxu0 %v1863
    %2264 = vmatprep.subr.mxu0 %v1868
    %2265 = vmatpush1.msra.mxu0 %v1867
    %2266 = vmatprep.subr.mxu0 %v1872
    %2267 = vmatpush1.msra.mxu0 %v1871
    %2268 = vmatprep.subr.mxu0 %v1876
    %2269 = vmatpush1.msra.mxu0 %v1875
    %2270 = vmatprep.subr.mxu0 %v1880
    %2271 = vmatpush1.msra.mxu0 %v1879
    %2272 = vmatprep.subr.mxu0 %v1884
    %2273 = vmatpush1.msra.mxu0 %v1883
    %2274 = vmatprep.subr.mxu0 %v1888
    %2275 = vmatpush1.msra.mxu0 %v1887
    %2276 = vmatprep.subr.mxu0 %v1892
    %2277 = vmatpush1.msra.mxu0 %v1891
    %2278 = vmatprep.subr.mxu0 %v1896
    %2279 = vmatpush1.msra.mxu0 %v1895
    %2280 = vmatprep.subr.mxu0 %v1900
    %2281 = vmatpush1.msra.mxu0 %v1899
    %2282 = vmatprep.subr.mxu0 %v1904
    %2283 = vmatpush1.msra.mxu0 %v1903
    %2284 = vmatprep.subr.mxu0 %v1908
    %2285 = vmatpush1.msra.mxu0 %v1907
    %2286 = vmatprep.subr.mxu0 %v1912
    %2287 = vmatpush1.msra.mxu0 %v1911
    %2288 = vmatprep.subr.mxu0 %v1916
    %2289 = vmatpush1.msra.mxu0 %v1915
    %2290 = vmatprep.subr.mxu0 %v1920
    %2291 = vmatpush1.msra.mxu0 %v1919
    %2292 = vmatprep.subr.mxu0 %v1924
    %2293 = vmatpush1.msra.mxu0 %v1923
    %2294 = vmatprep.subr.mxu0 %v1928
    %2295 = vmatpush1.msra.mxu0 %v1927
    %2296 = vmatprep.subr.mxu0 %v1932
    %2297 = vmatpush1.msra.mxu0 %v1931
    %2298 = vmatprep.subr.mxu0 %v1936
    %2299 = vmatpush1.msra.mxu0 %v1935
    %2300 = vmatprep.subr.mxu0 %v1940
    %2301 = vmatpush1.msra.mxu0 %v1939
    %2302 = vmatprep.subr.mxu0 %v1944
    %2303 = vmatpush1.msra.mxu0 %v1943
    %2304 = vmatprep.subr.mxu0 %v1948
    %2305 = vmatpush1.msra.mxu0 %v1947
    %2306 = vmatprep.subr.mxu0 %v1952
    %2307 = vmatpush1.msra.mxu0 %v1951
    %2308 = vmatprep.mubr.f32.mxu0 %v1418
    %2309 = vmatmul.mubr.f32.gmra.mrb[0].mxu0 %v1417
    %v2310 = vpop.f32.mrb[0].mxu0
    %v2311 = vadd.f32 %v2222, %v2310
    %v2312 = vpop.f32.mrb[0].mxu0
    %v2313 = vadd.f32 %v2224, %v2312
    %2314 = vmatprep.mubr.f32.mxu0 %v1426
    %2315 = vmatmul.mubr.f32.gmra.mrb[0].mxu0 %v1425
    %v2316 = vpop.f32.mrb[0].mxu0
    %v2317 = vadd.f32 %v2228, %v2316
    %v2318 = vpop.f32.mrb[0].mxu0
    %v2319 = vadd.f32 %v2230, %v2318
    %2320 = vmatprep.mubr.f32.mxu0 %v1434
    %2321 = vmatmul.mubr.f32.gmra.mrb[0].mxu0 %v1433
    %v2322 = vpop.f32.mrb[0].mxu0
    %v2323 = vadd.f32 %v2234, %v2322
    %v2324 = vpop.f32.mrb[0].mxu0
    %v2325 = vadd.f32 %v2236, %v2324
    %2326 = vmatprep.mubr.f32.mxu0 %v1442
    %2327 = vmatmul.mubr.f32.gmra.mrb[0].mxu0 %v1441
    %v2328 = vpop.f32.mrb[0].mxu0
    %v2329 = vadd.f32 %v2240, %v2328
    %v2330 = vpop.f32.mrb[0].mxu0
    %v2331 = vadd.f32 %v2242, %v2330
    %2332 = vdwg.mxu0
    %2333 = vmatprep.subr.mxu0 %v1446
    %2334 = vmatpush1.msra.mxu0 %v1445
    %2335 = vmatprep.subr.mxu0 %v1450
    %2336 = vmatpush1.msra.mxu0 %v1449
    %2337 = vmatprep.subr.mxu0 %v1454
    %2338 = vmatpush1.msra.mxu0 %v1453
    %2339 = vmatprep.subr.mxu0 %v1458
    %2340 = vmatpush1.msra.mxu0 %v1457
    %2341 = vmatprep.subr.mxu0 %v1462
    %2342 = vmatpush1.msra.mxu0 %v1461
    %2343 = vmatprep.subr.mxu0 %v1466
    %2344 = vmatpush1.msra.mxu0 %v1465
    %2345 = vmatprep.subr.mxu0 %v1470
    %2346 = vmatpush1.msra.mxu0 %v1469
    %2347 = vmatprep.subr.mxu0 %v1474
    %2348 = vmatpush1.msra.mxu0 %v1473
    %2349 = vmatprep.subr.mxu0 %v1478
    %2350 = vmatpush1.msra.mxu0 %v1477
    %2351 = vmatprep.subr.mxu0 %v1482
    %2352 = vmatpush1.msra.mxu0 %v1481
    %2353 = vmatprep.subr.mxu0 %v1486
    %2354 = vmatpush1.msra.mxu0 %v1485
    %2355 = vmatprep.subr.mxu0 %v1490
    %2356 = vmatpush1.msra.mxu0 %v1489
    %2357 = vmatprep.subr.mxu0 %v1494
    %2358 = vmatpush1.msra.mxu0 %v1493
    %2359 = vmatprep.subr.mxu0 %v1498
    %2360 = vmatpush1.msra.mxu0 %v1497
    %2361 = vmatprep.subr.mxu0 %v1502
    %2362 = vmatpush1.msra.mxu0 %v1501
    %2363 = vmatprep.subr.mxu0 %v1506
    %2364 = vmatpush1.msra.mxu0 %v1505
    %2365 = vmatprep.subr.mxu0 %v1510
    %2366 = vmatpush1.msra.mxu0 %v1509
    %2367 = vmatprep.subr.mxu0 %v1514
    %2368 = vmatpush1.msra.mxu0 %v1513
    %2369 = vmatprep.subr.mxu0 %v1518
    %2370 = vmatpush1.msra.mxu0 %v1517
    %2371 = vmatprep.subr.mxu0 %v1522
    %2372 = vmatpush1.msra.mxu0 %v1521
    %2373 = vmatprep.subr.mxu0 %v1526
    %2374 = vmatpush1.msra.mxu0 %v1525
    %2375 = vmatprep.subr.mxu0 %v1530
    %2376 = vmatpush1.msra.mxu0 %v1529
    %2377 = vmatprep.subr.mxu0 %v1534
    %2378 = vmatpush1.msra.mxu0 %v1533
    %2379 = vmatprep.subr.mxu0 %v1538
    %2380 = vmatpush1.msra.mxu0 %v1537
    %2381 = vmatprep.subr.mxu0 %v1542
    %2382 = vmatpush1.msra.mxu0 %v1541
    %2383 = vmatprep.subr.mxu0 %v1546
    %2384 = vmatpush1.msra.mxu0 %v1545
    %2385 = vmatprep.subr.mxu0 %v1550
    %2386 = vmatpush1.msra.mxu0 %v1549
    %2387 = vmatprep.subr.mxu0 %v1554
    %2388 = vmatpush1.msra.mxu0 %v1553
    %2389 = vmatprep.subr.mxu0 %v1558
    %2390 = vmatpush1.msra.mxu0 %v1557
    %2391 = vmatprep.subr.mxu0 %v1562
    %2392 = vmatpush1.msra.mxu0 %v1561
    %2393 = vmatprep.subr.mxu0 %v1566
    %2394 = vmatpush1.msra.mxu0 %v1565
    %2395 = vmatprep.subr.mxu0 %v1570
    %2396 = vmatpush1.msra.mxu0 %v1569
    %2397 = vmatprep.mubr.f32.mxu0 %v1412
    %2398 = vmatmul.mubr.f32.gmra.mrb[0].mxu0 %v1411
    %v2399 = vpop.f32.mrb[0].mxu0
    %v2400 = vadd.f32 %v1968, %v2399
    %v2401 = vpop.f32.mrb[0].mxu0
    %v2402 = vadd.f32 %v1972, %v2401
    %2403 = vmatprep.mubr.f32.mxu0 %v1420
    %2404 = vmatmul.mubr.f32.gmra.mrb[0].mxu0 %v1419
    %v2405 = vpop.f32.mrb[0].mxu0
    %v2406 = vadd.f32 %v1968, %v2405
    %v2407 = vpop.f32.mrb[0].mxu0
    %v2408 = vadd.f32 %v1972, %v2407
    %2409 = vmatprep.mubr.f32.mxu0 %v1428
    %2410 = vmatmul.mubr.f32.gmra.mrb[0].mxu0 %v1427
    %v2411 = vpop.f32.mrb[0].mxu0
    %v2412 = vadd.f32 %v1968, %v2411
    %v2413 = vpop.f32.mrb[0].mxu0
    %v2414 = vadd.f32 %v1972, %v2413
    %2415 = vmatprep.mubr.f32.mxu0 %v1436
    %2416 = vmatmul.mubr.f32.gmra.mrb[0].mxu0 %v1435
    %v2417 = vpop.f32.mrb[0].mxu0
    %v2418 = vadd.f32 %v1968, %v2417
    %v2419 = vpop.f32.mrb[0].mxu0
    %v2420 = vadd.f32 %v1972, %v2419
    %2421 = vdwg.mxu0
    %2422 = vmatprep.subr.mxu0 %v1574
    %2423 = vmatpush1.msra.mxu0 %v1573
    %2424 = vmatprep.subr.mxu0 %v1578
    %2425 = vmatpush1.msra.mxu0 %v1577
    %2426 = vmatprep.subr.mxu0 %v1582
    %2427 = vmatpush1.msra.mxu0 %v1581
    %2428 = vmatprep.subr.mxu0 %v1586
    %2429 = vmatpush1.msra.mxu0 %v1585
    %2430 = vmatprep.subr.mxu0 %v1590
    %2431 = vmatpush1.msra.mxu0 %v1589
    %2432 = vmatprep.subr.mxu0 %v1594
    %2433 = vmatpush1.msra.mxu0 %v1593
    %2434 = vmatprep.subr.mxu0 %v1598
    %2435 = vmatpush1.msra.mxu0 %v1597
    %2436 = vmatprep.subr.mxu0 %v1602
    %2437 = vmatpush1.msra.mxu0 %v1601
    %2438 = vmatprep.subr.mxu0 %v1606
    %2439 = vmatpush1.msra.mxu0 %v1605
    %2440 = vmatprep.subr.mxu0 %v1610
    %2441 = vmatpush1.msra.mxu0 %v1609
    %2442 = vmatprep.subr.mxu0 %v1614
    %2443 = vmatpush1.msra.mxu0 %v1613
    %2444 = vmatprep.subr.mxu0 %v1618
    %2445 = vmatpush1.msra.mxu0 %v1617
    %2446 = vmatprep.subr.mxu0 %v1622
    %2447 = vmatpush1.msra.mxu0 %v1621
    %2448 = vmatprep.subr.mxu0 %v1626
    %2449 = vmatpush1.msra.mxu0 %v1625
    %2450 = vmatprep.subr.mxu0 %v1630
    %2451 = vmatpush1.msra.mxu0 %v1629
    %2452 = vmatprep.subr.mxu0 %v1634
    %2453 = vmatpush1.msra.mxu0 %v1633
    %2454 = vmatprep.subr.mxu0 %v1638
    %2455 = vmatpush1.msra.mxu0 %v1637
    %2456 = vmatprep.subr.mxu0 %v1642
    %2457 = vmatpush1.msra.mxu0 %v1641
    %2458 = vmatprep.subr.mxu0 %v1646
    %2459 = vmatpush1.msra.mxu0 %v1645
    %2460 = vmatprep.subr.mxu0 %v1650
    %2461 = vmatpush1.msra.mxu0 %v1649
    %2462 = vmatprep.subr.mxu0 %v1654
    %2463 = vmatpush1.msra.mxu0 %v1653
    %2464 = vmatprep.subr.mxu0 %v1658
    %2465 = vmatpush1.msra.mxu0 %v1657
    %2466 = vmatprep.subr.mxu0 %v1662
    %2467 = vmatpush1.msra.mxu0 %v1661
    %2468 = vmatprep.subr.mxu0 %v1666
    %2469 = vmatpush1.msra.mxu0 %v1665
    %2470 = vmatprep.subr.mxu0 %v1670
    %2471 = vmatpush1.msra.mxu0 %v1669
    %2472 = vmatprep.subr.mxu0 %v1674
    %2473 = vmatpush1.msra.mxu0 %v1673
    %2474 = vmatprep.subr.mxu0 %v1678
    %2475 = vmatpush1.msra.mxu0 %v1677
    %2476 = vmatprep.subr.mxu0 %v1682
    %2477 = vmatpush1.msra.mxu0 %v1681
    %2478 = vmatprep.subr.mxu0 %v1686
    %2479 = vmatpush1.msra.mxu0 %v1685
    %2480 = vmatprep.subr.mxu0 %v1690
    %2481 = vmatpush1.msra.mxu0 %v1689
    %2482 = vmatprep.subr.mxu0 %v1694
    %2483 = vmatpush1.msra.mxu0 %v1693
    %2484 = vmatprep.subr.mxu0 %v1698
    %2485 = vmatpush1.msra.mxu0 %v1697
    %2486 = vmatprep.mubr.f32.mxu0 %v1414
    %2487 = vmatmul.mubr.f32.gmra.mrb[0].mxu0 %v1413
    %v2488 = vpop.f32.mrb[0].mxu0
    %v2489 = vadd.f32 %v2400, %v2488
    %v2490 = vpop.f32.mrb[0].mxu0
    %v2491 = vadd.f32 %v2402, %v2490
    %2492 = vmatprep.mubr.f32.mxu0 %v1422
    %2493 = vmatmul.mubr.f32.gmra.mrb[0].mxu0 %v1421
    %v2494 = vpop.f32.mrb[0].mxu0
    %v2495 = vadd.f32 %v2406, %v2494
    %v2496 = vpop.f32.mrb[0].mxu0
    %v2497 = vadd.f32 %v2408, %v2496
    %2498 = vmatprep.mubr.f32.mxu0 %v1430
    %2499 = vmatmul.mubr.f32.gmra.mrb[0].mxu0 %v1429
    %v2500 = vpop.f32.mrb[0].mxu0
    %v2501 = vadd.f32 %v2412, %v2500
    %v2502 = vpop.f32.mrb[0].mxu0
    %v2503 = vadd.f32 %v2414, %v2502
    %2504 = vmatprep.mubr.f32.mxu0 %v1438
    %2505 = vmatmul.mubr.f32.gmra.mrb[0].mxu0 %v1437
    %v2506 = vpop.f32.mrb[0].mxu0
    %v2507 = vadd.f32 %v2418, %v2506
    %v2508 = vpop.f32.mrb[0].mxu0
    %v2509 = vadd.f32 %v2420, %v2508
    %2510 = vdwg.mxu0
    %2511 = vmatprep.subr.mxu0 %v1702
    %2512 = vmatpush1.msra.mxu0 %v1701
    %2513 = vmatprep.subr.mxu0 %v1706
    %2514 = vmatpush1.msra.mxu0 %v1705
    %2515 = vmatprep.subr.mxu0 %v1710
    %2516 = vmatpush1.msra.mxu0 %v1709
    %2517 = vmatprep.subr.mxu0 %v1714
    %2518 = vmatpush1.msra.mxu0 %v1713
    %2519 = vmatprep.subr.mxu0 %v1718
    %2520 = vmatpush1.msra.mxu0 %v1717
    %2521 = vmatprep.subr.mxu0 %v1722
    %2522 = vmatpush1.msra.mxu0 %v1721
    %2523 = vmatprep.subr.mxu0 %v1726
    %2524 = vmatpush1.msra.mxu0 %v1725
    %2525 = vmatprep.subr.mxu0 %v1730
    %2526 = vmatpush1.msra.mxu0 %v1729
    %2527 = vmatprep.subr.mxu0 %v1734
    %2528 = vmatpush1.msra.mxu0 %v1733
    %2529 = vmatprep.subr.mxu0 %v1738
    %2530 = vmatpush1.msra.mxu0 %v1737
    %2531 = vmatprep.subr.mxu0 %v1742
    %2532 = vmatpush1.msra.mxu0 %v1741
    %2533 = vmatprep.subr.mxu0 %v1746
    %2534 = vmatpush1.msra.mxu0 %v1745
    %2535 = vmatprep.subr.mxu0 %v1750
    %2536 = vmatpush1.msra.mxu0 %v1749
    %2537 = vmatprep.subr.mxu0 %v1754
    %2538 = vmatpush1.msra.mxu0 %v1753
    %2539 = vmatprep.subr.mxu0 %v1758
    %2540 = vmatpush1.msra.mxu0 %v1757
    %2541 = vmatprep.subr.mxu0 %v1762
    %2542 = vmatpush1.msra.mxu0 %v1761
    %2543 = vmatprep.subr.mxu0 %v1766
    %2544 = vmatpush1.msra.mxu0 %v1765
    %2545 = vmatprep.subr.mxu0 %v1770
    %2546 = vmatpush1.msra.mxu0 %v1769
    %2547 = vmatprep.subr.mxu0 %v1774
    %2548 = vmatpush1.msra.mxu0 %v1773
    %2549 = vmatprep.subr.mxu0 %v1778
    %2550 = vmatpush1.msra.mxu0 %v1777
    %2551 = vmatprep.subr.mxu0 %v1782
    %2552 = vmatpush1.msra.mxu0 %v1781
    %2553 = vmatprep.subr.mxu0 %v1786
    %2554 = vmatpush1.msra.mxu0 %v1785
    %2555 = vmatprep.subr.mxu0 %v1790
    %2556 = vmatpush1.msra.mxu0 %v1789
    %2557 = vmatprep.subr.mxu0 %v1794
    %2558 = vmatpush1.msra.mxu0 %v1793
    %2559 = vmatprep.subr.mxu0 %v1798
    %2560 = vmatpush1.msra.mxu0 %v1797
    %2561 = vmatprep.subr.mxu0 %v1802
    %2562 = vmatpush1.msra.mxu0 %v1801
    %2563 = vmatprep.subr.mxu0 %v1806
    %2564 = vmatpush1.msra.mxu0 %v1805
    %2565 = vmatprep.subr.mxu0 %v1810
    %2566 = vmatpush1.msra.mxu0 %v1809
    %2567 = vmatprep.subr.mxu0 %v1814
    %2568 = vmatpush1.msra.mxu0 %v1813
    %2569 = vmatprep.subr.mxu0 %v1818
    %2570 = vmatpush1.msra.mxu0 %v1817
    %2571 = vmatprep.subr.mxu0 %v1822
    %2572 = vmatpush1.msra.mxu0 %v1821
    %2573 = vmatprep.subr.mxu0 %v1826
    %2574 = vmatpush1.msra.mxu0 %v1825
    %2575 = vmatprep.mubr.f32.mxu0 %v1416
    %2576 = vmatmul.mubr.f32.gmra.mrb[0].mxu0 %v1415
    %v2577 = vpop.f32.mrb[0].mxu0
    %v2578 = vadd.f32 %v2489, %v2577
    %v2579 = vpop.f32.mrb[0].mxu0
    %v2580 = vadd.f32 %v2491, %v2579
    %2581 = vmatprep.mubr.f32.mxu0 %v1424
    %2582 = vmatmul.mubr.f32.gmra.mrb[0].mxu0 %v1423
    %v2583 = vpop.f32.mrb[0].mxu0
    %v2584 = vadd.f32 %v2495, %v2583
    %v2585 = vpop.f32.mrb[0].mxu0
    %v2586 = vadd.f32 %v2497, %v2585
    %2587 = vmatprep.mubr.f32.mxu0 %v1432
    %2588 = vmatmul.mubr.f32.gmra.mrb[0].mxu0 %v1431
    %v2589 = vpop.f32.mrb[0].mxu0
    %v2590 = vadd.f32 %v2501, %v2589
    %v2591 = vpop.f32.mrb[0].mxu0
    %v2592 = vadd.f32 %v2503, %v2591
    %2593 = vmatprep.mubr.f32.mxu0 %v1440
    %2594 = vmatmul.mubr.f32.gmra.mrb[0].mxu0 %v1439
    %v2595 = vpop.f32.mrb[0].mxu0
    %v2596 = vadd.f32 %v2507, %v2595
    %v2597 = vpop.f32.mrb[0].mxu0
    %v2598 = vadd.f32 %v2509, %v2597
    %2599 = vdwg.mxu0
    %2600 = vmatprep.subr.mxu0 %v1830
    %2601 = vmatpush1.msra.mxu0 %v1829
    %2602 = vmatprep.subr.mxu0 %v1834
    %2603 = vmatpush1.msra.mxu0 %v1833
    %2604 = vmatprep.subr.mxu0 %v1838
    %2605 = vmatpush1.msra.mxu0 %v1837
    %2606 = vmatprep.subr.mxu0 %v1842
    %2607 = vmatpush1.msra.mxu0 %v1841
    %2608 = vmatprep.subr.mxu0 %v1846
    %2609 = vmatpush1.msra.mxu0 %v1845
    %2610 = vmatprep.subr.mxu0 %v1850
    %2611 = vmatpush1.msra.mxu0 %v1849
    %2612 = vmatprep.subr.mxu0 %v1854
    %2613 = vmatpush1.msra.mxu0 %v1853
    %2614 = vmatprep.subr.mxu0 %v1858
    %2615 = vmatpush1.msra.mxu0 %v1857
    %2616 = vmatprep.subr.mxu0 %v1862
    %2617 = vmatpush1.msra.mxu0 %v1861
    %2618 = vmatprep.subr.mxu0 %v1866
    %2619 = vmatpush1.msra.mxu0 %v1865
    %2620 = vmatprep.subr.mxu0 %v1870
    %2621 = vmatpush1.msra.mxu0 %v1869
    %2622 = vmatprep.subr.mxu0 %v1874
    %2623 = vmatpush1.msra.mxu0 %v1873
    %2624 = vmatprep.subr.mxu0 %v1878
    %2625 = vmatpush1.msra.mxu0 %v1877
    %2626 = vmatprep.subr.mxu0 %v1882
    %2627 = vmatpush1.msra.mxu0 %v1881
    %2628 = vmatprep.subr.mxu0 %v1886
    %2629 = vmatpush1.msra.mxu0 %v1885
    %2630 = vmatprep.subr.mxu0 %v1890
    %2631 = vmatpush1.msra.mxu0 %v1889
    %2632 = vmatprep.subr.mxu0 %v1894
    %2633 = vmatpush1.msra.mxu0 %v1893
    %2634 = vmatprep.subr.mxu0 %v1898
    %2635 = vmatpush1.msra.mxu0 %v1897
    %2636 = vmatprep.subr.mxu0 %v1902
    %2637 = vmatpush1.msra.mxu0 %v1901
    %2638 = vmatprep.subr.mxu0 %v1906
    %2639 = vmatpush1.msra.mxu0 %v1905
    %2640 = vmatprep.subr.mxu0 %v1910
    %2641 = vmatpush1.msra.mxu0 %v1909
    %2642 = vmatprep.subr.mxu0 %v1914
    %2643 = vmatpush1.msra.mxu0 %v1913
    %2644 = vmatprep.subr.mxu0 %v1918
    %2645 = vmatpush1.msra.mxu0 %v1917
    %2646 = vmatprep.subr.mxu0 %v1922
    %2647 = vmatpush1.msra.mxu0 %v1921
    %2648 = vmatprep.subr.mxu0 %v1926
    %2649 = vmatpush1.msra.mxu0 %v1925
    %2650 = vmatprep.subr.mxu0 %v1930
    %2651 = vmatpush1.msra.mxu0 %v1929
    %2652 = vmatprep.subr.mxu0 %v1934
    %2653 = vmatpush1.msra.mxu0 %v1933
    %2654 = vmatprep.subr.mxu0 %v1938
    %2655 = vmatpush1.msra.mxu0 %v1937
    %2656 = vmatprep.subr.mxu0 %v1942
    %2657 = vmatpush1.msra.mxu0 %v1941
    %2658 = vmatprep.subr.mxu0 %v1946
    %2659 = vmatpush1.msra.mxu0 %v1945
    %2660 = vmatprep.subr.mxu0 %v1950
    %2661 = vmatpush1.msra.mxu0 %v1949
    %2662 = vmatprep.subr.mxu0 %v1954
    %2663 = vmatpush1.msra.mxu0 %v1953
    %2664 = vmatprep.mubr.f32.mxu0 %v1418
    %2665 = vmatmul.mubr.f32.gmra.mrb[0].mxu0 %v1417
    %v2666 = vpop.f32.mrb[0].mxu0
    %v2667 = vadd.f32 %v2578, %v2666
    %v2668 = vpop.f32.mrb[0].mxu0
    %v2669 = vadd.f32 %v2580, %v2668
    %2670 = vmatprep.mubr.f32.mxu0 %v1426
    %2671 = vmatmul.mubr.f32.gmra.mrb[0].mxu0 %v1425
    %v2672 = vpop.f32.mrb[0].mxu0
    %v2673 = vadd.f32 %v2584, %v2672
    %v2674 = vpop.f32.mrb[0].mxu0
    %v2675 = vadd.f32 %v2586, %v2674
    %2676 = vmatprep.mubr.f32.mxu0 %v1434
    %2677 = vmatmul.mubr.f32.gmra.mrb[0].mxu0 %v1433
    %v2678 = vpop.f32.mrb[0].mxu0
    %v2679 = vadd.f32 %v2590, %v2678
    %v2680 = vpop.f32.mrb[0].mxu0
    %v2681 = vadd.f32 %v2592, %v2680
    %2682 = vmatprep.mubr.f32.mxu0 %v1442
    %2683 = vmatmul.mubr.f32.gmra.mrb[0].mxu0 %v1441
    %v2684 = vpop.f32.mrb[0].mxu0
    %v2685 = vadd.f32 %v2596, %v2684
    %v2686 = vpop.f32.mrb[0].mxu0
    %v2687 = vadd.f32 %v2598, %v2686
    %2688 = vdwg.mxu0
    %v2689 = vld [vmem:[%s19] sm:$0xff]
    %v2690 = vld [vmem:[%s19 + $0x8] sm:$0xff]
    %v2691 = vld [vmem:[#allocation13] sm:$0xff]
    %v2692 = vld [vmem:[#allocation13 + $0x8] sm:$0xff]
    %v2693 = vld [vmem:[#allocation13 + $0x10] sm:$0xff]
    %v2694 = vld [vmem:[#allocation13 + $0x18] sm:$0xff]
    %v2695 = vld [vmem:[#allocation13 + $0x20] sm:$0xff]
    %v2696 = vld [vmem:[#allocation13 + $0x28] sm:$0xff]
    %v2697 = vld [vmem:[#allocation13 + $0x30] sm:$0xff]
    %v2698 = vld [vmem:[#allocation13 + $0x38] sm:$0xff]
    %v2699 = vld [vmem:[#allocation13 + $0x40] sm:$0xff]
    %v2700 = vld [vmem:[#allocation13 + $0x48] sm:$0xff]
    %v2701 = vld [vmem:[#allocation13 + $0x50] sm:$0xff]
    %v2702 = vld [vmem:[#allocation13 + $0x58] sm:$0xff]
    %v2703 = vld [vmem:[#allocation13 + $0x60] sm:$0xff]
    %v2704 = vld [vmem:[#allocation13 + $0x68] sm:$0xff]
    %v2705 = vld [vmem:[#allocation13 + $0x70] sm:$0xff]
    %v2706 = vld [vmem:[#allocation13 + $0x78] sm:$0xff]
    %v2707 = vld [vmem:[#allocation13 + $0x80] sm:$0xff]
    %v2708 = vld [vmem:[#allocation13 + $0x88] sm:$0xff]
    %v2709 = vld [vmem:[#allocation13 + $0x90] sm:$0xff]
    %v2710 = vld [vmem:[#allocation13 + $0x98] sm:$0xff]
    %v2711 = vld [vmem:[#allocation13 + $0xa0] sm:$0xff]
    %v2712 = vld [vmem:[#allocation13 + $0xa8] sm:$0xff]
    %v2713 = vld [vmem:[#allocation13 + $0xb0] sm:$0xff]
    %v2714 = vld [vmem:[#allocation13 + $0xb8] sm:$0xff]
    %v2715 = vld [vmem:[#allocation13 + $0xc0] sm:$0xff]
    %v2716 = vld [vmem:[#allocation13 + $0xc8] sm:$0xff]
    %v2717 = vld [vmem:[#allocation13 + $0xd0] sm:$0xff]
    %v2718 = vld [vmem:[#allocation13 + $0xd8] sm:$0xff]
    %v2719 = vld [vmem:[#allocation13 + $0xe0] sm:$0xff]
    %v2720 = vld [vmem:[#allocation13 + $0xe8] sm:$0xff]
    %v2721 = vld [vmem:[#allocation13 + $0xf0] sm:$0xff]
    %v2722 = vld [vmem:[#allocation13 + $0xf8] sm:$0xff]
    %2723 = vmatprep.subr.mxu0 %v2692
    %2724 = vmatpush1.msra.mxu0 %v2691
    %2725 = vmatprep.subr.mxu0 %v2694
    %2726 = vmatpush1.msra.mxu0 %v2693
    %2727 = vmatprep.subr.mxu0 %v2696
    %2728 = vmatpush1.msra.mxu0 %v2695
    %2729 = vmatprep.subr.mxu0 %v2698
    %2730 = vmatpush1.msra.mxu0 %v2697
    %2731 = vmatprep.subr.mxu0 %v2700
    %2732 = vmatpush1.msra.mxu0 %v2699
    %2733 = vmatprep.subr.mxu0 %v2702
    %2734 = vmatpush1.msra.mxu0 %v2701
    %2735 = vmatprep.subr.mxu0 %v2704
    %2736 = vmatpush1.msra.mxu0 %v2703
    %2737 = vmatprep.subr.mxu0 %v2706
    %2738 = vmatpush1.msra.mxu0 %v2705
    %2739 = vmatprep.subr.mxu0 %v2708
    %2740 = vmatpush1.msra.mxu0 %v2707
    %2741 = vmatprep.subr.mxu0 %v2710
    %2742 = vmatpush1.msra.mxu0 %v2709
    %2743 = vmatprep.subr.mxu0 %v2712
    %2744 = vmatpush1.msra.mxu0 %v2711
    %2745 = vmatprep.subr.mxu0 %v2714
    %2746 = vmatpush1.msra.mxu0 %v2713
    %2747 = vmatprep.subr.mxu0 %v2716
    %2748 = vmatpush1.msra.mxu0 %v2715
    %2749 = vmatprep.subr.mxu0 %v2718
    %2750 = vmatpush1.msra.mxu0 %v2717
    %2751 = vmatprep.subr.mxu0 %v2720
    %2752 = vmatpush1.msra.mxu0 %v2719
    %2753 = vmatprep.subr.mxu0 %v2722
    %2754 = vmatpush1.msra.mxu0 %v2721
    %2755 = vmatprep.subr.mxu0 0.0
    %2756 = vmatpush1.msra.mxu0 0.0
    %2757 = vmatprep.subr.mxu0 0.0
    %2758 = vmatpush1.msra.mxu0 0.0
    %2759 = vmatprep.subr.mxu0 0.0
    %2760 = vmatpush1.msra.mxu0 0.0
    %2761 = vmatprep.subr.mxu0 0.0
    %2762 = vmatpush1.msra.mxu0 0.0
    %2763 = vmatprep.subr.mxu0 0.0
    %2764 = vmatpush1.msra.mxu0 0.0
    %2765 = vmatprep.subr.mxu0 0.0
    %2766 = vmatpush1.msra.mxu0 0.0
    %2767 = vmatprep.subr.mxu0 0.0
    %2768 = vmatpush1.msra.mxu0 0.0
    %2769 = vmatprep.subr.mxu0 0.0
    %2770 = vmatpush1.msra.mxu0 0.0
    %2771 = vmatprep.subr.mxu0 0.0
    %2772 = vmatpush1.msra.mxu0 0.0
    %2773 = vmatprep.subr.mxu0 0.0
    %2774 = vmatpush1.msra.mxu0 0.0
    %2775 = vmatprep.subr.mxu0 0.0
    %2776 = vmatpush1.msra.mxu0 0.0
    %2777 = vmatprep.subr.mxu0 0.0
    %2778 = vmatpush1.msra.mxu0 0.0
    %2779 = vmatprep.subr.mxu0 0.0
    %2780 = vmatpush1.msra.mxu0 0.0
    %2781 = vmatprep.subr.mxu0 0.0
    %2782 = vmatpush1.msra.mxu0 0.0
    %2783 = vmatprep.subr.mxu0 0.0
    %2784 = vmatpush1.msra.mxu0 0.0
    %2785 = vmatprep.subr.mxu0 0.0
    %2786 = vmatpush1.msra.mxu0 0.0
    %2787 = vmatprep.mubr.f32.mxu0 0.0
    %2788 = vmatmul.mubr.f32.gmra.mrb[0].mxu0 %v816
    %v2789 = vpop.f32.mrb[0].mxu0
    %v2790 = vadd.f32 0.0, %v2789
    %v2791 = vpop.f32.mrb[0].mxu0
    %v2792 = vadd.f32 0.0, %v2791
    %2793 = vdwg.mxu0
    %vm2794 = vcmask 64512
    %v2796 = vsel %vm2794, %v2689, 0
    %v2799 = vsel %vm2794, %v2690, 0
    %2801 = vmatprep.subr.mxu0 %v2792
    %2802 = vmatpush1.msra.mxu0 %v2790
    %2803 = vmatprep.subr.mxu0 0.0
    %2804 = vmatpush1.msra.mxu0 0.0
    %2805 = vmatprep.subr.mxu0 0.0
    %2806 = vmatpush1.msra.mxu0 0.0
    %2807 = vmatprep.subr.mxu0 0.0
    %2808 = vmatpush1.msra.mxu0 0.0
    %2809 = vmatprep.subr.mxu0 0.0
    %2810 = vmatpush1.msra.mxu0 0.0
    %2811 = vmatprep.subr.mxu0 0.0
    %2812 = vmatpush1.msra.mxu0 0.0
    %2813 = vmatprep.subr.mxu0 0.0
    %2814 = vmatpush1.msra.mxu0 0.0
    %2815 = vmatprep.subr.mxu0 0.0
    %2816 = vmatpush1.msra.mxu0 0.0
    %2817 = vmatprep.subr.mxu0 0.0
    %2818 = vmatpush1.msra.mxu0 0.0
    %2819 = vmatprep.subr.mxu0 0.0
    %2820 = vmatpush1.msra.mxu0 0.0
    %2821 = vmatprep.subr.mxu0 0.0
    %2822 = vmatpush1.msra.mxu0 0.0
    %2823 = vmatprep.subr.mxu0 0.0
    %2824 = vmatpush1.msra.mxu0 0.0
    %2825 = vmatprep.subr.mxu0 0.0
    %2826 = vmatpush1.msra.mxu0 0.0
    %2827 = vmatprep.subr.mxu0 0.0
    %2828 = vmatpush1.msra.mxu0 0.0
    %2829 = vmatprep.subr.mxu0 0.0
    %2830 = vmatpush1.msra.mxu0 0.0
    %2831 = vmatprep.subr.mxu0 0.0
    %2832 = vmatpush1.msra.mxu0 0.0
    %2833 = vmatprep.subr.mxu0 0.0
    %2834 = vmatpush1.msra.mxu0 0.0
    %2835 = vmatprep.subr.mxu0 0.0
    %2836 = vmatpush1.msra.mxu0 0.0
    %2837 = vmatprep.subr.mxu0 0.0
    %2838 = vmatpush1.msra.mxu0 0.0
    %2839 = vmatprep.subr.mxu0 0.0
    %2840 = vmatpush1.msra.mxu0 0.0
    %2841 = vmatprep.subr.mxu0 0.0
    %2842 = vmatpush1.msra.mxu0 0.0
    %2843 = vmatprep.subr.mxu0 0.0
    %2844 = vmatpush1.msra.mxu0 0.0
    %2845 = vmatprep.subr.mxu0 0.0
    %2846 = vmatpush1.msra.mxu0 0.0
    %2847 = vmatprep.subr.mxu0 0.0
    %2848 = vmatpush1.msra.mxu0 0.0
    %2849 = vmatprep.subr.mxu0 0.0
    %2850 = vmatpush1.msra.mxu0 0.0
    %2851 = vmatprep.subr.mxu0 0.0
    %2852 = vmatpush1.msra.mxu0 0.0
    %2853 = vmatprep.subr.mxu0 0.0
    %2854 = vmatpush1.msra.mxu0 0.0
    %2855 = vmatprep.subr.mxu0 0.0
    %2856 = vmatpush1.msra.mxu0 0.0
    %2857 = vmatprep.subr.mxu0 0.0
    %2858 = vmatpush1.msra.mxu0 0.0
    %2859 = vmatprep.subr.mxu0 0.0
    %2860 = vmatpush1.msra.mxu0 0.0
    %2861 = vmatprep.subr.mxu0 0.0
    %2862 = vmatpush1.msra.mxu0 0.0
    %2863 = vmatprep.subr.mxu0 0.0
    %2864 = vmatpush1.msra.mxu0 0.0
    %2865 = vmatprep.mubr.f32.mxu0 0.0
    %2866 = vmatmul.mubr.f32.gmra.mrb[0].mxu0 %v2796
    %v2867 = vpop.f32.mrb[0].mxu0
    %v2868 = vadd.f32 0.0, %v2867
    %v2869 = vpop.f32.mrb[0].mxu0
    %v2870 = vadd.f32 0.0, %v2869
    %2871 = vmatprep.mubr.f32.mxu0 0.0
    %2872 = vmatmul.mubr.f32.gmra.mrb[0].mxu0 %v2799
    %v2873 = vpop.f32.mrb[0].mxu0
    %v2874 = vadd.f32 0.0, %v2873
    %v2875 = vpop.f32.mrb[0].mxu0
    %v2876 = vadd.f32 0.0, %v2875
    %2877 = vdwg.mxu0
    %v2878 = vadd.f32 %v1401, %v2868
    %v2879 = vadd.f32 %v1403, %v2870
    %v2880 = vadd.f32 %v1407, %v2874
    %v2881 = vadd.f32 %v1409, %v2876
    %v2882 = vld [vmem:[%s23] sm:$0xff]
    %v2883 = vld [vmem:[%s23 + $0x8] sm:$0xff]
    %v2884 = vld [vmem:[%s23 + $0x10] sm:$0xff]
    %v2885 = vld [vmem:[%s23 + $0x18] sm:$0xff]
    %v2886 = vld [vmem:[#allocation14] sm:$0xff]
    %v2887 = vld [vmem:[#allocation14 + $0x8] sm:$0xff]
    %v2888 = vld [vmem:[#allocation14 + $0x10] sm:$0xff]
    %v2889 = vld [vmem:[#allocation14 + $0x18] sm:$0xff]
    %v2890 = vld [vmem:[#allocation14 + $0x20] sm:$0xff]
    %v2891 = vld [vmem:[#allocation14 + $0x28] sm:$0xff]
    %v2892 = vld [vmem:[#allocation14 + $0x30] sm:$0xff]
    %v2893 = vld [vmem:[#allocation14 + $0x38] sm:$0xff]
    %v2894 = vld [vmem:[#allocation14 + $0x40] sm:$0xff]
    %v2895 = vld [vmem:[#allocation14 + $0x48] sm:$0xff]
    %v2896 = vld [vmem:[#allocation14 + $0x50] sm:$0xff]
    %v2897 = vld [vmem:[#allocation14 + $0x58] sm:$0xff]
    %v2898 = vld [vmem:[#allocation14 + $0x60] sm:$0xff]
    %v2899 = vld [vmem:[#allocation14 + $0x68] sm:$0xff]
    %v2900 = vld [vmem:[#allocation14 + $0x70] sm:$0xff]
    %v2901 = vld [vmem:[#allocation14 + $0x78] sm:$0xff]
    %v2902 = vld [vmem:[#allocation14 + $0x80] sm:$0xff]
    %v2903 = vld [vmem:[#allocation14 + $0x88] sm:$0xff]
    %v2904 = vld [vmem:[#allocation14 + $0x90] sm:$0xff]
    %v2905 = vld [vmem:[#allocation14 + $0x98] sm:$0xff]
    %v2906 = vld [vmem:[#allocation14 + $0xa0] sm:$0xff]
    %v2907 = vld [vmem:[#allocation14 + $0xa8] sm:$0xff]
    %v2908 = vld [vmem:[#allocation14 + $0xb0] sm:$0xff]
    %v2909 = vld [vmem:[#allocation14 + $0xb8] sm:$0xff]
    %v2910 = vld [vmem:[#allocation14 + $0xc0] sm:$0xff]
    %v2911 = vld [vmem:[#allocation14 + $0xc8] sm:$0xff]
    %v2912 = vld [vmem:[#allocation14 + $0xd0] sm:$0xff]
    %v2913 = vld [vmem:[#allocation14 + $0xd8] sm:$0xff]
    %v2914 = vld [vmem:[#allocation14 + $0xe0] sm:$0xff]
    %v2915 = vld [vmem:[#allocation14 + $0xe8] sm:$0xff]
    %v2916 = vld [vmem:[#allocation14 + $0xf0] sm:$0xff]
    %v2917 = vld [vmem:[#allocation14 + $0xf8] sm:$0xff]
    %v2918 = vld [vmem:[#allocation14 + $0x100] sm:$0xff]
    %v2919 = vld [vmem:[#allocation14 + $0x108] sm:$0xff]
    %v2920 = vld [vmem:[#allocation14 + $0x110] sm:$0xff]
    %v2921 = vld [vmem:[#allocation14 + $0x118] sm:$0xff]
    %v2922 = vld [vmem:[#allocation14 + $0x120] sm:$0xff]
    %v2923 = vld [vmem:[#allocation14 + $0x128] sm:$0xff]
    %v2924 = vld [vmem:[#allocation14 + $0x130] sm:$0xff]
    %v2925 = vld [vmem:[#allocation14 + $0x138] sm:$0xff]
    %v2926 = vld [vmem:[#allocation14 + $0x140] sm:$0xff]
    %v2927 = vld [vmem:[#allocation14 + $0x148] sm:$0xff]
    %v2928 = vld [vmem:[#allocation14 + $0x150] sm:$0xff]
    %v2929 = vld [vmem:[#allocation14 + $0x158] sm:$0xff]
    %v2930 = vld [vmem:[#allocation14 + $0x160] sm:$0xff]
    %v2931 = vld [vmem:[#allocation14 + $0x168] sm:$0xff]
    %v2932 = vld [vmem:[#allocation14 + $0x170] sm:$0xff]
    %v2933 = vld [vmem:[#allocation14 + $0x178] sm:$0xff]
    %v2934 = vld [vmem:[#allocation14 + $0x180] sm:$0xff]
    %v2935 = vld [vmem:[#allocation14 + $0x188] sm:$0xff]
    %v2936 = vld [vmem:[#allocation14 + $0x190] sm:$0xff]
    %v2937 = vld [vmem:[#allocation14 + $0x198] sm:$0xff]
    %v2938 = vld [vmem:[#allocation14 + $0x1a0] sm:$0xff]
    %v2939 = vld [vmem:[#allocation14 + $0x1a8] sm:$0xff]
    %v2940 = vld [vmem:[#allocation14 + $0x1b0] sm:$0xff]
    %v2941 = vld [vmem:[#allocation14 + $0x1b8] sm:$0xff]
    %v2942 = vld [vmem:[#allocation14 + $0x1c0] sm:$0xff]
    %v2943 = vld [vmem:[#allocation14 + $0x1c8] sm:$0xff]
    %v2944 = vld [vmem:[#allocation14 + $0x1d0] sm:$0xff]
    %v2945 = vld [vmem:[#allocation14 + $0x1d8] sm:$0xff]
    %v2946 = vld [vmem:[#allocation14 + $0x1e0] sm:$0xff]
    %v2947 = vld [vmem:[#allocation14 + $0x1e8] sm:$0xff]
    %v2948 = vld [vmem:[#allocation14 + $0x1f0] sm:$0xff]
    %v2949 = vld [vmem:[#allocation14 + $0x1f8] sm:$0xff]
    %v2950 = vld [vmem:[#allocation14 + $0x200] sm:$0xff]
    %v2951 = vld [vmem:[#allocation14 + $0x208] sm:$0xff]
    %v2952 = vld [vmem:[#allocation14 + $0x210] sm:$0xff]
    %v2953 = vld [vmem:[#allocation14 + $0x218] sm:$0xff]
    %v2954 = vld [vmem:[#allocation14 + $0x220] sm:$0xff]
    %v2955 = vld [vmem:[#allocation14 + $0x228] sm:$0xff]
    %v2956 = vld [vmem:[#allocation14 + $0x230] sm:$0xff]
    %v2957 = vld [vmem:[#allocation14 + $0x238] sm:$0xff]
    %v2958 = vld [vmem:[#allocation14 + $0x240] sm:$0xff]
    %v2959 = vld [vmem:[#allocation14 + $0x248] sm:$0xff]
    %v2960 = vld [vmem:[#allocation14 + $0x250] sm:$0xff]
    %v2961 = vld [vmem:[#allocation14 + $0x258] sm:$0xff]
    %v2962 = vld [vmem:[#allocation14 + $0x260] sm:$0xff]
    %v2963 = vld [vmem:[#allocation14 + $0x268] sm:$0xff]
    %v2964 = vld [vmem:[#allocation14 + $0x270] sm:$0xff]
    %v2965 = vld [vmem:[#allocation14 + $0x278] sm:$0xff]
    %v2966 = vld [vmem:[#allocation14 + $0x280] sm:$0xff]
    %v2967 = vld [vmem:[#allocation14 + $0x288] sm:$0xff]
    %v2968 = vld [vmem:[#allocation14 + $0x290] sm:$0xff]
    %v2969 = vld [vmem:[#allocation14 + $0x298] sm:$0xff]
    %v2970 = vld [vmem:[#allocation14 + $0x2a0] sm:$0xff]
    %v2971 = vld [vmem:[#allocation14 + $0x2a8] sm:$0xff]
    %v2972 = vld [vmem:[#allocation14 + $0x2b0] sm:$0xff]
    %v2973 = vld [vmem:[#allocation14 + $0x2b8] sm:$0xff]
    %v2974 = vld [vmem:[#allocation14 + $0x2c0] sm:$0xff]
    %v2975 = vld [vmem:[#allocation14 + $0x2c8] sm:$0xff]
    %v2976 = vld [vmem:[#allocation14 + $0x2d0] sm:$0xff]
    %v2977 = vld [vmem:[#allocation14 + $0x2d8] sm:$0xff]
    %v2978 = vld [vmem:[#allocation14 + $0x2e0] sm:$0xff]
    %v2979 = vld [vmem:[#allocation14 + $0x2e8] sm:$0xff]
    %v2980 = vld [vmem:[#allocation14 + $0x2f0] sm:$0xff]
    %v2981 = vld [vmem:[#allocation14 + $0x2f8] sm:$0xff]
    %v2982 = vld [vmem:[#allocation14 + $0x300] sm:$0xff]
    %v2983 = vld [vmem:[#allocation14 + $0x308] sm:$0xff]
    %v2984 = vld [vmem:[#allocation14 + $0x310] sm:$0xff]
    %v2985 = vld [vmem:[#allocation14 + $0x318] sm:$0xff]
    %v2986 = vld [vmem:[#allocation14 + $0x320] sm:$0xff]
    %v2987 = vld [vmem:[#allocation14 + $0x328] sm:$0xff]
    %v2988 = vld [vmem:[#allocation14 + $0x330] sm:$0xff]
    %v2989 = vld [vmem:[#allocation14 + $0x338] sm:$0xff]
    %v2990 = vld [vmem:[#allocation14 + $0x340] sm:$0xff]
    %v2991 = vld [vmem:[#allocation14 + $0x348] sm:$0xff]
    %v2992 = vld [vmem:[#allocation14 + $0x350] sm:$0xff]
    %v2993 = vld [vmem:[#allocation14 + $0x358] sm:$0xff]
    %v2994 = vld [vmem:[#allocation14 + $0x360] sm:$0xff]
    %v2995 = vld [vmem:[#allocation14 + $0x368] sm:$0xff]
    %v2996 = vld [vmem:[#allocation14 + $0x370] sm:$0xff]
    %v2997 = vld [vmem:[#allocation14 + $0x378] sm:$0xff]
    %v2998 = vld [vmem:[#allocation14 + $0x380] sm:$0xff]
    %v2999 = vld [vmem:[#allocation14 + $0x388] sm:$0xff]
    %v3000 = vld [vmem:[#allocation14 + $0x390] sm:$0xff]
    %v3001 = vld [vmem:[#allocation14 + $0x398] sm:$0xff]
    %v3002 = vld [vmem:[#allocation14 + $0x3a0] sm:$0xff]
    %v3003 = vld [vmem:[#allocation14 + $0x3a8] sm:$0xff]
    %v3004 = vld [vmem:[#allocation14 + $0x3b0] sm:$0xff]
    %v3005 = vld [vmem:[#allocation14 + $0x3b8] sm:$0xff]
    %v3006 = vld [vmem:[#allocation14 + $0x3c0] sm:$0xff]
    %v3007 = vld [vmem:[#allocation14 + $0x3c8] sm:$0xff]
    %v3008 = vld [vmem:[#allocation14 + $0x3d0] sm:$0xff]
    %v3009 = vld [vmem:[#allocation14 + $0x3d8] sm:$0xff]
    %v3010 = vld [vmem:[#allocation14 + $0x3e0] sm:$0xff]
    %v3011 = vld [vmem:[#allocation14 + $0x3e8] sm:$0xff]
    %v3012 = vld [vmem:[#allocation14 + $0x3f0] sm:$0xff]
    %v3013 = vld [vmem:[#allocation14 + $0x3f8] sm:$0xff]
    %3014 = vmatprep.subr.mxu0 %v2887
    %3015 = vmatpush1.msra.mxu0 %v2886
    %3016 = vmatprep.subr.mxu0 %v2891
    %3017 = vmatpush1.msra.mxu0 %v2890
    %3018 = vmatprep.subr.mxu0 %v2895
    %3019 = vmatpush1.msra.mxu0 %v2894
    %3020 = vmatprep.subr.mxu0 %v2899
    %3021 = vmatpush1.msra.mxu0 %v2898
    %3022 = vmatprep.subr.mxu0 %v2903
    %3023 = vmatpush1.msra.mxu0 %v2902
    %3024 = vmatprep.subr.mxu0 %v2907
    %3025 = vmatpush1.msra.mxu0 %v2906
    %3026 = vmatprep.subr.mxu0 %v2911
    %3027 = vmatpush1.msra.mxu0 %v2910
    %3028 = vmatprep.subr.mxu0 %v2915
    %3029 = vmatpush1.msra.mxu0 %v2914
    %3030 = vmatprep.subr.mxu0 %v2919
    %3031 = vmatpush1.msra.mxu0 %v2918
    %3032 = vmatprep.subr.mxu0 %v2923
    %3033 = vmatpush1.msra.mxu0 %v2922
    %3034 = vmatprep.subr.mxu0 %v2927
    %3035 = vmatpush1.msra.mxu0 %v2926
    %3036 = vmatprep.subr.mxu0 %v2931
    %3037 = vmatpush1.msra.mxu0 %v2930
    %3038 = vmatprep.subr.mxu0 %v2935
    %3039 = vmatpush1.msra.mxu0 %v2934
    %3040 = vmatprep.subr.mxu0 %v2939
    %3041 = vmatpush1.msra.mxu0 %v2938
    %3042 = vmatprep.subr.mxu0 %v2943
    %3043 = vmatpush1.msra.mxu0 %v2942
    %3044 = vmatprep.subr.mxu0 %v2947
    %3045 = vmatpush1.msra.mxu0 %v2946
    %3046 = vmatprep.subr.mxu0 %v2951
    %3047 = vmatpush1.msra.mxu0 %v2950
    %3048 = vmatprep.subr.mxu0 %v2955
    %3049 = vmatpush1.msra.mxu0 %v2954
    %3050 = vmatprep.subr.mxu0 %v2959
    %3051 = vmatpush1.msra.mxu0 %v2958
    %3052 = vmatprep.subr.mxu0 %v2963
    %3053 = vmatpush1.msra.mxu0 %v2962
    %3054 = vmatprep.subr.mxu0 %v2967
    %3055 = vmatpush1.msra.mxu0 %v2966
    %3056 = vmatprep.subr.mxu0 %v2971
    %3057 = vmatpush1.msra.mxu0 %v2970
    %3058 = vmatprep.subr.mxu0 %v2975
    %3059 = vmatpush1.msra.mxu0 %v2974
    %3060 = vmatprep.subr.mxu0 %v2979
    %3061 = vmatpush1.msra.mxu0 %v2978
    %3062 = vmatprep.subr.mxu0 %v2983
    %3063 = vmatpush1.msra.mxu0 %v2982
    %3064 = vmatprep.subr.mxu0 %v2987
    %3065 = vmatpush1.msra.mxu0 %v2986
    %3066 = vmatprep.subr.mxu0 %v2991
    %3067 = vmatpush1.msra.mxu0 %v2990
    %3068 = vmatprep.subr.mxu0 %v2995
    %3069 = vmatpush1.msra.mxu0 %v2994
    %3070 = vmatprep.subr.mxu0 %v2999
    %3071 = vmatpush1.msra.mxu0 %v2998
    %3072 = vmatprep.subr.mxu0 %v3003
    %3073 = vmatpush1.msra.mxu0 %v3002
    %3074 = vmatprep.subr.mxu0 %v3007
    %3075 = vmatpush1.msra.mxu0 %v3006
    %3076 = vmatprep.subr.mxu0 %v3011
    %3077 = vmatpush1.msra.mxu0 %v3010
    %3078 = vmatprep.mubr.f32.mxu0 %v2879
    %3079 = vmatmul.mubr.f32.gmra.mrb[0].mxu0 %v2878
    %v3080 = vpop.f32.mrb[0].mxu0
    %v3081 = vadd.f32 0.0, %v3080
    %v3082 = vpop.f32.mrb[0].mxu0
    %v3083 = vadd.f32 0.0, %v3082
    %3084 = vmatprep.mubr.f32.mxu0 %v2881
    %3085 = vmatmul.mubr.f32.gmra.mrb[0].mxu0 %v2880
    %v3086 = vpop.f32.mrb[0].mxu0
    %v3087 = vadd.f32 0.0, %v3086
    %v3088 = vpop.f32.mrb[0].mxu0
    %v3089 = vadd.f32 0.0, %v3088
    %3090 = vdwg.mxu0
    %3091 = vmatprep.subr.mxu0 %v2889
    %3092 = vmatpush1.msra.mxu0 %v2888
    %3093 = vmatprep.subr.mxu0 %v2893
    %3094 = vmatpush1.msra.mxu0 %v2892
    %3095 = vmatprep.subr.mxu0 %v2897
    %3096 = vmatpush1.msra.mxu0 %v2896
    %3097 = vmatprep.subr.mxu0 %v2901
    %3098 = vmatpush1.msra.mxu0 %v2900
    %3099 = vmatprep.subr.mxu0 %v2905
    %3100 = vmatpush1.msra.mxu0 %v2904
    %3101 = vmatprep.subr.mxu0 %v2909
    %3102 = vmatpush1.msra.mxu0 %v2908
    %3103 = vmatprep.subr.mxu0 %v2913
    %3104 = vmatpush1.msra.mxu0 %v2912
    %3105 = vmatprep.subr.mxu0 %v2917
    %3106 = vmatpush1.msra.mxu0 %v2916
    %3107 = vmatprep.subr.mxu0 %v2921
    %3108 = vmatpush1.msra.mxu0 %v2920
    %3109 = vmatprep.subr.mxu0 %v2925
    %3110 = vmatpush1.msra.mxu0 %v2924
    %3111 = vmatprep.subr.mxu0 %v2929
    %3112 = vmatpush1.msra.mxu0 %v2928
    %3113 = vmatprep.subr.mxu0 %v2933
    %3114 = vmatpush1.msra.mxu0 %v2932
    %3115 = vmatprep.subr.mxu0 %v2937
    %3116 = vmatpush1.msra.mxu0 %v2936
    %3117 = vmatprep.subr.mxu0 %v2941
    %3118 = vmatpush1.msra.mxu0 %v2940
    %3119 = vmatprep.subr.mxu0 %v2945
    %3120 = vmatpush1.msra.mxu0 %v2944
    %3121 = vmatprep.subr.mxu0 %v2949
    %3122 = vmatpush1.msra.mxu0 %v2948
    %3123 = vmatprep.subr.mxu0 %v2953
    %3124 = vmatpush1.msra.mxu0 %v2952
    %3125 = vmatprep.subr.mxu0 %v2957
    %3126 = vmatpush1.msra.mxu0 %v2956
    %3127 = vmatprep.subr.mxu0 %v2961
    %3128 = vmatpush1.msra.mxu0 %v2960
    %3129 = vmatprep.subr.mxu0 %v2965
    %3130 = vmatpush1.msra.mxu0 %v2964
    %3131 = vmatprep.subr.mxu0 %v2969
    %3132 = vmatpush1.msra.mxu0 %v2968
    %3133 = vmatprep.subr.mxu0 %v2973
    %3134 = vmatpush1.msra.mxu0 %v2972
    %3135 = vmatprep.subr.mxu0 %v2977
    %3136 = vmatpush1.msra.mxu0 %v2976
    %3137 = vmatprep.subr.mxu0 %v2981
    %3138 = vmatpush1.msra.mxu0 %v2980
    %3139 = vmatprep.subr.mxu0 %v2985
    %3140 = vmatpush1.msra.mxu0 %v2984
    %3141 = vmatprep.subr.mxu0 %v2989
    %3142 = vmatpush1.msra.mxu0 %v2988
    %3143 = vmatprep.subr.mxu0 %v2993
    %3144 = vmatpush1.msra.mxu0 %v2992
    %3145 = vmatprep.subr.mxu0 %v2997
    %3146 = vmatpush1.msra.mxu0 %v2996
    %3147 = vmatprep.subr.mxu0 %v3001
    %3148 = vmatpush1.msra.mxu0 %v3000
    %3149 = vmatprep.subr.mxu0 %v3005
    %3150 = vmatpush1.msra.mxu0 %v3004
    %3151 = vmatprep.subr.mxu0 %v3009
    %3152 = vmatpush1.msra.mxu0 %v3008
    %3153 = vmatprep.subr.mxu0 %v3013
    %3154 = vmatpush1.msra.mxu0 %v3012
    %3155 = vmatprep.mubr.f32.mxu0 %v2879
    %3156 = vmatmul.mubr.f32.gmra.mrb[0].mxu0 %v2878
    %v3157 = vpop.f32.mrb[0].mxu0
    %v3158 = vadd.f32 0.0, %v3157
    %v3159 = vpop.f32.mrb[0].mxu0
    %v3160 = vadd.f32 0.0, %v3159
    %3161 = vmatprep.mubr.f32.mxu0 %v2881
    %3162 = vmatmul.mubr.f32.gmra.mrb[0].mxu0 %v2880
    %v3163 = vpop.f32.mrb[0].mxu0
    %v3164 = vadd.f32 0.0, %v3163
    %v3165 = vpop.f32.mrb[0].mxu0
    %v3166 = vadd.f32 0.0, %v3165
    %3167 = vdwg.mxu0
    %vm3168 = vcmask 130048
    %v3170 = vsel %vm3168, %v2882, 0
    %v3173 = vsel %vm3168, %v2883, 0
    %v3176 = vsel %vm3168, %v2884, 0
    %v3179 = vsel %vm3168, %v2885, 0
    %3181 = vmatprep.subr.mxu0 %v3083
    %3182 = vmatpush1.msra.mxu0 %v3081
    %3183 = vmatprep.subr.mxu0 %v3089
    %3184 = vmatpush1.msra.mxu0 %v3087
    %3185 = vmatprep.subr.mxu0 0.0
    %3186 = vmatpush1.msra.mxu0 0.0
    %3187 = vmatprep.subr.mxu0 0.0
    %3188 = vmatpush1.msra.mxu0 0.0
    %3189 = vmatprep.subr.mxu0 0.0
    %3190 = vmatpush1.msra.mxu0 0.0
    %3191 = vmatprep.subr.mxu0 0.0
    %3192 = vmatpush1.msra.mxu0 0.0
    %3193 = vmatprep.subr.mxu0 0.0
    %3194 = vmatpush1.msra.mxu0 0.0
    %3195 = vmatprep.subr.mxu0 0.0
    %3196 = vmatpush1.msra.mxu0 0.0
    %3197 = vmatprep.subr.mxu0 0.0
    %3198 = vmatpush1.msra.mxu0 0.0
    %3199 = vmatprep.subr.mxu0 0.0
    %3200 = vmatpush1.msra.mxu0 0.0
    %3201 = vmatprep.subr.mxu0 0.0
    %3202 = vmatpush1.msra.mxu0 0.0
    %3203 = vmatprep.subr.mxu0 0.0
    %3204 = vmatpush1.msra.mxu0 0.0
    %3205 = vmatprep.subr.mxu0 0.0
    %3206 = vmatpush1.msra.mxu0 0.0
    %3207 = vmatprep.subr.mxu0 0.0
    %3208 = vmatpush1.msra.mxu0 0.0
    %3209 = vmatprep.subr.mxu0 0.0
    %3210 = vmatpush1.msra.mxu0 0.0
    %3211 = vmatprep.subr.mxu0 0.0
    %3212 = vmatpush1.msra.mxu0 0.0
    %3213 = vmatprep.subr.mxu0 0.0
    %3214 = vmatpush1.msra.mxu0 0.0
    %3215 = vmatprep.subr.mxu0 0.0
    %3216 = vmatpush1.msra.mxu0 0.0
    %3217 = vmatprep.subr.mxu0 0.0
    %3218 = vmatpush1.msra.mxu0 0.0
    %3219 = vmatprep.subr.mxu0 0.0
    %3220 = vmatpush1.msra.mxu0 0.0
    %3221 = vmatprep.subr.mxu0 0.0
    %3222 = vmatpush1.msra.mxu0 0.0
    %3223 = vmatprep.subr.mxu0 0.0
    %3224 = vmatpush1.msra.mxu0 0.0
    %3225 = vmatprep.subr.mxu0 0.0
    %3226 = vmatpush1.msra.mxu0 0.0
    %3227 = vmatprep.subr.mxu0 0.0
    %3228 = vmatpush1.msra.mxu0 0.0
    %3229 = vmatprep.subr.mxu0 0.0
    %3230 = vmatpush1.msra.mxu0 0.0
    %3231 = vmatprep.subr.mxu0 0.0
    %3232 = vmatpush1.msra.mxu0 0.0
    %3233 = vmatprep.subr.mxu0 0.0
    %3234 = vmatpush1.msra.mxu0 0.0
    %3235 = vmatprep.subr.mxu0 0.0
    %3236 = vmatpush1.msra.mxu0 0.0
    %3237 = vmatprep.subr.mxu0 0.0
    %3238 = vmatpush1.msra.mxu0 0.0
    %3239 = vmatprep.subr.mxu0 0.0
    %3240 = vmatpush1.msra.mxu0 0.0
    %3241 = vmatprep.subr.mxu0 0.0
    %3242 = vmatpush1.msra.mxu0 0.0
    %3243 = vmatprep.subr.mxu0 0.0
    %3244 = vmatpush1.msra.mxu0 0.0
    %3245 = vmatprep.mubr.f32.mxu0 0.0
    %3246 = vmatmul.mubr.f32.gmra.mrb[0].mxu0 %v3170
    %v3247 = vpop.f32.mrb[0].mxu0
    %v3248 = vadd.f32 0.0, %v3247
    %v3249 = vpop.f32.mrb[0].mxu0
    %v3250 = vadd.f32 0.0, %v3249
    %3251 = vmatprep.mubr.f32.mxu0 0.0
    %3252 = vmatmul.mubr.f32.gmra.mrb[0].mxu0 %v3173
    %v3253 = vpop.f32.mrb[0].mxu0
    %v3254 = vadd.f32 0.0, %v3253
    %v3255 = vpop.f32.mrb[0].mxu0
    %v3256 = vadd.f32 0.0, %v3255
    %3257 = vmatprep.mubr.f32.mxu0 0.0
    %3258 = vmatmul.mubr.f32.gmra.mrb[0].mxu0 %v3176
    %v3259 = vpop.f32.mrb[0].mxu0
    %v3260 = vadd.f32 0.0, %v3259
    %v3261 = vpop.f32.mrb[0].mxu0
    %v3262 = vadd.f32 0.0, %v3261
    %3263 = vmatprep.mubr.f32.mxu0 0.0
    %3264 = vmatmul.mubr.f32.gmra.mrb[0].mxu0 %v3179
    %v3265 = vpop.f32.mrb[0].mxu0
    %v3266 = vadd.f32 0.0, %v3265
    %v3267 = vpop.f32.mrb[0].mxu0
    %v3268 = vadd.f32 0.0, %v3267
    %3269 = vdwg.mxu0
    %3270 = vmatprep.subr.mxu0 %v3160
    %3271 = vmatpush1.msra.mxu0 %v3158
    %3272 = vmatprep.subr.mxu0 %v3166
    %3273 = vmatpush1.msra.mxu0 %v3164
    %3274 = vmatprep.subr.mxu0 0.0
    %3275 = vmatpush1.msra.mxu0 0.0
    %3276 = vmatprep.subr.mxu0 0.0
    %3277 = vmatpush1.msra.mxu0 0.0
    %3278 = vmatprep.subr.mxu0 0.0
    %3279 = vmatpush1.msra.mxu0 0.0
    %3280 = vmatprep.subr.mxu0 0.0
    %3281 = vmatpush1.msra.mxu0 0.0
    %3282 = vmatprep.subr.mxu0 0.0
    %3283 = vmatpush1.msra.mxu0 0.0
    %3284 = vmatprep.subr.mxu0 0.0
    %3285 = vmatpush1.msra.mxu0 0.0
    %3286 = vmatprep.subr.mxu0 0.0
    %3287 = vmatpush1.msra.mxu0 0.0
    %3288 = vmatprep.subr.mxu0 0.0
    %3289 = vmatpush1.msra.mxu0 0.0
    %3290 = vmatprep.subr.mxu0 0.0
    %3291 = vmatpush1.msra.mxu0 0.0
    %3292 = vmatprep.subr.mxu0 0.0
    %3293 = vmatpush1.msra.mxu0 0.0
    %3294 = vmatprep.subr.mxu0 0.0
    %3295 = vmatpush1.msra.mxu0 0.0
    %3296 = vmatprep.subr.mxu0 0.0
    %3297 = vmatpush1.msra.mxu0 0.0
    %3298 = vmatprep.subr.mxu0 0.0
    %3299 = vmatpush1.msra.mxu0 0.0
    %3300 = vmatprep.subr.mxu0 0.0
    %3301 = vmatpush1.msra.mxu0 0.0
    %3302 = vmatprep.subr.mxu0 0.0
    %3303 = vmatpush1.msra.mxu0 0.0
    %3304 = vmatprep.subr.mxu0 0.0
    %3305 = vmatpush1.msra.mxu0 0.0
    %3306 = vmatprep.subr.mxu0 0.0
    %3307 = vmatpush1.msra.mxu0 0.0
    %3308 = vmatprep.subr.mxu0 0.0
    %3309 = vmatpush1.msra.mxu0 0.0
    %3310 = vmatprep.subr.mxu0 0.0
    %3311 = vmatpush1.msra.mxu0 0.0
    %3312 = vmatprep.subr.mxu0 0.0
    %3313 = vmatpush1.msra.mxu0 0.0
    %3314 = vmatprep.subr.mxu0 0.0
    %3315 = vmatpush1.msra.mxu0 0.0
    %3316 = vmatprep.subr.mxu0 0.0
    %3317 = vmatpush1.msra.mxu0 0.0
    %3318 = vmatprep.subr.mxu0 0.0
    %3319 = vmatpush1.msra.mxu0 0.0
    %3320 = vmatprep.subr.mxu0 0.0
    %3321 = vmatpush1.msra.mxu0 0.0
    %3322 = vmatprep.subr.mxu0 0.0
    %3323 = vmatpush1.msra.mxu0 0.0
    %3324 = vmatprep.subr.mxu0 0.0
    %3325 = vmatpush1.msra.mxu0 0.0
    %3326 = vmatprep.subr.mxu0 0.0
    %3327 = vmatpush1.msra.mxu0 0.0
    %3328 = vmatprep.subr.mxu0 0.0
    %3329 = vmatpush1.msra.mxu0 0.0
    %3330 = vmatprep.subr.mxu0 0.0
    %3331 = vmatpush1.msra.mxu0 0.0
    %3332 = vmatprep.subr.mxu0 0.0
    %3333 = vmatpush1.msra.mxu0 0.0
    %3334 = vmatprep.mubr.f32.mxu0 0.0
    %3335 = vmatmul.mubr.f32.gmra.mrb[0].mxu0 %v3170
    %v3336 = vpop.f32.mrb[0].mxu0
    %v3337 = vadd.f32 0.0, %v3336
    %v3338 = vpop.f32.mrb[0].mxu0
    %v3339 = vadd.f32 0.0, %v3338
    %3340 = vmatprep.mubr.f32.mxu0 0.0
    %3341 = vmatmul.mubr.f32.gmra.mrb[0].mxu0 %v3173
    %v3342 = vpop.f32.mrb[0].mxu0
    %v3343 = vadd.f32 0.0, %v3342
    %v3344 = vpop.f32.mrb[0].mxu0
    %v3345 = vadd.f32 0.0, %v3344
    %3346 = vmatprep.mubr.f32.mxu0 0.0
    %3347 = vmatmul.mubr.f32.gmra.mrb[0].mxu0 %v3176
    %v3348 = vpop.f32.mrb[0].mxu0
    %v3349 = vadd.f32 0.0, %v3348
    %v3350 = vpop.f32.mrb[0].mxu0
    %v3351 = vadd.f32 0.0, %v3350
    %3352 = vmatprep.mubr.f32.mxu0 0.0
    %3353 = vmatmul.mubr.f32.gmra.mrb[0].mxu0 %v3179
    %v3354 = vpop.f32.mrb[0].mxu0
    %v3355 = vadd.f32 0.0, %v3354
    %v3356 = vpop.f32.mrb[0].mxu0
    %v3357 = vadd.f32 0.0, %v3356
    %3358 = vdwg.mxu0
    %v3359 = vadd.f32 %v2311, %v3248
    %v3360 = vadd.f32 %v2313, %v3250
    %v3361 = vadd.f32 %v2667, %v3337
    %v3362 = vadd.f32 %v2669, %v3339
    %v3363 = vadd.f32 %v2317, %v3254
    %v3364 = vadd.f32 %v2319, %v3256
    %v3365 = vadd.f32 %v2673, %v3343
    %v3366 = vadd.f32 %v2675, %v3345
    %v3367 = vadd.f32 %v2323, %v3260
    %v3368 = vadd.f32 %v2325, %v3262
    %v3369 = vadd.f32 %v2679, %v3349
    %v3370 = vadd.f32 %v2681, %v3351
    %v3371 = vadd.f32 %v2329, %v3266
    %v3372 = vadd.f32 %v2331, %v3268
    %v3373 = vadd.f32 %v2685, %v3355
    %v3374 = vadd.f32 %v2687, %v3357
    %v3375 = vld [vmem:[#allocation19] sm:$0xf]
    %v3376 = vld [vmem:[#allocation16] sm:$0xff]
    %v3377 = vld [vmem:[#allocation16 + $0x8] sm:$0xff]
    %v3378 = vld [vmem:[#allocation16 + $0x10] sm:$0xff]
    %v3379 = vld [vmem:[#allocation16 + $0x18] sm:$0xff]
    %v3380 = vld [vmem:[#allocation17] sm:$0xff]
    %v3381 = vld [vmem:[#allocation17 + $0x8] sm:$0xff]
    %v3382 = vld [vmem:[#allocation17 + $0x10] sm:$0xff]
    %v3383 = vld [vmem:[#allocation17 + $0x18] sm:$0xff]
    %v3384 = vld [vmem:[#allocation17 + $0x20] sm:$0xff]
    %v3385 = vld [vmem:[#allocation17 + $0x28] sm:$0xff]
    %v3386 = vld [vmem:[#allocation17 + $0x30] sm:$0xff]
    %v3387 = vld [vmem:[#allocation17 + $0x38] sm:$0xff]
    %v3388 = vld [vmem:[#allocation17 + $0x40] sm:$0xff]
    %v3389 = vld [vmem:[#allocation17 + $0x48] sm:$0xff]
    %v3390 = vld [vmem:[#allocation17 + $0x50] sm:$0xff]
    %v3391 = vld [vmem:[#allocation17 + $0x58] sm:$0xff]
    %v3392 = vld [vmem:[#allocation17 + $0x60] sm:$0xff]
    %v3393 = vld [vmem:[#allocation17 + $0x68] sm:$0xff]
    %v3394 = vld [vmem:[#allocation17 + $0x70] sm:$0xff]
    %v3395 = vld [vmem:[#allocation17 + $0x78] sm:$0xff]
    %v3396 = vld [vmem:[#allocation17 + $0x80] sm:$0xff]
    %v3397 = vld [vmem:[#allocation17 + $0x88] sm:$0xff]
    %v3398 = vld [vmem:[#allocation17 + $0x90] sm:$0xff]
    %v3399 = vld [vmem:[#allocation17 + $0x98] sm:$0xff]
    %v3400 = vld [vmem:[#allocation17 + $0xa0] sm:$0xff]
    %v3401 = vld [vmem:[#allocation17 + $0xa8] sm:$0xff]
    %v3402 = vld [vmem:[#allocation17 + $0xb0] sm:$0xff]
    %v3403 = vld [vmem:[#allocation17 + $0xb8] sm:$0xff]
    %v3404 = vld [vmem:[#allocation17 + $0xc0] sm:$0xff]
    %v3405 = vld [vmem:[#allocation17 + $0xc8] sm:$0xff]
    %v3406 = vld [vmem:[#allocation17 + $0xd0] sm:$0xff]
    %v3407 = vld [vmem:[#allocation17 + $0xd8] sm:$0xff]
    %v3408 = vld [vmem:[#allocation17 + $0xe0] sm:$0xff]
    %v3409 = vld [vmem:[#allocation17 + $0xe8] sm:$0xff]
    %v3410 = vld [vmem:[#allocation17 + $0xf0] sm:$0xff]
    %v3411 = vld [vmem:[#allocation17 + $0xf8] sm:$0xff]
    %v3412 = vld [vmem:[#allocation17 + $0x100] sm:$0xff]
    %v3413 = vld [vmem:[#allocation17 + $0x108] sm:$0xff]
    %v3414 = vld [vmem:[#allocation17 + $0x110] sm:$0xff]
    %v3415 = vld [vmem:[#allocation17 + $0x118] sm:$0xff]
    %v3416 = vld [vmem:[#allocation17 + $0x120] sm:$0xff]
    %v3417 = vld [vmem:[#allocation17 + $0x128] sm:$0xff]
    %v3418 = vld [vmem:[#allocation17 + $0x130] sm:$0xff]
    %v3419 = vld [vmem:[#allocation17 + $0x138] sm:$0xff]
    %v3420 = vld [vmem:[#allocation17 + $0x140] sm:$0xff]
    %v3421 = vld [vmem:[#allocation17 + $0x148] sm:$0xff]
    %v3422 = vld [vmem:[#allocation17 + $0x150] sm:$0xff]
    %v3423 = vld [vmem:[#allocation17 + $0x158] sm:$0xff]
    %v3424 = vld [vmem:[#allocation17 + $0x160] sm:$0xff]
    %v3425 = vld [vmem:[#allocation17 + $0x168] sm:$0xff]
    %v3426 = vld [vmem:[#allocation17 + $0x170] sm:$0xff]
    %v3427 = vld [vmem:[#allocation17 + $0x178] sm:$0xff]
    %v3428 = vld [vmem:[#allocation17 + $0x180] sm:$0xff]
    %v3429 = vld [vmem:[#allocation17 + $0x188] sm:$0xff]
    %v3430 = vld [vmem:[#allocation17 + $0x190] sm:$0xff]
    %v3431 = vld [vmem:[#allocation17 + $0x198] sm:$0xff]
    %v3432 = vld [vmem:[#allocation17 + $0x1a0] sm:$0xff]
    %v3433 = vld [vmem:[#allocation17 + $0x1a8] sm:$0xff]
    %v3434 = vld [vmem:[#allocation17 + $0x1b0] sm:$0xff]
    %v3435 = vld [vmem:[#allocation17 + $0x1b8] sm:$0xff]
    %v3436 = vld [vmem:[#allocation17 + $0x1c0] sm:$0xff]
    %v3437 = vld [vmem:[#allocation17 + $0x1c8] sm:$0xff]
    %v3438 = vld [vmem:[#allocation17 + $0x1d0] sm:$0xff]
    %v3439 = vld [vmem:[#allocation17 + $0x1d8] sm:$0xff]
    %v3440 = vld [vmem:[#allocation17 + $0x1e0] sm:$0xff]
    %v3441 = vld [vmem:[#allocation17 + $0x1e8] sm:$0xff]
    %v3442 = vld [vmem:[#allocation17 + $0x1f0] sm:$0xff]
    %v3443 = vld [vmem:[#allocation17 + $0x1f8] sm:$0xff]
    %v3444 = vld [vmem:[#allocation17 + $0x200] sm:$0xff]
    %v3445 = vld [vmem:[#allocation17 + $0x208] sm:$0xff]
    %v3446 = vld [vmem:[#allocation17 + $0x210] sm:$0xff]
    %v3447 = vld [vmem:[#allocation17 + $0x218] sm:$0xff]
    %v3448 = vld [vmem:[#allocation17 + $0x220] sm:$0xff]
    %v3449 = vld [vmem:[#allocation17 + $0x228] sm:$0xff]
    %v3450 = vld [vmem:[#allocation17 + $0x230] sm:$0xff]
    %v3451 = vld [vmem:[#allocation17 + $0x238] sm:$0xff]
    %v3452 = vld [vmem:[#allocation17 + $0x240] sm:$0xff]
    %v3453 = vld [vmem:[#allocation17 + $0x248] sm:$0xff]
    %v3454 = vld [vmem:[#allocation17 + $0x250] sm:$0xff]
    %v3455 = vld [vmem:[#allocation17 + $0x258] sm:$0xff]
    %v3456 = vld [vmem:[#allocation17 + $0x260] sm:$0xff]
    %v3457 = vld [vmem:[#allocation17 + $0x268] sm:$0xff]
    %v3458 = vld [vmem:[#allocation17 + $0x270] sm:$0xff]
    %v3459 = vld [vmem:[#allocation17 + $0x278] sm:$0xff]
    %v3460 = vld [vmem:[#allocation17 + $0x280] sm:$0xff]
    %v3461 = vld [vmem:[#allocation17 + $0x288] sm:$0xff]
    %v3462 = vld [vmem:[#allocation17 + $0x290] sm:$0xff]
    %v3463 = vld [vmem:[#allocation17 + $0x298] sm:$0xff]
    %v3464 = vld [vmem:[#allocation17 + $0x2a0] sm:$0xff]
    %v3465 = vld [vmem:[#allocation17 + $0x2a8] sm:$0xff]
    %v3466 = vld [vmem:[#allocation17 + $0x2b0] sm:$0xff]
    %v3467 = vld [vmem:[#allocation17 + $0x2b8] sm:$0xff]
    %v3468 = vld [vmem:[#allocation17 + $0x2c0] sm:$0xff]
    %v3469 = vld [vmem:[#allocation17 + $0x2c8] sm:$0xff]
    %v3470 = vld [vmem:[#allocation17 + $0x2d0] sm:$0xff]
    %v3471 = vld [vmem:[#allocation17 + $0x2d8] sm:$0xff]
    %v3472 = vld [vmem:[#allocation17 + $0x2e0] sm:$0xff]
    %v3473 = vld [vmem:[#allocation17 + $0x2e8] sm:$0xff]
    %v3474 = vld [vmem:[#allocation17 + $0x2f0] sm:$0xff]
    %v3475 = vld [vmem:[#allocation17 + $0x2f8] sm:$0xff]
    %v3476 = vld [vmem:[#allocation17 + $0x300] sm:$0xff]
    %v3477 = vld [vmem:[#allocation17 + $0x308] sm:$0xff]
    %v3478 = vld [vmem:[#allocation17 + $0x310] sm:$0xff]
    %v3479 = vld [vmem:[#allocation17 + $0x318] sm:$0xff]
    %v3480 = vld [vmem:[#allocation17 + $0x320] sm:$0xff]
    %v3481 = vld [vmem:[#allocation17 + $0x328] sm:$0xff]
    %v3482 = vld [vmem:[#allocation17 + $0x330] sm:$0xff]
    %v3483 = vld [vmem:[#allocation17 + $0x338] sm:$0xff]
    %v3484 = vld [vmem:[#allocation17 + $0x340] sm:$0xff]
    %v3485 = vld [vmem:[#allocation17 + $0x348] sm:$0xff]
    %v3486 = vld [vmem:[#allocation17 + $0x350] sm:$0xff]
    %v3487 = vld [vmem:[#allocation17 + $0x358] sm:$0xff]
    %v3488 = vld [vmem:[#allocation17 + $0x360] sm:$0xff]
    %v3489 = vld [vmem:[#allocation17 + $0x368] sm:$0xff]
    %v3490 = vld [vmem:[#allocation17 + $0x370] sm:$0xff]
    %v3491 = vld [vmem:[#allocation17 + $0x378] sm:$0xff]
    %v3492 = vld [vmem:[#allocation17 + $0x380] sm:$0xff]
    %v3493 = vld [vmem:[#allocation17 + $0x388] sm:$0xff]
    %v3494 = vld [vmem:[#allocation17 + $0x390] sm:$0xff]
    %v3495 = vld [vmem:[#allocation17 + $0x398] sm:$0xff]
    %v3496 = vld [vmem:[#allocation17 + $0x3a0] sm:$0xff]
    %v3497 = vld [vmem:[#allocation17 + $0x3a8] sm:$0xff]
    %v3498 = vld [vmem:[#allocation17 + $0x3b0] sm:$0xff]
    %v3499 = vld [vmem:[#allocation17 + $0x3b8] sm:$0xff]
    %v3500 = vld [vmem:[#allocation17 + $0x3c0] sm:$0xff]
    %v3501 = vld [vmem:[#allocation17 + $0x3c8] sm:$0xff]
    %v3502 = vld [vmem:[#allocation17 + $0x3d0] sm:$0xff]
    %v3503 = vld [vmem:[#allocation17 + $0x3d8] sm:$0xff]
    %v3504 = vld [vmem:[#allocation17 + $0x3e0] sm:$0xff]
    %v3505 = vld [vmem:[#allocation17 + $0x3e8] sm:$0xff]
    %v3506 = vld [vmem:[#allocation17 + $0x3f0] sm:$0xff]
    %v3507 = vld [vmem:[#allocation17 + $0x3f8] sm:$0xff]
    %v3508 = vld [vmem:[#allocation17 + $0x400] sm:$0xff]
    %v3509 = vld [vmem:[#allocation17 + $0x408] sm:$0xff]
    %v3510 = vld [vmem:[#allocation17 + $0x410] sm:$0xff]
    %v3511 = vld [vmem:[#allocation17 + $0x418] sm:$0xff]
    %v3512 = vld [vmem:[#allocation17 + $0x420] sm:$0xff]
    %v3513 = vld [vmem:[#allocation17 + $0x428] sm:$0xff]
    %v3514 = vld [vmem:[#allocation17 + $0x430] sm:$0xff]
    %v3515 = vld [vmem:[#allocation17 + $0x438] sm:$0xff]
    %v3516 = vld [vmem:[#allocation17 + $0x440] sm:$0xff]
    %v3517 = vld [vmem:[#allocation17 + $0x448] sm:$0xff]
    %v3518 = vld [vmem:[#allocation17 + $0x450] sm:$0xff]
    %v3519 = vld [vmem:[#allocation17 + $0x458] sm:$0xff]
    %v3520 = vld [vmem:[#allocation17 + $0x460] sm:$0xff]
    %v3521 = vld [vmem:[#allocation17 + $0x468] sm:$0xff]
    %v3522 = vld [vmem:[#allocation17 + $0x470] sm:$0xff]
    %v3523 = vld [vmem:[#allocation17 + $0x478] sm:$0xff]
    %v3524 = vld [vmem:[#allocation17 + $0x480] sm:$0xff]
    %v3525 = vld [vmem:[#allocation17 + $0x488] sm:$0xff]
    %v3526 = vld [vmem:[#allocation17 + $0x490] sm:$0xff]
    %v3527 = vld [vmem:[#allocation17 + $0x498] sm:$0xff]
    %v3528 = vld [vmem:[#allocation17 + $0x4a0] sm:$0xff]
    %v3529 = vld [vmem:[#allocation17 + $0x4a8] sm:$0xff]
    %v3530 = vld [vmem:[#allocation17 + $0x4b0] sm:$0xff]
    %v3531 = vld [vmem:[#allocation17 + $0x4b8] sm:$0xff]
    %v3532 = vld [vmem:[#allocation17 + $0x4c0] sm:$0xff]
    %v3533 = vld [vmem:[#allocation17 + $0x4c8] sm:$0xff]
    %v3534 = vld [vmem:[#allocation17 + $0x4d0] sm:$0xff]
    %v3535 = vld [vmem:[#allocation17 + $0x4d8] sm:$0xff]
    %v3536 = vld [vmem:[#allocation17 + $0x4e0] sm:$0xff]
    %v3537 = vld [vmem:[#allocation17 + $0x4e8] sm:$0xff]
    %v3538 = vld [vmem:[#allocation17 + $0x4f0] sm:$0xff]
    %v3539 = vld [vmem:[#allocation17 + $0x4f8] sm:$0xff]
    %v3540 = vld [vmem:[#allocation17 + $0x500] sm:$0xff]
    %v3541 = vld [vmem:[#allocation17 + $0x508] sm:$0xff]
    %v3542 = vld [vmem:[#allocation17 + $0x510] sm:$0xff]
    %v3543 = vld [vmem:[#allocation17 + $0x518] sm:$0xff]
    %v3544 = vld [vmem:[#allocation17 + $0x520] sm:$0xff]
    %v3545 = vld [vmem:[#allocation17 + $0x528] sm:$0xff]
    %v3546 = vld [vmem:[#allocation17 + $0x530] sm:$0xff]
    %v3547 = vld [vmem:[#allocation17 + $0x538] sm:$0xff]
    %v3548 = vld [vmem:[#allocation17 + $0x540] sm:$0xff]
    %v3549 = vld [vmem:[#allocation17 + $0x548] sm:$0xff]
    %v3550 = vld [vmem:[#allocation17 + $0x550] sm:$0xff]
    %v3551 = vld [vmem:[#allocation17 + $0x558] sm:$0xff]
    %v3552 = vld [vmem:[#allocation17 + $0x560] sm:$0xff]
    %v3553 = vld [vmem:[#allocation17 + $0x568] sm:$0xff]
    %v3554 = vld [vmem:[#allocation17 + $0x570] sm:$0xff]
    %v3555 = vld [vmem:[#allocation17 + $0x578] sm:$0xff]
    %v3556 = vld [vmem:[#allocation17 + $0x580] sm:$0xff]
    %v3557 = vld [vmem:[#allocation17 + $0x588] sm:$0xff]
    %v3558 = vld [vmem:[#allocation17 + $0x590] sm:$0xff]
    %v3559 = vld [vmem:[#allocation17 + $0x598] sm:$0xff]
    %v3560 = vld [vmem:[#allocation17 + $0x5a0] sm:$0xff]
    %v3561 = vld [vmem:[#allocation17 + $0x5a8] sm:$0xff]
    %v3562 = vld [vmem:[#allocation17 + $0x5b0] sm:$0xff]
    %v3563 = vld [vmem:[#allocation17 + $0x5b8] sm:$0xff]
    %v3564 = vld [vmem:[#allocation17 + $0x5c0] sm:$0xff]
    %v3565 = vld [vmem:[#allocation17 + $0x5c8] sm:$0xff]
    %v3566 = vld [vmem:[#allocation17 + $0x5d0] sm:$0xff]
    %v3567 = vld [vmem:[#allocation17 + $0x5d8] sm:$0xff]
    %v3568 = vld [vmem:[#allocation17 + $0x5e0] sm:$0xff]
    %v3569 = vld [vmem:[#allocation17 + $0x5e8] sm:$0xff]
    %v3570 = vld [vmem:[#allocation17 + $0x5f0] sm:$0xff]
    %v3571 = vld [vmem:[#allocation17 + $0x5f8] sm:$0xff]
    %v3572 = vld [vmem:[#allocation17 + $0x600] sm:$0xff]
    %v3573 = vld [vmem:[#allocation17 + $0x608] sm:$0xff]
    %v3574 = vld [vmem:[#allocation17 + $0x610] sm:$0xff]
    %v3575 = vld [vmem:[#allocation17 + $0x618] sm:$0xff]
    %v3576 = vld [vmem:[#allocation17 + $0x620] sm:$0xff]
    %v3577 = vld [vmem:[#allocation17 + $0x628] sm:$0xff]
    %v3578 = vld [vmem:[#allocation17 + $0x630] sm:$0xff]
    %v3579 = vld [vmem:[#allocation17 + $0x638] sm:$0xff]
    %v3580 = vld [vmem:[#allocation17 + $0x640] sm:$0xff]
    %v3581 = vld [vmem:[#allocation17 + $0x648] sm:$0xff]
    %v3582 = vld [vmem:[#allocation17 + $0x650] sm:$0xff]
    %v3583 = vld [vmem:[#allocation17 + $0x658] sm:$0xff]
    %v3584 = vld [vmem:[#allocation17 + $0x660] sm:$0xff]
    %v3585 = vld [vmem:[#allocation17 + $0x668] sm:$0xff]
    %v3586 = vld [vmem:[#allocation17 + $0x670] sm:$0xff]
    %v3587 = vld [vmem:[#allocation17 + $0x678] sm:$0xff]
    %v3588 = vld [vmem:[#allocation17 + $0x680] sm:$0xff]
    %v3589 = vld [vmem:[#allocation17 + $0x688] sm:$0xff]
    %v3590 = vld [vmem:[#allocation17 + $0x690] sm:$0xff]
    %v3591 = vld [vmem:[#allocation17 + $0x698] sm:$0xff]
    %v3592 = vld [vmem:[#allocation17 + $0x6a0] sm:$0xff]
    %v3593 = vld [vmem:[#allocation17 + $0x6a8] sm:$0xff]
    %v3594 = vld [vmem:[#allocation17 + $0x6b0] sm:$0xff]
    %v3595 = vld [vmem:[#allocation17 + $0x6b8] sm:$0xff]
    %v3596 = vld [vmem:[#allocation17 + $0x6c0] sm:$0xff]
    %v3597 = vld [vmem:[#allocation17 + $0x6c8] sm:$0xff]
    %v3598 = vld [vmem:[#allocation17 + $0x6d0] sm:$0xff]
    %v3599 = vld [vmem:[#allocation17 + $0x6d8] sm:$0xff]
    %v3600 = vld [vmem:[#allocation17 + $0x6e0] sm:$0xff]
    %v3601 = vld [vmem:[#allocation17 + $0x6e8] sm:$0xff]
    %v3602 = vld [vmem:[#allocation17 + $0x6f0] sm:$0xff]
    %v3603 = vld [vmem:[#allocation17 + $0x6f8] sm:$0xff]
    %v3604 = vld [vmem:[#allocation17 + $0x700] sm:$0xff]
    %v3605 = vld [vmem:[#allocation17 + $0x708] sm:$0xff]
    %v3606 = vld [vmem:[#allocation17 + $0x710] sm:$0xff]
    %v3607 = vld [vmem:[#allocation17 + $0x718] sm:$0xff]
    %v3608 = vld [vmem:[#allocation17 + $0x720] sm:$0xff]
    %v3609 = vld [vmem:[#allocation17 + $0x728] sm:$0xff]
    %v3610 = vld [vmem:[#allocation17 + $0x730] sm:$0xff]
    %v3611 = vld [vmem:[#allocation17 + $0x738] sm:$0xff]
    %v3612 = vld [vmem:[#allocation17 + $0x740] sm:$0xff]
    %v3613 = vld [vmem:[#allocation17 + $0x748] sm:$0xff]
    %v3614 = vld [vmem:[#allocation17 + $0x750] sm:$0xff]
    %v3615 = vld [vmem:[#allocation17 + $0x758] sm:$0xff]
    %v3616 = vld [vmem:[#allocation17 + $0x760] sm:$0xff]
    %v3617 = vld [vmem:[#allocation17 + $0x768] sm:$0xff]
    %v3618 = vld [vmem:[#allocation17 + $0x770] sm:$0xff]
    %v3619 = vld [vmem:[#allocation17 + $0x778] sm:$0xff]
    %v3620 = vld [vmem:[#allocation17 + $0x780] sm:$0xff]
    %v3621 = vld [vmem:[#allocation17 + $0x788] sm:$0xff]
    %v3622 = vld [vmem:[#allocation17 + $0x790] sm:$0xff]
    %v3623 = vld [vmem:[#allocation17 + $0x798] sm:$0xff]
    %v3624 = vld [vmem:[#allocation17 + $0x7a0] sm:$0xff]
    %v3625 = vld [vmem:[#allocation17 + $0x7a8] sm:$0xff]
    %v3626 = vld [vmem:[#allocation17 + $0x7b0] sm:$0xff]
    %v3627 = vld [vmem:[#allocation17 + $0x7b8] sm:$0xff]
    %v3628 = vld [vmem:[#allocation17 + $0x7c0] sm:$0xff]
    %v3629 = vld [vmem:[#allocation17 + $0x7c8] sm:$0xff]
    %v3630 = vld [vmem:[#allocation17 + $0x7d0] sm:$0xff]
    %v3631 = vld [vmem:[#allocation17 + $0x7d8] sm:$0xff]
    %v3632 = vld [vmem:[#allocation17 + $0x7e0] sm:$0xff]
    %v3633 = vld [vmem:[#allocation17 + $0x7e8] sm:$0xff]
    %v3634 = vld [vmem:[#allocation17 + $0x7f0] sm:$0xff]
    %v3635 = vld [vmem:[#allocation17 + $0x7f8] sm:$0xff]
    %3636 = vmatprep.subr.mxu0 %v3381
    %3637 = vmatpush1.msra.mxu0 %v3380
    %3638 = vmatprep.subr.mxu0 %v3385
    %3639 = vmatpush1.msra.mxu0 %v3384
    %3640 = vmatprep.subr.mxu0 %v3389
    %3641 = vmatpush1.msra.mxu0 %v3388
    %3642 = vmatprep.subr.mxu0 %v3393
    %3643 = vmatpush1.msra.mxu0 %v3392
    %3644 = vmatprep.subr.mxu0 %v3397
    %3645 = vmatpush1.msra.mxu0 %v3396
    %3646 = vmatprep.subr.mxu0 %v3401
    %3647 = vmatpush1.msra.mxu0 %v3400
    %3648 = vmatprep.subr.mxu0 %v3405
    %3649 = vmatpush1.msra.mxu0 %v3404
    %3650 = vmatprep.subr.mxu0 %v3409
    %3651 = vmatpush1.msra.mxu0 %v3408
    %3652 = vmatprep.subr.mxu0 %v3413
    %3653 = vmatpush1.msra.mxu0 %v3412
    %3654 = vmatprep.subr.mxu0 %v3417
    %3655 = vmatpush1.msra.mxu0 %v3416
    %3656 = vmatprep.subr.mxu0 %v3421
    %3657 = vmatpush1.msra.mxu0 %v3420
    %3658 = vmatprep.subr.mxu0 %v3425
    %3659 = vmatpush1.msra.mxu0 %v3424
    %3660 = vmatprep.subr.mxu0 %v3429
    %3661 = vmatpush1.msra.mxu0 %v3428
    %3662 = vmatprep.subr.mxu0 %v3433
    %3663 = vmatpush1.msra.mxu0 %v3432
    %3664 = vmatprep.subr.mxu0 %v3437
    %3665 = vmatpush1.msra.mxu0 %v3436
    %3666 = vmatprep.subr.mxu0 %v3441
    %3667 = vmatpush1.msra.mxu0 %v3440
    %3668 = vmatprep.subr.mxu0 %v3445
    %3669 = vmatpush1.msra.mxu0 %v3444
    %3670 = vmatprep.subr.mxu0 %v3449
    %3671 = vmatpush1.msra.mxu0 %v3448
    %3672 = vmatprep.subr.mxu0 %v3453
    %3673 = vmatpush1.msra.mxu0 %v3452
    %3674 = vmatprep.subr.mxu0 %v3457
    %3675 = vmatpush1.msra.mxu0 %v3456
    %3676 = vmatprep.subr.mxu0 %v3461
    %3677 = vmatpush1.msra.mxu0 %v3460
    %3678 = vmatprep.subr.mxu0 %v3465
    %3679 = vmatpush1.msra.mxu0 %v3464
    %3680 = vmatprep.subr.mxu0 %v3469
    %3681 = vmatpush1.msra.mxu0 %v3468
    %3682 = vmatprep.subr.mxu0 %v3473
    %3683 = vmatpush1.msra.mxu0 %v3472
    %3684 = vmatprep.subr.mxu0 %v3477
    %3685 = vmatpush1.msra.mxu0 %v3476
    %3686 = vmatprep.subr.mxu0 %v3481
    %3687 = vmatpush1.msra.mxu0 %v3480
    %3688 = vmatprep.subr.mxu0 %v3485
    %3689 = vmatpush1.msra.mxu0 %v3484
    %3690 = vmatprep.subr.mxu0 %v3489
    %3691 = vmatpush1.msra.mxu0 %v3488
    %3692 = vmatprep.subr.mxu0 %v3493
    %3693 = vmatpush1.msra.mxu0 %v3492
    %3694 = vmatprep.subr.mxu0 %v3497
    %3695 = vmatpush1.msra.mxu0 %v3496
    %3696 = vmatprep.subr.mxu0 %v3501
    %3697 = vmatpush1.msra.mxu0 %v3500
    %3698 = vmatprep.subr.mxu0 %v3505
    %3699 = vmatpush1.msra.mxu0 %v3504
    %3700 = vmatprep.mubr.f32.mxu0 %v3360
    %3701 = vmatmul.mubr.f32.gmra.mrb[0].mxu0 %v3359
    %v3702 = vpop.f32.mrb[0].mxu0
    %v3703 = vadd.f32 0.0, %v3702
    %v3704 = vpop.f32.mrb[0].mxu0
    %v3705 = vadd.f32 0.0, %v3704
    %3706 = vmatprep.mubr.f32.mxu0 %v3364
    %3707 = vmatmul.mubr.f32.gmra.mrb[0].mxu0 %v3363
    %v3708 = vpop.f32.mrb[0].mxu0
    %v3709 = vadd.f32 0.0, %v3708
    %v3710 = vpop.f32.mrb[0].mxu0
    %v3711 = vadd.f32 0.0, %v3710
    %3712 = vmatprep.mubr.f32.mxu0 %v3368
    %3713 = vmatmul.mubr.f32.gmra.mrb[0].mxu0 %v3367
    %v3714 = vpop.f32.mrb[0].mxu0
    %v3715 = vadd.f32 0.0, %v3714
    %v3716 = vpop.f32.mrb[0].mxu0
    %v3717 = vadd.f32 0.0, %v3716
    %3718 = vmatprep.mubr.f32.mxu0 %v3372
    %3719 = vmatmul.mubr.f32.gmra.mrb[0].mxu0 %v3371
    %v3720 = vpop.f32.mrb[0].mxu0
    %v3721 = vadd.f32 0.0, %v3720
    %v3722 = vpop.f32.mrb[0].mxu0
    %v3723 = vadd.f32 0.0, %v3722
    %3724 = vdwg.mxu0
    %3725 = vmatprep.subr.mxu0 %v3509
    %3726 = vmatpush1.msra.mxu0 %v3508
    %3727 = vmatprep.subr.mxu0 %v3513
    %3728 = vmatpush1.msra.mxu0 %v3512
    %3729 = vmatprep.subr.mxu0 %v3517
    %3730 = vmatpush1.msra.mxu0 %v3516
    %3731 = vmatprep.subr.mxu0 %v3521
    %3732 = vmatpush1.msra.mxu0 %v3520
    %3733 = vmatprep.subr.mxu0 %v3525
    %3734 = vmatpush1.msra.mxu0 %v3524
    %3735 = vmatprep.subr.mxu0 %v3529
    %3736 = vmatpush1.msra.mxu0 %v3528
    %3737 = vmatprep.subr.mxu0 %v3533
    %3738 = vmatpush1.msra.mxu0 %v3532
    %3739 = vmatprep.subr.mxu0 %v3537
    %3740 = vmatpush1.msra.mxu0 %v3536
    %3741 = vmatprep.subr.mxu0 %v3541
    %3742 = vmatpush1.msra.mxu0 %v3540
    %3743 = vmatprep.subr.mxu0 %v3545
    %3744 = vmatpush1.msra.mxu0 %v3544
    %3745 = vmatprep.subr.mxu0 %v3549
    %3746 = vmatpush1.msra.mxu0 %v3548
    %3747 = vmatprep.subr.mxu0 %v3553
    %3748 = vmatpush1.msra.mxu0 %v3552
    %3749 = vmatprep.subr.mxu0 %v3557
    %3750 = vmatpush1.msra.mxu0 %v3556
    %3751 = vmatprep.subr.mxu0 %v3561
    %3752 = vmatpush1.msra.mxu0 %v3560
    %3753 = vmatprep.subr.mxu0 %v3565
    %3754 = vmatpush1.msra.mxu0 %v3564
    %3755 = vmatprep.subr.mxu0 %v3569
    %3756 = vmatpush1.msra.mxu0 %v3568
    %3757 = vmatprep.subr.mxu0 %v3573
    %3758 = vmatpush1.msra.mxu0 %v3572
    %3759 = vmatprep.subr.mxu0 %v3577
    %3760 = vmatpush1.msra.mxu0 %v3576
    %3761 = vmatprep.subr.mxu0 %v3581
    %3762 = vmatpush1.msra.mxu0 %v3580
    %3763 = vmatprep.subr.mxu0 %v3585
    %3764 = vmatpush1.msra.mxu0 %v3584
    %3765 = vmatprep.subr.mxu0 %v3589
    %3766 = vmatpush1.msra.mxu0 %v3588
    %3767 = vmatprep.subr.mxu0 %v3593
    %3768 = vmatpush1.msra.mxu0 %v3592
    %3769 = vmatprep.subr.mxu0 %v3597
    %3770 = vmatpush1.msra.mxu0 %v3596
    %3771 = vmatprep.subr.mxu0 %v3601
    %3772 = vmatpush1.msra.mxu0 %v3600
    %3773 = vmatprep.subr.mxu0 %v3605
    %3774 = vmatpush1.msra.mxu0 %v3604
    %3775 = vmatprep.subr.mxu0 %v3609
    %3776 = vmatpush1.msra.mxu0 %v3608
    %3777 = vmatprep.subr.mxu0 %v3613
    %3778 = vmatpush1.msra.mxu0 %v3612
    %3779 = vmatprep.subr.mxu0 %v3617
    %3780 = vmatpush1.msra.mxu0 %v3616
    %3781 = vmatprep.subr.mxu0 %v3621
    %3782 = vmatpush1.msra.mxu0 %v3620
    %3783 = vmatprep.subr.mxu0 %v3625
    %3784 = vmatpush1.msra.mxu0 %v3624
    %3785 = vmatprep.subr.mxu0 %v3629
    %3786 = vmatpush1.msra.mxu0 %v3628
    %3787 = vmatprep.subr.mxu0 %v3633
    %3788 = vmatpush1.msra.mxu0 %v3632
    %3789 = vmatprep.mubr.f32.mxu0 %v3362
    %3790 = vmatmul.mubr.f32.gmra.mrb[0].mxu0 %v3361
    %v3791 = vpop.f32.mrb[0].mxu0
    %v3792 = vadd.f32 %v3703, %v3791
    %v3793 = vpop.f32.mrb[0].mxu0
    %v3794 = vadd.f32 %v3705, %v3793
    %3795 = vmatprep.mubr.f32.mxu0 %v3366
    %3796 = vmatmul.mubr.f32.gmra.mrb[0].mxu0 %v3365
    %v3797 = vpop.f32.mrb[0].mxu0
    %v3798 = vadd.f32 %v3709, %v3797
    %v3799 = vpop.f32.mrb[0].mxu0
    %v3800 = vadd.f32 %v3711, %v3799
    %3801 = vmatprep.mubr.f32.mxu0 %v3370
    %3802 = vmatmul.mubr.f32.gmra.mrb[0].mxu0 %v3369
    %v3803 = vpop.f32.mrb[0].mxu0
    %v3804 = vadd.f32 %v3715, %v3803
    %v3805 = vpop.f32.mrb[0].mxu0
    %v3806 = vadd.f32 %v3717, %v3805
    %3807 = vmatprep.mubr.f32.mxu0 %v3374
    %3808 = vmatmul.mubr.f32.gmra.mrb[0].mxu0 %v3373
    %v3809 = vpop.f32.mrb[0].mxu0
    %v3810 = vadd.f32 %v3721, %v3809
    %v3811 = vpop.f32.mrb[0].mxu0
    %v3812 = vadd.f32 %v3723, %v3811
    %3813 = vdwg.mxu0
    %3814 = vmatprep.subr.mxu0 %v3383
    %3815 = vmatpush1.msra.mxu0 %v3382
    %3816 = vmatprep.subr.mxu0 %v3387
    %3817 = vmatpush1.msra.mxu0 %v3386
    %3818 = vmatprep.subr.mxu0 %v3391
    %3819 = vmatpush1.msra.mxu0 %v3390
    %3820 = vmatprep.subr.mxu0 %v3395
    %3821 = vmatpush1.msra.mxu0 %v3394
    %3822 = vmatprep.subr.mxu0 %v3399
    %3823 = vmatpush1.msra.mxu0 %v3398
    %3824 = vmatprep.subr.mxu0 %v3403
    %3825 = vmatpush1.msra.mxu0 %v3402
    %3826 = vmatprep.subr.mxu0 %v3407
    %3827 = vmatpush1.msra.mxu0 %v3406
    %3828 = vmatprep.subr.mxu0 %v3411
    %3829 = vmatpush1.msra.mxu0 %v3410
    %3830 = vmatprep.subr.mxu0 %v3415
    %3831 = vmatpush1.msra.mxu0 %v3414
    %3832 = vmatprep.subr.mxu0 %v3419
    %3833 = vmatpush1.msra.mxu0 %v3418
    %3834 = vmatprep.subr.mxu0 %v3423
    %3835 = vmatpush1.msra.mxu0 %v3422
    %3836 = vmatprep.subr.mxu0 %v3427
    %3837 = vmatpush1.msra.mxu0 %v3426
    %3838 = vmatprep.subr.mxu0 %v3431
    %3839 = vmatpush1.msra.mxu0 %v3430
    %3840 = vmatprep.subr.mxu0 %v3435
    %3841 = vmatpush1.msra.mxu0 %v3434
    %3842 = vmatprep.subr.mxu0 %v3439
    %3843 = vmatpush1.msra.mxu0 %v3438
    %3844 = vmatprep.subr.mxu0 %v3443
    %3845 = vmatpush1.msra.mxu0 %v3442
    %3846 = vmatprep.subr.mxu0 %v3447
    %3847 = vmatpush1.msra.mxu0 %v3446
    %3848 = vmatprep.subr.mxu0 %v3451
    %3849 = vmatpush1.msra.mxu0 %v3450
    %3850 = vmatprep.subr.mxu0 %v3455
    %3851 = vmatpush1.msra.mxu0 %v3454
    %3852 = vmatprep.subr.mxu0 %v3459
    %3853 = vmatpush1.msra.mxu0 %v3458
    %3854 = vmatprep.subr.mxu0 %v3463
    %3855 = vmatpush1.msra.mxu0 %v3462
    %3856 = vmatprep.subr.mxu0 %v3467
    %3857 = vmatpush1.msra.mxu0 %v3466
    %3858 = vmatprep.subr.mxu0 %v3471
    %3859 = vmatpush1.msra.mxu0 %v3470
    %3860 = vmatprep.subr.mxu0 %v3475
    %3861 = vmatpush1.msra.mxu0 %v3474
    %3862 = vmatprep.subr.mxu0 %v3479
    %3863 = vmatpush1.msra.mxu0 %v3478
    %3864 = vmatprep.subr.mxu0 %v3483
    %3865 = vmatpush1.msra.mxu0 %v3482
    %3866 = vmatprep.subr.mxu0 %v3487
    %3867 = vmatpush1.msra.mxu0 %v3486
    %3868 = vmatprep.subr.mxu0 %v3491
    %3869 = vmatpush1.msra.mxu0 %v3490
    %3870 = vmatprep.subr.mxu0 %v3495
    %3871 = vmatpush1.msra.mxu0 %v3494
    %3872 = vmatprep.subr.mxu0 %v3499
    %3873 = vmatpush1.msra.mxu0 %v3498
    %3874 = vmatprep.subr.mxu0 %v3503
    %3875 = vmatpush1.msra.mxu0 %v3502
    %3876 = vmatprep.subr.mxu0 %v3507
    %3877 = vmatpush1.msra.mxu0 %v3506
    %3878 = vmatprep.mubr.f32.mxu0 %v3360
    %3879 = vmatmul.mubr.f32.gmra.mrb[0].mxu0 %v3359
    %v3880 = vpop.f32.mrb[0].mxu0
    %v3881 = vadd.f32 0.0, %v3880
    %v3882 = vpop.f32.mrb[0].mxu0
    %v3883 = vadd.f32 0.0, %v3882
    %3884 = vmatprep.mubr.f32.mxu0 %v3364
    %3885 = vmatmul.mubr.f32.gmra.mrb[0].mxu0 %v3363
    %v3886 = vpop.f32.mrb[0].mxu0
    %v3887 = vadd.f32 0.0, %v3886
    %v3888 = vpop.f32.mrb[0].mxu0
    %v3889 = vadd.f32 0.0, %v3888
    %3890 = vmatprep.mubr.f32.mxu0 %v3368
    %3891 = vmatmul.mubr.f32.gmra.mrb[0].mxu0 %v3367
    %v3892 = vpop.f32.mrb[0].mxu0
    %v3893 = vadd.f32 0.0, %v3892
    %v3894 = vpop.f32.mrb[0].mxu0
    %v3895 = vadd.f32 0.0, %v3894
    %3896 = vmatprep.mubr.f32.mxu0 %v3372
    %3897 = vmatmul.mubr.f32.gmra.mrb[0].mxu0 %v3371
    %v3898 = vpop.f32.mrb[0].mxu0
    %v3899 = vadd.f32 0.0, %v3898
    %v3900 = vpop.f32.mrb[0].mxu0
    %v3901 = vadd.f32 0.0, %v3900
    %3902 = vdwg.mxu0
    %3903 = vmatprep.subr.mxu0 %v3511
    %3904 = vmatpush1.msra.mxu0 %v3510
    %3905 = vmatprep.subr.mxu0 %v3515
    %3906 = vmatpush1.msra.mxu0 %v3514
    %3907 = vmatprep.subr.mxu0 %v3519
    %3908 = vmatpush1.msra.mxu0 %v3518
    %3909 = vmatprep.subr.mxu0 %v3523
    %3910 = vmatpush1.msra.mxu0 %v3522
    %3911 = vmatprep.subr.mxu0 %v3527
    %3912 = vmatpush1.msra.mxu0 %v3526
    %3913 = vmatprep.subr.mxu0 %v3531
    %3914 = vmatpush1.msra.mxu0 %v3530
    %3915 = vmatprep.subr.mxu0 %v3535
    %3916 = vmatpush1.msra.mxu0 %v3534
    %3917 = vmatprep.subr.mxu0 %v3539
    %3918 = vmatpush1.msra.mxu0 %v3538
    %3919 = vmatprep.subr.mxu0 %v3543
    %3920 = vmatpush1.msra.mxu0 %v3542
    %3921 = vmatprep.subr.mxu0 %v3547
    %3922 = vmatpush1.msra.mxu0 %v3546
    %3923 = vmatprep.subr.mxu0 %v3551
    %3924 = vmatpush1.msra.mxu0 %v3550
    %3925 = vmatprep.subr.mxu0 %v3555
    %3926 = vmatpush1.msra.mxu0 %v3554
    %3927 = vmatprep.subr.mxu0 %v3559
    %3928 = vmatpush1.msra.mxu0 %v3558
    %3929 = vmatprep.subr.mxu0 %v3563
    %3930 = vmatpush1.msra.mxu0 %v3562
    %3931 = vmatprep.subr.mxu0 %v3567
    %3932 = vmatpush1.msra.mxu0 %v3566
    %3933 = vmatprep.subr.mxu0 %v3571
    %3934 = vmatpush1.msra.mxu0 %v3570
    %3935 = vmatprep.subr.mxu0 %v3575
    %3936 = vmatpush1.msra.mxu0 %v3574
    %3937 = vmatprep.subr.mxu0 %v3579
    %3938 = vmatpush1.msra.mxu0 %v3578
    %3939 = vmatprep.subr.mxu0 %v3583
    %3940 = vmatpush1.msra.mxu0 %v3582
    %3941 = vmatprep.subr.mxu0 %v3587
    %3942 = vmatpush1.msra.mxu0 %v3586
    %3943 = vmatprep.subr.mxu0 %v3591
    %3944 = vmatpush1.msra.mxu0 %v3590
    %3945 = vmatprep.subr.mxu0 %v3595
    %3946 = vmatpush1.msra.mxu0 %v3594
    %3947 = vmatprep.subr.mxu0 %v3599
    %3948 = vmatpush1.msra.mxu0 %v3598
    %3949 = vmatprep.subr.mxu0 %v3603
    %3950 = vmatpush1.msra.mxu0 %v3602
    %3951 = vmatprep.subr.mxu0 %v3607
    %3952 = vmatpush1.msra.mxu0 %v3606
    %3953 = vmatprep.subr.mxu0 %v3611
    %3954 = vmatpush1.msra.mxu0 %v3610
    %3955 = vmatprep.subr.mxu0 %v3615
    %3956 = vmatpush1.msra.mxu0 %v3614
    %3957 = vmatprep.subr.mxu0 %v3619
    %3958 = vmatpush1.msra.mxu0 %v3618
    %3959 = vmatprep.subr.mxu0 %v3623
    %3960 = vmatpush1.msra.mxu0 %v3622
    %3961 = vmatprep.subr.mxu0 %v3627
    %3962 = vmatpush1.msra.mxu0 %v3626
    %3963 = vmatprep.subr.mxu0 %v3631
    %3964 = vmatpush1.msra.mxu0 %v3630
    %3965 = vmatprep.subr.mxu0 %v3635
    %3966 = vmatpush1.msra.mxu0 %v3634
    %3967 = vmatprep.mubr.f32.mxu0 %v3362
    %3968 = vmatmul.mubr.f32.gmra.mrb[0].mxu0 %v3361
    %v3969 = vpop.f32.mrb[0].mxu0
    %v3970 = vadd.f32 %v3881, %v3969
    %v3971 = vpop.f32.mrb[0].mxu0
    %v3972 = vadd.f32 %v3883, %v3971
    %3973 = vmatprep.mubr.f32.mxu0 %v3366
    %3974 = vmatmul.mubr.f32.gmra.mrb[0].mxu0 %v3365
    %v3975 = vpop.f32.mrb[0].mxu0
    %v3976 = vadd.f32 %v3887, %v3975
    %v3977 = vpop.f32.mrb[0].mxu0
    %v3978 = vadd.f32 %v3889, %v3977
    %3979 = vmatprep.mubr.f32.mxu0 %v3370
    %3980 = vmatmul.mubr.f32.gmra.mrb[0].mxu0 %v3369
    %v3981 = vpop.f32.mrb[0].mxu0
    %v3982 = vadd.f32 %v3893, %v3981
    %v3983 = vpop.f32.mrb[0].mxu0
    %v3984 = vadd.f32 %v3895, %v3983
    %3985 = vmatprep.mubr.f32.mxu0 %v3374
    %3986 = vmatmul.mubr.f32.gmra.mrb[0].mxu0 %v3373
    %v3987 = vpop.f32.mrb[0].mxu0
    %v3988 = vadd.f32 %v3899, %v3987
    %v3989 = vpop.f32.mrb[0].mxu0
    %v3990 = vadd.f32 %v3901, %v3989
    %3991 = vdwg.mxu0
    %vm3992 = vcmask 261120
    %v3994 = vsel %vm3992, %v3376, 0
    %v3997 = vsel %vm3992, %v3377, 0
    %v4000 = vsel %vm3992, %v3378, 0
    %v4003 = vsel %vm3992, %v3379, 0
    %4005 = vmatprep.subr.mxu0 %v3794
    %4006 = vmatpush1.msra.mxu0 %v3792
    %4007 = vmatprep.subr.mxu0 %v3800
    %4008 = vmatpush1.msra.mxu0 %v3798
    %4009 = vmatprep.subr.mxu0 %v3806
    %4010 = vmatpush1.msra.mxu0 %v3804
    %4011 = vmatprep.subr.mxu0 %v3812
    %4012 = vmatpush1.msra.mxu0 %v3810
    %4013 = vmatprep.subr.mxu0 0.0
    %4014 = vmatpush1.msra.mxu0 0.0
    %4015 = vmatprep.subr.mxu0 0.0
    %4016 = vmatpush1.msra.mxu0 0.0
    %4017 = vmatprep.subr.mxu0 0.0
    %4018 = vmatpush1.msra.mxu0 0.0
    %4019 = vmatprep.subr.mxu0 0.0
    %4020 = vmatpush1.msra.mxu0 0.0
    %4021 = vmatprep.subr.mxu0 0.0
    %4022 = vmatpush1.msra.mxu0 0.0
    %4023 = vmatprep.subr.mxu0 0.0
    %4024 = vmatpush1.msra.mxu0 0.0
    %4025 = vmatprep.subr.mxu0 0.0
    %4026 = vmatpush1.msra.mxu0 0.0
    %4027 = vmatprep.subr.mxu0 0.0
    %4028 = vmatpush1.msra.mxu0 0.0
    %4029 = vmatprep.subr.mxu0 0.0
    %4030 = vmatpush1.msra.mxu0 0.0
    %4031 = vmatprep.subr.mxu0 0.0
    %4032 = vmatpush1.msra.mxu0 0.0
    %4033 = vmatprep.subr.mxu0 0.0
    %4034 = vmatpush1.msra.mxu0 0.0
    %4035 = vmatprep.subr.mxu0 0.0
    %4036 = vmatpush1.msra.mxu0 0.0
    %4037 = vmatprep.subr.mxu0 0.0
    %4038 = vmatpush1.msra.mxu0 0.0
    %4039 = vmatprep.subr.mxu0 0.0
    %4040 = vmatpush1.msra.mxu0 0.0
    %4041 = vmatprep.subr.mxu0 0.0
    %4042 = vmatpush1.msra.mxu0 0.0
    %4043 = vmatprep.subr.mxu0 0.0
    %4044 = vmatpush1.msra.mxu0 0.0
    %4045 = vmatprep.subr.mxu0 0.0
    %4046 = vmatpush1.msra.mxu0 0.0
    %4047 = vmatprep.subr.mxu0 0.0
    %4048 = vmatpush1.msra.mxu0 0.0
    %4049 = vmatprep.subr.mxu0 0.0
    %4050 = vmatpush1.msra.mxu0 0.0
    %4051 = vmatprep.subr.mxu0 0.0
    %4052 = vmatpush1.msra.mxu0 0.0
    %4053 = vmatprep.subr.mxu0 0.0
    %4054 = vmatpush1.msra.mxu0 0.0
    %4055 = vmatprep.subr.mxu0 0.0
    %4056 = vmatpush1.msra.mxu0 0.0
    %4057 = vmatprep.subr.mxu0 0.0
    %4058 = vmatpush1.msra.mxu0 0.0
    %4059 = vmatprep.subr.mxu0 0.0
    %4060 = vmatpush1.msra.mxu0 0.0
    %4061 = vmatprep.subr.mxu0 0.0
    %4062 = vmatpush1.msra.mxu0 0.0
    %4063 = vmatprep.subr.mxu0 0.0
    %4064 = vmatpush1.msra.mxu0 0.0
    %4065 = vmatprep.subr.mxu0 0.0
    %4066 = vmatpush1.msra.mxu0 0.0
    %4067 = vmatprep.subr.mxu0 0.0
    %4068 = vmatpush1.msra.mxu0 0.0
    %4069 = vmatprep.mubr.f32.mxu0 0.0
    %4070 = vmatmul.mubr.f32.gmra.mrb[0].mxu0 %v3994
    %v4071 = vpop.f32.mrb[0].mxu0
    %v4072 = vadd.f32 0.0, %v4071
    %v4073 = vpop.f32.mrb[0].mxu0
    %v4074 = vadd.f32 0.0, %v4073
    %4075 = vmatprep.mubr.f32.mxu0 0.0
    %4076 = vmatmul.mubr.f32.gmra.mrb[0].mxu0 %v3997
    %v4077 = vpop.f32.mrb[0].mxu0
    %v4078 = vadd.f32 0.0, %v4077
    %v4079 = vpop.f32.mrb[0].mxu0
    %v4080 = vadd.f32 0.0, %v4079
    %4081 = vmatprep.mubr.f32.mxu0 0.0
    %4082 = vmatmul.mubr.f32.gmra.mrb[0].mxu0 %v4000
    %v4083 = vpop.f32.mrb[0].mxu0
    %v4084 = vadd.f32 0.0, %v4083
    %v4085 = vpop.f32.mrb[0].mxu0
    %v4086 = vadd.f32 0.0, %v4085
    %4087 = vmatprep.mubr.f32.mxu0 0.0
    %4088 = vmatmul.mubr.f32.gmra.mrb[0].mxu0 %v4003
    %v4089 = vpop.f32.mrb[0].mxu0
    %v4090 = vadd.f32 0.0, %v4089
    %v4091 = vpop.f32.mrb[0].mxu0
    %v4092 = vadd.f32 0.0, %v4091
    %4093 = vdwg.mxu0
    %4094 = vmatprep.subr.mxu0 %v3972
    %4095 = vmatpush1.msra.mxu0 %v3970
    %4096 = vmatprep.subr.mxu0 %v3978
    %4097 = vmatpush1.msra.mxu0 %v3976
    %4098 = vmatprep.subr.mxu0 %v3984
    %4099 = vmatpush1.msra.mxu0 %v3982
    %4100 = vmatprep.subr.mxu0 %v3990
    %4101 = vmatpush1.msra.mxu0 %v3988
    %4102 = vmatprep.subr.mxu0 0.0
    %4103 = vmatpush1.msra.mxu0 0.0
    %4104 = vmatprep.subr.mxu0 0.0
    %4105 = vmatpush1.msra.mxu0 0.0
    %4106 = vmatprep.subr.mxu0 0.0
    %4107 = vmatpush1.msra.mxu0 0.0
    %4108 = vmatprep.subr.mxu0 0.0
    %4109 = vmatpush1.msra.mxu0 0.0
    %4110 = vmatprep.subr.mxu0 0.0
    %4111 = vmatpush1.msra.mxu0 0.0
    %4112 = vmatprep.subr.mxu0 0.0
    %4113 = vmatpush1.msra.mxu0 0.0
    %4114 = vmatprep.subr.mxu0 0.0
    %4115 = vmatpush1.msra.mxu0 0.0
    %4116 = vmatprep.subr.mxu0 0.0
    %4117 = vmatpush1.msra.mxu0 0.0
    %4118 = vmatprep.subr.mxu0 0.0
    %4119 = vmatpush1.msra.mxu0 0.0
    %4120 = vmatprep.subr.mxu0 0.0
    %4121 = vmatpush1.msra.mxu0 0.0
    %4122 = vmatprep.subr.mxu0 0.0
    %4123 = vmatpush1.msra.mxu0 0.0
    %4124 = vmatprep.subr.mxu0 0.0
    %4125 = vmatpush1.msra.mxu0 0.0
    %4126 = vmatprep.subr.mxu0 0.0
    %4127 = vmatpush1.msra.mxu0 0.0
    %4128 = vmatprep.subr.mxu0 0.0
    %4129 = vmatpush1.msra.mxu0 0.0
    %4130 = vmatprep.subr.mxu0 0.0
    %4131 = vmatpush1.msra.mxu0 0.0
    %4132 = vmatprep.subr.mxu0 0.0
    %4133 = vmatpush1.msra.mxu0 0.0
    %4134 = vmatprep.subr.mxu0 0.0
    %4135 = vmatpush1.msra.mxu0 0.0
    %4136 = vmatprep.subr.mxu0 0.0
    %4137 = vmatpush1.msra.mxu0 0.0
    %4138 = vmatprep.subr.mxu0 0.0
    %4139 = vmatpush1.msra.mxu0 0.0
    %4140 = vmatprep.subr.mxu0 0.0
    %4141 = vmatpush1.msra.mxu0 0.0
    %4142 = vmatprep.subr.mxu0 0.0
    %4143 = vmatpush1.msra.mxu0 0.0
    %4144 = vmatprep.subr.mxu0 0.0
    %4145 = vmatpush1.msra.mxu0 0.0
    %4146 = vmatprep.subr.mxu0 0.0
    %4147 = vmatpush1.msra.mxu0 0.0
    %4148 = vmatprep.subr.mxu0 0.0
    %4149 = vmatpush1.msra.mxu0 0.0
    %4150 = vmatprep.subr.mxu0 0.0
    %4151 = vmatpush1.msra.mxu0 0.0
    %4152 = vmatprep.subr.mxu0 0.0
    %4153 = vmatpush1.msra.mxu0 0.0
    %4154 = vmatprep.subr.mxu0 0.0
    %4155 = vmatpush1.msra.mxu0 0.0
    %4156 = vmatprep.subr.mxu0 0.0
    %4157 = vmatpush1.msra.mxu0 0.0
    %4158 = vmatprep.mubr.f32.mxu0 0.0
    %4159 = vmatmul.mubr.f32.gmra.mrb[0].mxu0 %v3994
    %v4160 = vpop.f32.mrb[0].mxu0
    %v4161 = vadd.f32 0.0, %v4160
    %v4162 = vpop.f32.mrb[0].mxu0
    %v4163 = vadd.f32 0.0, %v4162
    %4164 = vmatprep.mubr.f32.mxu0 0.0
    %4165 = vmatmul.mubr.f32.gmra.mrb[0].mxu0 %v3997
    %v4166 = vpop.f32.mrb[0].mxu0
    %v4167 = vadd.f32 0.0, %v4166
    %v4168 = vpop.f32.mrb[0].mxu0
    %v4169 = vadd.f32 0.0, %v4168
    %4170 = vmatprep.mubr.f32.mxu0 0.0
    %4171 = vmatmul.mubr.f32.gmra.mrb[0].mxu0 %v4000
    %v4172 = vpop.f32.mrb[0].mxu0
    %v4173 = vadd.f32 0.0, %v4172
    %v4174 = vpop.f32.mrb[0].mxu0
    %v4175 = vadd.f32 0.0, %v4174
    %4176 = vmatprep.mubr.f32.mxu0 0.0
    %4177 = vmatmul.mubr.f32.gmra.mrb[0].mxu0 %v4003
    %v4178 = vpop.f32.mrb[0].mxu0
    %v4179 = vadd.f32 0.0, %v4178
    %v4180 = vpop.f32.mrb[0].mxu0
    %v4181 = vadd.f32 0.0, %v4180
    %4182 = vdwg.mxu0
    %v4184 = vlaneseq
    %v4185 = vshrl.u32 %v4184, 7
    %v4186 = vsub.s32 0, %v4185
    %v4187 = vrot.slane %v3375, %v4186
    %v4188 = vlaneseq
    %v4189 = vshrl.u32 %v4188, 7
    %v4190 = vsub.s32 1, %v4189
    %v4191 = vrot.slane %v3375, %v4190
    %v4192 = vlaneseq
    %v4193 = vshrl.u32 %v4192, 7
    %v4194 = vsub.s32 2, %v4193
    %v4195 = vrot.slane %v3375, %v4194
    %v4196 = vlaneseq
    %v4197 = vshrl.u32 %v4196, 7
    %v4198 = vsub.s32 3, %v4197
    %v4199 = vrot.slane %v3375, %v4198
    %v4204 = vadd.f32 %v4187, %v4072
    %v4205 = vadd.f32 %v4191, %v4074
    %v4206 = vadd.f32 %v4195, %v4161
    %v4207 = vadd.f32 %v4199, %v4163
    %v4208 = vadd.f32 %v4187, %v4078
    %v4209 = vadd.f32 %v4191, %v4080
    %v4210 = vadd.f32 %v4195, %v4167
    %v4211 = vadd.f32 %v4199, %v4169
    %v4212 = vadd.f32 %v4187, %v4084
    %v4213 = vadd.f32 %v4191, %v4086
    %v4214 = vadd.f32 %v4195, %v4173
    %v4215 = vadd.f32 %v4199, %v4175
    %v4216 = vadd.f32 %v4187, %v4090
    %v4217 = vadd.f32 %v4191, %v4092
    %v4218 = vadd.f32 %v4195, %v4179
    %v4219 = vadd.f32 %v4199, %v4181
    %s4220 = scalar_lea.vmem [#allocation16], 32
    %v4221 = vld [vmem:[%s4220] sm:$0xff]
    %v4222 = vld [vmem:[%s4220 + $0x8] sm:$0xff]
    %v4223 = vld [vmem:[%s4220 + $0x10] sm:$0xff]
    %v4224 = vld [vmem:[%s4220 + $0x18] sm:$0xff]
    %s4225 = scalar_lea.vmem [#allocation17], 2048
    %v4226 = vld [vmem:[%s4225] sm:$0xff]
    %v4227 = vld [vmem:[%s4225 + $0x8] sm:$0xff]
    %v4228 = vld [vmem:[%s4225 + $0x10] sm:$0xff]
    %v4229 = vld [vmem:[%s4225 + $0x18] sm:$0xff]
    %v4230 = vld [vmem:[%s4225 + $0x20] sm:$0xff]
    %v4231 = vld [vmem:[%s4225 + $0x28] sm:$0xff]
    %v4232 = vld [vmem:[%s4225 + $0x30] sm:$0xff]
    %v4233 = vld [vmem:[%s4225 + $0x38] sm:$0xff]
    %v4234 = vld [vmem:[%s4225 + $0x40] sm:$0xff]
    %v4235 = vld [vmem:[%s4225 + $0x48] sm:$0xff]
    %v4236 = vld [vmem:[%s4225 + $0x50] sm:$0xff]
    %v4237 = vld [vmem:[%s4225 + $0x58] sm:$0xff]
    %v4238 = vld [vmem:[%s4225 + $0x60] sm:$0xff]
    %v4239 = vld [vmem:[%s4225 + $0x68] sm:$0xff]
    %v4240 = vld [vmem:[%s4225 + $0x70] sm:$0xff]
    %v4241 = vld [vmem:[%s4225 + $0x78] sm:$0xff]
    %v4242 = vld [vmem:[%s4225 + $0x80] sm:$0xff]
    %v4243 = vld [vmem:[%s4225 + $0x88] sm:$0xff]
    %v4244 = vld [vmem:[%s4225 + $0x90] sm:$0xff]
    %v4245 = vld [vmem:[%s4225 + $0x98] sm:$0xff]
    %v4246 = vld [vmem:[%s4225 + $0xa0] sm:$0xff]
    %v4247 = vld [vmem:[%s4225 + $0xa8] sm:$0xff]
    %v4248 = vld [vmem:[%s4225 + $0xb0] sm:$0xff]
    %v4249 = vld [vmem:[%s4225 + $0xb8] sm:$0xff]
    %v4250 = vld [vmem:[%s4225 + $0xc0] sm:$0xff]
    %v4251 = vld [vmem:[%s4225 + $0xc8] sm:$0xff]
    %v4252 = vld [vmem:[%s4225 + $0xd0] sm:$0xff]
    %v4253 = vld [vmem:[%s4225 + $0xd8] sm:$0xff]
    %v4254 = vld [vmem:[%s4225 + $0xe0] sm:$0xff]
    %v4255 = vld [vmem:[%s4225 + $0xe8] sm:$0xff]
    %v4256 = vld [vmem:[%s4225 + $0xf0] sm:$0xff]
    %v4257 = vld [vmem:[%s4225 + $0xf8] sm:$0xff]
    %v4258 = vld [vmem:[%s4225 + $0x100] sm:$0xff]
    %v4259 = vld [vmem:[%s4225 + $0x108] sm:$0xff]
    %v4260 = vld [vmem:[%s4225 + $0x110] sm:$0xff]
    %v4261 = vld [vmem:[%s4225 + $0x118] sm:$0xff]
    %v4262 = vld [vmem:[%s4225 + $0x120] sm:$0xff]
    %v4263 = vld [vmem:[%s4225 + $0x128] sm:$0xff]
    %v4264 = vld [vmem:[%s4225 + $0x130] sm:$0xff]
    %v4265 = vld [vmem:[%s4225 + $0x138] sm:$0xff]
    %v4266 = vld [vmem:[%s4225 + $0x140] sm:$0xff]
    %v4267 = vld [vmem:[%s4225 + $0x148] sm:$0xff]
    %v4268 = vld [vmem:[%s4225 + $0x150] sm:$0xff]
    %v4269 = vld [vmem:[%s4225 + $0x158] sm:$0xff]
    %v4270 = vld [vmem:[%s4225 + $0x160] sm:$0xff]
    %v4271 = vld [vmem:[%s4225 + $0x168] sm:$0xff]
    %v4272 = vld [vmem:[%s4225 + $0x170] sm:$0xff]
    %v4273 = vld [vmem:[%s4225 + $0x178] sm:$0xff]
    %v4274 = vld [vmem:[%s4225 + $0x180] sm:$0xff]
    %v4275 = vld [vmem:[%s4225 + $0x188] sm:$0xff]
    %v4276 = vld [vmem:[%s4225 + $0x190] sm:$0xff]
    %v4277 = vld [vmem:[%s4225 + $0x198] sm:$0xff]
    %v4278 = vld [vmem:[%s4225 + $0x1a0] sm:$0xff]
    %v4279 = vld [vmem:[%s4225 + $0x1a8] sm:$0xff]
    %v4280 = vld [vmem:[%s4225 + $0x1b0] sm:$0xff]
    %v4281 = vld [vmem:[%s4225 + $0x1b8] sm:$0xff]
    %v4282 = vld [vmem:[%s4225 + $0x1c0] sm:$0xff]
    %v4283 = vld [vmem:[%s4225 + $0x1c8] sm:$0xff]
    %v4284 = vld [vmem:[%s4225 + $0x1d0] sm:$0xff]
    %v4285 = vld [vmem:[%s4225 + $0x1d8] sm:$0xff]
    %v4286 = vld [vmem:[%s4225 + $0x1e0] sm:$0xff]
    %v4287 = vld [vmem:[%s4225 + $0x1e8] sm:$0xff]
    %v4288 = vld [vmem:[%s4225 + $0x1f0] sm:$0xff]
    %v4289 = vld [vmem:[%s4225 + $0x1f8] sm:$0xff]
    %v4290 = vld [vmem:[%s4225 + $0x200] sm:$0xff]
    %v4291 = vld [vmem:[%s4225 + $0x208] sm:$0xff]
    %v4292 = vld [vmem:[%s4225 + $0x210] sm:$0xff]
    %v4293 = vld [vmem:[%s4225 + $0x218] sm:$0xff]
    %v4294 = vld [vmem:[%s4225 + $0x220] sm:$0xff]
    %v4295 = vld [vmem:[%s4225 + $0x228] sm:$0xff]
    %v4296 = vld [vmem:[%s4225 + $0x230] sm:$0xff]
    %v4297 = vld [vmem:[%s4225 + $0x238] sm:$0xff]
    %v4298 = vld [vmem:[%s4225 + $0x240] sm:$0xff]
    %v4299 = vld [vmem:[%s4225 + $0x248] sm:$0xff]
    %v4300 = vld [vmem:[%s4225 + $0x250] sm:$0xff]
    %v4301 = vld [vmem:[%s4225 + $0x258] sm:$0xff]
    %v4302 = vld [vmem:[%s4225 + $0x260] sm:$0xff]
    %v4303 = vld [vmem:[%s4225 + $0x268] sm:$0xff]
    %v4304 = vld [vmem:[%s4225 + $0x270] sm:$0xff]
    %v4305 = vld [vmem:[%s4225 + $0x278] sm:$0xff]
    %v4306 = vld [vmem:[%s4225 + $0x280] sm:$0xff]
    %v4307 = vld [vmem:[%s4225 + $0x288] sm:$0xff]
    %v4308 = vld [vmem:[%s4225 + $0x290] sm:$0xff]
    %v4309 = vld [vmem:[%s4225 + $0x298] sm:$0xff]
    %v4310 = vld [vmem:[%s4225 + $0x2a0] sm:$0xff]
    %v4311 = vld [vmem:[%s4225 + $0x2a8] sm:$0xff]
    %v4312 = vld [vmem:[%s4225 + $0x2b0] sm:$0xff]
    %v4313 = vld [vmem:[%s4225 + $0x2b8] sm:$0xff]
    %v4314 = vld [vmem:[%s4225 + $0x2c0] sm:$0xff]
    %v4315 = vld [vmem:[%s4225 + $0x2c8] sm:$0xff]
    %v4316 = vld [vmem:[%s4225 + $0x2d0] sm:$0xff]
    %v4317 = vld [vmem:[%s4225 + $0x2d8] sm:$0xff]
    %v4318 = vld [vmem:[%s4225 + $0x2e0] sm:$0xff]
    %v4319 = vld [vmem:[%s4225 + $0x2e8] sm:$0xff]
    %v4320 = vld [vmem:[%s4225 + $0x2f0] sm:$0xff]
    %v4321 = vld [vmem:[%s4225 + $0x2f8] sm:$0xff]
    %v4322 = vld [vmem:[%s4225 + $0x300] sm:$0xff]
    %v4323 = vld [vmem:[%s4225 + $0x308] sm:$0xff]
    %v4324 = vld [vmem:[%s4225 + $0x310] sm:$0xff]
    %v4325 = vld [vmem:[%s4225 + $0x318] sm:$0xff]
    %v4326 = vld [vmem:[%s4225 + $0x320] sm:$0xff]
    %v4327 = vld [vmem:[%s4225 + $0x328] sm:$0xff]
    %v4328 = vld [vmem:[%s4225 + $0x330] sm:$0xff]
    %v4329 = vld [vmem:[%s4225 + $0x338] sm:$0xff]
    %v4330 = vld [vmem:[%s4225 + $0x340] sm:$0xff]
    %v4331 = vld [vmem:[%s4225 + $0x348] sm:$0xff]
    %v4332 = vld [vmem:[%s4225 + $0x350] sm:$0xff]
    %v4333 = vld [vmem:[%s4225 + $0x358] sm:$0xff]
    %v4334 = vld [vmem:[%s4225 + $0x360] sm:$0xff]
    %v4335 = vld [vmem:[%s4225 + $0x368] sm:$0xff]
    %v4336 = vld [vmem:[%s4225 + $0x370] sm:$0xff]
    %v4337 = vld [vmem:[%s4225 + $0x378] sm:$0xff]
    %v4338 = vld [vmem:[%s4225 + $0x380] sm:$0xff]
    %v4339 = vld [vmem:[%s4225 + $0x388] sm:$0xff]
    %v4340 = vld [vmem:[%s4225 + $0x390] sm:$0xff]
    %v4341 = vld [vmem:[%s4225 + $0x398] sm:$0xff]
    %v4342 = vld [vmem:[%s4225 + $0x3a0] sm:$0xff]
    %v4343 = vld [vmem:[%s4225 + $0x3a8] sm:$0xff]
    %v4344 = vld [vmem:[%s4225 + $0x3b0] sm:$0xff]
    %v4345 = vld [vmem:[%s4225 + $0x3b8] sm:$0xff]
    %v4346 = vld [vmem:[%s4225 + $0x3c0] sm:$0xff]
    %v4347 = vld [vmem:[%s4225 + $0x3c8] sm:$0xff]
    %v4348 = vld [vmem:[%s4225 + $0x3d0] sm:$0xff]
    %v4349 = vld [vmem:[%s4225 + $0x3d8] sm:$0xff]
    %v4350 = vld [vmem:[%s4225 + $0x3e0] sm:$0xff]
    %v4351 = vld [vmem:[%s4225 + $0x3e8] sm:$0xff]
    %v4352 = vld [vmem:[%s4225 + $0x3f0] sm:$0xff]
    %v4353 = vld [vmem:[%s4225 + $0x3f8] sm:$0xff]
    %v4354 = vld [vmem:[%s4225 + $0x400] sm:$0xff]
    %v4355 = vld [vmem:[%s4225 + $0x408] sm:$0xff]
    %v4356 = vld [vmem:[%s4225 + $0x410] sm:$0xff]
    %v4357 = vld [vmem:[%s4225 + $0x418] sm:$0xff]
    %v4358 = vld [vmem:[%s4225 + $0x420] sm:$0xff]
    %v4359 = vld [vmem:[%s4225 + $0x428] sm:$0xff]
    %v4360 = vld [vmem:[%s4225 + $0x430] sm:$0xff]
    %v4361 = vld [vmem:[%s4225 + $0x438] sm:$0xff]
    %v4362 = vld [vmem:[%s4225 + $0x440] sm:$0xff]
    %v4363 = vld [vmem:[%s4225 + $0x448] sm:$0xff]
    %v4364 = vld [vmem:[%s4225 + $0x450] sm:$0xff]
    %v4365 = vld [vmem:[%s4225 + $0x458] sm:$0xff]
    %v4366 = vld [vmem:[%s4225 + $0x460] sm:$0xff]
    %v4367 = vld [vmem:[%s4225 + $0x468] sm:$0xff]
    %v4368 = vld [vmem:[%s4225 + $0x470] sm:$0xff]
    %v4369 = vld [vmem:[%s4225 + $0x478] sm:$0xff]
    %v4370 = vld [vmem:[%s4225 + $0x480] sm:$0xff]
    %v4371 = vld [vmem:[%s4225 + $0x488] sm:$0xff]
    %v4372 = vld [vmem:[%s4225 + $0x490] sm:$0xff]
    %v4373 = vld [vmem:[%s4225 + $0x498] sm:$0xff]
    %v4374 = vld [vmem:[%s4225 + $0x4a0] sm:$0xff]
    %v4375 = vld [vmem:[%s4225 + $0x4a8] sm:$0xff]
    %v4376 = vld [vmem:[%s4225 + $0x4b0] sm:$0xff]
    %v4377 = vld [vmem:[%s4225 + $0x4b8] sm:$0xff]
    %v4378 = vld [vmem:[%s4225 + $0x4c0] sm:$0xff]
    %v4379 = vld [vmem:[%s4225 + $0x4c8] sm:$0xff]
    %v4380 = vld [vmem:[%s4225 + $0x4d0] sm:$0xff]
    %v4381 = vld [vmem:[%s4225 + $0x4d8] sm:$0xff]
    %v4382 = vld [vmem:[%s4225 + $0x4e0] sm:$0xff]
    %v4383 = vld [vmem:[%s4225 + $0x4e8] sm:$0xff]
    %v4384 = vld [vmem:[%s4225 + $0x4f0] sm:$0xff]
    %v4385 = vld [vmem:[%s4225 + $0x4f8] sm:$0xff]
    %v4386 = vld [vmem:[%s4225 + $0x500] sm:$0xff]
    %v4387 = vld [vmem:[%s4225 + $0x508] sm:$0xff]
    %v4388 = vld [vmem:[%s4225 + $0x510] sm:$0xff]
    %v4389 = vld [vmem:[%s4225 + $0x518] sm:$0xff]
    %v4390 = vld [vmem:[%s4225 + $0x520] sm:$0xff]
    %v4391 = vld [vmem:[%s4225 + $0x528] sm:$0xff]
    %v4392 = vld [vmem:[%s4225 + $0x530] sm:$0xff]
    %v4393 = vld [vmem:[%s4225 + $0x538] sm:$0xff]
    %v4394 = vld [vmem:[%s4225 + $0x540] sm:$0xff]
    %v4395 = vld [vmem:[%s4225 + $0x548] sm:$0xff]
    %v4396 = vld [vmem:[%s4225 + $0x550] sm:$0xff]
    %v4397 = vld [vmem:[%s4225 + $0x558] sm:$0xff]
    %v4398 = vld [vmem:[%s4225 + $0x560] sm:$0xff]
    %v4399 = vld [vmem:[%s4225 + $0x568] sm:$0xff]
    %v4400 = vld [vmem:[%s4225 + $0x570] sm:$0xff]
    %v4401 = vld [vmem:[%s4225 + $0x578] sm:$0xff]
    %v4402 = vld [vmem:[%s4225 + $0x580] sm:$0xff]
    %v4403 = vld [vmem:[%s4225 + $0x588] sm:$0xff]
    %v4404 = vld [vmem:[%s4225 + $0x590] sm:$0xff]
    %v4405 = vld [vmem:[%s4225 + $0x598] sm:$0xff]
    %v4406 = vld [vmem:[%s4225 + $0x5a0] sm:$0xff]
    %v4407 = vld [vmem:[%s4225 + $0x5a8] sm:$0xff]
    %v4408 = vld [vmem:[%s4225 + $0x5b0] sm:$0xff]
    %v4409 = vld [vmem:[%s4225 + $0x5b8] sm:$0xff]
    %v4410 = vld [vmem:[%s4225 + $0x5c0] sm:$0xff]
    %v4411 = vld [vmem:[%s4225 + $0x5c8] sm:$0xff]
    %v4412 = vld [vmem:[%s4225 + $0x5d0] sm:$0xff]
    %v4413 = vld [vmem:[%s4225 + $0x5d8] sm:$0xff]
    %v4414 = vld [vmem:[%s4225 + $0x5e0] sm:$0xff]
    %v4415 = vld [vmem:[%s4225 + $0x5e8] sm:$0xff]
    %v4416 = vld [vmem:[%s4225 + $0x5f0] sm:$0xff]
    %v4417 = vld [vmem:[%s4225 + $0x5f8] sm:$0xff]
    %v4418 = vld [vmem:[%s4225 + $0x600] sm:$0xff]
    %v4419 = vld [vmem:[%s4225 + $0x608] sm:$0xff]
    %v4420 = vld [vmem:[%s4225 + $0x610] sm:$0xff]
    %v4421 = vld [vmem:[%s4225 + $0x618] sm:$0xff]
    %v4422 = vld [vmem:[%s4225 + $0x620] sm:$0xff]
    %v4423 = vld [vmem:[%s4225 + $0x628] sm:$0xff]
    %v4424 = vld [vmem:[%s4225 + $0x630] sm:$0xff]
    %v4425 = vld [vmem:[%s4225 + $0x638] sm:$0xff]
    %v4426 = vld [vmem:[%s4225 + $0x640] sm:$0xff]
    %v4427 = vld [vmem:[%s4225 + $0x648] sm:$0xff]
    %v4428 = vld [vmem:[%s4225 + $0x650] sm:$0xff]
    %v4429 = vld [vmem:[%s4225 + $0x658] sm:$0xff]
    %v4430 = vld [vmem:[%s4225 + $0x660] sm:$0xff]
    %v4431 = vld [vmem:[%s4225 + $0x668] sm:$0xff]
    %v4432 = vld [vmem:[%s4225 + $0x670] sm:$0xff]
    %v4433 = vld [vmem:[%s4225 + $0x678] sm:$0xff]
    %v4434 = vld [vmem:[%s4225 + $0x680] sm:$0xff]
    %v4435 = vld [vmem:[%s4225 + $0x688] sm:$0xff]
    %v4436 = vld [vmem:[%s4225 + $0x690] sm:$0xff]
    %v4437 = vld [vmem:[%s4225 + $0x698] sm:$0xff]
    %v4438 = vld [vmem:[%s4225 + $0x6a0] sm:$0xff]
    %v4439 = vld [vmem:[%s4225 + $0x6a8] sm:$0xff]
    %v4440 = vld [vmem:[%s4225 + $0x6b0] sm:$0xff]
    %v4441 = vld [vmem:[%s4225 + $0x6b8] sm:$0xff]
    %v4442 = vld [vmem:[%s4225 + $0x6c0] sm:$0xff]
    %v4443 = vld [vmem:[%s4225 + $0x6c8] sm:$0xff]
    %v4444 = vld [vmem:[%s4225 + $0x6d0] sm:$0xff]
    %v4445 = vld [vmem:[%s4225 + $0x6d8] sm:$0xff]
    %v4446 = vld [vmem:[%s4225 + $0x6e0] sm:$0xff]
    %v4447 = vld [vmem:[%s4225 + $0x6e8] sm:$0xff]
    %v4448 = vld [vmem:[%s4225 + $0x6f0] sm:$0xff]
    %v4449 = vld [vmem:[%s4225 + $0x6f8] sm:$0xff]
    %v4450 = vld [vmem:[%s4225 + $0x700] sm:$0xff]
    %v4451 = vld [vmem:[%s4225 + $0x708] sm:$0xff]
    %v4452 = vld [vmem:[%s4225 + $0x710] sm:$0xff]
    %v4453 = vld [vmem:[%s4225 + $0x718] sm:$0xff]
    %v4454 = vld [vmem:[%s4225 + $0x720] sm:$0xff]
    %v4455 = vld [vmem:[%s4225 + $0x728] sm:$0xff]
    %v4456 = vld [vmem:[%s4225 + $0x730] sm:$0xff]
    %v4457 = vld [vmem:[%s4225 + $0x738] sm:$0xff]
    %v4458 = vld [vmem:[%s4225 + $0x740] sm:$0xff]
    %v4459 = vld [vmem:[%s4225 + $0x748] sm:$0xff]
    %v4460 = vld [vmem:[%s4225 + $0x750] sm:$0xff]
    %v4461 = vld [vmem:[%s4225 + $0x758] sm:$0xff]
    %v4462 = vld [vmem:[%s4225 + $0x760] sm:$0xff]
    %v4463 = vld [vmem:[%s4225 + $0x768] sm:$0xff]
    %v4464 = vld [vmem:[%s4225 + $0x770] sm:$0xff]
    %v4465 = vld [vmem:[%s4225 + $0x778] sm:$0xff]
    %v4466 = vld [vmem:[%s4225 + $0x780] sm:$0xff]
    %v4467 = vld [vmem:[%s4225 + $0x788] sm:$0xff]
    %v4468 = vld [vmem:[%s4225 + $0x790] sm:$0xff]
    %v4469 = vld [vmem:[%s4225 + $0x798] sm:$0xff]
    %v4470 = vld [vmem:[%s4225 + $0x7a0] sm:$0xff]
    %v4471 = vld [vmem:[%s4225 + $0x7a8] sm:$0xff]
    %v4472 = vld [vmem:[%s4225 + $0x7b0] sm:$0xff]
    %v4473 = vld [vmem:[%s4225 + $0x7b8] sm:$0xff]
    %v4474 = vld [vmem:[%s4225 + $0x7c0] sm:$0xff]
    %v4475 = vld [vmem:[%s4225 + $0x7c8] sm:$0xff]
    %v4476 = vld [vmem:[%s4225 + $0x7d0] sm:$0xff]
    %v4477 = vld [vmem:[%s4225 + $0x7d8] sm:$0xff]
    %v4478 = vld [vmem:[%s4225 + $0x7e0] sm:$0xff]
    %v4479 = vld [vmem:[%s4225 + $0x7e8] sm:$0xff]
    %v4480 = vld [vmem:[%s4225 + $0x7f0] sm:$0xff]
    %v4481 = vld [vmem:[%s4225 + $0x7f8] sm:$0xff]
    %4482 = vmatprep.subr.mxu0 %v4227
    %4483 = vmatpush1.msra.mxu0 %v4226
    %4484 = vmatprep.subr.mxu0 %v4231
    %4485 = vmatpush1.msra.mxu0 %v4230
    %4486 = vmatprep.subr.mxu0 %v4235
    %4487 = vmatpush1.msra.mxu0 %v4234
    %4488 = vmatprep.subr.mxu0 %v4239
    %4489 = vmatpush1.msra.mxu0 %v4238
    %4490 = vmatprep.subr.mxu0 %v4243
    %4491 = vmatpush1.msra.mxu0 %v4242
    %4492 = vmatprep.subr.mxu0 %v4247
    %4493 = vmatpush1.msra.mxu0 %v4246
    %4494 = vmatprep.subr.mxu0 %v4251
    %4495 = vmatpush1.msra.mxu0 %v4250
    %4496 = vmatprep.subr.mxu0 %v4255
    %4497 = vmatpush1.msra.mxu0 %v4254
    %4498 = vmatprep.subr.mxu0 %v4259
    %4499 = vmatpush1.msra.mxu0 %v4258
    %4500 = vmatprep.subr.mxu0 %v4263
    %4501 = vmatpush1.msra.mxu0 %v4262
    %4502 = vmatprep.subr.mxu0 %v4267
    %4503 = vmatpush1.msra.mxu0 %v4266
    %4504 = vmatprep.subr.mxu0 %v4271
    %4505 = vmatpush1.msra.mxu0 %v4270
    %4506 = vmatprep.subr.mxu0 %v4275
    %4507 = vmatpush1.msra.mxu0 %v4274
    %4508 = vmatprep.subr.mxu0 %v4279
    %4509 = vmatpush1.msra.mxu0 %v4278
    %4510 = vmatprep.subr.mxu0 %v4283
    %4511 = vmatpush1.msra.mxu0 %v4282
    %4512 = vmatprep.subr.mxu0 %v4287
    %4513 = vmatpush1.msra.mxu0 %v4286
    %4514 = vmatprep.subr.mxu0 %v4291
    %4515 = vmatpush1.msra.mxu0 %v4290
    %4516 = vmatprep.subr.mxu0 %v4295
    %4517 = vmatpush1.msra.mxu0 %v4294
    %4518 = vmatprep.subr.mxu0 %v4299
    %4519 = vmatpush1.msra.mxu0 %v4298
    %4520 = vmatprep.subr.mxu0 %v4303
    %4521 = vmatpush1.msra.mxu0 %v4302
    %4522 = vmatprep.subr.mxu0 %v4307
    %4523 = vmatpush1.msra.mxu0 %v4306
    %4524 = vmatprep.subr.mxu0 %v4311
    %4525 = vmatpush1.msra.mxu0 %v4310
    %4526 = vmatprep.subr.mxu0 %v4315
    %4527 = vmatpush1.msra.mxu0 %v4314
    %4528 = vmatprep.subr.mxu0 %v4319
    %4529 = vmatpush1.msra.mxu0 %v4318
    %4530 = vmatprep.subr.mxu0 %v4323
    %4531 = vmatpush1.msra.mxu0 %v4322
    %4532 = vmatprep.subr.mxu0 %v4327
    %4533 = vmatpush1.msra.mxu0 %v4326
    %4534 = vmatprep.subr.mxu0 %v4331
    %4535 = vmatpush1.msra.mxu0 %v4330
    %4536 = vmatprep.subr.mxu0 %v4335
    %4537 = vmatpush1.msra.mxu0 %v4334
    %4538 = vmatprep.subr.mxu0 %v4339
    %4539 = vmatpush1.msra.mxu0 %v4338
    %4540 = vmatprep.subr.mxu0 %v4343
    %4541 = vmatpush1.msra.mxu0 %v4342
    %4542 = vmatprep.subr.mxu0 %v4347
    %4543 = vmatpush1.msra.mxu0 %v4346
    %4544 = vmatprep.subr.mxu0 %v4351
    %4545 = vmatpush1.msra.mxu0 %v4350
    %4546 = vmatprep.mubr.f32.mxu0 %v3360
    %4547 = vmatmul.mubr.f32.gmra.mrb[0].mxu0 %v3359
    %v4548 = vpop.f32.mrb[0].mxu0
    %v4549 = vadd.f32 0.0, %v4548
    %v4550 = vpop.f32.mrb[0].mxu0
    %v4551 = vadd.f32 0.0, %v4550
    %4552 = vmatprep.mubr.f32.mxu0 %v3364
    %4553 = vmatmul.mubr.f32.gmra.mrb[0].mxu0 %v3363
    %v4554 = vpop.f32.mrb[0].mxu0
    %v4555 = vadd.f32 0.0, %v4554
    %v4556 = vpop.f32.mrb[0].mxu0
    %v4557 = vadd.f32 0.0, %v4556
    %4558 = vmatprep.mubr.f32.mxu0 %v3368
    %4559 = vmatmul.mubr.f32.gmra.mrb[0].mxu0 %v3367
    %v4560 = vpop.f32.mrb[0].mxu0
    %v4561 = vadd.f32 0.0, %v4560
    %v4562 = vpop.f32.mrb[0].mxu0
    %v4563 = vadd.f32 0.0, %v4562
    %4564 = vmatprep.mubr.f32.mxu0 %v3372
    %4565 = vmatmul.mubr.f32.gmra.mrb[0].mxu0 %v3371
    %v4566 = vpop.f32.mrb[0].mxu0
    %v4567 = vadd.f32 0.0, %v4566
    %v4568 = vpop.f32.mrb[0].mxu0
    %v4569 = vadd.f32 0.0, %v4568
    %4570 = vdwg.mxu0
    %4571 = vmatprep.subr.mxu0 %v4355
    %4572 = vmatpush1.msra.mxu0 %v4354
    %4573 = vmatprep.subr.mxu0 %v4359
    %4574 = vmatpush1.msra.mxu0 %v4358
    %4575 = vmatprep.subr.mxu0 %v4363
    %4576 = vmatpush1.msra.mxu0 %v4362
    %4577 = vmatprep.subr.mxu0 %v4367
    %4578 = vmatpush1.msra.mxu0 %v4366
    %4579 = vmatprep.subr.mxu0 %v4371
    %4580 = vmatpush1.msra.mxu0 %v4370
    %4581 = vmatprep.subr.mxu0 %v4375
    %4582 = vmatpush1.msra.mxu0 %v4374
    %4583 = vmatprep.subr.mxu0 %v4379
    %4584 = vmatpush1.msra.mxu0 %v4378
    %4585 = vmatprep.subr.mxu0 %v4383
    %4586 = vmatpush1.msra.mxu0 %v4382
    %4587 = vmatprep.subr.mxu0 %v4387
    %4588 = vmatpush1.msra.mxu0 %v4386
    %4589 = vmatprep.subr.mxu0 %v4391
    %4590 = vmatpush1.msra.mxu0 %v4390
    %4591 = vmatprep.subr.mxu0 %v4395
    %4592 = vmatpush1.msra.mxu0 %v4394
    %4593 = vmatprep.subr.mxu0 %v4399
    %4594 = vmatpush1.msra.mxu0 %v4398
    %4595 = vmatprep.subr.mxu0 %v4403
    %4596 = vmatpush1.msra.mxu0 %v4402
    %4597 = vmatprep.subr.mxu0 %v4407
    %4598 = vmatpush1.msra.mxu0 %v4406
    %4599 = vmatprep.subr.mxu0 %v4411
    %4600 = vmatpush1.msra.mxu0 %v4410
    %4601 = vmatprep.subr.mxu0 %v4415
    %4602 = vmatpush1.msra.mxu0 %v4414
    %4603 = vmatprep.subr.mxu0 %v4419
    %4604 = vmatpush1.msra.mxu0 %v4418
    %4605 = vmatprep.subr.mxu0 %v4423
    %4606 = vmatpush1.msra.mxu0 %v4422
    %4607 = vmatprep.subr.mxu0 %v4427
    %4608 = vmatpush1.msra.mxu0 %v4426
    %4609 = vmatprep.subr.mxu0 %v4431
    %4610 = vmatpush1.msra.mxu0 %v4430
    %4611 = vmatprep.subr.mxu0 %v4435
    %4612 = vmatpush1.msra.mxu0 %v4434
    %4613 = vmatprep.subr.mxu0 %v4439
    %4614 = vmatpush1.msra.mxu0 %v4438
    %4615 = vmatprep.subr.mxu0 %v4443
    %4616 = vmatpush1.msra.mxu0 %v4442
    %4617 = vmatprep.subr.mxu0 %v4447
    %4618 = vmatpush1.msra.mxu0 %v4446
    %4619 = vmatprep.subr.mxu0 %v4451
    %4620 = vmatpush1.msra.mxu0 %v4450
    %4621 = vmatprep.subr.mxu0 %v4455
    %4622 = vmatpush1.msra.mxu0 %v4454
    %4623 = vmatprep.subr.mxu0 %v4459
    %4624 = vmatpush1.msra.mxu0 %v4458
    %4625 = vmatprep.subr.mxu0 %v4463
    %4626 = vmatpush1.msra.mxu0 %v4462
    %4627 = vmatprep.subr.mxu0 %v4467
    %4628 = vmatpush1.msra.mxu0 %v4466
    %4629 = vmatprep.subr.mxu0 %v4471
    %4630 = vmatpush1.msra.mxu0 %v4470
    %4631 = vmatprep.subr.mxu0 %v4475
    %4632 = vmatpush1.msra.mxu0 %v4474
    %4633 = vmatprep.subr.mxu0 %v4479
    %4634 = vmatpush1.msra.mxu0 %v4478
    %4635 = vmatprep.mubr.f32.mxu0 %v3362
    %4636 = vmatmul.mubr.f32.gmra.mrb[0].mxu0 %v3361
    %v4637 = vpop.f32.mrb[0].mxu0
    %v4638 = vadd.f32 %v4549, %v4637
    %v4639 = vpop.f32.mrb[0].mxu0
    %v4640 = vadd.f32 %v4551, %v4639
    %4641 = vmatprep.mubr.f32.mxu0 %v3366
    %4642 = vmatmul.mubr.f32.gmra.mrb[0].mxu0 %v3365
    %v4643 = vpop.f32.mrb[0].mxu0
    %v4644 = vadd.f32 %v4555, %v4643
    %v4645 = vpop.f32.mrb[0].mxu0
    %v4646 = vadd.f32 %v4557, %v4645
    %4647 = vmatprep.mubr.f32.mxu0 %v3370
    %4648 = vmatmul.mubr.f32.gmra.mrb[0].mxu0 %v3369
    %v4649 = vpop.f32.mrb[0].mxu0
    %v4650 = vadd.f32 %v4561, %v4649
    %v4651 = vpop.f32.mrb[0].mxu0
    %v4652 = vadd.f32 %v4563, %v4651
    %4653 = vmatprep.mubr.f32.mxu0 %v3374
    %4654 = vmatmul.mubr.f32.gmra.mrb[0].mxu0 %v3373
    %v4655 = vpop.f32.mrb[0].mxu0
    %v4656 = vadd.f32 %v4567, %v4655
    %v4657 = vpop.f32.mrb[0].mxu0
    %v4658 = vadd.f32 %v4569, %v4657
    %4659 = vdwg.mxu0
    %4660 = vmatprep.subr.mxu0 %v4229
    %4661 = vmatpush1.msra.mxu0 %v4228
    %4662 = vmatprep.subr.mxu0 %v4233
    %4663 = vmatpush1.msra.mxu0 %v4232
    %4664 = vmatprep.subr.mxu0 %v4237
    %4665 = vmatpush1.msra.mxu0 %v4236
    %4666 = vmatprep.subr.mxu0 %v4241
    %4667 = vmatpush1.msra.mxu0 %v4240
    %4668 = vmatprep.subr.mxu0 %v4245
    %4669 = vmatpush1.msra.mxu0 %v4244
    %4670 = vmatprep.subr.mxu0 %v4249
    %4671 = vmatpush1.msra.mxu0 %v4248
    %4672 = vmatprep.subr.mxu0 %v4253
    %4673 = vmatpush1.msra.mxu0 %v4252
    %4674 = vmatprep.subr.mxu0 %v4257
    %4675 = vmatpush1.msra.mxu0 %v4256
    %4676 = vmatprep.subr.mxu0 %v4261
    %4677 = vmatpush1.msra.mxu0 %v4260
    %4678 = vmatprep.subr.mxu0 %v4265
    %4679 = vmatpush1.msra.mxu0 %v4264
    %4680 = vmatprep.subr.mxu0 %v4269
    %4681 = vmatpush1.msra.mxu0 %v4268
    %4682 = vmatprep.subr.mxu0 %v4273
    %4683 = vmatpush1.msra.mxu0 %v4272
    %4684 = vmatprep.subr.mxu0 %v4277
    %4685 = vmatpush1.msra.mxu0 %v4276
    %4686 = vmatprep.subr.mxu0 %v4281
    %4687 = vmatpush1.msra.mxu0 %v4280
    %4688 = vmatprep.subr.mxu0 %v4285
    %4689 = vmatpush1.msra.mxu0 %v4284
    %4690 = vmatprep.subr.mxu0 %v4289
    %4691 = vmatpush1.msra.mxu0 %v4288
    %4692 = vmatprep.subr.mxu0 %v4293
    %4693 = vmatpush1.msra.mxu0 %v4292
    %4694 = vmatprep.subr.mxu0 %v4297
    %4695 = vmatpush1.msra.mxu0 %v4296
    %4696 = vmatprep.subr.mxu0 %v4301
    %4697 = vmatpush1.msra.mxu0 %v4300
    %4698 = vmatprep.subr.mxu0 %v4305
    %4699 = vmatpush1.msra.mxu0 %v4304
    %4700 = vmatprep.subr.mxu0 %v4309
    %4701 = vmatpush1.msra.mxu0 %v4308
    %4702 = vmatprep.subr.mxu0 %v4313
    %4703 = vmatpush1.msra.mxu0 %v4312
    %4704 = vmatprep.subr.mxu0 %v4317
    %4705 = vmatpush1.msra.mxu0 %v4316
    %4706 = vmatprep.subr.mxu0 %v4321
    %4707 = vmatpush1.msra.mxu0 %v4320
    %4708 = vmatprep.subr.mxu0 %v4325
    %4709 = vmatpush1.msra.mxu0 %v4324
    %4710 = vmatprep.subr.mxu0 %v4329
    %4711 = vmatpush1.msra.mxu0 %v4328
    %4712 = vmatprep.subr.mxu0 %v4333
    %4713 = vmatpush1.msra.mxu0 %v4332
    %4714 = vmatprep.subr.mxu0 %v4337
    %4715 = vmatpush1.msra.mxu0 %v4336
    %4716 = vmatprep.subr.mxu0 %v4341
    %4717 = vmatpush1.msra.mxu0 %v4340
    %4718 = vmatprep.subr.mxu0 %v4345
    %4719 = vmatpush1.msra.mxu0 %v4344
    %4720 = vmatprep.subr.mxu0 %v4349
    %4721 = vmatpush1.msra.mxu0 %v4348
    %4722 = vmatprep.subr.mxu0 %v4353
    %4723 = vmatpush1.msra.mxu0 %v4352
    %4724 = vmatprep.mubr.f32.mxu0 %v3360
    %4725 = vmatmul.mubr.f32.gmra.mrb[0].mxu0 %v3359
    %v4726 = vpop.f32.mrb[0].mxu0
    %v4727 = vadd.f32 0.0, %v4726
    %v4728 = vpop.f32.mrb[0].mxu0
    %v4729 = vadd.f32 0.0, %v4728
    %4730 = vmatprep.mubr.f32.mxu0 %v3364
    %4731 = vmatmul.mubr.f32.gmra.mrb[0].mxu0 %v3363
    %v4732 = vpop.f32.mrb[0].mxu0
    %v4733 = vadd.f32 0.0, %v4732
    %v4734 = vpop.f32.mrb[0].mxu0
    %v4735 = vadd.f32 0.0, %v4734
    %4736 = vmatprep.mubr.f32.mxu0 %v3368
    %4737 = vmatmul.mubr.f32.gmra.mrb[0].mxu0 %v3367
    %v4738 = vpop.f32.mrb[0].mxu0
    %v4739 = vadd.f32 0.0, %v4738
    %v4740 = vpop.f32.mrb[0].mxu0
    %v4741 = vadd.f32 0.0, %v4740
    %4742 = vmatprep.mubr.f32.mxu0 %v3372
    %4743 = vmatmul.mubr.f32.gmra.mrb[0].mxu0 %v3371
    %v4744 = vpop.f32.mrb[0].mxu0
    %v4745 = vadd.f32 0.0, %v4744
    %v4746 = vpop.f32.mrb[0].mxu0
    %v4747 = vadd.f32 0.0, %v4746
    %4748 = vdwg.mxu0
    %4749 = vmatprep.subr.mxu0 %v4357
    %4750 = vmatpush1.msra.mxu0 %v4356
    %4751 = vmatprep.subr.mxu0 %v4361
    %4752 = vmatpush1.msra.mxu0 %v4360
    %4753 = vmatprep.subr.mxu0 %v4365
    %4754 = vmatpush1.msra.mxu0 %v4364
    %4755 = vmatprep.subr.mxu0 %v4369
    %4756 = vmatpush1.msra.mxu0 %v4368
    %4757 = vmatprep.subr.mxu0 %v4373
    %4758 = vmatpush1.msra.mxu0 %v4372
    %4759 = vmatprep.subr.mxu0 %v4377
    %4760 = vmatpush1.msra.mxu0 %v4376
    %4761 = vmatprep.subr.mxu0 %v4381
    %4762 = vmatpush1.msra.mxu0 %v4380
    %4763 = vmatprep.subr.mxu0 %v4385
    %4764 = vmatpush1.msra.mxu0 %v4384
    %4765 = vmatprep.subr.mxu0 %v4389
    %4766 = vmatpush1.msra.mxu0 %v4388
    %4767 = vmatprep.subr.mxu0 %v4393
    %4768 = vmatpush1.msra.mxu0 %v4392
    %4769 = vmatprep.subr.mxu0 %v4397
    %4770 = vmatpush1.msra.mxu0 %v4396
    %4771 = vmatprep.subr.mxu0 %v4401
    %4772 = vmatpush1.msra.mxu0 %v4400
    %4773 = vmatprep.subr.mxu0 %v4405
    %4774 = vmatpush1.msra.mxu0 %v4404
    %4775 = vmatprep.subr.mxu0 %v4409
    %4776 = vmatpush1.msra.mxu0 %v4408
    %4777 = vmatprep.subr.mxu0 %v4413
    %4778 = vmatpush1.msra.mxu0 %v4412
    %4779 = vmatprep.subr.mxu0 %v4417
    %4780 = vmatpush1.msra.mxu0 %v4416
    %4781 = vmatprep.subr.mxu0 %v4421
    %4782 = vmatpush1.msra.mxu0 %v4420
    %4783 = vmatprep.subr.mxu0 %v4425
    %4784 = vmatpush1.msra.mxu0 %v4424
    %4785 = vmatprep.subr.mxu0 %v4429
    %4786 = vmatpush1.msra.mxu0 %v4428
    %4787 = vmatprep.subr.mxu0 %v4433
    %4788 = vmatpush1.msra.mxu0 %v4432
    %4789 = vmatprep.subr.mxu0 %v4437
    %4790 = vmatpush1.msra.mxu0 %v4436
    %4791 = vmatprep.subr.mxu0 %v4441
    %4792 = vmatpush1.msra.mxu0 %v4440
    %4793 = vmatprep.subr.mxu0 %v4445
    %4794 = vmatpush1.msra.mxu0 %v4444
    %4795 = vmatprep.subr.mxu0 %v4449
    %4796 = vmatpush1.msra.mxu0 %v4448
    %4797 = vmatprep.subr.mxu0 %v4453
    %4798 = vmatpush1.msra.mxu0 %v4452
    %4799 = vmatprep.subr.mxu0 %v4457
    %4800 = vmatpush1.msra.mxu0 %v4456
    %4801 = vmatprep.subr.mxu0 %v4461
    %4802 = vmatpush1.msra.mxu0 %v4460
    %4803 = vmatprep.subr.mxu0 %v4465
    %4804 = vmatpush1.msra.mxu0 %v4464
    %4805 = vmatprep.subr.mxu0 %v4469
    %4806 = vmatpush1.msra.mxu0 %v4468
    %4807 = vmatprep.subr.mxu0 %v4473
    %4808 = vmatpush1.msra.mxu0 %v4472
    %4809 = vmatprep.subr.mxu0 %v4477
    %4810 = vmatpush1.msra.mxu0 %v4476
    %4811 = vmatprep.subr.mxu0 %v4481
    %4812 = vmatpush1.msra.mxu0 %v4480
    %4813 = vmatprep.mubr.f32.mxu0 %v3362
    %4814 = vmatmul.mubr.f32.gmra.mrb[0].mxu0 %v3361
    %v4815 = vpop.f32.mrb[0].mxu0
    %v4816 = vadd.f32 %v4727, %v4815
    %v4817 = vpop.f32.mrb[0].mxu0
    %v4818 = vadd.f32 %v4729, %v4817
    %4819 = vmatprep.mubr.f32.mxu0 %v3366
    %4820 = vmatmul.mubr.f32.gmra.mrb[0].mxu0 %v3365
    %v4821 = vpop.f32.mrb[0].mxu0
    %v4822 = vadd.f32 %v4733, %v4821
    %v4823 = vpop.f32.mrb[0].mxu0
    %v4824 = vadd.f32 %v4735, %v4823
    %4825 = vmatprep.mubr.f32.mxu0 %v3370
    %4826 = vmatmul.mubr.f32.gmra.mrb[0].mxu0 %v3369
    %v4827 = vpop.f32.mrb[0].mxu0
    %v4828 = vadd.f32 %v4739, %v4827
    %v4829 = vpop.f32.mrb[0].mxu0
    %v4830 = vadd.f32 %v4741, %v4829
    %4831 = vmatprep.mubr.f32.mxu0 %v3374
    %4832 = vmatmul.mubr.f32.gmra.mrb[0].mxu0 %v3373
    %v4833 = vpop.f32.mrb[0].mxu0
    %v4834 = vadd.f32 %v4745, %v4833
    %v4835 = vpop.f32.mrb[0].mxu0
    %v4836 = vadd.f32 %v4747, %v4835
    %4837 = vdwg.mxu0
    %v4839 = vsel %vm3992, %v4221, 0
    %v4842 = vsel %vm3992, %v4222, 0
    %v4845 = vsel %vm3992, %v4223, 0
    %v4848 = vsel %vm3992, %v4224, 0
    %4850 = vmatprep.subr.mxu0 %v4640
    %4851 = vmatpush1.msra.mxu0 %v4638
    %4852 = vmatprep.subr.mxu0 %v4646
    %4853 = vmatpush1.msra.mxu0 %v4644
    %4854 = vmatprep.subr.mxu0 %v4652
    %4855 = vmatpush1.msra.mxu0 %v4650
    %4856 = vmatprep.subr.mxu0 %v4658
    %4857 = vmatpush1.msra.mxu0 %v4656
    %4858 = vmatprep.subr.mxu0 0.0
    %4859 = vmatpush1.msra.mxu0 0.0
    %4860 = vmatprep.subr.mxu0 0.0
    %4861 = vmatpush1.msra.mxu0 0.0
    %4862 = vmatprep.subr.mxu0 0.0
    %4863 = vmatpush1.msra.mxu0 0.0
    %4864 = vmatprep.subr.mxu0 0.0
    %4865 = vmatpush1.msra.mxu0 0.0
    %4866 = vmatprep.subr.mxu0 0.0
    %4867 = vmatpush1.msra.mxu0 0.0
    %4868 = vmatprep.subr.mxu0 0.0
    %4869 = vmatpush1.msra.mxu0 0.0
    %4870 = vmatprep.subr.mxu0 0.0
    %4871 = vmatpush1.msra.mxu0 0.0
    %4872 = vmatprep.subr.mxu0 0.0
    %4873 = vmatpush1.msra.mxu0 0.0
    %4874 = vmatprep.subr.mxu0 0.0
    %4875 = vmatpush1.msra.mxu0 0.0
    %4876 = vmatprep.subr.mxu0 0.0
    %4877 = vmatpush1.msra.mxu0 0.0
    %4878 = vmatprep.subr.mxu0 0.0
    %4879 = vmatpush1.msra.mxu0 0.0
    %4880 = vmatprep.subr.mxu0 0.0
    %4881 = vmatpush1.msra.mxu0 0.0
    %4882 = vmatprep.subr.mxu0 0.0
    %4883 = vmatpush1.msra.mxu0 0.0
    %4884 = vmatprep.subr.mxu0 0.0
    %4885 = vmatpush1.msra.mxu0 0.0
    %4886 = vmatprep.subr.mxu0 0.0
    %4887 = vmatpush1.msra.mxu0 0.0
    %4888 = vmatprep.subr.mxu0 0.0
    %4889 = vmatpush1.msra.mxu0 0.0
    %4890 = vmatprep.subr.mxu0 0.0
    %4891 = vmatpush1.msra.mxu0 0.0
    %4892 = vmatprep.subr.mxu0 0.0
    %4893 = vmatpush1.msra.mxu0 0.0
    %4894 = vmatprep.subr.mxu0 0.0
    %4895 = vmatpush1.msra.mxu0 0.0
    %4896 = vmatprep.subr.mxu0 0.0
    %4897 = vmatpush1.msra.mxu0 0.0
    %4898 = vmatprep.subr.mxu0 0.0
    %4899 = vmatpush1.msra.mxu0 0.0
    %4900 = vmatprep.subr.mxu0 0.0
    %4901 = vmatpush1.msra.mxu0 0.0
    %4902 = vmatprep.subr.mxu0 0.0
    %4903 = vmatpush1.msra.mxu0 0.0
    %4904 = vmatprep.subr.mxu0 0.0
    %4905 = vmatpush1.msra.mxu0 0.0
    %4906 = vmatprep.subr.mxu0 0.0
    %4907 = vmatpush1.msra.mxu0 0.0
    %4908 = vmatprep.subr.mxu0 0.0
    %4909 = vmatpush1.msra.mxu0 0.0
    %4910 = vmatprep.subr.mxu0 0.0
    %4911 = vmatpush1.msra.mxu0 0.0
    %4912 = vmatprep.subr.mxu0 0.0
    %4913 = vmatpush1.msra.mxu0 0.0
    %4914 = vmatprep.mubr.f32.mxu0 0.0
    %4915 = vmatmul.mubr.f32.gmra.mrb[0].mxu0 %v4839
    %v4916 = vpop.f32.mrb[0].mxu0
    %v4917 = vadd.f32 0.0, %v4916
    %v4918 = vpop.f32.mrb[0].mxu0
    %v4919 = vadd.f32 0.0, %v4918
    %4920 = vmatprep.mubr.f32.mxu0 0.0
    %4921 = vmatmul.mubr.f32.gmra.mrb[0].mxu0 %v4842
    %v4922 = vpop.f32.mrb[0].mxu0
    %v4923 = vadd.f32 0.0, %v4922
    %v4924 = vpop.f32.mrb[0].mxu0
    %v4925 = vadd.f32 0.0, %v4924
    %4926 = vmatprep.mubr.f32.mxu0 0.0
    %4927 = vmatmul.mubr.f32.gmra.mrb[0].mxu0 %v4845
    %v4928 = vpop.f32.mrb[0].mxu0
    %v4929 = vadd.f32 0.0, %v4928
    %v4930 = vpop.f32.mrb[0].mxu0
    %v4931 = vadd.f32 0.0, %v4930
    %4932 = vmatprep.mubr.f32.mxu0 0.0
    %4933 = vmatmul.mubr.f32.gmra.mrb[0].mxu0 %v4848
    %v4934 = vpop.f32.mrb[0].mxu0
    %v4935 = vadd.f32 0.0, %v4934
    %v4936 = vpop.f32.mrb[0].mxu0
    %v4937 = vadd.f32 0.0, %v4936
    %4938 = vdwg.mxu0
    %4939 = vmatprep.subr.mxu0 %v4818
    %4940 = vmatpush1.msra.mxu0 %v4816
    %4941 = vmatprep.subr.mxu0 %v4824
    %4942 = vmatpush1.msra.mxu0 %v4822
    %4943 = vmatprep.subr.mxu0 %v4830
    %4944 = vmatpush1.msra.mxu0 %v4828
    %4945 = vmatprep.subr.mxu0 %v4836
    %4946 = vmatpush1.msra.mxu0 %v4834
    %4947 = vmatprep.subr.mxu0 0.0
    %4948 = vmatpush1.msra.mxu0 0.0
    %4949 = vmatprep.subr.mxu0 0.0
    %4950 = vmatpush1.msra.mxu0 0.0
    %4951 = vmatprep.subr.mxu0 0.0
    %4952 = vmatpush1.msra.mxu0 0.0
    %4953 = vmatprep.subr.mxu0 0.0
    %4954 = vmatpush1.msra.mxu0 0.0
    %4955 = vmatprep.subr.mxu0 0.0
    %4956 = vmatpush1.msra.mxu0 0.0
    %4957 = vmatprep.subr.mxu0 0.0
    %4958 = vmatpush1.msra.mxu0 0.0
    %4959 = vmatprep.subr.mxu0 0.0
    %4960 = vmatpush1.msra.mxu0 0.0
    %4961 = vmatprep.subr.mxu0 0.0
    %4962 = vmatpush1.msra.mxu0 0.0
    %4963 = vmatprep.subr.mxu0 0.0
    %4964 = vmatpush1.msra.mxu0 0.0
    %4965 = vmatprep.subr.mxu0 0.0
    %4966 = vmatpush1.msra.mxu0 0.0
    %4967 = vmatprep.subr.mxu0 0.0
    %4968 = vmatpush1.msra.mxu0 0.0
    %4969 = vmatprep.subr.mxu0 0.0
    %4970 = vmatpush1.msra.mxu0 0.0
    %4971 = vmatprep.subr.mxu0 0.0
    %4972 = vmatpush1.msra.mxu0 0.0
    %4973 = vmatprep.subr.mxu0 0.0
    %4974 = vmatpush1.msra.mxu0 0.0
    %4975 = vmatprep.subr.mxu0 0.0
    %4976 = vmatpush1.msra.mxu0 0.0
    %4977 = vmatprep.subr.mxu0 0.0
    %4978 = vmatpush1.msra.mxu0 0.0
    %4979 = vmatprep.subr.mxu0 0.0
    %4980 = vmatpush1.msra.mxu0 0.0
    %4981 = vmatprep.subr.mxu0 0.0
    %4982 = vmatpush1.msra.mxu0 0.0
    %4983 = vmatprep.subr.mxu0 0.0
    %4984 = vmatpush1.msra.mxu0 0.0
    %4985 = vmatprep.subr.mxu0 0.0
    %4986 = vmatpush1.msra.mxu0 0.0
    %4987 = vmatprep.subr.mxu0 0.0
    %4988 = vmatpush1.msra.mxu0 0.0
    %4989 = vmatprep.subr.mxu0 0.0
    %4990 = vmatpush1.msra.mxu0 0.0
    %4991 = vmatprep.subr.mxu0 0.0
    %4992 = vmatpush1.msra.mxu0 0.0
    %4993 = vmatprep.subr.mxu0 0.0
    %4994 = vmatpush1.msra.mxu0 0.0
    %4995 = vmatprep.subr.mxu0 0.0
    %4996 = vmatpush1.msra.mxu0 0.0
    %4997 = vmatprep.subr.mxu0 0.0
    %4998 = vmatpush1.msra.mxu0 0.0
    %4999 = vmatprep.subr.mxu0 0.0
    %5000 = vmatpush1.msra.mxu0 0.0
    %5001 = vmatprep.subr.mxu0 0.0
    %5002 = vmatpush1.msra.mxu0 0.0
    %5003 = vmatprep.mubr.f32.mxu0 0.0
    %5004 = vmatmul.mubr.f32.gmra.mrb[0].mxu0 %v4839
    %v5005 = vpop.f32.mrb[0].mxu0
    %v5006 = vadd.f32 0.0, %v5005
    %v5007 = vpop.f32.mrb[0].mxu0
    %v5008 = vadd.f32 0.0, %v5007
    %5009 = vmatprep.mubr.f32.mxu0 0.0
    %5010 = vmatmul.mubr.f32.gmra.mrb[0].mxu0 %v4842
    %v5011 = vpop.f32.mrb[0].mxu0
    %v5012 = vadd.f32 0.0, %v5011
    %v5013 = vpop.f32.mrb[0].mxu0
    %v5014 = vadd.f32 0.0, %v5013
    %5015 = vmatprep.mubr.f32.mxu0 0.0
    %5016 = vmatmul.mubr.f32.gmra.mrb[0].mxu0 %v4845
    %v5017 = vpop.f32.mrb[0].mxu0
    %v5018 = vadd.f32 0.0, %v5017
    %v5019 = vpop.f32.mrb[0].mxu0
    %v5020 = vadd.f32 0.0, %v5019
    %5021 = vmatprep.mubr.f32.mxu0 0.0
    %5022 = vmatmul.mubr.f32.gmra.mrb[0].mxu0 %v4848
    %v5023 = vpop.f32.mrb[0].mxu0
    %v5024 = vadd.f32 0.0, %v5023
    %v5025 = vpop.f32.mrb[0].mxu0
    %v5026 = vadd.f32 0.0, %v5025
    %5027 = vdwg.mxu0
    %v5028 = vadd.f32 %v4204, %v4917
    %v5029 = vadd.f32 %v4205, %v4919
    %v5030 = vadd.f32 %v4206, %v5006
    %v5031 = vadd.f32 %v4207, %v5008
    %v5032 = vadd.f32 %v4208, %v4923
    %v5033 = vadd.f32 %v4209, %v4925
    %v5034 = vadd.f32 %v4210, %v5012
    %v5035 = vadd.f32 %v4211, %v5014
    %v5036 = vadd.f32 %v4212, %v4929
    %v5037 = vadd.f32 %v4213, %v4931
    %v5038 = vadd.f32 %v4214, %v5018
    %v5039 = vadd.f32 %v4215, %v5020
    %v5040 = vadd.f32 %v4216, %v4935
    %v5041 = vadd.f32 %v4217, %v4937
    %v5042 = vadd.f32 %v4218, %v5024
    %v5043 = vadd.f32 %v4219, %v5026
    %s5044 = scalar_lea.vmem [#allocation16], 64
    %v5045 = vld [vmem:[%s5044] sm:$0xff]
    %v5046 = vld [vmem:[%s5044 + $0x8] sm:$0xff]
    %v5047 = vld [vmem:[%s5044 + $0x10] sm:$0xff]
    %v5048 = vld [vmem:[%s5044 + $0x18] sm:$0xff]
    %s5049 = scalar_lea.vmem [#allocation17], 4096
    %v5050 = vld [vmem:[%s5049] sm:$0xff]
    %v5051 = vld [vmem:[%s5049 + $0x8] sm:$0xff]
    %v5052 = vld [vmem:[%s5049 + $0x10] sm:$0xff]
    %v5053 = vld [vmem:[%s5049 + $0x18] sm:$0xff]
    %v5054 = vld [vmem:[%s5049 + $0x20] sm:$0xff]
    %v5055 = vld [vmem:[%s5049 + $0x28] sm:$0xff]
    %v5056 = vld [vmem:[%s5049 + $0x30] sm:$0xff]
    %v5057 = vld [vmem:[%s5049 + $0x38] sm:$0xff]
    %v5058 = vld [vmem:[%s5049 + $0x40] sm:$0xff]
    %v5059 = vld [vmem:[%s5049 + $0x48] sm:$0xff]
    %v5060 = vld [vmem:[%s5049 + $0x50] sm:$0xff]
    %v5061 = vld [vmem:[%s5049 + $0x58] sm:$0xff]
    %v5062 = vld [vmem:[%s5049 + $0x60] sm:$0xff]
    %v5063 = vld [vmem:[%s5049 + $0x68] sm:$0xff]
    %v5064 = vld [vmem:[%s5049 + $0x70] sm:$0xff]
    %v5065 = vld [vmem:[%s5049 + $0x78] sm:$0xff]
    %v5066 = vld [vmem:[%s5049 + $0x80] sm:$0xff]
    %v5067 = vld [vmem:[%s5049 + $0x88] sm:$0xff]
    %v5068 = vld [vmem:[%s5049 + $0x90] sm:$0xff]
    %v5069 = vld [vmem:[%s5049 + $0x98] sm:$0xff]
    %v5070 = vld [vmem:[%s5049 + $0xa0] sm:$0xff]
    %v5071 = vld [vmem:[%s5049 + $0xa8] sm:$0xff]
    %v5072 = vld [vmem:[%s5049 + $0xb0] sm:$0xff]
    %v5073 = vld [vmem:[%s5049 + $0xb8] sm:$0xff]
    %v5074 = vld [vmem:[%s5049 + $0xc0] sm:$0xff]
    %v5075 = vld [vmem:[%s5049 + $0xc8] sm:$0xff]
    %v5076 = vld [vmem:[%s5049 + $0xd0] sm:$0xff]
    %v5077 = vld [vmem:[%s5049 + $0xd8] sm:$0xff]
    %v5078 = vld [vmem:[%s5049 + $0xe0] sm:$0xff]
    %v5079 = vld [vmem:[%s5049 + $0xe8] sm:$0xff]
    %v5080 = vld [vmem:[%s5049 + $0xf0] sm:$0xff]
    %v5081 = vld [vmem:[%s5049 + $0xf8] sm:$0xff]
    %v5082 = vld [vmem:[%s5049 + $0x100] sm:$0xff]
    %v5083 = vld [vmem:[%s5049 + $0x108] sm:$0xff]
    %v5084 = vld [vmem:[%s5049 + $0x110] sm:$0xff]
    %v5085 = vld [vmem:[%s5049 + $0x118] sm:$0xff]
    %v5086 = vld [vmem:[%s5049 + $0x120] sm:$0xff]
    %v5087 = vld [vmem:[%s5049 + $0x128] sm:$0xff]
    %v5088 = vld [vmem:[%s5049 + $0x130] sm:$0xff]
    %v5089 = vld [vmem:[%s5049 + $0x138] sm:$0xff]
    %v5090 = vld [vmem:[%s5049 + $0x140] sm:$0xff]
    %v5091 = vld [vmem:[%s5049 + $0x148] sm:$0xff]
    %v5092 = vld [vmem:[%s5049 + $0x150] sm:$0xff]
    %v5093 = vld [vmem:[%s5049 + $0x158] sm:$0xff]
    %v5094 = vld [vmem:[%s5049 + $0x160] sm:$0xff]
    %v5095 = vld [vmem:[%s5049 + $0x168] sm:$0xff]
    %v5096 = vld [vmem:[%s5049 + $0x170] sm:$0xff]
    %v5097 = vld [vmem:[%s5049 + $0x178] sm:$0xff]
    %v5098 = vld [vmem:[%s5049 + $0x180] sm:$0xff]
    %v5099 = vld [vmem:[%s5049 + $0x188] sm:$0xff]
    %v5100 = vld [vmem:[%s5049 + $0x190] sm:$0xff]
    %v5101 = vld [vmem:[%s5049 + $0x198] sm:$0xff]
    %v5102 = vld [vmem:[%s5049 + $0x1a0] sm:$0xff]
    %v5103 = vld [vmem:[%s5049 + $0x1a8] sm:$0xff]
    %v5104 = vld [vmem:[%s5049 + $0x1b0] sm:$0xff]
    %v5105 = vld [vmem:[%s5049 + $0x1b8] sm:$0xff]
    %v5106 = vld [vmem:[%s5049 + $0x1c0] sm:$0xff]
    %v5107 = vld [vmem:[%s5049 + $0x1c8] sm:$0xff]
    %v5108 = vld [vmem:[%s5049 + $0x1d0] sm:$0xff]
    %v5109 = vld [vmem:[%s5049 + $0x1d8] sm:$0xff]
    %v5110 = vld [vmem:[%s5049 + $0x1e0] sm:$0xff]
    %v5111 = vld [vmem:[%s5049 + $0x1e8] sm:$0xff]
    %v5112 = vld [vmem:[%s5049 + $0x1f0] sm:$0xff]
    %v5113 = vld [vmem:[%s5049 + $0x1f8] sm:$0xff]
    %v5114 = vld [vmem:[%s5049 + $0x200] sm:$0xff]
    %v5115 = vld [vmem:[%s5049 + $0x208] sm:$0xff]
    %v5116 = vld [vmem:[%s5049 + $0x210] sm:$0xff]
    %v5117 = vld [vmem:[%s5049 + $0x218] sm:$0xff]
    %v5118 = vld [vmem:[%s5049 + $0x220] sm:$0xff]
    %v5119 = vld [vmem:[%s5049 + $0x228] sm:$0xff]
    %v5120 = vld [vmem:[%s5049 + $0x230] sm:$0xff]
    %v5121 = vld [vmem:[%s5049 + $0x238] sm:$0xff]
    %v5122 = vld [vmem:[%s5049 + $0x240] sm:$0xff]
    %v5123 = vld [vmem:[%s5049 + $0x248] sm:$0xff]
    %v5124 = vld [vmem:[%s5049 + $0x250] sm:$0xff]
    %v5125 = vld [vmem:[%s5049 + $0x258] sm:$0xff]
    %v5126 = vld [vmem:[%s5049 + $0x260] sm:$0xff]
    %v5127 = vld [vmem:[%s5049 + $0x268] sm:$0xff]
    %v5128 = vld [vmem:[%s5049 + $0x270] sm:$0xff]
    %v5129 = vld [vmem:[%s5049 + $0x278] sm:$0xff]
    %v5130 = vld [vmem:[%s5049 + $0x280] sm:$0xff]
    %v5131 = vld [vmem:[%s5049 + $0x288] sm:$0xff]
    %v5132 = vld [vmem:[%s5049 + $0x290] sm:$0xff]
    %v5133 = vld [vmem:[%s5049 + $0x298] sm:$0xff]
    %v5134 = vld [vmem:[%s5049 + $0x2a0] sm:$0xff]
    %v5135 = vld [vmem:[%s5049 + $0x2a8] sm:$0xff]
    %v5136 = vld [vmem:[%s5049 + $0x2b0] sm:$0xff]
    %v5137 = vld [vmem:[%s5049 + $0x2b8] sm:$0xff]
    %v5138 = vld [vmem:[%s5049 + $0x2c0] sm:$0xff]
    %v5139 = vld [vmem:[%s5049 + $0x2c8] sm:$0xff]
    %v5140 = vld [vmem:[%s5049 + $0x2d0] sm:$0xff]
    %v5141 = vld [vmem:[%s5049 + $0x2d8] sm:$0xff]
    %v5142 = vld [vmem:[%s5049 + $0x2e0] sm:$0xff]
    %v5143 = vld [vmem:[%s5049 + $0x2e8] sm:$0xff]
    %v5144 = vld [vmem:[%s5049 + $0x2f0] sm:$0xff]
    %v5145 = vld [vmem:[%s5049 + $0x2f8] sm:$0xff]
    %v5146 = vld [vmem:[%s5049 + $0x300] sm:$0xff]
    %v5147 = vld [vmem:[%s5049 + $0x308] sm:$0xff]
    %v5148 = vld [vmem:[%s5049 + $0x310] sm:$0xff]
    %v5149 = vld [vmem:[%s5049 + $0x318] sm:$0xff]
    %v5150 = vld [vmem:[%s5049 + $0x320] sm:$0xff]
    %v5151 = vld [vmem:[%s5049 + $0x328] sm:$0xff]
    %v5152 = vld [vmem:[%s5049 + $0x330] sm:$0xff]
    %v5153 = vld [vmem:[%s5049 + $0x338] sm:$0xff]
    %v5154 = vld [vmem:[%s5049 + $0x340] sm:$0xff]
    %v5155 = vld [vmem:[%s5049 + $0x348] sm:$0xff]
    %v5156 = vld [vmem:[%s5049 + $0x350] sm:$0xff]
    %v5157 = vld [vmem:[%s5049 + $0x358] sm:$0xff]
    %v5158 = vld [vmem:[%s5049 + $0x360] sm:$0xff]
    %v5159 = vld [vmem:[%s5049 + $0x368] sm:$0xff]
    %v5160 = vld [vmem:[%s5049 + $0x370] sm:$0xff]
    %v5161 = vld [vmem:[%s5049 + $0x378] sm:$0xff]
    %v5162 = vld [vmem:[%s5049 + $0x380] sm:$0xff]
    %v5163 = vld [vmem:[%s5049 + $0x388] sm:$0xff]
    %v5164 = vld [vmem:[%s5049 + $0x390] sm:$0xff]
    %v5165 = vld [vmem:[%s5049 + $0x398] sm:$0xff]
    %v5166 = vld [vmem:[%s5049 + $0x3a0] sm:$0xff]
    %v5167 = vld [vmem:[%s5049 + $0x3a8] sm:$0xff]
    %v5168 = vld [vmem:[%s5049 + $0x3b0] sm:$0xff]
    %v5169 = vld [vmem:[%s5049 + $0x3b8] sm:$0xff]
    %v5170 = vld [vmem:[%s5049 + $0x3c0] sm:$0xff]
    %v5171 = vld [vmem:[%s5049 + $0x3c8] sm:$0xff]
    %v5172 = vld [vmem:[%s5049 + $0x3d0] sm:$0xff]
    %v5173 = vld [vmem:[%s5049 + $0x3d8] sm:$0xff]
    %v5174 = vld [vmem:[%s5049 + $0x3e0] sm:$0xff]
    %v5175 = vld [vmem:[%s5049 + $0x3e8] sm:$0xff]
    %v5176 = vld [vmem:[%s5049 + $0x3f0] sm:$0xff]
    %v5177 = vld [vmem:[%s5049 + $0x3f8] sm:$0xff]
    %v5178 = vld [vmem:[%s5049 + $0x400] sm:$0xff]
    %v5179 = vld [vmem:[%s5049 + $0x408] sm:$0xff]
    %v5180 = vld [vmem:[%s5049 + $0x410] sm:$0xff]
    %v5181 = vld [vmem:[%s5049 + $0x418] sm:$0xff]
    %v5182 = vld [vmem:[%s5049 + $0x420] sm:$0xff]
    %v5183 = vld [vmem:[%s5049 + $0x428] sm:$0xff]
    %v5184 = vld [vmem:[%s5049 + $0x430] sm:$0xff]
    %v5185 = vld [vmem:[%s5049 + $0x438] sm:$0xff]
    %v5186 = vld [vmem:[%s5049 + $0x440] sm:$0xff]
    %v5187 = vld [vmem:[%s5049 + $0x448] sm:$0xff]
    %v5188 = vld [vmem:[%s5049 + $0x450] sm:$0xff]
    %v5189 = vld [vmem:[%s5049 + $0x458] sm:$0xff]
    %v5190 = vld [vmem:[%s5049 + $0x460] sm:$0xff]
    %v5191 = vld [vmem:[%s5049 + $0x468] sm:$0xff]
    %v5192 = vld [vmem:[%s5049 + $0x470] sm:$0xff]
    %v5193 = vld [vmem:[%s5049 + $0x478] sm:$0xff]
    %v5194 = vld [vmem:[%s5049 + $0x480] sm:$0xff]
    %v5195 = vld [vmem:[%s5049 + $0x488] sm:$0xff]
    %v5196 = vld [vmem:[%s5049 + $0x490] sm:$0xff]
    %v5197 = vld [vmem:[%s5049 + $0x498] sm:$0xff]
    %v5198 = vld [vmem:[%s5049 + $0x4a0] sm:$0xff]
    %v5199 = vld [vmem:[%s5049 + $0x4a8] sm:$0xff]
    %v5200 = vld [vmem:[%s5049 + $0x4b0] sm:$0xff]
    %v5201 = vld [vmem:[%s5049 + $0x4b8] sm:$0xff]
    %v5202 = vld [vmem:[%s5049 + $0x4c0] sm:$0xff]
    %v5203 = vld [vmem:[%s5049 + $0x4c8] sm:$0xff]
    %v5204 = vld [vmem:[%s5049 + $0x4d0] sm:$0xff]
    %v5205 = vld [vmem:[%s5049 + $0x4d8] sm:$0xff]
    %v5206 = vld [vmem:[%s5049 + $0x4e0] sm:$0xff]
    %v5207 = vld [vmem:[%s5049 + $0x4e8] sm:$0xff]
    %v5208 = vld [vmem:[%s5049 + $0x4f0] sm:$0xff]
    %v5209 = vld [vmem:[%s5049 + $0x4f8] sm:$0xff]
    %v5210 = vld [vmem:[%s5049 + $0x500] sm:$0xff]
    %v5211 = vld [vmem:[%s5049 + $0x508] sm:$0xff]
    %v5212 = vld [vmem:[%s5049 + $0x510] sm:$0xff]
    %v5213 = vld [vmem:[%s5049 + $0x518] sm:$0xff]
    %v5214 = vld [vmem:[%s5049 + $0x520] sm:$0xff]
    %v5215 = vld [vmem:[%s5049 + $0x528] sm:$0xff]
    %v5216 = vld [vmem:[%s5049 + $0x530] sm:$0xff]
    %v5217 = vld [vmem:[%s5049 + $0x538] sm:$0xff]
    %v5218 = vld [vmem:[%s5049 + $0x540] sm:$0xff]
    %v5219 = vld [vmem:[%s5049 + $0x548] sm:$0xff]
    %v5220 = vld [vmem:[%s5049 + $0x550] sm:$0xff]
    %v5221 = vld [vmem:[%s5049 + $0x558] sm:$0xff]
    %v5222 = vld [vmem:[%s5049 + $0x560] sm:$0xff]
    %v5223 = vld [vmem:[%s5049 + $0x568] sm:$0xff]
    %v5224 = vld [vmem:[%s5049 + $0x570] sm:$0xff]
    %v5225 = vld [vmem:[%s5049 + $0x578] sm:$0xff]
    %v5226 = vld [vmem:[%s5049 + $0x580] sm:$0xff]
    %v5227 = vld [vmem:[%s5049 + $0x588] sm:$0xff]
    %v5228 = vld [vmem:[%s5049 + $0x590] sm:$0xff]
    %v5229 = vld [vmem:[%s5049 + $0x598] sm:$0xff]
    %v5230 = vld [vmem:[%s5049 + $0x5a0] sm:$0xff]
    %v5231 = vld [vmem:[%s5049 + $0x5a8] sm:$0xff]
    %v5232 = vld [vmem:[%s5049 + $0x5b0] sm:$0xff]
    %v5233 = vld [vmem:[%s5049 + $0x5b8] sm:$0xff]
    %v5234 = vld [vmem:[%s5049 + $0x5c0] sm:$0xff]
    %v5235 = vld [vmem:[%s5049 + $0x5c8] sm:$0xff]
    %v5236 = vld [vmem:[%s5049 + $0x5d0] sm:$0xff]
    %v5237 = vld [vmem:[%s5049 + $0x5d8] sm:$0xff]
    %v5238 = vld [vmem:[%s5049 + $0x5e0] sm:$0xff]
    %v5239 = vld [vmem:[%s5049 + $0x5e8] sm:$0xff]
    %v5240 = vld [vmem:[%s5049 + $0x5f0] sm:$0xff]
    %v5241 = vld [vmem:[%s5049 + $0x5f8] sm:$0xff]
    %v5242 = vld [vmem:[%s5049 + $0x600] sm:$0xff]
    %v5243 = vld [vmem:[%s5049 + $0x608] sm:$0xff]
    %v5244 = vld [vmem:[%s5049 + $0x610] sm:$0xff]
    %v5245 = vld [vmem:[%s5049 + $0x618] sm:$0xff]
    %v5246 = vld [vmem:[%s5049 + $0x620] sm:$0xff]
    %v5247 = vld [vmem:[%s5049 + $0x628] sm:$0xff]
    %v5248 = vld [vmem:[%s5049 + $0x630] sm:$0xff]
    %v5249 = vld [vmem:[%s5049 + $0x638] sm:$0xff]
    %v5250 = vld [vmem:[%s5049 + $0x640] sm:$0xff]
    %v5251 = vld [vmem:[%s5049 + $0x648] sm:$0xff]
    %v5252 = vld [vmem:[%s5049 + $0x650] sm:$0xff]
    %v5253 = vld [vmem:[%s5049 + $0x658] sm:$0xff]
    %v5254 = vld [vmem:[%s5049 + $0x660] sm:$0xff]
    %v5255 = vld [vmem:[%s5049 + $0x668] sm:$0xff]
    %v5256 = vld [vmem:[%s5049 + $0x670] sm:$0xff]
    %v5257 = vld [vmem:[%s5049 + $0x678] sm:$0xff]
    %v5258 = vld [vmem:[%s5049 + $0x680] sm:$0xff]
    %v5259 = vld [vmem:[%s5049 + $0x688] sm:$0xff]
    %v5260 = vld [vmem:[%s5049 + $0x690] sm:$0xff]
    %v5261 = vld [vmem:[%s5049 + $0x698] sm:$0xff]
    %v5262 = vld [vmem:[%s5049 + $0x6a0] sm:$0xff]
    %v5263 = vld [vmem:[%s5049 + $0x6a8] sm:$0xff]
    %v5264 = vld [vmem:[%s5049 + $0x6b0] sm:$0xff]
    %v5265 = vld [vmem:[%s5049 + $0x6b8] sm:$0xff]
    %v5266 = vld [vmem:[%s5049 + $0x6c0] sm:$0xff]
    %v5267 = vld [vmem:[%s5049 + $0x6c8] sm:$0xff]
    %v5268 = vld [vmem:[%s5049 + $0x6d0] sm:$0xff]
    %v5269 = vld [vmem:[%s5049 + $0x6d8] sm:$0xff]
    %v5270 = vld [vmem:[%s5049 + $0x6e0] sm:$0xff]
    %v5271 = vld [vmem:[%s5049 + $0x6e8] sm:$0xff]
    %v5272 = vld [vmem:[%s5049 + $0x6f0] sm:$0xff]
    %v5273 = vld [vmem:[%s5049 + $0x6f8] sm:$0xff]
    %v5274 = vld [vmem:[%s5049 + $0x700] sm:$0xff]
    %v5275 = vld [vmem:[%s5049 + $0x708] sm:$0xff]
    %v5276 = vld [vmem:[%s5049 + $0x710] sm:$0xff]
    %v5277 = vld [vmem:[%s5049 + $0x718] sm:$0xff]
    %v5278 = vld [vmem:[%s5049 + $0x720] sm:$0xff]
    %v5279 = vld [vmem:[%s5049 + $0x728] sm:$0xff]
    %v5280 = vld [vmem:[%s5049 + $0x730] sm:$0xff]
    %v5281 = vld [vmem:[%s5049 + $0x738] sm:$0xff]
    %v5282 = vld [vmem:[%s5049 + $0x740] sm:$0xff]
    %v5283 = vld [vmem:[%s5049 + $0x748] sm:$0xff]
    %v5284 = vld [vmem:[%s5049 + $0x750] sm:$0xff]
    %v5285 = vld [vmem:[%s5049 + $0x758] sm:$0xff]
    %v5286 = vld [vmem:[%s5049 + $0x760] sm:$0xff]
    %v5287 = vld [vmem:[%s5049 + $0x768] sm:$0xff]
    %v5288 = vld [vmem:[%s5049 + $0x770] sm:$0xff]
    %v5289 = vld [vmem:[%s5049 + $0x778] sm:$0xff]
    %v5290 = vld [vmem:[%s5049 + $0x780] sm:$0xff]
    %v5291 = vld [vmem:[%s5049 + $0x788] sm:$0xff]
    %v5292 = vld [vmem:[%s5049 + $0x790] sm:$0xff]
    %v5293 = vld [vmem:[%s5049 + $0x798] sm:$0xff]
    %v5294 = vld [vmem:[%s5049 + $0x7a0] sm:$0xff]
    %v5295 = vld [vmem:[%s5049 + $0x7a8] sm:$0xff]
    %v5296 = vld [vmem:[%s5049 + $0x7b0] sm:$0xff]
    %v5297 = vld [vmem:[%s5049 + $0x7b8] sm:$0xff]
    %v5298 = vld [vmem:[%s5049 + $0x7c0] sm:$0xff]
    %v5299 = vld [vmem:[%s5049 + $0x7c8] sm:$0xff]
    %v5300 = vld [vmem:[%s5049 + $0x7d0] sm:$0xff]
    %v5301 = vld [vmem:[%s5049 + $0x7d8] sm:$0xff]
    %v5302 = vld [vmem:[%s5049 + $0x7e0] sm:$0xff]
    %v5303 = vld [vmem:[%s5049 + $0x7e8] sm:$0xff]
    %v5304 = vld [vmem:[%s5049 + $0x7f0] sm:$0xff]
    %v5305 = vld [vmem:[%s5049 + $0x7f8] sm:$0xff]
    %5306 = vmatprep.subr.mxu0 %v5051
    %5307 = vmatpush1.msra.mxu0 %v5050
    %5308 = vmatprep.subr.mxu0 %v5055
    %5309 = vmatpush1.msra.mxu0 %v5054
    %5310 = vmatprep.subr.mxu0 %v5059
    %5311 = vmatpush1.msra.mxu0 %v5058
    %5312 = vmatprep.subr.mxu0 %v5063
    %5313 = vmatpush1.msra.mxu0 %v5062
    %5314 = vmatprep.subr.mxu0 %v5067
    %5315 = vmatpush1.msra.mxu0 %v5066
    %5316 = vmatprep.subr.mxu0 %v5071
    %5317 = vmatpush1.msra.mxu0 %v5070
    %5318 = vmatprep.subr.mxu0 %v5075
    %5319 = vmatpush1.msra.mxu0 %v5074
    %5320 = vmatprep.subr.mxu0 %v5079
    %5321 = vmatpush1.msra.mxu0 %v5078
    %5322 = vmatprep.subr.mxu0 %v5083
    %5323 = vmatpush1.msra.mxu0 %v5082
    %5324 = vmatprep.subr.mxu0 %v5087
    %5325 = vmatpush1.msra.mxu0 %v5086
    %5326 = vmatprep.subr.mxu0 %v5091
    %5327 = vmatpush1.msra.mxu0 %v5090
    %5328 = vmatprep.subr.mxu0 %v5095
    %5329 = vmatpush1.msra.mxu0 %v5094
    %5330 = vmatprep.subr.mxu0 %v5099
    %5331 = vmatpush1.msra.mxu0 %v5098
    %5332 = vmatprep.subr.mxu0 %v5103
    %5333 = vmatpush1.msra.mxu0 %v5102
    %5334 = vmatprep.subr.mxu0 %v5107
    %5335 = vmatpush1.msra.mxu0 %v5106
    %5336 = vmatprep.subr.mxu0 %v5111
    %5337 = vmatpush1.msra.mxu0 %v5110
    %5338 = vmatprep.subr.mxu0 %v5115
    %5339 = vmatpush1.msra.mxu0 %v5114
    %5340 = vmatprep.subr.mxu0 %v5119
    %5341 = vmatpush1.msra.mxu0 %v5118
    %5342 = vmatprep.subr.mxu0 %v5123
    %5343 = vmatpush1.msra.mxu0 %v5122
    %5344 = vmatprep.subr.mxu0 %v5127
    %5345 = vmatpush1.msra.mxu0 %v5126
    %5346 = vmatprep.subr.mxu0 %v5131
    %5347 = vmatpush1.msra.mxu0 %v5130
    %5348 = vmatprep.subr.mxu0 %v5135
    %5349 = vmatpush1.msra.mxu0 %v5134
    %5350 = vmatprep.subr.mxu0 %v5139
    %5351 = vmatpush1.msra.mxu0 %v5138
    %5352 = vmatprep.subr.mxu0 %v5143
    %5353 = vmatpush1.msra.mxu0 %v5142
    %5354 = vmatprep.subr.mxu0 %v5147
    %5355 = vmatpush1.msra.mxu0 %v5146
    %5356 = vmatprep.subr.mxu0 %v5151
    %5357 = vmatpush1.msra.mxu0 %v5150
    %5358 = vmatprep.subr.mxu0 %v5155
    %5359 = vmatpush1.msra.mxu0 %v5154
    %5360 = vmatprep.subr.mxu0 %v5159
    %5361 = vmatpush1.msra.mxu0 %v5158
    %5362 = vmatprep.subr.mxu0 %v5163
    %5363 = vmatpush1.msra.mxu0 %v5162
    %5364 = vmatprep.subr.mxu0 %v5167
    %5365 = vmatpush1.msra.mxu0 %v5166
    %5366 = vmatprep.subr.mxu0 %v5171
    %5367 = vmatpush1.msra.mxu0 %v5170
    %5368 = vmatprep.subr.mxu0 %v5175
    %5369 = vmatpush1.msra.mxu0 %v5174
    %5370 = vmatprep.mubr.f32.mxu0 %v3360
    %5371 = vmatmul.mubr.f32.gmra.mrb[0].mxu0 %v3359
    %v5372 = vpop.f32.mrb[0].mxu0
    %v5373 = vadd.f32 0.0, %v5372
    %v5374 = vpop.f32.mrb[0].mxu0
    %v5375 = vadd.f32 0.0, %v5374
    %5376 = vmatprep.mubr.f32.mxu0 %v3364
    %5377 = vmatmul.mubr.f32.gmra.mrb[0].mxu0 %v3363
    %v5378 = vpop.f32.mrb[0].mxu0
    %v5379 = vadd.f32 0.0, %v5378
    %v5380 = vpop.f32.mrb[0].mxu0
    %v5381 = vadd.f32 0.0, %v5380
    %5382 = vmatprep.mubr.f32.mxu0 %v3368
    %5383 = vmatmul.mubr.f32.gmra.mrb[0].mxu0 %v3367
    %v5384 = vpop.f32.mrb[0].mxu0
    %v5385 = vadd.f32 0.0, %v5384
    %v5386 = vpop.f32.mrb[0].mxu0
    %v5387 = vadd.f32 0.0, %v5386
    %5388 = vmatprep.mubr.f32.mxu0 %v3372
    %5389 = vmatmul.mubr.f32.gmra.mrb[0].mxu0 %v3371
    %v5390 = vpop.f32.mrb[0].mxu0
    %v5391 = vadd.f32 0.0, %v5390
    %v5392 = vpop.f32.mrb[0].mxu0
    %v5393 = vadd.f32 0.0, %v5392
    %5394 = vdwg.mxu0
    %5395 = vmatprep.subr.mxu0 %v5179
    %5396 = vmatpush1.msra.mxu0 %v5178
    %5397 = vmatprep.subr.mxu0 %v5183
    %5398 = vmatpush1.msra.mxu0 %v5182
    %5399 = vmatprep.subr.mxu0 %v5187
    %5400 = vmatpush1.msra.mxu0 %v5186
    %5401 = vmatprep.subr.mxu0 %v5191
    %5402 = vmatpush1.msra.mxu0 %v5190
    %5403 = vmatprep.subr.mxu0 %v5195
    %5404 = vmatpush1.msra.mxu0 %v5194
    %5405 = vmatprep.subr.mxu0 %v5199
    %5406 = vmatpush1.msra.mxu0 %v5198
    %5407 = vmatprep.subr.mxu0 %v5203
    %5408 = vmatpush1.msra.mxu0 %v5202
    %5409 = vmatprep.subr.mxu0 %v5207
    %5410 = vmatpush1.msra.mxu0 %v5206
    %5411 = vmatprep.subr.mxu0 %v5211
    %5412 = vmatpush1.msra.mxu0 %v5210
    %5413 = vmatprep.subr.mxu0 %v5215
    %5414 = vmatpush1.msra.mxu0 %v5214
    %5415 = vmatprep.subr.mxu0 %v5219
    %5416 = vmatpush1.msra.mxu0 %v5218
    %5417 = vmatprep.subr.mxu0 %v5223
    %5418 = vmatpush1.msra.mxu0 %v5222
    %5419 = vmatprep.subr.mxu0 %v5227
    %5420 = vmatpush1.msra.mxu0 %v5226
    %5421 = vmatprep.subr.mxu0 %v5231
    %5422 = vmatpush1.msra.mxu0 %v5230
    %5423 = vmatprep.subr.mxu0 %v5235
    %5424 = vmatpush1.msra.mxu0 %v5234
    %5425 = vmatprep.subr.mxu0 %v5239
    %5426 = vmatpush1.msra.mxu0 %v5238
    %5427 = vmatprep.subr.mxu0 %v5243
    %5428 = vmatpush1.msra.mxu0 %v5242
    %5429 = vmatprep.subr.mxu0 %v5247
    %5430 = vmatpush1.msra.mxu0 %v5246
    %5431 = vmatprep.subr.mxu0 %v5251
    %5432 = vmatpush1.msra.mxu0 %v5250
    %5433 = vmatprep.subr.mxu0 %v5255
    %5434 = vmatpush1.msra.mxu0 %v5254
    %5435 = vmatprep.subr.mxu0 %v5259
    %5436 = vmatpush1.msra.mxu0 %v5258
    %5437 = vmatprep.subr.mxu0 %v5263
    %5438 = vmatpush1.msra.mxu0 %v5262
    %5439 = vmatprep.subr.mxu0 %v5267
    %5440 = vmatpush1.msra.mxu0 %v5266
    %5441 = vmatprep.subr.mxu0 %v5271
    %5442 = vmatpush1.msra.mxu0 %v5270
    %5443 = vmatprep.subr.mxu0 %v5275
    %5444 = vmatpush1.msra.mxu0 %v5274
    %5445 = vmatprep.subr.mxu0 %v5279
    %5446 = vmatpush1.msra.mxu0 %v5278
    %5447 = vmatprep.subr.mxu0 %v5283
    %5448 = vmatpush1.msra.mxu0 %v5282
    %5449 = vmatprep.subr.mxu0 %v5287
    %5450 = vmatpush1.msra.mxu0 %v5286
    %5451 = vmatprep.subr.mxu0 %v5291
    %5452 = vmatpush1.msra.mxu0 %v5290
    %5453 = vmatprep.subr.mxu0 %v5295
    %5454 = vmatpush1.msra.mxu0 %v5294
    %5455 = vmatprep.subr.mxu0 %v5299
    %5456 = vmatpush1.msra.mxu0 %v5298
    %5457 = vmatprep.subr.mxu0 %v5303
    %5458 = vmatpush1.msra.mxu0 %v5302
    %5459 = vmatprep.mubr.f32.mxu0 %v3362
    %5460 = vmatmul.mubr.f32.gmra.mrb[0].mxu0 %v3361
    %v5461 = vpop.f32.mrb[0].mxu0
    %v5462 = vadd.f32 %v5373, %v5461
    %v5463 = vpop.f32.mrb[0].mxu0
    %v5464 = vadd.f32 %v5375, %v5463
    %5465 = vmatprep.mubr.f32.mxu0 %v3366
    %5466 = vmatmul.mubr.f32.gmra.mrb[0].mxu0 %v3365
    %v5467 = vpop.f32.mrb[0].mxu0
    %v5468 = vadd.f32 %v5379, %v5467
    %v5469 = vpop.f32.mrb[0].mxu0
    %v5470 = vadd.f32 %v5381, %v5469
    %5471 = vmatprep.mubr.f32.mxu0 %v3370
    %5472 = vmatmul.mubr.f32.gmra.mrb[0].mxu0 %v3369
    %v5473 = vpop.f32.mrb[0].mxu0
    %v5474 = vadd.f32 %v5385, %v5473
    %v5475 = vpop.f32.mrb[0].mxu0
    %v5476 = vadd.f32 %v5387, %v5475
    %5477 = vmatprep.mubr.f32.mxu0 %v3374
    %5478 = vmatmul.mubr.f32.gmra.mrb[0].mxu0 %v3373
    %v5479 = vpop.f32.mrb[0].mxu0
    %v5480 = vadd.f32 %v5391, %v5479
    %v5481 = vpop.f32.mrb[0].mxu0
    %v5482 = vadd.f32 %v5393, %v5481
    %5483 = vdwg.mxu0
    %5484 = vmatprep.subr.mxu0 %v5053
    %5485 = vmatpush1.msra.mxu0 %v5052
    %5486 = vmatprep.subr.mxu0 %v5057
    %5487 = vmatpush1.msra.mxu0 %v5056
    %5488 = vmatprep.subr.mxu0 %v5061
    %5489 = vmatpush1.msra.mxu0 %v5060
    %5490 = vmatprep.subr.mxu0 %v5065
    %5491 = vmatpush1.msra.mxu0 %v5064
    %5492 = vmatprep.subr.mxu0 %v5069
    %5493 = vmatpush1.msra.mxu0 %v5068
    %5494 = vmatprep.subr.mxu0 %v5073
    %5495 = vmatpush1.msra.mxu0 %v5072
    %5496 = vmatprep.subr.mxu0 %v5077
    %5497 = vmatpush1.msra.mxu0 %v5076
    %5498 = vmatprep.subr.mxu0 %v5081
    %5499 = vmatpush1.msra.mxu0 %v5080
    %5500 = vmatprep.subr.mxu0 %v5085
    %5501 = vmatpush1.msra.mxu0 %v5084
    %5502 = vmatprep.subr.mxu0 %v5089
    %5503 = vmatpush1.msra.mxu0 %v5088
    %5504 = vmatprep.subr.mxu0 %v5093
    %5505 = vmatpush1.msra.mxu0 %v5092
    %5506 = vmatprep.subr.mxu0 %v5097
    %5507 = vmatpush1.msra.mxu0 %v5096
    %5508 = vmatprep.subr.mxu0 %v5101
    %5509 = vmatpush1.msra.mxu0 %v5100
    %5510 = vmatprep.subr.mxu0 %v5105
    %5511 = vmatpush1.msra.mxu0 %v5104
    %5512 = vmatprep.subr.mxu0 %v5109
    %5513 = vmatpush1.msra.mxu0 %v5108
    %5514 = vmatprep.subr.mxu0 %v5113
    %5515 = vmatpush1.msra.mxu0 %v5112
    %5516 = vmatprep.subr.mxu0 %v5117
    %5517 = vmatpush1.msra.mxu0 %v5116
    %5518 = vmatprep.subr.mxu0 %v5121
    %5519 = vmatpush1.msra.mxu0 %v5120
    %5520 = vmatprep.subr.mxu0 %v5125
    %5521 = vmatpush1.msra.mxu0 %v5124
    %5522 = vmatprep.subr.mxu0 %v5129
    %5523 = vmatpush1.msra.mxu0 %v5128
    %5524 = vmatprep.subr.mxu0 %v5133
    %5525 = vmatpush1.msra.mxu0 %v5132
    %5526 = vmatprep.subr.mxu0 %v5137
    %5527 = vmatpush1.msra.mxu0 %v5136
    %5528 = vmatprep.subr.mxu0 %v5141
    %5529 = vmatpush1.msra.mxu0 %v5140
    %5530 = vmatprep.subr.mxu0 %v5145
    %5531 = vmatpush1.msra.mxu0 %v5144
    %5532 = vmatprep.subr.mxu0 %v5149
    %5533 = vmatpush1.msra.mxu0 %v5148
    %5534 = vmatprep.subr.mxu0 %v5153
    %5535 = vmatpush1.msra.mxu0 %v5152
    %5536 = vmatprep.subr.mxu0 %v5157
    %5537 = vmatpush1.msra.mxu0 %v5156
    %5538 = vmatprep.subr.mxu0 %v5161
    %5539 = vmatpush1.msra.mxu0 %v5160
    %5540 = vmatprep.subr.mxu0 %v5165
    %5541 = vmatpush1.msra.mxu0 %v5164
    %5542 = vmatprep.subr.mxu0 %v5169
    %5543 = vmatpush1.msra.mxu0 %v5168
    %5544 = vmatprep.subr.mxu0 %v5173
    %5545 = vmatpush1.msra.mxu0 %v5172
    %5546 = vmatprep.subr.mxu0 %v5177
    %5547 = vmatpush1.msra.mxu0 %v5176
    %5548 = vmatprep.mubr.f32.mxu0 %v3360
    %5549 = vmatmul.mubr.f32.gmra.mrb[0].mxu0 %v3359
    %v5550 = vpop.f32.mrb[0].mxu0
    %v5551 = vadd.f32 0.0, %v5550
    %v5552 = vpop.f32.mrb[0].mxu0
    %v5553 = vadd.f32 0.0, %v5552
    %5554 = vmatprep.mubr.f32.mxu0 %v3364
    %5555 = vmatmul.mubr.f32.gmra.mrb[0].mxu0 %v3363
    %v5556 = vpop.f32.mrb[0].mxu0
    %v5557 = vadd.f32 0.0, %v5556
    %v5558 = vpop.f32.mrb[0].mxu0
    %v5559 = vadd.f32 0.0, %v5558
    %5560 = vmatprep.mubr.f32.mxu0 %v3368
    %5561 = vmatmul.mubr.f32.gmra.mrb[0].mxu0 %v3367
    %v5562 = vpop.f32.mrb[0].mxu0
    %v5563 = vadd.f32 0.0, %v5562
    %v5564 = vpop.f32.mrb[0].mxu0
    %v5565 = vadd.f32 0.0, %v5564
    %5566 = vmatprep.mubr.f32.mxu0 %v3372
    %5567 = vmatmul.mubr.f32.gmra.mrb[0].mxu0 %v3371
    %v5568 = vpop.f32.mrb[0].mxu0
    %v5569 = vadd.f32 0.0, %v5568
    %v5570 = vpop.f32.mrb[0].mxu0
    %v5571 = vadd.f32 0.0, %v5570
    %5572 = vdwg.mxu0
    %5573 = vmatprep.subr.mxu0 %v5181
    %5574 = vmatpush1.msra.mxu0 %v5180
    %5575 = vmatprep.subr.mxu0 %v5185
    %5576 = vmatpush1.msra.mxu0 %v5184
    %5577 = vmatprep.subr.mxu0 %v5189
    %5578 = vmatpush1.msra.mxu0 %v5188
    %5579 = vmatprep.subr.mxu0 %v5193
    %5580 = vmatpush1.msra.mxu0 %v5192
    %5581 = vmatprep.subr.mxu0 %v5197
    %5582 = vmatpush1.msra.mxu0 %v5196
    %5583 = vmatprep.subr.mxu0 %v5201
    %5584 = vmatpush1.msra.mxu0 %v5200
    %5585 = vmatprep.subr.mxu0 %v5205
    %5586 = vmatpush1.msra.mxu0 %v5204
    %5587 = vmatprep.subr.mxu0 %v5209
    %5588 = vmatpush1.msra.mxu0 %v5208
    %5589 = vmatprep.subr.mxu0 %v5213
    %5590 = vmatpush1.msra.mxu0 %v5212
    %5591 = vmatprep.subr.mxu0 %v5217
    %5592 = vmatpush1.msra.mxu0 %v5216
    %5593 = vmatprep.subr.mxu0 %v5221
    %5594 = vmatpush1.msra.mxu0 %v5220
    %5595 = vmatprep.subr.mxu0 %v5225
    %5596 = vmatpush1.msra.mxu0 %v5224
    %5597 = vmatprep.subr.mxu0 %v5229
    %5598 = vmatpush1.msra.mxu0 %v5228
    %5599 = vmatprep.subr.mxu0 %v5233
    %5600 = vmatpush1.msra.mxu0 %v5232
    %5601 = vmatprep.subr.mxu0 %v5237
    %5602 = vmatpush1.msra.mxu0 %v5236
    %5603 = vmatprep.subr.mxu0 %v5241
    %5604 = vmatpush1.msra.mxu0 %v5240
    %5605 = vmatprep.subr.mxu0 %v5245
    %5606 = vmatpush1.msra.mxu0 %v5244
    %5607 = vmatprep.subr.mxu0 %v5249
    %5608 = vmatpush1.msra.mxu0 %v5248
    %5609 = vmatprep.subr.mxu0 %v5253
    %5610 = vmatpush1.msra.mxu0 %v5252
    %5611 = vmatprep.subr.mxu0 %v5257
    %5612 = vmatpush1.msra.mxu0 %v5256
    %5613 = vmatprep.subr.mxu0 %v5261
    %5614 = vmatpush1.msra.mxu0 %v5260
    %5615 = vmatprep.subr.mxu0 %v5265
    %5616 = vmatpush1.msra.mxu0 %v5264
    %5617 = vmatprep.subr.mxu0 %v5269
    %5618 = vmatpush1.msra.mxu0 %v5268
    %5619 = vmatprep.subr.mxu0 %v5273
    %5620 = vmatpush1.msra.mxu0 %v5272
    %5621 = vmatprep.subr.mxu0 %v5277
    %5622 = vmatpush1.msra.mxu0 %v5276
    %5623 = vmatprep.subr.mxu0 %v5281
    %5624 = vmatpush1.msra.mxu0 %v5280
    %5625 = vmatprep.subr.mxu0 %v5285
    %5626 = vmatpush1.msra.mxu0 %v5284
    %5627 = vmatprep.subr.mxu0 %v5289
    %5628 = vmatpush1.msra.mxu0 %v5288
    %5629 = vmatprep.subr.mxu0 %v5293
    %5630 = vmatpush1.msra.mxu0 %v5292
    %5631 = vmatprep.subr.mxu0 %v5297
    %5632 = vmatpush1.msra.mxu0 %v5296
    %5633 = vmatprep.subr.mxu0 %v5301
    %5634 = vmatpush1.msra.mxu0 %v5300
    %5635 = vmatprep.subr.mxu0 %v5305
    %5636 = vmatpush1.msra.mxu0 %v5304
    %5637 = vmatprep.mubr.f32.mxu0 %v3362
    %5638 = vmatmul.mubr.f32.gmra.mrb[0].mxu0 %v3361
    %v5639 = vpop.f32.mrb[0].mxu0
    %v5640 = vadd.f32 %v5551, %v5639
    %v5641 = vpop.f32.mrb[0].mxu0
    %v5642 = vadd.f32 %v5553, %v5641
    %5643 = vmatprep.mubr.f32.mxu0 %v3366
    %5644 = vmatmul.mubr.f32.gmra.mrb[0].mxu0 %v3365
    %v5645 = vpop.f32.mrb[0].mxu0
    %v5646 = vadd.f32 %v5557, %v5645
    %v5647 = vpop.f32.mrb[0].mxu0
    %v5648 = vadd.f32 %v5559, %v5647
    %5649 = vmatprep.mubr.f32.mxu0 %v3370
    %5650 = vmatmul.mubr.f32.gmra.mrb[0].mxu0 %v3369
    %v5651 = vpop.f32.mrb[0].mxu0
    %v5652 = vadd.f32 %v5563, %v5651
    %v5653 = vpop.f32.mrb[0].mxu0
    %v5654 = vadd.f32 %v5565, %v5653
    %5655 = vmatprep.mubr.f32.mxu0 %v3374
    %5656 = vmatmul.mubr.f32.gmra.mrb[0].mxu0 %v3373
    %v5657 = vpop.f32.mrb[0].mxu0
    %v5658 = vadd.f32 %v5569, %v5657
    %v5659 = vpop.f32.mrb[0].mxu0
    %v5660 = vadd.f32 %v5571, %v5659
    %5661 = vdwg.mxu0
    %v5663 = vsel %vm3992, %v5045, 0
    %v5666 = vsel %vm3992, %v5046, 0
    %v5669 = vsel %vm3992, %v5047, 0
    %v5672 = vsel %vm3992, %v5048, 0
    %5674 = vmatprep.subr.mxu0 %v5464
    %5675 = vmatpush1.msra.mxu0 %v5462
    %5676 = vmatprep.subr.mxu0 %v5470
    %5677 = vmatpush1.msra.mxu0 %v5468
    %5678 = vmatprep.subr.mxu0 %v5476
    %5679 = vmatpush1.msra.mxu0 %v5474
    %5680 = vmatprep.subr.mxu0 %v5482
    %5681 = vmatpush1.msra.mxu0 %v5480
    %5682 = vmatprep.subr.mxu0 0.0
    %5683 = vmatpush1.msra.mxu0 0.0
    %5684 = vmatprep.subr.mxu0 0.0
    %5685 = vmatpush1.msra.mxu0 0.0
    %5686 = vmatprep.subr.mxu0 0.0
    %5687 = vmatpush1.msra.mxu0 0.0
    %5688 = vmatprep.subr.mxu0 0.0
    %5689 = vmatpush1.msra.mxu0 0.0
    %5690 = vmatprep.subr.mxu0 0.0
    %5691 = vmatpush1.msra.mxu0 0.0
    %5692 = vmatprep.subr.mxu0 0.0
    %5693 = vmatpush1.msra.mxu0 0.0
    %5694 = vmatprep.subr.mxu0 0.0
    %5695 = vmatpush1.msra.mxu0 0.0
    %5696 = vmatprep.subr.mxu0 0.0
    %5697 = vmatpush1.msra.mxu0 0.0
    %5698 = vmatprep.subr.mxu0 0.0
    %5699 = vmatpush1.msra.mxu0 0.0
    %5700 = vmatprep.subr.mxu0 0.0
    %5701 = vmatpush1.msra.mxu0 0.0
    %5702 = vmatprep.subr.mxu0 0.0
    %5703 = vmatpush1.msra.mxu0 0.0
    %5704 = vmatprep.subr.mxu0 0.0
    %5705 = vmatpush1.msra.mxu0 0.0
    %5706 = vmatprep.subr.mxu0 0.0
    %5707 = vmatpush1.msra.mxu0 0.0
    %5708 = vmatprep.subr.mxu0 0.0
    %5709 = vmatpush1.msra.mxu0 0.0
    %5710 = vmatprep.subr.mxu0 0.0
    %5711 = vmatpush1.msra.mxu0 0.0
    %5712 = vmatprep.subr.mxu0 0.0
    %5713 = vmatpush1.msra.mxu0 0.0
    %5714 = vmatprep.subr.mxu0 0.0
    %5715 = vmatpush1.msra.mxu0 0.0
    %5716 = vmatprep.subr.mxu0 0.0
    %5717 = vmatpush1.msra.mxu0 0.0
    %5718 = vmatprep.subr.mxu0 0.0
    %5719 = vmatpush1.msra.mxu0 0.0
    %5720 = vmatprep.subr.mxu0 0.0
    %5721 = vmatpush1.msra.mxu0 0.0
    %5722 = vmatprep.subr.mxu0 0.0
    %5723 = vmatpush1.msra.mxu0 0.0
    %5724 = vmatprep.subr.mxu0 0.0
    %5725 = vmatpush1.msra.mxu0 0.0
    %5726 = vmatprep.subr.mxu0 0.0
    %5727 = vmatpush1.msra.mxu0 0.0
    %5728 = vmatprep.subr.mxu0 0.0
    %5729 = vmatpush1.msra.mxu0 0.0
    %5730 = vmatprep.subr.mxu0 0.0
    %5731 = vmatpush1.msra.mxu0 0.0
    %5732 = vmatprep.subr.mxu0 0.0
    %5733 = vmatpush1.msra.mxu0 0.0
    %5734 = vmatprep.subr.mxu0 0.0
    %5735 = vmatpush1.msra.mxu0 0.0
    %5736 = vmatprep.subr.mxu0 0.0
    %5737 = vmatpush1.msra.mxu0 0.0
    %5738 = vmatprep.mubr.f32.mxu0 0.0
    %5739 = vmatmul.mubr.f32.gmra.mrb[0].mxu0 %v5663
    %v5740 = vpop.f32.mrb[0].mxu0
    %v5741 = vadd.f32 0.0, %v5740
    %v5742 = vpop.f32.mrb[0].mxu0
    %v5743 = vadd.f32 0.0, %v5742
    %5744 = vmatprep.mubr.f32.mxu0 0.0
    %5745 = vmatmul.mubr.f32.gmra.mrb[0].mxu0 %v5666
    %v5746 = vpop.f32.mrb[0].mxu0
    %v5747 = vadd.f32 0.0, %v5746
    %v5748 = vpop.f32.mrb[0].mxu0
    %v5749 = vadd.f32 0.0, %v5748
    %5750 = vmatprep.mubr.f32.mxu0 0.0
    %5751 = vmatmul.mubr.f32.gmra.mrb[0].mxu0 %v5669
    %v5752 = vpop.f32.mrb[0].mxu0
    %v5753 = vadd.f32 0.0, %v5752
    %v5754 = vpop.f32.mrb[0].mxu0
    %v5755 = vadd.f32 0.0, %v5754
    %5756 = vmatprep.mubr.f32.mxu0 0.0
    %5757 = vmatmul.mubr.f32.gmra.mrb[0].mxu0 %v5672
    %v5758 = vpop.f32.mrb[0].mxu0
    %v5759 = vadd.f32 0.0, %v5758
    %v5760 = vpop.f32.mrb[0].mxu0
    %v5761 = vadd.f32 0.0, %v5760
    %5762 = vdwg.mxu0
    %5763 = vmatprep.subr.mxu0 %v5642
    %5764 = vmatpush1.msra.mxu0 %v5640
    %5765 = vmatprep.subr.mxu0 %v5648
    %5766 = vmatpush1.msra.mxu0 %v5646
    %5767 = vmatprep.subr.mxu0 %v5654
    %5768 = vmatpush1.msra.mxu0 %v5652
    %5769 = vmatprep.subr.mxu0 %v5660
    %5770 = vmatpush1.msra.mxu0 %v5658
    %5771 = vmatprep.subr.mxu0 0.0
    %5772 = vmatpush1.msra.mxu0 0.0
    %5773 = vmatprep.subr.mxu0 0.0
    %5774 = vmatpush1.msra.mxu0 0.0
    %5775 = vmatprep.subr.mxu0 0.0
    %5776 = vmatpush1.msra.mxu0 0.0
    %5777 = vmatprep.subr.mxu0 0.0
    %5778 = vmatpush1.msra.mxu0 0.0
    %5779 = vmatprep.subr.mxu0 0.0
    %5780 = vmatpush1.msra.mxu0 0.0
    %5781 = vmatprep.subr.mxu0 0.0
    %5782 = vmatpush1.msra.mxu0 0.0
    %5783 = vmatprep.subr.mxu0 0.0
    %5784 = vmatpush1.msra.mxu0 0.0
    %5785 = vmatprep.subr.mxu0 0.0
    %5786 = vmatpush1.msra.mxu0 0.0
    %5787 = vmatprep.subr.mxu0 0.0
    %5788 = vmatpush1.msra.mxu0 0.0
    %5789 = vmatprep.subr.mxu0 0.0
    %5790 = vmatpush1.msra.mxu0 0.0
    %5791 = vmatprep.subr.mxu0 0.0
    %5792 = vmatpush1.msra.mxu0 0.0
    %5793 = vmatprep.subr.mxu0 0.0
    %5794 = vmatpush1.msra.mxu0 0.0
    %5795 = vmatprep.subr.mxu0 0.0
    %5796 = vmatpush1.msra.mxu0 0.0
    %5797 = vmatprep.subr.mxu0 0.0
    %5798 = vmatpush1.msra.mxu0 0.0
    %5799 = vmatprep.subr.mxu0 0.0
    %5800 = vmatpush1.msra.mxu0 0.0
    %5801 = vmatprep.subr.mxu0 0.0
    %5802 = vmatpush1.msra.mxu0 0.0
    %5803 = vmatprep.subr.mxu0 0.0
    %5804 = vmatpush1.msra.mxu0 0.0
    %5805 = vmatprep.subr.mxu0 0.0
    %5806 = vmatpush1.msra.mxu0 0.0
    %5807 = vmatprep.subr.mxu0 0.0
    %5808 = vmatpush1.msra.mxu0 0.0
    %5809 = vmatprep.subr.mxu0 0.0
    %5810 = vmatpush1.msra.mxu0 0.0
    %5811 = vmatprep.subr.mxu0 0.0
    %5812 = vmatpush1.msra.mxu0 0.0
    %5813 = vmatprep.subr.mxu0 0.0
    %5814 = vmatpush1.msra.mxu0 0.0
    %5815 = vmatprep.subr.mxu0 0.0
    %5816 = vmatpush1.msra.mxu0 0.0
    %5817 = vmatprep.subr.mxu0 0.0
    %5818 = vmatpush1.msra.mxu0 0.0
    %5819 = vmatprep.subr.mxu0 0.0
    %5820 = vmatpush1.msra.mxu0 0.0
    %5821 = vmatprep.subr.mxu0 0.0
    %5822 = vmatpush1.msra.mxu0 0.0
    %5823 = vmatprep.subr.mxu0 0.0
    %5824 = vmatpush1.msra.mxu0 0.0
    %5825 = vmatprep.subr.mxu0 0.0
    %5826 = vmatpush1.msra.mxu0 0.0
    %5827 = vmatprep.mubr.f32.mxu0 0.0
    %5828 = vmatmul.mubr.f32.gmra.mrb[0].mxu0 %v5663
    %v5829 = vpop.f32.mrb[0].mxu0
    %v5830 = vadd.f32 0.0, %v5829
    %v5831 = vpop.f32.mrb[0].mxu0
    %v5832 = vadd.f32 0.0, %v5831
    %5833 = vmatprep.mubr.f32.mxu0 0.0
    %5834 = vmatmul.mubr.f32.gmra.mrb[0].mxu0 %v5666
    %v5835 = vpop.f32.mrb[0].mxu0
    %v5836 = vadd.f32 0.0, %v5835
    %v5837 = vpop.f32.mrb[0].mxu0
    %v5838 = vadd.f32 0.0, %v5837
    %5839 = vmatprep.mubr.f32.mxu0 0.0
    %5840 = vmatmul.mubr.f32.gmra.mrb[0].mxu0 %v5669
    %v5841 = vpop.f32.mrb[0].mxu0
    %v5842 = vadd.f32 0.0, %v5841
    %v5843 = vpop.f32.mrb[0].mxu0
    %v5844 = vadd.f32 0.0, %v5843
    %5845 = vmatprep.mubr.f32.mxu0 0.0
    %5846 = vmatmul.mubr.f32.gmra.mrb[0].mxu0 %v5672
    %v5847 = vpop.f32.mrb[0].mxu0
    %v5848 = vadd.f32 0.0, %v5847
    %v5849 = vpop.f32.mrb[0].mxu0
    %v5850 = vadd.f32 0.0, %v5849
    %5851 = vdwg.mxu0
    %v5852 = vadd.f32 %v5028, %v5741
    %v5853 = vadd.f32 %v5029, %v5743
    %v5854 = vadd.f32 %v5030, %v5830
    %v5855 = vadd.f32 %v5031, %v5832
    %v5856 = vadd.f32 %v5032, %v5747
    %v5857 = vadd.f32 %v5033, %v5749
    %v5858 = vadd.f32 %v5034, %v5836
    %v5859 = vadd.f32 %v5035, %v5838
    %v5860 = vadd.f32 %v5036, %v5753
    %v5861 = vadd.f32 %v5037, %v5755
    %v5862 = vadd.f32 %v5038, %v5842
    %v5863 = vadd.f32 %v5039, %v5844
    %v5864 = vadd.f32 %v5040, %v5759
    %v5865 = vadd.f32 %v5041, %v5761
    %v5866 = vadd.f32 %v5042, %v5848
    %v5867 = vadd.f32 %v5043, %v5850
    %v5868 = vld [vmem:[#allocation23] sm:$0x3]
    %v5869 = vld [vmem:[#allocation20] sm:$0xff]
    %v5870 = vld [vmem:[#allocation20 + $0x8] sm:$0xff]
    %v5871 = vld [vmem:[#allocation22] sm:$0xff]
    %v5872 = vld [vmem:[#allocation22 + $0x8] sm:$0xff]
    %v5873 = vld [vmem:[#allocation22 + $0x10] sm:$0xff]
    %v5874 = vld [vmem:[#allocation22 + $0x18] sm:$0xff]
    %v5875 = vld [vmem:[#allocation22 + $0x20] sm:$0xff]
    %v5876 = vld [vmem:[#allocation22 + $0x28] sm:$0xff]
    %v5877 = vld [vmem:[#allocation22 + $0x30] sm:$0xff]
    %v5878 = vld [vmem:[#allocation22 + $0x38] sm:$0xff]
    %v5879 = vld [vmem:[#allocation22 + $0x40] sm:$0xff]
    %v5880 = vld [vmem:[#allocation22 + $0x48] sm:$0xff]
    %v5881 = vld [vmem:[#allocation22 + $0x50] sm:$0xff]
    %v5882 = vld [vmem:[#allocation22 + $0x58] sm:$0xff]
    %v5883 = vld [vmem:[#allocation22 + $0x60] sm:$0xff]
    %v5884 = vld [vmem:[#allocation22 + $0x68] sm:$0xff]
    %v5885 = vld [vmem:[#allocation22 + $0x70] sm:$0xff]
    %v5886 = vld [vmem:[#allocation22 + $0x78] sm:$0xff]
    %v5887 = vld [vmem:[#allocation22 + $0x80] sm:$0xff]
    %v5888 = vld [vmem:[#allocation22 + $0x88] sm:$0xff]
    %v5889 = vld [vmem:[#allocation22 + $0x90] sm:$0xff]
    %v5890 = vld [vmem:[#allocation22 + $0x98] sm:$0xff]
    %v5891 = vld [vmem:[#allocation22 + $0xa0] sm:$0xff]
    %v5892 = vld [vmem:[#allocation22 + $0xa8] sm:$0xff]
    %v5893 = vld [vmem:[#allocation22 + $0xb0] sm:$0xff]
    %v5894 = vld [vmem:[#allocation22 + $0xb8] sm:$0xff]
    %v5895 = vld [vmem:[#allocation22 + $0xc0] sm:$0xff]
    %v5896 = vld [vmem:[#allocation22 + $0xc8] sm:$0xff]
    %v5897 = vld [vmem:[#allocation22 + $0xd0] sm:$0xff]
    %v5898 = vld [vmem:[#allocation22 + $0xd8] sm:$0xff]
    %v5899 = vld [vmem:[#allocation22 + $0xe0] sm:$0xff]
    %v5900 = vld [vmem:[#allocation22 + $0xe8] sm:$0xff]
    %v5901 = vld [vmem:[#allocation22 + $0xf0] sm:$0xff]
    %v5902 = vld [vmem:[#allocation22 + $0xf8] sm:$0xff]
    %v5903 = vld [vmem:[#allocation22 + $0x100] sm:$0xff]
    %v5904 = vld [vmem:[#allocation22 + $0x108] sm:$0xff]
    %v5905 = vld [vmem:[#allocation22 + $0x110] sm:$0xff]
    %v5906 = vld [vmem:[#allocation22 + $0x118] sm:$0xff]
    %v5907 = vld [vmem:[#allocation22 + $0x120] sm:$0xff]
    %v5908 = vld [vmem:[#allocation22 + $0x128] sm:$0xff]
    %v5909 = vld [vmem:[#allocation22 + $0x130] sm:$0xff]
    %v5910 = vld [vmem:[#allocation22 + $0x138] sm:$0xff]
    %v5911 = vld [vmem:[#allocation22 + $0x140] sm:$0xff]
    %v5912 = vld [vmem:[#allocation22 + $0x148] sm:$0xff]
    %v5913 = vld [vmem:[#allocation22 + $0x150] sm:$0xff]
    %v5914 = vld [vmem:[#allocation22 + $0x158] sm:$0xff]
    %v5915 = vld [vmem:[#allocation22 + $0x160] sm:$0xff]
    %v5916 = vld [vmem:[#allocation22 + $0x168] sm:$0xff]
    %v5917 = vld [vmem:[#allocation22 + $0x170] sm:$0xff]
    %v5918 = vld [vmem:[#allocation22 + $0x178] sm:$0xff]
    %v5919 = vld [vmem:[#allocation22 + $0x180] sm:$0xff]
    %v5920 = vld [vmem:[#allocation22 + $0x188] sm:$0xff]
    %v5921 = vld [vmem:[#allocation22 + $0x190] sm:$0xff]
    %v5922 = vld [vmem:[#allocation22 + $0x198] sm:$0xff]
    %v5923 = vld [vmem:[#allocation22 + $0x1a0] sm:$0xff]
    %v5924 = vld [vmem:[#allocation22 + $0x1a8] sm:$0xff]
    %v5925 = vld [vmem:[#allocation22 + $0x1b0] sm:$0xff]
    %v5926 = vld [vmem:[#allocation22 + $0x1b8] sm:$0xff]
    %v5927 = vld [vmem:[#allocation22 + $0x1c0] sm:$0xff]
    %v5928 = vld [vmem:[#allocation22 + $0x1c8] sm:$0xff]
    %v5929 = vld [vmem:[#allocation22 + $0x1d0] sm:$0xff]
    %v5930 = vld [vmem:[#allocation22 + $0x1d8] sm:$0xff]
    %v5931 = vld [vmem:[#allocation22 + $0x1e0] sm:$0xff]
    %v5932 = vld [vmem:[#allocation22 + $0x1e8] sm:$0xff]
    %v5933 = vld [vmem:[#allocation22 + $0x1f0] sm:$0xff]
    %v5934 = vld [vmem:[#allocation22 + $0x1f8] sm:$0xff]
    %5935 = vmatprep.subr.mxu0 %v5872
    %5936 = vmatpush1.msra.mxu0 %v5871
    %5937 = vmatprep.subr.mxu0 %v5874
    %5938 = vmatpush1.msra.mxu0 %v5873
    %5939 = vmatprep.subr.mxu0 %v5876
    %5940 = vmatpush1.msra.mxu0 %v5875
    %5941 = vmatprep.subr.mxu0 %v5878
    %5942 = vmatpush1.msra.mxu0 %v5877
    %5943 = vmatprep.subr.mxu0 %v5880
    %5944 = vmatpush1.msra.mxu0 %v5879
    %5945 = vmatprep.subr.mxu0 %v5882
    %5946 = vmatpush1.msra.mxu0 %v5881
    %5947 = vmatprep.subr.mxu0 %v5884
    %5948 = vmatpush1.msra.mxu0 %v5883
    %5949 = vmatprep.subr.mxu0 %v5886
    %5950 = vmatpush1.msra.mxu0 %v5885
    %5951 = vmatprep.subr.mxu0 %v5888
    %5952 = vmatpush1.msra.mxu0 %v5887
    %5953 = vmatprep.subr.mxu0 %v5890
    %5954 = vmatpush1.msra.mxu0 %v5889
    %5955 = vmatprep.subr.mxu0 %v5892
    %5956 = vmatpush1.msra.mxu0 %v5891
    %5957 = vmatprep.subr.mxu0 %v5894
    %5958 = vmatpush1.msra.mxu0 %v5893
    %5959 = vmatprep.subr.mxu0 %v5896
    %5960 = vmatpush1.msra.mxu0 %v5895
    %5961 = vmatprep.subr.mxu0 %v5898
    %5962 = vmatpush1.msra.mxu0 %v5897
    %5963 = vmatprep.subr.mxu0 %v5900
    %5964 = vmatpush1.msra.mxu0 %v5899
    %5965 = vmatprep.subr.mxu0 %v5902
    %5966 = vmatpush1.msra.mxu0 %v5901
    %5967 = vmatprep.subr.mxu0 %v5904
    %5968 = vmatpush1.msra.mxu0 %v5903
    %5969 = vmatprep.subr.mxu0 %v5906
    %5970 = vmatpush1.msra.mxu0 %v5905
    %5971 = vmatprep.subr.mxu0 %v5908
    %5972 = vmatpush1.msra.mxu0 %v5907
    %5973 = vmatprep.subr.mxu0 %v5910
    %5974 = vmatpush1.msra.mxu0 %v5909
    %5975 = vmatprep.subr.mxu0 %v5912
    %5976 = vmatpush1.msra.mxu0 %v5911
    %5977 = vmatprep.subr.mxu0 %v5914
    %5978 = vmatpush1.msra.mxu0 %v5913
    %5979 = vmatprep.subr.mxu0 %v5916
    %5980 = vmatpush1.msra.mxu0 %v5915
    %5981 = vmatprep.subr.mxu0 %v5918
    %5982 = vmatpush1.msra.mxu0 %v5917
    %5983 = vmatprep.subr.mxu0 %v5920
    %5984 = vmatpush1.msra.mxu0 %v5919
    %5985 = vmatprep.subr.mxu0 %v5922
    %5986 = vmatpush1.msra.mxu0 %v5921
    %5987 = vmatprep.subr.mxu0 %v5924
    %5988 = vmatpush1.msra.mxu0 %v5923
    %5989 = vmatprep.subr.mxu0 %v5926
    %5990 = vmatpush1.msra.mxu0 %v5925
    %5991 = vmatprep.subr.mxu0 %v5928
    %5992 = vmatpush1.msra.mxu0 %v5927
    %5993 = vmatprep.subr.mxu0 %v5930
    %5994 = vmatpush1.msra.mxu0 %v5929
    %5995 = vmatprep.subr.mxu0 %v5932
    %5996 = vmatpush1.msra.mxu0 %v5931
    %5997 = vmatprep.subr.mxu0 %v5934
    %5998 = vmatpush1.msra.mxu0 %v5933
    %5999 = vmatprep.mubr.f32.mxu0 %v2879
    %6000 = vmatmul.mubr.f32.gmra.mrb[0].mxu0 %v2878
    %v6001 = vpop.f32.mrb[0].mxu0
    %v6002 = vadd.f32 0.0, %v6001
    %v6003 = vpop.f32.mrb[0].mxu0
    %v6004 = vadd.f32 0.0, %v6003
    %6005 = vmatprep.mubr.f32.mxu0 %v2881
    %6006 = vmatmul.mubr.f32.gmra.mrb[0].mxu0 %v2880
    %v6007 = vpop.f32.mrb[0].mxu0
    %v6008 = vadd.f32 0.0, %v6007
    %v6009 = vpop.f32.mrb[0].mxu0
    %v6010 = vadd.f32 0.0, %v6009
    %6011 = vdwg.mxu0
    %v6013 = vsel %vm3168, %v5869, 0
    %v6016 = vsel %vm3168, %v5870, 0
    %6018 = vmatprep.subr.mxu0 %v6004
    %6019 = vmatpush1.msra.mxu0 %v6002
    %6020 = vmatprep.subr.mxu0 %v6010
    %6021 = vmatpush1.msra.mxu0 %v6008
    %6022 = vmatprep.subr.mxu0 0.0
    %6023 = vmatpush1.msra.mxu0 0.0
    %6024 = vmatprep.subr.mxu0 0.0
    %6025 = vmatpush1.msra.mxu0 0.0
    %6026 = vmatprep.subr.mxu0 0.0
    %6027 = vmatpush1.msra.mxu0 0.0
    %6028 = vmatprep.subr.mxu0 0.0
    %6029 = vmatpush1.msra.mxu0 0.0
    %6030 = vmatprep.subr.mxu0 0.0
    %6031 = vmatpush1.msra.mxu0 0.0
    %6032 = vmatprep.subr.mxu0 0.0
    %6033 = vmatpush1.msra.mxu0 0.0
    %6034 = vmatprep.subr.mxu0 0.0
    %6035 = vmatpush1.msra.mxu0 0.0
    %6036 = vmatprep.subr.mxu0 0.0
    %6037 = vmatpush1.msra.mxu0 0.0
    %6038 = vmatprep.subr.mxu0 0.0
    %6039 = vmatpush1.msra.mxu0 0.0
    %6040 = vmatprep.subr.mxu0 0.0
    %6041 = vmatpush1.msra.mxu0 0.0
    %6042 = vmatprep.subr.mxu0 0.0
    %6043 = vmatpush1.msra.mxu0 0.0
    %6044 = vmatprep.subr.mxu0 0.0
    %6045 = vmatpush1.msra.mxu0 0.0
    %6046 = vmatprep.subr.mxu0 0.0
    %6047 = vmatpush1.msra.mxu0 0.0
    %6048 = vmatprep.subr.mxu0 0.0
    %6049 = vmatpush1.msra.mxu0 0.0
    %6050 = vmatprep.subr.mxu0 0.0
    %6051 = vmatpush1.msra.mxu0 0.0
    %6052 = vmatprep.subr.mxu0 0.0
    %6053 = vmatpush1.msra.mxu0 0.0
    %6054 = vmatprep.subr.mxu0 0.0
    %6055 = vmatpush1.msra.mxu0 0.0
    %6056 = vmatprep.subr.mxu0 0.0
    %6057 = vmatpush1.msra.mxu0 0.0
    %6058 = vmatprep.subr.mxu0 0.0
    %6059 = vmatpush1.msra.mxu0 0.0
    %6060 = vmatprep.subr.mxu0 0.0
    %6061 = vmatpush1.msra.mxu0 0.0
    %6062 = vmatprep.subr.mxu0 0.0
    %6063 = vmatpush1.msra.mxu0 0.0
    %6064 = vmatprep.subr.mxu0 0.0
    %6065 = vmatpush1.msra.mxu0 0.0
    %6066 = vmatprep.subr.mxu0 0.0
    %6067 = vmatpush1.msra.mxu0 0.0
    %6068 = vmatprep.subr.mxu0 0.0
    %6069 = vmatpush1.msra.mxu0 0.0
    %6070 = vmatprep.subr.mxu0 0.0
    %6071 = vmatpush1.msra.mxu0 0.0
    %6072 = vmatprep.subr.mxu0 0.0
    %6073 = vmatpush1.msra.mxu0 0.0
    %6074 = vmatprep.subr.mxu0 0.0
    %6075 = vmatpush1.msra.mxu0 0.0
    %6076 = vmatprep.subr.mxu0 0.0
    %6077 = vmatpush1.msra.mxu0 0.0
    %6078 = vmatprep.subr.mxu0 0.0
    %6079 = vmatpush1.msra.mxu0 0.0
    %6080 = vmatprep.subr.mxu0 0.0
    %6081 = vmatpush1.msra.mxu0 0.0
    %6082 = vmatprep.mubr.f32.mxu0 0.0
    %6083 = vmatmul.mubr.f32.gmra.mrb[0].mxu0 %v6013
    %v6084 = vpop.f32.mrb[0].mxu0
    %v6085 = vadd.f32 0.0, %v6084
    %v6086 = vpop.f32.mrb[0].mxu0
    %v6087 = vadd.f32 0.0, %v6086
    %6088 = vmatprep.mubr.f32.mxu0 0.0
    %6089 = vmatmul.mubr.f32.gmra.mrb[0].mxu0 %v6016
    %v6090 = vpop.f32.mrb[0].mxu0
    %v6091 = vadd.f32 0.0, %v6090
    %v6092 = vpop.f32.mrb[0].mxu0
    %v6093 = vadd.f32 0.0, %v6092
    %6094 = vdwg.mxu0
    %v6096 = vlaneseq
    %v6097 = vshrl.u32 %v6096, 7
    %v6098 = vsub.s32 0, %v6097
    %v6099 = vrot.slane %v5868, %v6098
    %v6100 = vlaneseq
    %v6101 = vshrl.u32 %v6100, 7
    %v6102 = vsub.s32 1, %v6101
    %v6103 = vrot.slane %v5868, %v6102
    %v6106 = vadd.f32 %v6099, %v6085
    %v6107 = vadd.f32 %v6103, %v6087
    %v6108 = vadd.f32 %v6099, %v6091
    %v6109 = vadd.f32 %v6103, %v6093
    %s6110 = scalar_lea.vmem [#allocation20], 16
    %v6111 = vld [vmem:[%s6110] sm:$0xff]
    %v6112 = vld [vmem:[%s6110 + $0x8] sm:$0xff]
    %s6113 = scalar_lea.vmem [#allocation22], 512
    %v6114 = vld [vmem:[%s6113] sm:$0xff]
    %v6115 = vld [vmem:[%s6113 + $0x8] sm:$0xff]
    %v6116 = vld [vmem:[%s6113 + $0x10] sm:$0xff]
    %v6117 = vld [vmem:[%s6113 + $0x18] sm:$0xff]
    %v6118 = vld [vmem:[%s6113 + $0x20] sm:$0xff]
    %v6119 = vld [vmem:[%s6113 + $0x28] sm:$0xff]
    %v6120 = vld [vmem:[%s6113 + $0x30] sm:$0xff]
    %v6121 = vld [vmem:[%s6113 + $0x38] sm:$0xff]
    %v6122 = vld [vmem:[%s6113 + $0x40] sm:$0xff]
    %v6123 = vld [vmem:[%s6113 + $0x48] sm:$0xff]
    %v6124 = vld [vmem:[%s6113 + $0x50] sm:$0xff]
    %v6125 = vld [vmem:[%s6113 + $0x58] sm:$0xff]
    %v6126 = vld [vmem:[%s6113 + $0x60] sm:$0xff]
    %v6127 = vld [vmem:[%s6113 + $0x68] sm:$0xff]
    %v6128 = vld [vmem:[%s6113 + $0x70] sm:$0xff]
    %v6129 = vld [vmem:[%s6113 + $0x78] sm:$0xff]
    %v6130 = vld [vmem:[%s6113 + $0x80] sm:$0xff]
    %v6131 = vld [vmem:[%s6113 + $0x88] sm:$0xff]
    %v6132 = vld [vmem:[%s6113 + $0x90] sm:$0xff]
    %v6133 = vld [vmem:[%s6113 + $0x98] sm:$0xff]
    %v6134 = vld [vmem:[%s6113 + $0xa0] sm:$0xff]
    %v6135 = vld [vmem:[%s6113 + $0xa8] sm:$0xff]
    %v6136 = vld [vmem:[%s6113 + $0xb0] sm:$0xff]
    %v6137 = vld [vmem:[%s6113 + $0xb8] sm:$0xff]
    %v6138 = vld [vmem:[%s6113 + $0xc0] sm:$0xff]
    %v6139 = vld [vmem:[%s6113 + $0xc8] sm:$0xff]
    %v6140 = vld [vmem:[%s6113 + $0xd0] sm:$0xff]
    %v6141 = vld [vmem:[%s6113 + $0xd8] sm:$0xff]
    %v6142 = vld [vmem:[%s6113 + $0xe0] sm:$0xff]
    %v6143 = vld [vmem:[%s6113 + $0xe8] sm:$0xff]
    %v6144 = vld [vmem:[%s6113 + $0xf0] sm:$0xff]
    %v6145 = vld [vmem:[%s6113 + $0xf8] sm:$0xff]
    %v6146 = vld [vmem:[%s6113 + $0x100] sm:$0xff]
    %v6147 = vld [vmem:[%s6113 + $0x108] sm:$0xff]
    %v6148 = vld [vmem:[%s6113 + $0x110] sm:$0xff]
    %v6149 = vld [vmem:[%s6113 + $0x118] sm:$0xff]
    %v6150 = vld [vmem:[%s6113 + $0x120] sm:$0xff]
    %v6151 = vld [vmem:[%s6113 + $0x128] sm:$0xff]
    %v6152 = vld [vmem:[%s6113 + $0x130] sm:$0xff]
    %v6153 = vld [vmem:[%s6113 + $0x138] sm:$0xff]
    %v6154 = vld [vmem:[%s6113 + $0x140] sm:$0xff]
    %v6155 = vld [vmem:[%s6113 + $0x148] sm:$0xff]
    %v6156 = vld [vmem:[%s6113 + $0x150] sm:$0xff]
    %v6157 = vld [vmem:[%s6113 + $0x158] sm:$0xff]
    %v6158 = vld [vmem:[%s6113 + $0x160] sm:$0xff]
    %v6159 = vld [vmem:[%s6113 + $0x168] sm:$0xff]
    %v6160 = vld [vmem:[%s6113 + $0x170] sm:$0xff]
    %v6161 = vld [vmem:[%s6113 + $0x178] sm:$0xff]
    %v6162 = vld [vmem:[%s6113 + $0x180] sm:$0xff]
    %v6163 = vld [vmem:[%s6113 + $0x188] sm:$0xff]
    %v6164 = vld [vmem:[%s6113 + $0x190] sm:$0xff]
    %v6165 = vld [vmem:[%s6113 + $0x198] sm:$0xff]
    %v6166 = vld [vmem:[%s6113 + $0x1a0] sm:$0xff]
    %v6167 = vld [vmem:[%s6113 + $0x1a8] sm:$0xff]
    %v6168 = vld [vmem:[%s6113 + $0x1b0] sm:$0xff]
    %v6169 = vld [vmem:[%s6113 + $0x1b8] sm:$0xff]
    %v6170 = vld [vmem:[%s6113 + $0x1c0] sm:$0xff]
    %v6171 = vld [vmem:[%s6113 + $0x1c8] sm:$0xff]
    %v6172 = vld [vmem:[%s6113 + $0x1d0] sm:$0xff]
    %v6173 = vld [vmem:[%s6113 + $0x1d8] sm:$0xff]
    %v6174 = vld [vmem:[%s6113 + $0x1e0] sm:$0xff]
    %v6175 = vld [vmem:[%s6113 + $0x1e8] sm:$0xff]
    %v6176 = vld [vmem:[%s6113 + $0x1f0] sm:$0xff]
    %v6177 = vld [vmem:[%s6113 + $0x1f8] sm:$0xff]
    %6178 = vmatprep.subr.mxu0 %v6115
    %6179 = vmatpush1.msra.mxu0 %v6114
    %6180 = vmatprep.subr.mxu0 %v6117
    %6181 = vmatpush1.msra.mxu0 %v6116
    %6182 = vmatprep.subr.mxu0 %v6119
    %6183 = vmatpush1.msra.mxu0 %v6118
    %6184 = vmatprep.subr.mxu0 %v6121
    %6185 = vmatpush1.msra.mxu0 %v6120
    %6186 = vmatprep.subr.mxu0 %v6123
    %6187 = vmatpush1.msra.mxu0 %v6122
    %6188 = vmatprep.subr.mxu0 %v6125
    %6189 = vmatpush1.msra.mxu0 %v6124
    %6190 = vmatprep.subr.mxu0 %v6127
    %6191 = vmatpush1.msra.mxu0 %v6126
    %6192 = vmatprep.subr.mxu0 %v6129
    %6193 = vmatpush1.msra.mxu0 %v6128
    %6194 = vmatprep.subr.mxu0 %v6131
    %6195 = vmatpush1.msra.mxu0 %v6130
    %6196 = vmatprep.subr.mxu0 %v6133
    %6197 = vmatpush1.msra.mxu0 %v6132
    %6198 = vmatprep.subr.mxu0 %v6135
    %6199 = vmatpush1.msra.mxu0 %v6134
    %6200 = vmatprep.subr.mxu0 %v6137
    %6201 = vmatpush1.msra.mxu0 %v6136
    %6202 = vmatprep.subr.mxu0 %v6139
    %6203 = vmatpush1.msra.mxu0 %v6138
    %6204 = vmatprep.subr.mxu0 %v6141
    %6205 = vmatpush1.msra.mxu0 %v6140
    %6206 = vmatprep.subr.mxu0 %v6143
    %6207 = vmatpush1.msra.mxu0 %v6142
    %6208 = vmatprep.subr.mxu0 %v6145
    %6209 = vmatpush1.msra.mxu0 %v6144
    %6210 = vmatprep.subr.mxu0 %v6147
    %6211 = vmatpush1.msra.mxu0 %v6146
    %6212 = vmatprep.subr.mxu0 %v6149
    %6213 = vmatpush1.msra.mxu0 %v6148
    %6214 = vmatprep.subr.mxu0 %v6151
    %6215 = vmatpush1.msra.mxu0 %v6150
    %6216 = vmatprep.subr.mxu0 %v6153
    %6217 = vmatpush1.msra.mxu0 %v6152
    %6218 = vmatprep.subr.mxu0 %v6155
    %6219 = vmatpush1.msra.mxu0 %v6154
    %6220 = vmatprep.subr.mxu0 %v6157
    %6221 = vmatpush1.msra.mxu0 %v6156
    %6222 = vmatprep.subr.mxu0 %v6159
    %6223 = vmatpush1.msra.mxu0 %v6158
    %6224 = vmatprep.subr.mxu0 %v6161
    %6225 = vmatpush1.msra.mxu0 %v6160
    %6226 = vmatprep.subr.mxu0 %v6163
    %6227 = vmatpush1.msra.mxu0 %v6162
    %6228 = vmatprep.subr.mxu0 %v6165
    %6229 = vmatpush1.msra.mxu0 %v6164
    %6230 = vmatprep.subr.mxu0 %v6167
    %6231 = vmatpush1.msra.mxu0 %v6166
    %6232 = vmatprep.subr.mxu0 %v6169
    %6233 = vmatpush1.msra.mxu0 %v6168
    %6234 = vmatprep.subr.mxu0 %v6171
    %6235 = vmatpush1.msra.mxu0 %v6170
    %6236 = vmatprep.subr.mxu0 %v6173
    %6237 = vmatpush1.msra.mxu0 %v6172
    %6238 = vmatprep.subr.mxu0 %v6175
    %6239 = vmatpush1.msra.mxu0 %v6174
    %6240 = vmatprep.subr.mxu0 %v6177
    %6241 = vmatpush1.msra.mxu0 %v6176
    %6242 = vmatprep.mubr.f32.mxu0 %v2879
    %6243 = vmatmul.mubr.f32.gmra.mrb[0].mxu0 %v2878
    %v6244 = vpop.f32.mrb[0].mxu0
    %v6245 = vadd.f32 0.0, %v6244
    %v6246 = vpop.f32.mrb[0].mxu0
    %v6247 = vadd.f32 0.0, %v6246
    %6248 = vmatprep.mubr.f32.mxu0 %v2881
    %6249 = vmatmul.mubr.f32.gmra.mrb[0].mxu0 %v2880
    %v6250 = vpop.f32.mrb[0].mxu0
    %v6251 = vadd.f32 0.0, %v6250
    %v6252 = vpop.f32.mrb[0].mxu0
    %v6253 = vadd.f32 0.0, %v6252
    %6254 = vdwg.mxu0
    %v6256 = vsel %vm3168, %v6111, 0
    %v6259 = vsel %vm3168, %v6112, 0
    %6261 = vmatprep.subr.mxu0 %v6247
    %6262 = vmatpush1.msra.mxu0 %v6245
    %6263 = vmatprep.subr.mxu0 %v6253
    %6264 = vmatpush1.msra.mxu0 %v6251
    %6265 = vmatprep.subr.mxu0 0.0
    %6266 = vmatpush1.msra.mxu0 0.0
    %6267 = vmatprep.subr.mxu0 0.0
    %6268 = vmatpush1.msra.mxu0 0.0
    %6269 = vmatprep.subr.mxu0 0.0
    %6270 = vmatpush1.msra.mxu0 0.0
    %6271 = vmatprep.subr.mxu0 0.0
    %6272 = vmatpush1.msra.mxu0 0.0
    %6273 = vmatprep.subr.mxu0 0.0
    %6274 = vmatpush1.msra.mxu0 0.0
    %6275 = vmatprep.subr.mxu0 0.0
    %6276 = vmatpush1.msra.mxu0 0.0
    %6277 = vmatprep.subr.mxu0 0.0
    %6278 = vmatpush1.msra.mxu0 0.0
    %6279 = vmatprep.subr.mxu0 0.0
    %6280 = vmatpush1.msra.mxu0 0.0
    %6281 = vmatprep.subr.mxu0 0.0
    %6282 = vmatpush1.msra.mxu0 0.0
    %6283 = vmatprep.subr.mxu0 0.0
    %6284 = vmatpush1.msra.mxu0 0.0
    %6285 = vmatprep.subr.mxu0 0.0
    %6286 = vmatpush1.msra.mxu0 0.0
    %6287 = vmatprep.subr.mxu0 0.0
    %6288 = vmatpush1.msra.mxu0 0.0
    %6289 = vmatprep.subr.mxu0 0.0
    %6290 = vmatpush1.msra.mxu0 0.0
    %6291 = vmatprep.subr.mxu0 0.0
    %6292 = vmatpush1.msra.mxu0 0.0
    %6293 = vmatprep.subr.mxu0 0.0
    %6294 = vmatpush1.msra.mxu0 0.0
    %6295 = vmatprep.subr.mxu0 0.0
    %6296 = vmatpush1.msra.mxu0 0.0
    %6297 = vmatprep.subr.mxu0 0.0
    %6298 = vmatpush1.msra.mxu0 0.0
    %6299 = vmatprep.subr.mxu0 0.0
    %6300 = vmatpush1.msra.mxu0 0.0
    %6301 = vmatprep.subr.mxu0 0.0
    %6302 = vmatpush1.msra.mxu0 0.0
    %6303 = vmatprep.subr.mxu0 0.0
    %6304 = vmatpush1.msra.mxu0 0.0
    %6305 = vmatprep.subr.mxu0 0.0
    %6306 = vmatpush1.msra.mxu0 0.0
    %6307 = vmatprep.subr.mxu0 0.0
    %6308 = vmatpush1.msra.mxu0 0.0
    %6309 = vmatprep.subr.mxu0 0.0
    %6310 = vmatpush1.msra.mxu0 0.0
    %6311 = vmatprep.subr.mxu0 0.0
    %6312 = vmatpush1.msra.mxu0 0.0
    %6313 = vmatprep.subr.mxu0 0.0
    %6314 = vmatpush1.msra.mxu0 0.0
    %6315 = vmatprep.subr.mxu0 0.0
    %6316 = vmatpush1.msra.mxu0 0.0
    %6317 = vmatprep.subr.mxu0 0.0
    %6318 = vmatpush1.msra.mxu0 0.0
    %6319 = vmatprep.subr.mxu0 0.0
    %6320 = vmatpush1.msra.mxu0 0.0
    %6321 = vmatprep.subr.mxu0 0.0
    %6322 = vmatpush1.msra.mxu0 0.0
    %6323 = vmatprep.subr.mxu0 0.0
    %6324 = vmatpush1.msra.mxu0 0.0
    %6325 = vmatprep.mubr.f32.mxu0 0.0
    %6326 = vmatmul.mubr.f32.gmra.mrb[0].mxu0 %v6256
    %v6327 = vpop.f32.mrb[0].mxu0
    %v6328 = vadd.f32 0.0, %v6327
    %v6329 = vpop.f32.mrb[0].mxu0
    %v6330 = vadd.f32 0.0, %v6329
    %6331 = vmatprep.mubr.f32.mxu0 0.0
    %6332 = vmatmul.mubr.f32.gmra.mrb[0].mxu0 %v6259
    %v6333 = vpop.f32.mrb[0].mxu0
    %v6334 = vadd.f32 0.0, %v6333
    %v6335 = vpop.f32.mrb[0].mxu0
    %v6336 = vadd.f32 0.0, %v6335
    %6337 = vdwg.mxu0
    %v6338 = vadd.f32 %v6106, %v6328
    %v6339 = vadd.f32 %v6107, %v6330
    %v6340 = vadd.f32 %v6108, %v6334
    %v6341 = vadd.f32 %v6109, %v6336
    %s6342 = scalar_lea.vmem [#allocation20], 32
    %v6343 = vld [vmem:[%s6342] sm:$0xff]
    %v6344 = vld [vmem:[%s6342 + $0x8] sm:$0xff]
    %s6345 = scalar_lea.vmem [#allocation22], 1024
    %v6346 = vld [vmem:[%s6345] sm:$0xff]
    %v6347 = vld [vmem:[%s6345 + $0x8] sm:$0xff]
    %v6348 = vld [vmem:[%s6345 + $0x10] sm:$0xff]
    %v6349 = vld [vmem:[%s6345 + $0x18] sm:$0xff]
    %v6350 = vld [vmem:[%s6345 + $0x20] sm:$0xff]
    %v6351 = vld [vmem:[%s6345 + $0x28] sm:$0xff]
    %v6352 = vld [vmem:[%s6345 + $0x30] sm:$0xff]
    %v6353 = vld [vmem:[%s6345 + $0x38] sm:$0xff]
    %v6354 = vld [vmem:[%s6345 + $0x40] sm:$0xff]
    %v6355 = vld [vmem:[%s6345 + $0x48] sm:$0xff]
    %v6356 = vld [vmem:[%s6345 + $0x50] sm:$0xff]
    %v6357 = vld [vmem:[%s6345 + $0x58] sm:$0xff]
    %v6358 = vld [vmem:[%s6345 + $0x60] sm:$0xff]
    %v6359 = vld [vmem:[%s6345 + $0x68] sm:$0xff]
    %v6360 = vld [vmem:[%s6345 + $0x70] sm:$0xff]
    %v6361 = vld [vmem:[%s6345 + $0x78] sm:$0xff]
    %v6362 = vld [vmem:[%s6345 + $0x80] sm:$0xff]
    %v6363 = vld [vmem:[%s6345 + $0x88] sm:$0xff]
    %v6364 = vld [vmem:[%s6345 + $0x90] sm:$0xff]
    %v6365 = vld [vmem:[%s6345 + $0x98] sm:$0xff]
    %v6366 = vld [vmem:[%s6345 + $0xa0] sm:$0xff]
    %v6367 = vld [vmem:[%s6345 + $0xa8] sm:$0xff]
    %v6368 = vld [vmem:[%s6345 + $0xb0] sm:$0xff]
    %v6369 = vld [vmem:[%s6345 + $0xb8] sm:$0xff]
    %v6370 = vld [vmem:[%s6345 + $0xc0] sm:$0xff]
    %v6371 = vld [vmem:[%s6345 + $0xc8] sm:$0xff]
    %v6372 = vld [vmem:[%s6345 + $0xd0] sm:$0xff]
    %v6373 = vld [vmem:[%s6345 + $0xd8] sm:$0xff]
    %v6374 = vld [vmem:[%s6345 + $0xe0] sm:$0xff]
    %v6375 = vld [vmem:[%s6345 + $0xe8] sm:$0xff]
    %v6376 = vld [vmem:[%s6345 + $0xf0] sm:$0xff]
    %v6377 = vld [vmem:[%s6345 + $0xf8] sm:$0xff]
    %v6378 = vld [vmem:[%s6345 + $0x100] sm:$0xff]
    %v6379 = vld [vmem:[%s6345 + $0x108] sm:$0xff]
    %v6380 = vld [vmem:[%s6345 + $0x110] sm:$0xff]
    %v6381 = vld [vmem:[%s6345 + $0x118] sm:$0xff]
    %v6382 = vld [vmem:[%s6345 + $0x120] sm:$0xff]
    %v6383 = vld [vmem:[%s6345 + $0x128] sm:$0xff]
    %v6384 = vld [vmem:[%s6345 + $0x130] sm:$0xff]
    %v6385 = vld [vmem:[%s6345 + $0x138] sm:$0xff]
    %v6386 = vld [vmem:[%s6345 + $0x140] sm:$0xff]
    %v6387 = vld [vmem:[%s6345 + $0x148] sm:$0xff]
    %v6388 = vld [vmem:[%s6345 + $0x150] sm:$0xff]
    %v6389 = vld [vmem:[%s6345 + $0x158] sm:$0xff]
    %v6390 = vld [vmem:[%s6345 + $0x160] sm:$0xff]
    %v6391 = vld [vmem:[%s6345 + $0x168] sm:$0xff]
    %v6392 = vld [vmem:[%s6345 + $0x170] sm:$0xff]
    %v6393 = vld [vmem:[%s6345 + $0x178] sm:$0xff]
    %v6394 = vld [vmem:[%s6345 + $0x180] sm:$0xff]
    %v6395 = vld [vmem:[%s6345 + $0x188] sm:$0xff]
    %v6396 = vld [vmem:[%s6345 + $0x190] sm:$0xff]
    %v6397 = vld [vmem:[%s6345 + $0x198] sm:$0xff]
    %v6398 = vld [vmem:[%s6345 + $0x1a0] sm:$0xff]
    %v6399 = vld [vmem:[%s6345 + $0x1a8] sm:$0xff]
    %v6400 = vld [vmem:[%s6345 + $0x1b0] sm:$0xff]
    %v6401 = vld [vmem:[%s6345 + $0x1b8] sm:$0xff]
    %v6402 = vld [vmem:[%s6345 + $0x1c0] sm:$0xff]
    %v6403 = vld [vmem:[%s6345 + $0x1c8] sm:$0xff]
    %v6404 = vld [vmem:[%s6345 + $0x1d0] sm:$0xff]
    %v6405 = vld [vmem:[%s6345 + $0x1d8] sm:$0xff]
    %v6406 = vld [vmem:[%s6345 + $0x1e0] sm:$0xff]
    %v6407 = vld [vmem:[%s6345 + $0x1e8] sm:$0xff]
    %v6408 = vld [vmem:[%s6345 + $0x1f0] sm:$0xff]
    %v6409 = vld [vmem:[%s6345 + $0x1f8] sm:$0xff]
    %6410 = vmatprep.subr.mxu0 %v6347
    %6411 = vmatpush1.msra.mxu0 %v6346
    %6412 = vmatprep.subr.mxu0 %v6349
    %6413 = vmatpush1.msra.mxu0 %v6348
    %6414 = vmatprep.subr.mxu0 %v6351
    %6415 = vmatpush1.msra.mxu0 %v6350
    %6416 = vmatprep.subr.mxu0 %v6353
    %6417 = vmatpush1.msra.mxu0 %v6352
    %6418 = vmatprep.subr.mxu0 %v6355
    %6419 = vmatpush1.msra.mxu0 %v6354
    %6420 = vmatprep.subr.mxu0 %v6357
    %6421 = vmatpush1.msra.mxu0 %v6356
    %6422 = vmatprep.subr.mxu0 %v6359
    %6423 = vmatpush1.msra.mxu0 %v6358
    %6424 = vmatprep.subr.mxu0 %v6361
    %6425 = vmatpush1.msra.mxu0 %v6360
    %6426 = vmatprep.subr.mxu0 %v6363
    %6427 = vmatpush1.msra.mxu0 %v6362
    %6428 = vmatprep.subr.mxu0 %v6365
    %6429 = vmatpush1.msra.mxu0 %v6364
    %6430 = vmatprep.subr.mxu0 %v6367
    %6431 = vmatpush1.msra.mxu0 %v6366
    %6432 = vmatprep.subr.mxu0 %v6369
    %6433 = vmatpush1.msra.mxu0 %v6368
    %6434 = vmatprep.subr.mxu0 %v6371
    %6435 = vmatpush1.msra.mxu0 %v6370
    %6436 = vmatprep.subr.mxu0 %v6373
    %6437 = vmatpush1.msra.mxu0 %v6372
    %6438 = vmatprep.subr.mxu0 %v6375
    %6439 = vmatpush1.msra.mxu0 %v6374
    %6440 = vmatprep.subr.mxu0 %v6377
    %6441 = vmatpush1.msra.mxu0 %v6376
    %6442 = vmatprep.subr.mxu0 %v6379
    %6443 = vmatpush1.msra.mxu0 %v6378
    %6444 = vmatprep.subr.mxu0 %v6381
    %6445 = vmatpush1.msra.mxu0 %v6380
    %6446 = vmatprep.subr.mxu0 %v6383
    %6447 = vmatpush1.msra.mxu0 %v6382
    %6448 = vmatprep.subr.mxu0 %v6385
    %6449 = vmatpush1.msra.mxu0 %v6384
    %6450 = vmatprep.subr.mxu0 %v6387
    %6451 = vmatpush1.msra.mxu0 %v6386
    %6452 = vmatprep.subr.mxu0 %v6389
    %6453 = vmatpush1.msra.mxu0 %v6388
    %6454 = vmatprep.subr.mxu0 %v6391
    %6455 = vmatpush1.msra.mxu0 %v6390
    %6456 = vmatprep.subr.mxu0 %v6393
    %6457 = vmatpush1.msra.mxu0 %v6392
    %6458 = vmatprep.subr.mxu0 %v6395
    %6459 = vmatpush1.msra.mxu0 %v6394
    %6460 = vmatprep.subr.mxu0 %v6397
    %6461 = vmatpush1.msra.mxu0 %v6396
    %6462 = vmatprep.subr.mxu0 %v6399
    %6463 = vmatpush1.msra.mxu0 %v6398
    %6464 = vmatprep.subr.mxu0 %v6401
    %6465 = vmatpush1.msra.mxu0 %v6400
    %6466 = vmatprep.subr.mxu0 %v6403
    %6467 = vmatpush1.msra.mxu0 %v6402
    %6468 = vmatprep.subr.mxu0 %v6405
    %6469 = vmatpush1.msra.mxu0 %v6404
    %6470 = vmatprep.subr.mxu0 %v6407
    %6471 = vmatpush1.msra.mxu0 %v6406
    %6472 = vmatprep.subr.mxu0 %v6409
    %6473 = vmatpush1.msra.mxu0 %v6408
    %6474 = vmatprep.mubr.f32.mxu0 %v2879
    %6475 = vmatmul.mubr.f32.gmra.mrb[0].mxu0 %v2878
    %v6476 = vpop.f32.mrb[0].mxu0
    %v6477 = vadd.f32 0.0, %v6476
    %v6478 = vpop.f32.mrb[0].mxu0
    %v6479 = vadd.f32 0.0, %v6478
    %6480 = vmatprep.mubr.f32.mxu0 %v2881
    %6481 = vmatmul.mubr.f32.gmra.mrb[0].mxu0 %v2880
    %v6482 = vpop.f32.mrb[0].mxu0
    %v6483 = vadd.f32 0.0, %v6482
    %v6484 = vpop.f32.mrb[0].mxu0
    %v6485 = vadd.f32 0.0, %v6484
    %6486 = vdwg.mxu0
    %v6488 = vsel %vm3168, %v6343, 0
    %v6491 = vsel %vm3168, %v6344, 0
    %6493 = vmatprep.subr.mxu0 %v6479
    %6494 = vmatpush1.msra.mxu0 %v6477
    %6495 = vmatprep.subr.mxu0 %v6485
    %6496 = vmatpush1.msra.mxu0 %v6483
    %6497 = vmatprep.subr.mxu0 0.0
    %6498 = vmatpush1.msra.mxu0 0.0
    %6499 = vmatprep.subr.mxu0 0.0
    %6500 = vmatpush1.msra.mxu0 0.0
    %6501 = vmatprep.subr.mxu0 0.0
    %6502 = vmatpush1.msra.mxu0 0.0
    %6503 = vmatprep.subr.mxu0 0.0
    %6504 = vmatpush1.msra.mxu0 0.0
    %6505 = vmatprep.subr.mxu0 0.0
    %6506 = vmatpush1.msra.mxu0 0.0
    %6507 = vmatprep.subr.mxu0 0.0
    %6508 = vmatpush1.msra.mxu0 0.0
    %6509 = vmatprep.subr.mxu0 0.0
    %6510 = vmatpush1.msra.mxu0 0.0
    %6511 = vmatprep.subr.mxu0 0.0
    %6512 = vmatpush1.msra.mxu0 0.0
    %6513 = vmatprep.subr.mxu0 0.0
    %6514 = vmatpush1.msra.mxu0 0.0
    %6515 = vmatprep.subr.mxu0 0.0
    %6516 = vmatpush1.msra.mxu0 0.0
    %6517 = vmatprep.subr.mxu0 0.0
    %6518 = vmatpush1.msra.mxu0 0.0
    %6519 = vmatprep.subr.mxu0 0.0
    %6520 = vmatpush1.msra.mxu0 0.0
    %6521 = vmatprep.subr.mxu0 0.0
    %6522 = vmatpush1.msra.mxu0 0.0
    %6523 = vmatprep.subr.mxu0 0.0
    %6524 = vmatpush1.msra.mxu0 0.0
    %6525 = vmatprep.subr.mxu0 0.0
    %6526 = vmatpush1.msra.mxu0 0.0
    %6527 = vmatprep.subr.mxu0 0.0
    %6528 = vmatpush1.msra.mxu0 0.0
    %6529 = vmatprep.subr.mxu0 0.0
    %6530 = vmatpush1.msra.mxu0 0.0
    %6531 = vmatprep.subr.mxu0 0.0
    %6532 = vmatpush1.msra.mxu0 0.0
    %6533 = vmatprep.subr.mxu0 0.0
    %6534 = vmatpush1.msra.mxu0 0.0
    %6535 = vmatprep.subr.mxu0 0.0
    %6536 = vmatpush1.msra.mxu0 0.0
    %6537 = vmatprep.subr.mxu0 0.0
    %6538 = vmatpush1.msra.mxu0 0.0
    %6539 = vmatprep.subr.mxu0 0.0
    %6540 = vmatpush1.msra.mxu0 0.0
    %6541 = vmatprep.subr.mxu0 0.0
    %6542 = vmatpush1.msra.mxu0 0.0
    %6543 = vmatprep.subr.mxu0 0.0
    %6544 = vmatpush1.msra.mxu0 0.0
    %6545 = vmatprep.subr.mxu0 0.0
    %6546 = vmatpush1.msra.mxu0 0.0
    %6547 = vmatprep.subr.mxu0 0.0
    %6548 = vmatpush1.msra.mxu0 0.0
    %6549 = vmatprep.subr.mxu0 0.0
    %6550 = vmatpush1.msra.mxu0 0.0
    %6551 = vmatprep.subr.mxu0 0.0
    %6552 = vmatpush1.msra.mxu0 0.0
    %6553 = vmatprep.subr.mxu0 0.0
    %6554 = vmatpush1.msra.mxu0 0.0
    %6555 = vmatprep.subr.mxu0 0.0
    %6556 = vmatpush1.msra.mxu0 0.0
    %6557 = vmatprep.mubr.f32.mxu0 0.0
    %6558 = vmatmul.mubr.f32.gmra.mrb[0].mxu0 %v6488
    %v6559 = vpop.f32.mrb[0].mxu0
    %v6560 = vadd.f32 0.0, %v6559
    %v6561 = vpop.f32.mrb[0].mxu0
    %v6562 = vadd.f32 0.0, %v6561
    %6563 = vmatprep.mubr.f32.mxu0 0.0
    %6564 = vmatmul.mubr.f32.gmra.mrb[0].mxu0 %v6491
    %v6565 = vpop.f32.mrb[0].mxu0
    %v6566 = vadd.f32 0.0, %v6565
    %v6567 = vpop.f32.mrb[0].mxu0
    %v6568 = vadd.f32 0.0, %v6567
    %6569 = vdwg.mxu0
    %v6570 = vadd.f32 %v6338, %v6560
    %v6571 = vadd.f32 %v6339, %v6562
    %v6572 = vadd.f32 %v6340, %v6566
    %v6573 = vadd.f32 %v6341, %v6568
    %v6574 = vld [vmem:[#allocation28] sm:$0x1]
    %v6575 = vld [vmem:[#allocation25] sm:$0xff]
    %v6576 = vld [vmem:[#allocation26] sm:$0xff]
    %v6577 = vld [vmem:[#allocation26 + $0x8] sm:$0xff]
    %v6578 = vld [vmem:[#allocation26 + $0x10] sm:$0xff]
    %v6579 = vld [vmem:[#allocation26 + $0x18] sm:$0xff]
    %v6580 = vld [vmem:[#allocation26 + $0x20] sm:$0xff]
    %v6581 = vld [vmem:[#allocation26 + $0x28] sm:$0xff]
    %v6582 = vld [vmem:[#allocation26 + $0x30] sm:$0xff]
    %v6583 = vld [vmem:[#allocation26 + $0x38] sm:$0xff]
    %v6584 = vld [vmem:[#allocation26 + $0x40] sm:$0xff]
    %v6585 = vld [vmem:[#allocation26 + $0x48] sm:$0xff]
    %v6586 = vld [vmem:[#allocation26 + $0x50] sm:$0xff]
    %v6587 = vld [vmem:[#allocation26 + $0x58] sm:$0xff]
    %v6588 = vld [vmem:[#allocation26 + $0x60] sm:$0xff]
    %v6589 = vld [vmem:[#allocation26 + $0x68] sm:$0xff]
    %v6590 = vld [vmem:[#allocation26 + $0x70] sm:$0xff]
    %v6591 = vld [vmem:[#allocation26 + $0x78] sm:$0xff]
    %6592 = vmatprep.subr.mxu0 0.0
    %6593 = vmatpush1.msra.mxu0 %v6576
    %6594 = vmatprep.subr.mxu0 0.0
    %6595 = vmatpush1.msra.mxu0 %v6577
    %6596 = vmatprep.subr.mxu0 0.0
    %6597 = vmatpush1.msra.mxu0 %v6578
    %6598 = vmatprep.subr.mxu0 0.0
    %6599 = vmatpush1.msra.mxu0 %v6579
    %6600 = vmatprep.subr.mxu0 0.0
    %6601 = vmatpush1.msra.mxu0 %v6580
    %6602 = vmatprep.subr.mxu0 0.0
    %6603 = vmatpush1.msra.mxu0 %v6581
    %6604 = vmatprep.subr.mxu0 0.0
    %6605 = vmatpush1.msra.mxu0 %v6582
    %6606 = vmatprep.subr.mxu0 0.0
    %6607 = vmatpush1.msra.mxu0 %v6583
    %6608 = vmatprep.subr.mxu0 0.0
    %6609 = vmatpush1.msra.mxu0 %v6584
    %6610 = vmatprep.subr.mxu0 0.0
    %6611 = vmatpush1.msra.mxu0 %v6585
    %6612 = vmatprep.subr.mxu0 0.0
    %6613 = vmatpush1.msra.mxu0 %v6586
    %6614 = vmatprep.subr.mxu0 0.0
    %6615 = vmatpush1.msra.mxu0 %v6587
    %6616 = vmatprep.subr.mxu0 0.0
    %6617 = vmatpush1.msra.mxu0 %v6588
    %6618 = vmatprep.subr.mxu0 0.0
    %6619 = vmatpush1.msra.mxu0 %v6589
    %6620 = vmatprep.subr.mxu0 0.0
    %6621 = vmatpush1.msra.mxu0 %v6590
    %6622 = vmatprep.subr.mxu0 0.0
    %6623 = vmatpush1.msra.mxu0 %v6591
    %6624 = vmatprep.subr.mxu0 0.0
    %6625 = vmatpush1.msra.mxu0 0.0
    %6626 = vmatprep.subr.mxu0 0.0
    %6627 = vmatpush1.msra.mxu0 0.0
    %6628 = vmatprep.subr.mxu0 0.0
    %6629 = vmatpush1.msra.mxu0 0.0
    %6630 = vmatprep.subr.mxu0 0.0
    %6631 = vmatpush1.msra.mxu0 0.0
    %6632 = vmatprep.subr.mxu0 0.0
    %6633 = vmatpush1.msra.mxu0 0.0
    %6634 = vmatprep.subr.mxu0 0.0
    %6635 = vmatpush1.msra.mxu0 0.0
    %6636 = vmatprep.subr.mxu0 0.0
    %6637 = vmatpush1.msra.mxu0 0.0
    %6638 = vmatprep.subr.mxu0 0.0
    %6639 = vmatpush1.msra.mxu0 0.0
    %6640 = vmatprep.subr.mxu0 0.0
    %6641 = vmatpush1.msra.mxu0 0.0
    %6642 = vmatprep.subr.mxu0 0.0
    %6643 = vmatpush1.msra.mxu0 0.0
    %6644 = vmatprep.subr.mxu0 0.0
    %6645 = vmatpush1.msra.mxu0 0.0
    %6646 = vmatprep.subr.mxu0 0.0
    %6647 = vmatpush1.msra.mxu0 0.0
    %6648 = vmatprep.subr.mxu0 0.0
    %6649 = vmatpush1.msra.mxu0 0.0
    %6650 = vmatprep.subr.mxu0 0.0
    %6651 = vmatpush1.msra.mxu0 0.0
    %6652 = vmatprep.subr.mxu0 0.0
    %6653 = vmatpush1.msra.mxu0 0.0
    %6654 = vmatprep.subr.mxu0 0.0
    %6655 = vmatpush1.msra.mxu0 0.0
    %6656 = vmatprep.mubr.f32.mxu0 0.0
    %6657 = vmatmul.mubr.f32.gmra.mrb[0].mxu0 %v816
    %v6658 = vpop.f32.mrb[0].mxu0
    %v6659 = vadd.f32 0.0, %v6658
    %v6660 = vpop.f32.mrb[0].mxu0
    %6661 = vdwg.mxu0
    %v6663 = vsel %vm2794, %v6575, 0
    %6665 = vmatprep.subr.mxu0 0.0
    %6666 = vmatpush1.msra.mxu0 %v6659
    %6667 = vmatprep.subr.mxu0 0.0
    %6668 = vmatpush1.msra.mxu0 0.0
    %6669 = vmatprep.subr.mxu0 0.0
    %6670 = vmatpush1.msra.mxu0 0.0
    %6671 = vmatprep.subr.mxu0 0.0
    %6672 = vmatpush1.msra.mxu0 0.0
    %6673 = vmatprep.subr.mxu0 0.0
    %6674 = vmatpush1.msra.mxu0 0.0
    %6675 = vmatprep.subr.mxu0 0.0
    %6676 = vmatpush1.msra.mxu0 0.0
    %6677 = vmatprep.subr.mxu0 0.0
    %6678 = vmatpush1.msra.mxu0 0.0
    %6679 = vmatprep.subr.mxu0 0.0
    %6680 = vmatpush1.msra.mxu0 0.0
    %6681 = vmatprep.subr.mxu0 0.0
    %6682 = vmatpush1.msra.mxu0 0.0
    %6683 = vmatprep.subr.mxu0 0.0
    %6684 = vmatpush1.msra.mxu0 0.0
    %6685 = vmatprep.subr.mxu0 0.0
    %6686 = vmatpush1.msra.mxu0 0.0
    %6687 = vmatprep.subr.mxu0 0.0
    %6688 = vmatpush1.msra.mxu0 0.0
    %6689 = vmatprep.subr.mxu0 0.0
    %6690 = vmatpush1.msra.mxu0 0.0
    %6691 = vmatprep.subr.mxu0 0.0
    %6692 = vmatpush1.msra.mxu0 0.0
    %6693 = vmatprep.subr.mxu0 0.0
    %6694 = vmatpush1.msra.mxu0 0.0
    %6695 = vmatprep.subr.mxu0 0.0
    %6696 = vmatpush1.msra.mxu0 0.0
    %6697 = vmatprep.subr.mxu0 0.0
    %6698 = vmatpush1.msra.mxu0 0.0
    %6699 = vmatprep.subr.mxu0 0.0
    %6700 = vmatpush1.msra.mxu0 0.0
    %6701 = vmatprep.subr.mxu0 0.0
    %6702 = vmatpush1.msra.mxu0 0.0
    %6703 = vmatprep.subr.mxu0 0.0
    %6704 = vmatpush1.msra.mxu0 0.0
    %6705 = vmatprep.subr.mxu0 0.0
    %6706 = vmatpush1.msra.mxu0 0.0
    %6707 = vmatprep.subr.mxu0 0.0
    %6708 = vmatpush1.msra.mxu0 0.0
    %6709 = vmatprep.subr.mxu0 0.0
    %6710 = vmatpush1.msra.mxu0 0.0
    %6711 = vmatprep.subr.mxu0 0.0
    %6712 = vmatpush1.msra.mxu0 0.0
    %6713 = vmatprep.subr.mxu0 0.0
    %6714 = vmatpush1.msra.mxu0 0.0
    %6715 = vmatprep.subr.mxu0 0.0
    %6716 = vmatpush1.msra.mxu0 0.0
    %6717 = vmatprep.subr.mxu0 0.0
    %6718 = vmatpush1.msra.mxu0 0.0
    %6719 = vmatprep.subr.mxu0 0.0
    %6720 = vmatpush1.msra.mxu0 0.0
    %6721 = vmatprep.subr.mxu0 0.0
    %6722 = vmatpush1.msra.mxu0 0.0
    %6723 = vmatprep.subr.mxu0 0.0
    %6724 = vmatpush1.msra.mxu0 0.0
    %6725 = vmatprep.subr.mxu0 0.0
    %6726 = vmatpush1.msra.mxu0 0.0
    %6727 = vmatprep.subr.mxu0 0.0
    %6728 = vmatpush1.msra.mxu0 0.0
    %6729 = vmatprep.mubr.f32.mxu0 0.0
    %6730 = vmatmul.mubr.f32.gmra.mrb[0].mxu0 %v6663
    %v6731 = vpop.f32.mrb[0].mxu0
    %v6732 = vadd.f32 0.0, %v6731
    %v6733 = vpop.f32.mrb[0].mxu0
    %6734 = vdwg.mxu0
    %v6736 = vlaneseq
    %v6737 = vshrl.u32 %v6736, 7
    %v6738 = vsub.s32 0, %v6737
    %v6739 = vrot.slane %v6574, %v6738
    %v6741 = vadd.f32 %v6739, %v6732
    %s6742 = scalar_lea.vmem [#allocation25], 8
    %v6743 = vld [vmem:[%s6742] sm:$0xff]
    %s6744 = scalar_lea.vmem [#allocation26], 128
    %v6745 = vld [vmem:[%s6744] sm:$0xff]
    %v6746 = vld [vmem:[%s6744 + $0x8] sm:$0xff]
    %v6747 = vld [vmem:[%s6744 + $0x10] sm:$0xff]
    %v6748 = vld [vmem:[%s6744 + $0x18] sm:$0xff]
    %v6749 = vld [vmem:[%s6744 + $0x20] sm:$0xff]
    %v6750 = vld [vmem:[%s6744 + $0x28] sm:$0xff]
    %v6751 = vld [vmem:[%s6744 + $0x30] sm:$0xff]
    %v6752 = vld [vmem:[%s6744 + $0x38] sm:$0xff]
    %v6753 = vld [vmem:[%s6744 + $0x40] sm:$0xff]
    %v6754 = vld [vmem:[%s6744 + $0x48] sm:$0xff]
    %v6755 = vld [vmem:[%s6744 + $0x50] sm:$0xff]
    %v6756 = vld [vmem:[%s6744 + $0x58] sm:$0xff]
    %v6757 = vld [vmem:[%s6744 + $0x60] sm:$0xff]
    %v6758 = vld [vmem:[%s6744 + $0x68] sm:$0xff]
    %v6759 = vld [vmem:[%s6744 + $0x70] sm:$0xff]
    %v6760 = vld [vmem:[%s6744 + $0x78] sm:$0xff]
    %6761 = vmatprep.subr.mxu0 0.0
    %6762 = vmatpush1.msra.mxu0 %v6745
    %6763 = vmatprep.subr.mxu0 0.0
    %6764 = vmatpush1.msra.mxu0 %v6746
    %6765 = vmatprep.subr.mxu0 0.0
    %6766 = vmatpush1.msra.mxu0 %v6747
    %6767 = vmatprep.subr.mxu0 0.0
    %6768 = vmatpush1.msra.mxu0 %v6748
    %6769 = vmatprep.subr.mxu0 0.0
    %6770 = vmatpush1.msra.mxu0 %v6749
    %6771 = vmatprep.subr.mxu0 0.0
    %6772 = vmatpush1.msra.mxu0 %v6750
    %6773 = vmatprep.subr.mxu0 0.0
    %6774 = vmatpush1.msra.mxu0 %v6751
    %6775 = vmatprep.subr.mxu0 0.0
    %6776 = vmatpush1.msra.mxu0 %v6752
    %6777 = vmatprep.subr.mxu0 0.0
    %6778 = vmatpush1.msra.mxu0 %v6753
    %6779 = vmatprep.subr.mxu0 0.0
    %6780 = vmatpush1.msra.mxu0 %v6754
    %6781 = vmatprep.subr.mxu0 0.0
    %6782 = vmatpush1.msra.mxu0 %v6755
    %6783 = vmatprep.subr.mxu0 0.0
    %6784 = vmatpush1.msra.mxu0 %v6756
    %6785 = vmatprep.subr.mxu0 0.0
    %6786 = vmatpush1.msra.mxu0 %v6757
    %6787 = vmatprep.subr.mxu0 0.0
    %6788 = vmatpush1.msra.mxu0 %v6758
    %6789 = vmatprep.subr.mxu0 0.0
    %6790 = vmatpush1.msra.mxu0 %v6759
    %6791 = vmatprep.subr.mxu0 0.0
    %6792 = vmatpush1.msra.mxu0 %v6760
    %6793 = vmatprep.subr.mxu0 0.0
    %6794 = vmatpush1.msra.mxu0 0.0
    %6795 = vmatprep.subr.mxu0 0.0
    %6796 = vmatpush1.msra.mxu0 0.0
    %6797 = vmatprep.subr.mxu0 0.0
    %6798 = vmatpush1.msra.mxu0 0.0
    %6799 = vmatprep.subr.mxu0 0.0
    %6800 = vmatpush1.msra.mxu0 0.0
    %6801 = vmatprep.subr.mxu0 0.0
    %6802 = vmatpush1.msra.mxu0 0.0
    %6803 = vmatprep.subr.mxu0 0.0
    %6804 = vmatpush1.msra.mxu0 0.0
    %6805 = vmatprep.subr.mxu0 0.0
    %6806 = vmatpush1.msra.mxu0 0.0
    %6807 = vmatprep.subr.mxu0 0.0
    %6808 = vmatpush1.msra.mxu0 0.0
    %6809 = vmatprep.subr.mxu0 0.0
    %6810 = vmatpush1.msra.mxu0 0.0
    %6811 = vmatprep.subr.mxu0 0.0
    %6812 = vmatpush1.msra.mxu0 0.0
    %6813 = vmatprep.subr.mxu0 0.0
    %6814 = vmatpush1.msra.mxu0 0.0
    %6815 = vmatprep.subr.mxu0 0.0
    %6816 = vmatpush1.msra.mxu0 0.0
    %6817 = vmatprep.subr.mxu0 0.0
    %6818 = vmatpush1.msra.mxu0 0.0
    %6819 = vmatprep.subr.mxu0 0.0
    %6820 = vmatpush1.msra.mxu0 0.0
    %6821 = vmatprep.subr.mxu0 0.0
    %6822 = vmatpush1.msra.mxu0 0.0
    %6823 = vmatprep.subr.mxu0 0.0
    %6824 = vmatpush1.msra.mxu0 0.0
    %6825 = vmatprep.mubr.f32.mxu0 0.0
    %6826 = vmatmul.mubr.f32.gmra.mrb[0].mxu0 %v816
    %v6827 = vpop.f32.mrb[0].mxu0
    %v6828 = vadd.f32 0.0, %v6827
    %v6829 = vpop.f32.mrb[0].mxu0
    %6830 = vdwg.mxu0
    %v6832 = vsel %vm2794, %v6743, 0
    %6834 = vmatprep.subr.mxu0 0.0
    %6835 = vmatpush1.msra.mxu0 %v6828
    %6836 = vmatprep.subr.mxu0 0.0
    %6837 = vmatpush1.msra.mxu0 0.0
    %6838 = vmatprep.subr.mxu0 0.0
    %6839 = vmatpush1.msra.mxu0 0.0
    %6840 = vmatprep.subr.mxu0 0.0
    %6841 = vmatpush1.msra.mxu0 0.0
    %6842 = vmatprep.subr.mxu0 0.0
    %6843 = vmatpush1.msra.mxu0 0.0
    %6844 = vmatprep.subr.mxu0 0.0
    %6845 = vmatpush1.msra.mxu0 0.0
    %6846 = vmatprep.subr.mxu0 0.0
    %6847 = vmatpush1.msra.mxu0 0.0
    %6848 = vmatprep.subr.mxu0 0.0
    %6849 = vmatpush1.msra.mxu0 0.0
    %6850 = vmatprep.subr.mxu0 0.0
    %6851 = vmatpush1.msra.mxu0 0.0
    %6852 = vmatprep.subr.mxu0 0.0
    %6853 = vmatpush1.msra.mxu0 0.0
    %6854 = vmatprep.subr.mxu0 0.0
    %6855 = vmatpush1.msra.mxu0 0.0
    %6856 = vmatprep.subr.mxu0 0.0
    %6857 = vmatpush1.msra.mxu0 0.0
    %6858 = vmatprep.subr.mxu0 0.0
    %6859 = vmatpush1.msra.mxu0 0.0
    %6860 = vmatprep.subr.mxu0 0.0
    %6861 = vmatpush1.msra.mxu0 0.0
    %6862 = vmatprep.subr.mxu0 0.0
    %6863 = vmatpush1.msra.mxu0 0.0
    %6864 = vmatprep.subr.mxu0 0.0
    %6865 = vmatpush1.msra.mxu0 0.0
    %6866 = vmatprep.subr.mxu0 0.0
    %6867 = vmatpush1.msra.mxu0 0.0
    %6868 = vmatprep.subr.mxu0 0.0
    %6869 = vmatpush1.msra.mxu0 0.0
    %6870 = vmatprep.subr.mxu0 0.0
    %6871 = vmatpush1.msra.mxu0 0.0
    %6872 = vmatprep.subr.mxu0 0.0
    %6873 = vmatpush1.msra.mxu0 0.0
    %6874 = vmatprep.subr.mxu0 0.0
    %6875 = vmatpush1.msra.mxu0 0.0
    %6876 = vmatprep.subr.mxu0 0.0
    %6877 = vmatpush1.msra.mxu0 0.0
    %6878 = vmatprep.subr.mxu0 0.0
    %6879 = vmatpush1.msra.mxu0 0.0
    %6880 = vmatprep.subr.mxu0 0.0
    %6881 = vmatpush1.msra.mxu0 0.0
    %6882 = vmatprep.subr.mxu0 0.0
    %6883 = vmatpush1.msra.mxu0 0.0
    %6884 = vmatprep.subr.mxu0 0.0
    %6885 = vmatpush1.msra.mxu0 0.0
    %6886 = vmatprep.subr.mxu0 0.0
    %6887 = vmatpush1.msra.mxu0 0.0
    %6888 = vmatprep.subr.mxu0 0.0
    %6889 = vmatpush1.msra.mxu0 0.0
    %6890 = vmatprep.subr.mxu0 0.0
    %6891 = vmatpush1.msra.mxu0 0.0
    %6892 = vmatprep.subr.mxu0 0.0
    %6893 = vmatpush1.msra.mxu0 0.0
    %6894 = vmatprep.subr.mxu0 0.0
    %6895 = vmatpush1.msra.mxu0 0.0
    %6896 = vmatprep.subr.mxu0 0.0
    %6897 = vmatpush1.msra.mxu0 0.0
    %6898 = vmatprep.mubr.f32.mxu0 0.0
    %6899 = vmatmul.mubr.f32.gmra.mrb[0].mxu0 %v6832
    %v6900 = vpop.f32.mrb[0].mxu0
    %v6901 = vadd.f32 0.0, %v6900
    %v6902 = vpop.f32.mrb[0].mxu0
    %6903 = vdwg.mxu0
    %v6904 = vadd.f32 %v6741, %v6901
    %s6905 = scalar_lea.vmem [#allocation25], 16
    %v6906 = vld [vmem:[%s6905] sm:$0xff]
    %s6907 = scalar_lea.vmem [#allocation26], 256
    %v6908 = vld [vmem:[%s6907] sm:$0xff]
    %v6909 = vld [vmem:[%s6907 + $0x8] sm:$0xff]
    %v6910 = vld [vmem:[%s6907 + $0x10] sm:$0xff]
    %v6911 = vld [vmem:[%s6907 + $0x18] sm:$0xff]
    %v6912 = vld [vmem:[%s6907 + $0x20] sm:$0xff]
    %v6913 = vld [vmem:[%s6907 + $0x28] sm:$0xff]
    %v6914 = vld [vmem:[%s6907 + $0x30] sm:$0xff]
    %v6915 = vld [vmem:[%s6907 + $0x38] sm:$0xff]
    %v6916 = vld [vmem:[%s6907 + $0x40] sm:$0xff]
    %v6917 = vld [vmem:[%s6907 + $0x48] sm:$0xff]
    %v6918 = vld [vmem:[%s6907 + $0x50] sm:$0xff]
    %v6919 = vld [vmem:[%s6907 + $0x58] sm:$0xff]
    %v6920 = vld [vmem:[%s6907 + $0x60] sm:$0xff]
    %v6921 = vld [vmem:[%s6907 + $0x68] sm:$0xff]
    %v6922 = vld [vmem:[%s6907 + $0x70] sm:$0xff]
    %v6923 = vld [vmem:[%s6907 + $0x78] sm:$0xff]
    %6924 = vmatprep.subr.mxu0 0.0
    %6925 = vmatpush1.msra.mxu0 %v6908
    %6926 = vmatprep.subr.mxu0 0.0
    %6927 = vmatpush1.msra.mxu0 %v6909
    %6928 = vmatprep.subr.mxu0 0.0
    %6929 = vmatpush1.msra.mxu0 %v6910
    %6930 = vmatprep.subr.mxu0 0.0
    %6931 = vmatpush1.msra.mxu0 %v6911
    %6932 = vmatprep.subr.mxu0 0.0
    %6933 = vmatpush1.msra.mxu0 %v6912
    %6934 = vmatprep.subr.mxu0 0.0
    %6935 = vmatpush1.msra.mxu0 %v6913
    %6936 = vmatprep.subr.mxu0 0.0
    %6937 = vmatpush1.msra.mxu0 %v6914
    %6938 = vmatprep.subr.mxu0 0.0
    %6939 = vmatpush1.msra.mxu0 %v6915
    %6940 = vmatprep.subr.mxu0 0.0
    %6941 = vmatpush1.msra.mxu0 %v6916
    %6942 = vmatprep.subr.mxu0 0.0
    %6943 = vmatpush1.msra.mxu0 %v6917
    %6944 = vmatprep.subr.mxu0 0.0
    %6945 = vmatpush1.msra.mxu0 %v6918
    %6946 = vmatprep.subr.mxu0 0.0
    %6947 = vmatpush1.msra.mxu0 %v6919
    %6948 = vmatprep.subr.mxu0 0.0
    %6949 = vmatpush1.msra.mxu0 %v6920
    %6950 = vmatprep.subr.mxu0 0.0
    %6951 = vmatpush1.msra.mxu0 %v6921
    %6952 = vmatprep.subr.mxu0 0.0
    %6953 = vmatpush1.msra.mxu0 %v6922
    %6954 = vmatprep.subr.mxu0 0.0
    %6955 = vmatpush1.msra.mxu0 %v6923
    %6956 = vmatprep.subr.mxu0 0.0
    %6957 = vmatpush1.msra.mxu0 0.0
    %6958 = vmatprep.subr.mxu0 0.0
    %6959 = vmatpush1.msra.mxu0 0.0
    %6960 = vmatprep.subr.mxu0 0.0
    %6961 = vmatpush1.msra.mxu0 0.0
    %6962 = vmatprep.subr.mxu0 0.0
    %6963 = vmatpush1.msra.mxu0 0.0
    %6964 = vmatprep.subr.mxu0 0.0
    %6965 = vmatpush1.msra.mxu0 0.0
    %6966 = vmatprep.subr.mxu0 0.0
    %6967 = vmatpush1.msra.mxu0 0.0
    %6968 = vmatprep.subr.mxu0 0.0
    %6969 = vmatpush1.msra.mxu0 0.0
    %6970 = vmatprep.subr.mxu0 0.0
    %6971 = vmatpush1.msra.mxu0 0.0
    %6972 = vmatprep.subr.mxu0 0.0
    %6973 = vmatpush1.msra.mxu0 0.0
    %6974 = vmatprep.subr.mxu0 0.0
    %6975 = vmatpush1.msra.mxu0 0.0
    %6976 = vmatprep.subr.mxu0 0.0
    %6977 = vmatpush1.msra.mxu0 0.0
    %6978 = vmatprep.subr.mxu0 0.0
    %6979 = vmatpush1.msra.mxu0 0.0
    %6980 = vmatprep.subr.mxu0 0.0
    %6981 = vmatpush1.msra.mxu0 0.0
    %6982 = vmatprep.subr.mxu0 0.0
    %6983 = vmatpush1.msra.mxu0 0.0
    %6984 = vmatprep.subr.mxu0 0.0
    %6985 = vmatpush1.msra.mxu0 0.0
    %6986 = vmatprep.subr.mxu0 0.0
    %6987 = vmatpush1.msra.mxu0 0.0
    %6988 = vmatprep.mubr.f32.mxu0 0.0
    %6989 = vmatmul.mubr.f32.gmra.mrb[0].mxu0 %v816
    %v6990 = vpop.f32.mrb[0].mxu0
    %v6991 = vadd.f32 0.0, %v6990
    %v6992 = vpop.f32.mrb[0].mxu0
    %6993 = vdwg.mxu0
    %v6995 = vsel %vm2794, %v6906, 0
    %6997 = vmatprep.subr.mxu0 0.0
    %6998 = vmatpush1.msra.mxu0 %v6991
    %6999 = vmatprep.subr.mxu0 0.0
    %7000 = vmatpush1.msra.mxu0 0.0
    %7001 = vmatprep.subr.mxu0 0.0
    %7002 = vmatpush1.msra.mxu0 0.0
    %7003 = vmatprep.subr.mxu0 0.0
    %7004 = vmatpush1.msra.mxu0 0.0
    %7005 = vmatprep.subr.mxu0 0.0
    %7006 = vmatpush1.msra.mxu0 0.0
    %7007 = vmatprep.subr.mxu0 0.0
    %7008 = vmatpush1.msra.mxu0 0.0
    %7009 = vmatprep.subr.mxu0 0.0
    %7010 = vmatpush1.msra.mxu0 0.0
    %7011 = vmatprep.subr.mxu0 0.0
    %7012 = vmatpush1.msra.mxu0 0.0
    %7013 = vmatprep.subr.mxu0 0.0
    %7014 = vmatpush1.msra.mxu0 0.0
    %7015 = vmatprep.subr.mxu0 0.0
    %7016 = vmatpush1.msra.mxu0 0.0
    %7017 = vmatprep.subr.mxu0 0.0
    %7018 = vmatpush1.msra.mxu0 0.0
    %7019 = vmatprep.subr.mxu0 0.0
    %7020 = vmatpush1.msra.mxu0 0.0
    %7021 = vmatprep.subr.mxu0 0.0
    %7022 = vmatpush1.msra.mxu0 0.0
    %7023 = vmatprep.subr.mxu0 0.0
    %7024 = vmatpush1.msra.mxu0 0.0
    %7025 = vmatprep.subr.mxu0 0.0
    %7026 = vmatpush1.msra.mxu0 0.0
    %7027 = vmatprep.subr.mxu0 0.0
    %7028 = vmatpush1.msra.mxu0 0.0
    %7029 = vmatprep.subr.mxu0 0.0
    %7030 = vmatpush1.msra.mxu0 0.0
    %7031 = vmatprep.subr.mxu0 0.0
    %7032 = vmatpush1.msra.mxu0 0.0
    %7033 = vmatprep.subr.mxu0 0.0
    %7034 = vmatpush1.msra.mxu0 0.0
    %7035 = vmatprep.subr.mxu0 0.0
    %7036 = vmatpush1.msra.mxu0 0.0
    %7037 = vmatprep.subr.mxu0 0.0
    %7038 = vmatpush1.msra.mxu0 0.0
    %7039 = vmatprep.subr.mxu0 0.0
    %7040 = vmatpush1.msra.mxu0 0.0
    %7041 = vmatprep.subr.mxu0 0.0
    %7042 = vmatpush1.msra.mxu0 0.0
    %7043 = vmatprep.subr.mxu0 0.0
    %7044 = vmatpush1.msra.mxu0 0.0
    %7045 = vmatprep.subr.mxu0 0.0
    %7046 = vmatpush1.msra.mxu0 0.0
    %7047 = vmatprep.subr.mxu0 0.0
    %7048 = vmatpush1.msra.mxu0 0.0
    %7049 = vmatprep.subr.mxu0 0.0
    %7050 = vmatpush1.msra.mxu0 0.0
    %7051 = vmatprep.subr.mxu0 0.0
    %7052 = vmatpush1.msra.mxu0 0.0
    %7053 = vmatprep.subr.mxu0 0.0
    %7054 = vmatpush1.msra.mxu0 0.0
    %7055 = vmatprep.subr.mxu0 0.0
    %7056 = vmatpush1.msra.mxu0 0.0
    %7057 = vmatprep.subr.mxu0 0.0
    %7058 = vmatpush1.msra.mxu0 0.0
    %7059 = vmatprep.subr.mxu0 0.0
    %7060 = vmatpush1.msra.mxu0 0.0
    %7061 = vmatprep.mubr.f32.mxu0 0.0
    %7062 = vmatmul.mubr.f32.gmra.mrb[0].mxu0 %v6995
    %v7063 = vpop.f32.mrb[0].mxu0
    %v7064 = vadd.f32 0.0, %v7063
    %v7065 = vpop.f32.mrb[0].mxu0
    %7066 = vdwg.mxu0
    %v7067 = vadd.f32 %v6904, %v7064
    %v7068 = vld [vmem:[#allocation31] sm:$0x1]
    %v7069 = vld [vmem:[#allocation29] sm:$0xf]
    %v7070 = vld [vmem:[%s47] sm:$0xff]
    %v7071 = vld [vmem:[%s47 + $0x8] sm:$0xff]
    %v7072 = vld [vmem:[%s47 + $0x10] sm:$0xff]
    %v7073 = vld [vmem:[%s47 + $0x18] sm:$0xff]
    %v7074 = vld [vmem:[%s47 + $0x20] sm:$0xff]
    %v7075 = vld [vmem:[%s47 + $0x28] sm:$0xff]
    %v7076 = vld [vmem:[%s47 + $0x30] sm:$0xff]
    %v7077 = vld [vmem:[%s47 + $0x38] sm:$0xff]
    %v7078 = vld [vmem:[%s47 + $0x40] sm:$0xff]
    %v7079 = vld [vmem:[%s47 + $0x48] sm:$0xff]
    %v7080 = vld [vmem:[%s47 + $0x50] sm:$0xff]
    %v7081 = vld [vmem:[%s47 + $0x58] sm:$0xff]
    %v7082 = vld [vmem:[%s47 + $0x60] sm:$0xff]
    %v7083 = vld [vmem:[%s47 + $0x68] sm:$0xff]
    %v7084 = vld [vmem:[%s47 + $0x70] sm:$0xff]
    %v7085 = vld [vmem:[%s47 + $0x78] sm:$0xff]
    %7086 = vmatprep.subr.mxu0 0.0
    %7087 = vmatpush1.msra.mxu0 %v7070
    %7088 = vmatprep.subr.mxu0 0.0
    %7089 = vmatpush1.msra.mxu0 %v7071
    %7090 = vmatprep.subr.mxu0 0.0
    %7091 = vmatpush1.msra.mxu0 %v7072
    %7092 = vmatprep.subr.mxu0 0.0
    %7093 = vmatpush1.msra.mxu0 %v7073
    %7094 = vmatprep.subr.mxu0 0.0
    %7095 = vmatpush1.msra.mxu0 %v7074
    %7096 = vmatprep.subr.mxu0 0.0
    %7097 = vmatpush1.msra.mxu0 %v7075
    %7098 = vmatprep.subr.mxu0 0.0
    %7099 = vmatpush1.msra.mxu0 %v7076
    %7100 = vmatprep.subr.mxu0 0.0
    %7101 = vmatpush1.msra.mxu0 %v7077
    %7102 = vmatprep.subr.mxu0 0.0
    %7103 = vmatpush1.msra.mxu0 %v7078
    %7104 = vmatprep.subr.mxu0 0.0
    %7105 = vmatpush1.msra.mxu0 %v7079
    %7106 = vmatprep.subr.mxu0 0.0
    %7107 = vmatpush1.msra.mxu0 %v7080
    %7108 = vmatprep.subr.mxu0 0.0
    %7109 = vmatpush1.msra.mxu0 %v7081
    %7110 = vmatprep.subr.mxu0 0.0
    %7111 = vmatpush1.msra.mxu0 %v7082
    %7112 = vmatprep.subr.mxu0 0.0
    %7113 = vmatpush1.msra.mxu0 %v7083
    %7114 = vmatprep.subr.mxu0 0.0
    %7115 = vmatpush1.msra.mxu0 %v7084
    %7116 = vmatprep.subr.mxu0 0.0
    %7117 = vmatpush1.msra.mxu0 %v7085
    %7118 = vmatprep.subr.mxu0 0.0
    %7119 = vmatpush1.msra.mxu0 0.0
    %7120 = vmatprep.subr.mxu0 0.0
    %7121 = vmatpush1.msra.mxu0 0.0
    %7122 = vmatprep.subr.mxu0 0.0
    %7123 = vmatpush1.msra.mxu0 0.0
    %7124 = vmatprep.subr.mxu0 0.0
    %7125 = vmatpush1.msra.mxu0 0.0
    %7126 = vmatprep.subr.mxu0 0.0
    %7127 = vmatpush1.msra.mxu0 0.0
    %7128 = vmatprep.subr.mxu0 0.0
    %7129 = vmatpush1.msra.mxu0 0.0
    %7130 = vmatprep.subr.mxu0 0.0
    %7131 = vmatpush1.msra.mxu0 0.0
    %7132 = vmatprep.subr.mxu0 0.0
    %7133 = vmatpush1.msra.mxu0 0.0
    %7134 = vmatprep.subr.mxu0 0.0
    %7135 = vmatpush1.msra.mxu0 0.0
    %7136 = vmatprep.subr.mxu0 0.0
    %7137 = vmatpush1.msra.mxu0 0.0
    %7138 = vmatprep.subr.mxu0 0.0
    %7139 = vmatpush1.msra.mxu0 0.0
    %7140 = vmatprep.subr.mxu0 0.0
    %7141 = vmatpush1.msra.mxu0 0.0
    %7142 = vmatprep.subr.mxu0 0.0
    %7143 = vmatpush1.msra.mxu0 0.0
    %7144 = vmatprep.subr.mxu0 0.0
    %7145 = vmatpush1.msra.mxu0 0.0
    %7146 = vmatprep.subr.mxu0 0.0
    %7147 = vmatpush1.msra.mxu0 0.0
    %7148 = vmatprep.subr.mxu0 0.0
    %7149 = vmatpush1.msra.mxu0 0.0
    %7150 = vmatprep.mubr.f32.mxu0 0.0
    %7151 = vmatmul.mubr.f32.gmra.mrb[0].mxu0 %v7067
    %v7152 = vpop.f32.mrb[0].mxu0
    %v7153 = vadd.f32 0.0, %v7152
    %v7154 = vpop.f32.mrb[0].mxu0
    %7155 = vdwg.mxu0
    %v7157 = vsel %vm2794, %v7069, 0
    %7159 = vmatprep.subr.mxu0 0.0
    %7160 = vmatpush1.msra.mxu0 %v7153
    %7161 = vmatprep.subr.mxu0 0.0
    %7162 = vmatpush1.msra.mxu0 0.0
    %7163 = vmatprep.subr.mxu0 0.0
    %7164 = vmatpush1.msra.mxu0 0.0
    %7165 = vmatprep.subr.mxu0 0.0
    %7166 = vmatpush1.msra.mxu0 0.0
    %7167 = vmatprep.subr.mxu0 0.0
    %7168 = vmatpush1.msra.mxu0 0.0
    %7169 = vmatprep.subr.mxu0 0.0
    %7170 = vmatpush1.msra.mxu0 0.0
    %7171 = vmatprep.subr.mxu0 0.0
    %7172 = vmatpush1.msra.mxu0 0.0
    %7173 = vmatprep.subr.mxu0 0.0
    %7174 = vmatpush1.msra.mxu0 0.0
    %7175 = vmatprep.subr.mxu0 0.0
    %7176 = vmatpush1.msra.mxu0 0.0
    %7177 = vmatprep.subr.mxu0 0.0
    %7178 = vmatpush1.msra.mxu0 0.0
    %7179 = vmatprep.subr.mxu0 0.0
    %7180 = vmatpush1.msra.mxu0 0.0
    %7181 = vmatprep.subr.mxu0 0.0
    %7182 = vmatpush1.msra.mxu0 0.0
    %7183 = vmatprep.subr.mxu0 0.0
    %7184 = vmatpush1.msra.mxu0 0.0
    %7185 = vmatprep.subr.mxu0 0.0
    %7186 = vmatpush1.msra.mxu0 0.0
    %7187 = vmatprep.subr.mxu0 0.0
    %7188 = vmatpush1.msra.mxu0 0.0
    %7189 = vmatprep.subr.mxu0 0.0
    %7190 = vmatpush1.msra.mxu0 0.0
    %7191 = vmatprep.subr.mxu0 0.0
    %7192 = vmatpush1.msra.mxu0 0.0
    %7193 = vmatprep.subr.mxu0 0.0
    %7194 = vmatpush1.msra.mxu0 0.0
    %7195 = vmatprep.subr.mxu0 0.0
    %7196 = vmatpush1.msra.mxu0 0.0
    %7197 = vmatprep.subr.mxu0 0.0
    %7198 = vmatpush1.msra.mxu0 0.0
    %7199 = vmatprep.subr.mxu0 0.0
    %7200 = vmatpush1.msra.mxu0 0.0
    %7201 = vmatprep.subr.mxu0 0.0
    %7202 = vmatpush1.msra.mxu0 0.0
    %7203 = vmatprep.subr.mxu0 0.0
    %7204 = vmatpush1.msra.mxu0 0.0
    %7205 = vmatprep.subr.mxu0 0.0
    %7206 = vmatpush1.msra.mxu0 0.0
    %7207 = vmatprep.subr.mxu0 0.0
    %7208 = vmatpush1.msra.mxu0 0.0
    %7209 = vmatprep.subr.mxu0 0.0
    %7210 = vmatpush1.msra.mxu0 0.0
    %7211 = vmatprep.subr.mxu0 0.0
    %7212 = vmatpush1.msra.mxu0 0.0
    %7213 = vmatprep.subr.mxu0 0.0
    %7214 = vmatpush1.msra.mxu0 0.0
    %7215 = vmatprep.subr.mxu0 0.0
    %7216 = vmatpush1.msra.mxu0 0.0
    %7217 = vmatprep.subr.mxu0 0.0
    %7218 = vmatpush1.msra.mxu0 0.0
    %7219 = vmatprep.subr.mxu0 0.0
    %7220 = vmatpush1.msra.mxu0 0.0
    %7221 = vmatprep.subr.mxu0 0.0
    %7222 = vmatpush1.msra.mxu0 0.0
    %7223 = vmatprep.mubr.f32.mxu0 0.0
    %7224 = vmatmul.mubr.f32.gmra.mrb[0].mxu0 %v7157
    %v7225 = vpop.f32.mrb[0].mxu0
    %v7226 = vadd.f32 0.0, %v7225
    %v7227 = vpop.f32.mrb[0].mxu0
    %7228 = vdwg.mxu0
    %v7230 = vlaneseq
    %v7231 = vshrl.u32 %v7230, 7
    %v7232 = vsub.s32 0, %v7231
    %v7233 = vrot.slane %v7068, %v7232
    %v7235 = vadd.f32 %v7233, %v7226
    %s7236 = scalar_lea.vmem [#allocation29], 4
    %v7237 = vld [vmem:[%s7236] sm:$0xf]
    %s7238 = scalar_lea.vmem %s47, 128
    %v7239 = vld [vmem:[%s7238] sm:$0xff]
    %v7240 = vld [vmem:[%s7238 + $0x8] sm:$0xff]
    %v7241 = vld [vmem:[%s7238 + $0x10] sm:$0xff]
    %v7242 = vld [vmem:[%s7238 + $0x18] sm:$0xff]
    %v7243 = vld [vmem:[%s7238 + $0x20] sm:$0xff]
    %v7244 = vld [vmem:[%s7238 + $0x28] sm:$0xff]
    %v7245 = vld [vmem:[%s7238 + $0x30] sm:$0xff]
    %v7246 = vld [vmem:[%s7238 + $0x38] sm:$0xff]
    %v7247 = vld [vmem:[%s7238 + $0x40] sm:$0xff]
    %v7248 = vld [vmem:[%s7238 + $0x48] sm:$0xff]
    %v7249 = vld [vmem:[%s7238 + $0x50] sm:$0xff]
    %v7250 = vld [vmem:[%s7238 + $0x58] sm:$0xff]
    %v7251 = vld [vmem:[%s7238 + $0x60] sm:$0xff]
    %v7252 = vld [vmem:[%s7238 + $0x68] sm:$0xff]
    %v7253 = vld [vmem:[%s7238 + $0x70] sm:$0xff]
    %v7254 = vld [vmem:[%s7238 + $0x78] sm:$0xff]
    %7255 = vmatprep.subr.mxu0 0.0
    %7256 = vmatpush1.msra.mxu0 %v7239
    %7257 = vmatprep.subr.mxu0 0.0
    %7258 = vmatpush1.msra.mxu0 %v7240
    %7259 = vmatprep.subr.mxu0 0.0
    %7260 = vmatpush1.msra.mxu0 %v7241
    %7261 = vmatprep.subr.mxu0 0.0
    %7262 = vmatpush1.msra.mxu0 %v7242
    %7263 = vmatprep.subr.mxu0 0.0
    %7264 = vmatpush1.msra.mxu0 %v7243
    %7265 = vmatprep.subr.mxu0 0.0
    %7266 = vmatpush1.msra.mxu0 %v7244
    %7267 = vmatprep.subr.mxu0 0.0
    %7268 = vmatpush1.msra.mxu0 %v7245
    %7269 = vmatprep.subr.mxu0 0.0
    %7270 = vmatpush1.msra.mxu0 %v7246
    %7271 = vmatprep.subr.mxu0 0.0
    %7272 = vmatpush1.msra.mxu0 %v7247
    %7273 = vmatprep.subr.mxu0 0.0
    %7274 = vmatpush1.msra.mxu0 %v7248
    %7275 = vmatprep.subr.mxu0 0.0
    %7276 = vmatpush1.msra.mxu0 %v7249
    %7277 = vmatprep.subr.mxu0 0.0
    %7278 = vmatpush1.msra.mxu0 %v7250
    %7279 = vmatprep.subr.mxu0 0.0
    %7280 = vmatpush1.msra.mxu0 %v7251
    %7281 = vmatprep.subr.mxu0 0.0
    %7282 = vmatpush1.msra.mxu0 %v7252
    %7283 = vmatprep.subr.mxu0 0.0
    %7284 = vmatpush1.msra.mxu0 %v7253
    %7285 = vmatprep.subr.mxu0 0.0
    %7286 = vmatpush1.msra.mxu0 %v7254
    %7287 = vmatprep.subr.mxu0 0.0
    %7288 = vmatpush1.msra.mxu0 0.0
    %7289 = vmatprep.subr.mxu0 0.0
    %7290 = vmatpush1.msra.mxu0 0.0
    %7291 = vmatprep.subr.mxu0 0.0
    %7292 = vmatpush1.msra.mxu0 0.0
    %7293 = vmatprep.subr.mxu0 0.0
    %7294 = vmatpush1.msra.mxu0 0.0
    %7295 = vmatprep.subr.mxu0 0.0
    %7296 = vmatpush1.msra.mxu0 0.0
    %7297 = vmatprep.subr.mxu0 0.0
    %7298 = vmatpush1.msra.mxu0 0.0
    %7299 = vmatprep.subr.mxu0 0.0
    %7300 = vmatpush1.msra.mxu0 0.0
    %7301 = vmatprep.subr.mxu0 0.0
    %7302 = vmatpush1.msra.mxu0 0.0
    %7303 = vmatprep.subr.mxu0 0.0
    %7304 = vmatpush1.msra.mxu0 0.0
    %7305 = vmatprep.subr.mxu0 0.0
    %7306 = vmatpush1.msra.mxu0 0.0
    %7307 = vmatprep.subr.mxu0 0.0
    %7308 = vmatpush1.msra.mxu0 0.0
    %7309 = vmatprep.subr.mxu0 0.0
    %7310 = vmatpush1.msra.mxu0 0.0
    %7311 = vmatprep.subr.mxu0 0.0
    %7312 = vmatpush1.msra.mxu0 0.0
    %7313 = vmatprep.subr.mxu0 0.0
    %7314 = vmatpush1.msra.mxu0 0.0
    %7315 = vmatprep.subr.mxu0 0.0
    %7316 = vmatpush1.msra.mxu0 0.0
    %7317 = vmatprep.subr.mxu0 0.0
    %7318 = vmatpush1.msra.mxu0 0.0
    %7319 = vmatprep.mubr.f32.mxu0 0.0
    %7320 = vmatmul.mubr.f32.gmra.mrb[0].mxu0 %v7067
    %v7321 = vpop.f32.mrb[0].mxu0
    %v7322 = vadd.f32 0.0, %v7321
    %v7323 = vpop.f32.mrb[0].mxu0
    %7324 = vdwg.mxu0
    %v7326 = vsel %vm2794, %v7237, 0
    %7328 = vmatprep.subr.mxu0 0.0
    %7329 = vmatpush1.msra.mxu0 %v7322
    %7330 = vmatprep.subr.mxu0 0.0
    %7331 = vmatpush1.msra.mxu0 0.0
    %7332 = vmatprep.subr.mxu0 0.0
    %7333 = vmatpush1.msra.mxu0 0.0
    %7334 = vmatprep.subr.mxu0 0.0
    %7335 = vmatpush1.msra.mxu0 0.0
    %7336 = vmatprep.subr.mxu0 0.0
    %7337 = vmatpush1.msra.mxu0 0.0
    %7338 = vmatprep.subr.mxu0 0.0
    %7339 = vmatpush1.msra.mxu0 0.0
    %7340 = vmatprep.subr.mxu0 0.0
    %7341 = vmatpush1.msra.mxu0 0.0
    %7342 = vmatprep.subr.mxu0 0.0
    %7343 = vmatpush1.msra.mxu0 0.0
    %7344 = vmatprep.subr.mxu0 0.0
    %7345 = vmatpush1.msra.mxu0 0.0
    %7346 = vmatprep.subr.mxu0 0.0
    %7347 = vmatpush1.msra.mxu0 0.0
    %7348 = vmatprep.subr.mxu0 0.0
    %7349 = vmatpush1.msra.mxu0 0.0
    %7350 = vmatprep.subr.mxu0 0.0
    %7351 = vmatpush1.msra.mxu0 0.0
    %7352 = vmatprep.subr.mxu0 0.0
    %7353 = vmatpush1.msra.mxu0 0.0
    %7354 = vmatprep.subr.mxu0 0.0
    %7355 = vmatpush1.msra.mxu0 0.0
    %7356 = vmatprep.subr.mxu0 0.0
    %7357 = vmatpush1.msra.mxu0 0.0
    %7358 = vmatprep.subr.mxu0 0.0
    %7359 = vmatpush1.msra.mxu0 0.0
    %7360 = vmatprep.subr.mxu0 0.0
    %7361 = vmatpush1.msra.mxu0 0.0
    %7362 = vmatprep.subr.mxu0 0.0
    %7363 = vmatpush1.msra.mxu0 0.0
    %7364 = vmatprep.subr.mxu0 0.0
    %7365 = vmatpush1.msra.mxu0 0.0
    %7366 = vmatprep.subr.mxu0 0.0
    %7367 = vmatpush1.msra.mxu0 0.0
    %7368 = vmatprep.subr.mxu0 0.0
    %7369 = vmatpush1.msra.mxu0 0.0
    %7370 = vmatprep.subr.mxu0 0.0
    %7371 = vmatpush1.msra.mxu0 0.0
    %7372 = vmatprep.subr.mxu0 0.0
    %7373 = vmatpush1.msra.mxu0 0.0
    %7374 = vmatprep.subr.mxu0 0.0
    %7375 = vmatpush1.msra.mxu0 0.0
    %7376 = vmatprep.subr.mxu0 0.0
    %7377 = vmatpush1.msra.mxu0 0.0
    %7378 = vmatprep.subr.mxu0 0.0
    %7379 = vmatpush1.msra.mxu0 0.0
    %7380 = vmatprep.subr.mxu0 0.0
    %7381 = vmatpush1.msra.mxu0 0.0
    %7382 = vmatprep.subr.mxu0 0.0
    %7383 = vmatpush1.msra.mxu0 0.0
    %7384 = vmatprep.subr.mxu0 0.0
    %7385 = vmatpush1.msra.mxu0 0.0
    %7386 = vmatprep.subr.mxu0 0.0
    %7387 = vmatpush1.msra.mxu0 0.0
    %7388 = vmatprep.subr.mxu0 0.0
    %7389 = vmatpush1.msra.mxu0 0.0
    %7390 = vmatprep.subr.mxu0 0.0
    %7391 = vmatpush1.msra.mxu0 0.0
    %7392 = vmatprep.mubr.f32.mxu0 0.0
    %7393 = vmatmul.mubr.f32.gmra.mrb[0].mxu0 %v7326
    %v7394 = vpop.f32.mrb[0].mxu0
    %v7395 = vadd.f32 0.0, %v7394
    %v7396 = vpop.f32.mrb[0].mxu0
    %7397 = vdwg.mxu0
    %v7398 = vadd.f32 %v7235, %v7395
    %s7399 = scalar_lea.vmem [#allocation29], 8
    %v7400 = vld [vmem:[%s7399] sm:$0xf]
    %s7401 = scalar_lea.vmem %s47, 256
    %v7402 = vld [vmem:[%s7401] sm:$0xff]
    %v7403 = vld [vmem:[%s7401 + $0x8] sm:$0xff]
    %v7404 = vld [vmem:[%s7401 + $0x10] sm:$0xff]
    %v7405 = vld [vmem:[%s7401 + $0x18] sm:$0xff]
    %v7406 = vld [vmem:[%s7401 + $0x20] sm:$0xff]
    %v7407 = vld [vmem:[%s7401 + $0x28] sm:$0xff]
    %v7408 = vld [vmem:[%s7401 + $0x30] sm:$0xff]
    %v7409 = vld [vmem:[%s7401 + $0x38] sm:$0xff]
    %v7410 = vld [vmem:[%s7401 + $0x40] sm:$0xff]
    %v7411 = vld [vmem:[%s7401 + $0x48] sm:$0xff]
    %v7412 = vld [vmem:[%s7401 + $0x50] sm:$0xff]
    %v7413 = vld [vmem:[%s7401 + $0x58] sm:$0xff]
    %v7414 = vld [vmem:[%s7401 + $0x60] sm:$0xff]
    %v7415 = vld [vmem:[%s7401 + $0x68] sm:$0xff]
    %v7416 = vld [vmem:[%s7401 + $0x70] sm:$0xff]
    %v7417 = vld [vmem:[%s7401 + $0x78] sm:$0xff]
    %7418 = vmatprep.subr.mxu0 0.0
    %7419 = vmatpush1.msra.mxu0 %v7402
    %7420 = vmatprep.subr.mxu0 0.0
    %7421 = vmatpush1.msra.mxu0 %v7403
    %7422 = vmatprep.subr.mxu0 0.0
    %7423 = vmatpush1.msra.mxu0 %v7404
    %7424 = vmatprep.subr.mxu0 0.0
    %7425 = vmatpush1.msra.mxu0 %v7405
    %7426 = vmatprep.subr.mxu0 0.0
    %7427 = vmatpush1.msra.mxu0 %v7406
    %7428 = vmatprep.subr.mxu0 0.0
    %7429 = vmatpush1.msra.mxu0 %v7407
    %7430 = vmatprep.subr.mxu0 0.0
    %7431 = vmatpush1.msra.mxu0 %v7408
    %7432 = vmatprep.subr.mxu0 0.0
    %7433 = vmatpush1.msra.mxu0 %v7409
    %7434 = vmatprep.subr.mxu0 0.0
    %7435 = vmatpush1.msra.mxu0 %v7410
    %7436 = vmatprep.subr.mxu0 0.0
    %7437 = vmatpush1.msra.mxu0 %v7411
    %7438 = vmatprep.subr.mxu0 0.0
    %7439 = vmatpush1.msra.mxu0 %v7412
    %7440 = vmatprep.subr.mxu0 0.0
    %7441 = vmatpush1.msra.mxu0 %v7413
    %7442 = vmatprep.subr.mxu0 0.0
    %7443 = vmatpush1.msra.mxu0 %v7414
    %7444 = vmatprep.subr.mxu0 0.0
    %7445 = vmatpush1.msra.mxu0 %v7415
    %7446 = vmatprep.subr.mxu0 0.0
    %7447 = vmatpush1.msra.mxu0 %v7416
    %7448 = vmatprep.subr.mxu0 0.0
    %7449 = vmatpush1.msra.mxu0 %v7417
    %7450 = vmatprep.subr.mxu0 0.0
    %7451 = vmatpush1.msra.mxu0 0.0
    %7452 = vmatprep.subr.mxu0 0.0
    %7453 = vmatpush1.msra.mxu0 0.0
    %7454 = vmatprep.subr.mxu0 0.0
    %7455 = vmatpush1.msra.mxu0 0.0
    %7456 = vmatprep.subr.mxu0 0.0
    %7457 = vmatpush1.msra.mxu0 0.0
    %7458 = vmatprep.subr.mxu0 0.0
    %7459 = vmatpush1.msra.mxu0 0.0
    %7460 = vmatprep.subr.mxu0 0.0
    %7461 = vmatpush1.msra.mxu0 0.0
    %7462 = vmatprep.subr.mxu0 0.0
    %7463 = vmatpush1.msra.mxu0 0.0
    %7464 = vmatprep.subr.mxu0 0.0
    %7465 = vmatpush1.msra.mxu0 0.0
    %7466 = vmatprep.subr.mxu0 0.0
    %7467 = vmatpush1.msra.mxu0 0.0
    %7468 = vmatprep.subr.mxu0 0.0
    %7469 = vmatpush1.msra.mxu0 0.0
    %7470 = vmatprep.subr.mxu0 0.0
    %7471 = vmatpush1.msra.mxu0 0.0
    %7472 = vmatprep.subr.mxu0 0.0
    %7473 = vmatpush1.msra.mxu0 0.0
    %7474 = vmatprep.subr.mxu0 0.0
    %7475 = vmatpush1.msra.mxu0 0.0
    %7476 = vmatprep.subr.mxu0 0.0
    %7477 = vmatpush1.msra.mxu0 0.0
    %7478 = vmatprep.subr.mxu0 0.0
    %7479 = vmatpush1.msra.mxu0 0.0
    %7480 = vmatprep.subr.mxu0 0.0
    %7481 = vmatpush1.msra.mxu0 0.0
    %7482 = vmatprep.mubr.f32.mxu0 0.0
    %7483 = vmatmul.mubr.f32.gmra.mrb[0].mxu0 %v7067
    %v7484 = vpop.f32.mrb[0].mxu0
    %v7485 = vadd.f32 0.0, %v7484
    %v7486 = vpop.f32.mrb[0].mxu0
    %7487 = vdwg.mxu0
    %v7489 = vsel %vm2794, %v7400, 0
    %7491 = vmatprep.subr.mxu0 0.0
    %7492 = vmatpush1.msra.mxu0 %v7485
    %7493 = vmatprep.subr.mxu0 0.0
    %7494 = vmatpush1.msra.mxu0 0.0
    %7495 = vmatprep.subr.mxu0 0.0
    %7496 = vmatpush1.msra.mxu0 0.0
    %7497 = vmatprep.subr.mxu0 0.0
    %7498 = vmatpush1.msra.mxu0 0.0
    %7499 = vmatprep.subr.mxu0 0.0
    %7500 = vmatpush1.msra.mxu0 0.0
    %7501 = vmatprep.subr.mxu0 0.0
    %7502 = vmatpush1.msra.mxu0 0.0
    %7503 = vmatprep.subr.mxu0 0.0
    %7504 = vmatpush1.msra.mxu0 0.0
    %7505 = vmatprep.subr.mxu0 0.0
    %7506 = vmatpush1.msra.mxu0 0.0
    %7507 = vmatprep.subr.mxu0 0.0
    %7508 = vmatpush1.msra.mxu0 0.0
    %7509 = vmatprep.subr.mxu0 0.0
    %7510 = vmatpush1.msra.mxu0 0.0
    %7511 = vmatprep.subr.mxu0 0.0
    %7512 = vmatpush1.msra.mxu0 0.0
    %7513 = vmatprep.subr.mxu0 0.0
    %7514 = vmatpush1.msra.mxu0 0.0
    %7515 = vmatprep.subr.mxu0 0.0
    %7516 = vmatpush1.msra.mxu0 0.0
    %7517 = vmatprep.subr.mxu0 0.0
    %7518 = vmatpush1.msra.mxu0 0.0
    %7519 = vmatprep.subr.mxu0 0.0
    %7520 = vmatpush1.msra.mxu0 0.0
    %7521 = vmatprep.subr.mxu0 0.0
    %7522 = vmatpush1.msra.mxu0 0.0
    %7523 = vmatprep.subr.mxu0 0.0
    %7524 = vmatpush1.msra.mxu0 0.0
    %7525 = vmatprep.subr.mxu0 0.0
    %7526 = vmatpush1.msra.mxu0 0.0
    %7527 = vmatprep.subr.mxu0 0.0
    %7528 = vmatpush1.msra.mxu0 0.0
    %7529 = vmatprep.subr.mxu0 0.0
    %7530 = vmatpush1.msra.mxu0 0.0
    %7531 = vmatprep.subr.mxu0 0.0
    %7532 = vmatpush1.msra.mxu0 0.0
    %7533 = vmatprep.subr.mxu0 0.0
    %7534 = vmatpush1.msra.mxu0 0.0
    %7535 = vmatprep.subr.mxu0 0.0
    %7536 = vmatpush1.msra.mxu0 0.0
    %7537 = vmatprep.subr.mxu0 0.0
    %7538 = vmatpush1.msra.mxu0 0.0
    %7539 = vmatprep.subr.mxu0 0.0
    %7540 = vmatpush1.msra.mxu0 0.0
    %7541 = vmatprep.subr.mxu0 0.0
    %7542 = vmatpush1.msra.mxu0 0.0
    %7543 = vmatprep.subr.mxu0 0.0
    %7544 = vmatpush1.msra.mxu0 0.0
    %7545 = vmatprep.subr.mxu0 0.0
    %7546 = vmatpush1.msra.mxu0 0.0
    %7547 = vmatprep.subr.mxu0 0.0
    %7548 = vmatpush1.msra.mxu0 0.0
    %7549 = vmatprep.subr.mxu0 0.0
    %7550 = vmatpush1.msra.mxu0 0.0
    %7551 = vmatprep.subr.mxu0 0.0
    %7552 = vmatpush1.msra.mxu0 0.0
    %7553 = vmatprep.subr.mxu0 0.0
    %7554 = vmatpush1.msra.mxu0 0.0
    %7555 = vmatprep.mubr.f32.mxu0 0.0
    %7556 = vmatmul.mubr.f32.gmra.mrb[0].mxu0 %v7489
    %v7557 = vpop.f32.mrb[0].mxu0
    %v7558 = vadd.f32 0.0, %v7557
    %v7559 = vpop.f32.mrb[0].mxu0
    %7560 = vdwg.mxu0
    %v7561 = vadd.f32 %v7398, %v7558
    %v7562 = vmax.f32 %v7561, 0.0
    %v7563 = vld [vmem:[#allocation34] sm:$0x1]
    %v7564 = vld [vmem:[#allocation32] sm:$0x3]
    %v7565 = vld [vmem:[%s53] sm:$0xff]
    %v7566 = vld [vmem:[%s53 + $0x8] sm:$0xff]
    %v7567 = vld [vmem:[%s53 + $0x10] sm:$0xff]
    %v7568 = vld [vmem:[%s53 + $0x18] sm:$0xff]
    %v7569 = vld [vmem:[%s53 + $0x20] sm:$0xff]
    %v7570 = vld [vmem:[%s53 + $0x28] sm:$0xff]
    %v7571 = vld [vmem:[%s53 + $0x30] sm:$0xff]
    %v7572 = vld [vmem:[%s53 + $0x38] sm:$0xff]
    %vm7573 = vcmask 523264
    %v7575 = vsel %vm7573, %v7562, 0
    %7577 = vmatprep.subr.mxu0 0.0
    %7578 = vmatpush1.msra.mxu0 %v7565
    %7579 = vmatprep.subr.mxu0 0.0
    %7580 = vmatpush1.msra.mxu0 %v7566
    %7581 = vmatprep.subr.mxu0 0.0
    %7582 = vmatpush1.msra.mxu0 %v7567
    %7583 = vmatprep.subr.mxu0 0.0
    %7584 = vmatpush1.msra.mxu0 %v7568
    %7585 = vmatprep.subr.mxu0 0.0
    %7586 = vmatpush1.msra.mxu0 %v7569
    %7587 = vmatprep.subr.mxu0 0.0
    %7588 = vmatpush1.msra.mxu0 %v7570
    %7589 = vmatprep.subr.mxu0 0.0
    %7590 = vmatpush1.msra.mxu0 %v7571
    %7591 = vmatprep.subr.mxu0 0.0
    %7592 = vmatpush1.msra.mxu0 %v7572
    %7593 = vmatprep.subr.mxu0 0.0
    %7594 = vmatpush1.msra.mxu0 0.0
    %7595 = vmatprep.subr.mxu0 0.0
    %7596 = vmatpush1.msra.mxu0 0.0
    %7597 = vmatprep.subr.mxu0 0.0
    %7598 = vmatpush1.msra.mxu0 0.0
    %7599 = vmatprep.subr.mxu0 0.0
    %7600 = vmatpush1.msra.mxu0 0.0
    %7601 = vmatprep.subr.mxu0 0.0
    %7602 = vmatpush1.msra.mxu0 0.0
    %7603 = vmatprep.subr.mxu0 0.0
    %7604 = vmatpush1.msra.mxu0 0.0
    %7605 = vmatprep.subr.mxu0 0.0
    %7606 = vmatpush1.msra.mxu0 0.0
    %7607 = vmatprep.subr.mxu0 0.0
    %7608 = vmatpush1.msra.mxu0 0.0
    %7609 = vmatprep.subr.mxu0 0.0
    %7610 = vmatpush1.msra.mxu0 0.0
    %7611 = vmatprep.subr.mxu0 0.0
    %7612 = vmatpush1.msra.mxu0 0.0
    %7613 = vmatprep.subr.mxu0 0.0
    %7614 = vmatpush1.msra.mxu0 0.0
    %7615 = vmatprep.subr.mxu0 0.0
    %7616 = vmatpush1.msra.mxu0 0.0
    %7617 = vmatprep.subr.mxu0 0.0
    %7618 = vmatpush1.msra.mxu0 0.0
    %7619 = vmatprep.subr.mxu0 0.0
    %7620 = vmatpush1.msra.mxu0 0.0
    %7621 = vmatprep.subr.mxu0 0.0
    %7622 = vmatpush1.msra.mxu0 0.0
    %7623 = vmatprep.subr.mxu0 0.0
    %7624 = vmatpush1.msra.mxu0 0.0
    %7625 = vmatprep.subr.mxu0 0.0
    %7626 = vmatpush1.msra.mxu0 0.0
    %7627 = vmatprep.subr.mxu0 0.0
    %7628 = vmatpush1.msra.mxu0 0.0
    %7629 = vmatprep.subr.mxu0 0.0
    %7630 = vmatpush1.msra.mxu0 0.0
    %7631 = vmatprep.subr.mxu0 0.0
    %7632 = vmatpush1.msra.mxu0 0.0
    %7633 = vmatprep.subr.mxu0 0.0
    %7634 = vmatpush1.msra.mxu0 0.0
    %7635 = vmatprep.subr.mxu0 0.0
    %7636 = vmatpush1.msra.mxu0 0.0
    %7637 = vmatprep.subr.mxu0 0.0
    %7638 = vmatpush1.msra.mxu0 0.0
    %7639 = vmatprep.subr.mxu0 0.0
    %7640 = vmatpush1.msra.mxu0 0.0
    %7641 = vmatprep.mubr.f32.mxu0 0.0
    %7642 = vmatmul.mubr.f32.gmra.mrb[0].mxu0 %v7575
    %v7643 = vpop.f32.mrb[0].mxu0
    %v7644 = vadd.f32 0.0, %v7643
    %v7645 = vpop.f32.mrb[0].mxu0
    %7646 = vdwg.mxu0
    %vm7647 = vcmask 31744
    %v7649 = vsel %vm7647, %v7564, 0
    %vm7651 = vcmask 1043456
    %v7653 = vsel %vm7651, %v7644, 0
    %7655 = vmatprep.subr.mxu0 0.0
    %7656 = vmatpush1.msra.mxu0 %v7653
    %7657 = vmatprep.subr.mxu0 0.0
    %7658 = vmatpush1.msra.mxu0 0.0
    %7659 = vmatprep.subr.mxu0 0.0
    %7660 = vmatpush1.msra.mxu0 0.0
    %7661 = vmatprep.subr.mxu0 0.0
    %7662 = vmatpush1.msra.mxu0 0.0
    %7663 = vmatprep.subr.mxu0 0.0
    %7664 = vmatpush1.msra.mxu0 0.0
    %7665 = vmatprep.subr.mxu0 0.0
    %7666 = vmatpush1.msra.mxu0 0.0
    %7667 = vmatprep.subr.mxu0 0.0
    %7668 = vmatpush1.msra.mxu0 0.0
    %7669 = vmatprep.subr.mxu0 0.0
    %7670 = vmatpush1.msra.mxu0 0.0
    %7671 = vmatprep.subr.mxu0 0.0
    %7672 = vmatpush1.msra.mxu0 0.0
    %7673 = vmatprep.subr.mxu0 0.0
    %7674 = vmatpush1.msra.mxu0 0.0
    %7675 = vmatprep.subr.mxu0 0.0
    %7676 = vmatpush1.msra.mxu0 0.0
    %7677 = vmatprep.subr.mxu0 0.0
    %7678 = vmatpush1.msra.mxu0 0.0
    %7679 = vmatprep.subr.mxu0 0.0
    %7680 = vmatpush1.msra.mxu0 0.0
    %7681 = vmatprep.subr.mxu0 0.0
    %7682 = vmatpush1.msra.mxu0 0.0
    %7683 = vmatprep.subr.mxu0 0.0
    %7684 = vmatpush1.msra.mxu0 0.0
    %7685 = vmatprep.subr.mxu0 0.0
    %7686 = vmatpush1.msra.mxu0 0.0
    %7687 = vmatprep.subr.mxu0 0.0
    %7688 = vmatpush1.msra.mxu0 0.0
    %7689 = vmatprep.subr.mxu0 0.0
    %7690 = vmatpush1.msra.mxu0 0.0
    %7691 = vmatprep.subr.mxu0 0.0
    %7692 = vmatpush1.msra.mxu0 0.0
    %7693 = vmatprep.subr.mxu0 0.0
    %7694 = vmatpush1.msra.mxu0 0.0
    %7695 = vmatprep.subr.mxu0 0.0
    %7696 = vmatpush1.msra.mxu0 0.0
    %7697 = vmatprep.subr.mxu0 0.0
    %7698 = vmatpush1.msra.mxu0 0.0
    %7699 = vmatprep.subr.mxu0 0.0
    %7700 = vmatpush1.msra.mxu0 0.0
    %7701 = vmatprep.subr.mxu0 0.0
    %7702 = vmatpush1.msra.mxu0 0.0
    %7703 = vmatprep.subr.mxu0 0.0
    %7704 = vmatpush1.msra.mxu0 0.0
    %7705 = vmatprep.subr.mxu0 0.0
    %7706 = vmatpush1.msra.mxu0 0.0
    %7707 = vmatprep.subr.mxu0 0.0
    %7708 = vmatpush1.msra.mxu0 0.0
    %7709 = vmatprep.subr.mxu0 0.0
    %7710 = vmatpush1.msra.mxu0 0.0
    %7711 = vmatprep.subr.mxu0 0.0
    %7712 = vmatpush1.msra.mxu0 0.0
    %7713 = vmatprep.subr.mxu0 0.0
    %7714 = vmatpush1.msra.mxu0 0.0
    %7715 = vmatprep.subr.mxu0 0.0
    %7716 = vmatpush1.msra.mxu0 0.0
    %7717 = vmatprep.subr.mxu0 0.0
    %7718 = vmatpush1.msra.mxu0 0.0
    %7719 = vmatprep.mubr.f32.mxu0 0.0
    %7720 = vmatmul.mubr.f32.gmra.mrb[0].mxu0 %v7649
    %v7721 = vpop.f32.mrb[0].mxu0
    %v7722 = vadd.f32 0.0, %v7721
    %v7723 = vpop.f32.mrb[0].mxu0
    %7724 = vdwg.mxu0
    %v7726 = vlaneseq
    %v7727 = vshrl.u32 %v7726, 7
    %v7728 = vsub.s32 0, %v7727
    %v7729 = vrot.slane %v7563, %v7728
    %v7731 = vadd.f32 %v7729, %v7722
    %s7732 = scalar_lea.vmem [#allocation32], 2
    %v7733 = vld [vmem:[%s7732] sm:$0x3]
    %s7734 = scalar_lea.vmem %s53, 64
    %v7735 = vld [vmem:[%s7734] sm:$0xff]
    %v7736 = vld [vmem:[%s7734 + $0x8] sm:$0xff]
    %v7737 = vld [vmem:[%s7734 + $0x10] sm:$0xff]
    %v7738 = vld [vmem:[%s7734 + $0x18] sm:$0xff]
    %v7739 = vld [vmem:[%s7734 + $0x20] sm:$0xff]
    %v7740 = vld [vmem:[%s7734 + $0x28] sm:$0xff]
    %v7741 = vld [vmem:[%s7734 + $0x30] sm:$0xff]
    %v7742 = vld [vmem:[%s7734 + $0x38] sm:$0xff]
    %7743 = vmatprep.subr.mxu0 0.0
    %7744 = vmatpush1.msra.mxu0 %v7735
    %7745 = vmatprep.subr.mxu0 0.0
    %7746 = vmatpush1.msra.mxu0 %v7736
    %7747 = vmatprep.subr.mxu0 0.0
    %7748 = vmatpush1.msra.mxu0 %v7737
    %7749 = vmatprep.subr.mxu0 0.0
    %7750 = vmatpush1.msra.mxu0 %v7738
    %7751 = vmatprep.subr.mxu0 0.0
    %7752 = vmatpush1.msra.mxu0 %v7739
    %7753 = vmatprep.subr.mxu0 0.0
    %7754 = vmatpush1.msra.mxu0 %v7740
    %7755 = vmatprep.subr.mxu0 0.0
    %7756 = vmatpush1.msra.mxu0 %v7741
    %7757 = vmatprep.subr.mxu0 0.0
    %7758 = vmatpush1.msra.mxu0 %v7742
    %7759 = vmatprep.subr.mxu0 0.0
    %7760 = vmatpush1.msra.mxu0 0.0
    %7761 = vmatprep.subr.mxu0 0.0
    %7762 = vmatpush1.msra.mxu0 0.0
    %7763 = vmatprep.subr.mxu0 0.0
    %7764 = vmatpush1.msra.mxu0 0.0
    %7765 = vmatprep.subr.mxu0 0.0
    %7766 = vmatpush1.msra.mxu0 0.0
    %7767 = vmatprep.subr.mxu0 0.0
    %7768 = vmatpush1.msra.mxu0 0.0
    %7769 = vmatprep.subr.mxu0 0.0
    %7770 = vmatpush1.msra.mxu0 0.0
    %7771 = vmatprep.subr.mxu0 0.0
    %7772 = vmatpush1.msra.mxu0 0.0
    %7773 = vmatprep.subr.mxu0 0.0
    %7774 = vmatpush1.msra.mxu0 0.0
    %7775 = vmatprep.subr.mxu0 0.0
    %7776 = vmatpush1.msra.mxu0 0.0
    %7777 = vmatprep.subr.mxu0 0.0
    %7778 = vmatpush1.msra.mxu0 0.0
    %7779 = vmatprep.subr.mxu0 0.0
    %7780 = vmatpush1.msra.mxu0 0.0
    %7781 = vmatprep.subr.mxu0 0.0
    %7782 = vmatpush1.msra.mxu0 0.0
    %7783 = vmatprep.subr.mxu0 0.0
    %7784 = vmatpush1.msra.mxu0 0.0
    %7785 = vmatprep.subr.mxu0 0.0
    %7786 = vmatpush1.msra.mxu0 0.0
    %7787 = vmatprep.subr.mxu0 0.0
    %7788 = vmatpush1.msra.mxu0 0.0
    %7789 = vmatprep.subr.mxu0 0.0
    %7790 = vmatpush1.msra.mxu0 0.0
    %7791 = vmatprep.subr.mxu0 0.0
    %7792 = vmatpush1.msra.mxu0 0.0
    %7793 = vmatprep.subr.mxu0 0.0
    %7794 = vmatpush1.msra.mxu0 0.0
    %7795 = vmatprep.subr.mxu0 0.0
    %7796 = vmatpush1.msra.mxu0 0.0
    %7797 = vmatprep.subr.mxu0 0.0
    %7798 = vmatpush1.msra.mxu0 0.0
    %7799 = vmatprep.subr.mxu0 0.0
    %7800 = vmatpush1.msra.mxu0 0.0
    %7801 = vmatprep.subr.mxu0 0.0
    %7802 = vmatpush1.msra.mxu0 0.0
    %7803 = vmatprep.subr.mxu0 0.0
    %7804 = vmatpush1.msra.mxu0 0.0
    %7805 = vmatprep.subr.mxu0 0.0
    %7806 = vmatpush1.msra.mxu0 0.0
    %7807 = vmatprep.mubr.f32.mxu0 0.0
    %7808 = vmatmul.mubr.f32.gmra.mrb[0].mxu0 %v7575
    %v7809 = vpop.f32.mrb[0].mxu0
    %v7810 = vadd.f32 0.0, %v7809
    %v7811 = vpop.f32.mrb[0].mxu0
    %7812 = vdwg.mxu0
    %v7814 = vsel %vm7647, %v7733, 0
    %v7817 = vsel %vm7651, %v7810, 0
    %7819 = vmatprep.subr.mxu0 0.0
    %7820 = vmatpush1.msra.mxu0 %v7817
    %7821 = vmatprep.subr.mxu0 0.0
    %7822 = vmatpush1.msra.mxu0 0.0
    %7823 = vmatprep.subr.mxu0 0.0
    %7824 = vmatpush1.msra.mxu0 0.0
    %7825 = vmatprep.subr.mxu0 0.0
    %7826 = vmatpush1.msra.mxu0 0.0
    %7827 = vmatprep.subr.mxu0 0.0
    %7828 = vmatpush1.msra.mxu0 0.0
    %7829 = vmatprep.subr.mxu0 0.0
    %7830 = vmatpush1.msra.mxu0 0.0
    %7831 = vmatprep.subr.mxu0 0.0
    %7832 = vmatpush1.msra.mxu0 0.0
    %7833 = vmatprep.subr.mxu0 0.0
    %7834 = vmatpush1.msra.mxu0 0.0
    %7835 = vmatprep.subr.mxu0 0.0
    %7836 = vmatpush1.msra.mxu0 0.0
    %7837 = vmatprep.subr.mxu0 0.0
    %7838 = vmatpush1.msra.mxu0 0.0
    %7839 = vmatprep.subr.mxu0 0.0
    %7840 = vmatpush1.msra.mxu0 0.0
    %7841 = vmatprep.subr.mxu0 0.0
    %7842 = vmatpush1.msra.mxu0 0.0
    %7843 = vmatprep.subr.mxu0 0.0
    %7844 = vmatpush1.msra.mxu0 0.0
    %7845 = vmatprep.subr.mxu0 0.0
    %7846 = vmatpush1.msra.mxu0 0.0
    %7847 = vmatprep.subr.mxu0 0.0
    %7848 = vmatpush1.msra.mxu0 0.0
    %7849 = vmatprep.subr.mxu0 0.0
    %7850 = vmatpush1.msra.mxu0 0.0
    %7851 = vmatprep.subr.mxu0 0.0
    %7852 = vmatpush1.msra.mxu0 0.0
    %7853 = vmatprep.subr.mxu0 0.0
    %7854 = vmatpush1.msra.mxu0 0.0
    %7855 = vmatprep.subr.mxu0 0.0
    %7856 = vmatpush1.msra.mxu0 0.0
    %7857 = vmatprep.subr.mxu0 0.0
    %7858 = vmatpush1.msra.mxu0 0.0
    %7859 = vmatprep.subr.mxu0 0.0
    %7860 = vmatpush1.msra.mxu0 0.0
    %7861 = vmatprep.subr.mxu0 0.0
    %7862 = vmatpush1.msra.mxu0 0.0
    %7863 = vmatprep.subr.mxu0 0.0
    %7864 = vmatpush1.msra.mxu0 0.0
    %7865 = vmatprep.subr.mxu0 0.0
    %7866 = vmatpush1.msra.mxu0 0.0
    %7867 = vmatprep.subr.mxu0 0.0
    %7868 = vmatpush1.msra.mxu0 0.0
    %7869 = vmatprep.subr.mxu0 0.0
    %7870 = vmatpush1.msra.mxu0 0.0
    %7871 = vmatprep.subr.mxu0 0.0
    %7872 = vmatpush1.msra.mxu0 0.0
    %7873 = vmatprep.subr.mxu0 0.0
    %7874 = vmatpush1.msra.mxu0 0.0
    %7875 = vmatprep.subr.mxu0 0.0
    %7876 = vmatpush1.msra.mxu0 0.0
    %7877 = vmatprep.subr.mxu0 0.0
    %7878 = vmatpush1.msra.mxu0 0.0
    %7879 = vmatprep.subr.mxu0 0.0
    %7880 = vmatpush1.msra.mxu0 0.0
    %7881 = vmatprep.subr.mxu0 0.0
    %7882 = vmatpush1.msra.mxu0 0.0
    %7883 = vmatprep.mubr.f32.mxu0 0.0
    %7884 = vmatmul.mubr.f32.gmra.mrb[0].mxu0 %v7814
    %v7885 = vpop.f32.mrb[0].mxu0
    %v7886 = vadd.f32 0.0, %v7885
    %v7887 = vpop.f32.mrb[0].mxu0
    %7888 = vdwg.mxu0
    %v7889 = vadd.f32 %v7731, %v7886
    %s7890 = scalar_lea.vmem [#allocation32], 4
    %v7891 = vld [vmem:[%s7890] sm:$0x3]
    %s7892 = scalar_lea.vmem %s53, 128
    %v7893 = vld [vmem:[%s7892] sm:$0xff]
    %v7894 = vld [vmem:[%s7892 + $0x8] sm:$0xff]
    %v7895 = vld [vmem:[%s7892 + $0x10] sm:$0xff]
    %v7896 = vld [vmem:[%s7892 + $0x18] sm:$0xff]
    %v7897 = vld [vmem:[%s7892 + $0x20] sm:$0xff]
    %v7898 = vld [vmem:[%s7892 + $0x28] sm:$0xff]
    %v7899 = vld [vmem:[%s7892 + $0x30] sm:$0xff]
    %v7900 = vld [vmem:[%s7892 + $0x38] sm:$0xff]
    %7901 = vmatprep.subr.mxu0 0.0
    %7902 = vmatpush1.msra.mxu0 %v7893
    %7903 = vmatprep.subr.mxu0 0.0
    %7904 = vmatpush1.msra.mxu0 %v7894
    %7905 = vmatprep.subr.mxu0 0.0
    %7906 = vmatpush1.msra.mxu0 %v7895
    %7907 = vmatprep.subr.mxu0 0.0
    %7908 = vmatpush1.msra.mxu0 %v7896
    %7909 = vmatprep.subr.mxu0 0.0
    %7910 = vmatpush1.msra.mxu0 %v7897
    %7911 = vmatprep.subr.mxu0 0.0
    %7912 = vmatpush1.msra.mxu0 %v7898
    %7913 = vmatprep.subr.mxu0 0.0
    %7914 = vmatpush1.msra.mxu0 %v7899
    %7915 = vmatprep.subr.mxu0 0.0
    %7916 = vmatpush1.msra.mxu0 %v7900
    %7917 = vmatprep.subr.mxu0 0.0
    %7918 = vmatpush1.msra.mxu0 0.0
    %7919 = vmatprep.subr.mxu0 0.0
    %7920 = vmatpush1.msra.mxu0 0.0
    %7921 = vmatprep.subr.mxu0 0.0
    %7922 = vmatpush1.msra.mxu0 0.0
    %7923 = vmatprep.subr.mxu0 0.0
    %7924 = vmatpush1.msra.mxu0 0.0
    %7925 = vmatprep.subr.mxu0 0.0
    %7926 = vmatpush1.msra.mxu0 0.0
    %7927 = vmatprep.subr.mxu0 0.0
    %7928 = vmatpush1.msra.mxu0 0.0
    %7929 = vmatprep.subr.mxu0 0.0
    %7930 = vmatpush1.msra.mxu0 0.0
    %7931 = vmatprep.subr.mxu0 0.0
    %7932 = vmatpush1.msra.mxu0 0.0
    %7933 = vmatprep.subr.mxu0 0.0
    %7934 = vmatpush1.msra.mxu0 0.0
    %7935 = vmatprep.subr.mxu0 0.0
    %7936 = vmatpush1.msra.mxu0 0.0
    %7937 = vmatprep.subr.mxu0 0.0
    %7938 = vmatpush1.msra.mxu0 0.0
    %7939 = vmatprep.subr.mxu0 0.0
    %7940 = vmatpush1.msra.mxu0 0.0
    %7941 = vmatprep.subr.mxu0 0.0
    %7942 = vmatpush1.msra.mxu0 0.0
    %7943 = vmatprep.subr.mxu0 0.0
    %7944 = vmatpush1.msra.mxu0 0.0
    %7945 = vmatprep.subr.mxu0 0.0
    %7946 = vmatpush1.msra.mxu0 0.0
    %7947 = vmatprep.subr.mxu0 0.0
    %7948 = vmatpush1.msra.mxu0 0.0
    %7949 = vmatprep.subr.mxu0 0.0
    %7950 = vmatpush1.msra.mxu0 0.0
    %7951 = vmatprep.subr.mxu0 0.0
    %7952 = vmatpush1.msra.mxu0 0.0
    %7953 = vmatprep.subr.mxu0 0.0
    %7954 = vmatpush1.msra.mxu0 0.0
    %7955 = vmatprep.subr.mxu0 0.0
    %7956 = vmatpush1.msra.mxu0 0.0
    %7957 = vmatprep.subr.mxu0 0.0
    %7958 = vmatpush1.msra.mxu0 0.0
    %7959 = vmatprep.subr.mxu0 0.0
    %7960 = vmatpush1.msra.mxu0 0.0
    %7961 = vmatprep.subr.mxu0 0.0
    %7962 = vmatpush1.msra.mxu0 0.0
    %7963 = vmatprep.subr.mxu0 0.0
    %7964 = vmatpush1.msra.mxu0 0.0
    %7965 = vmatprep.mubr.f32.mxu0 0.0
    %7966 = vmatmul.mubr.f32.gmra.mrb[0].mxu0 %v7575
    %v7967 = vpop.f32.mrb[0].mxu0
    %v7968 = vadd.f32 0.0, %v7967
    %v7969 = vpop.f32.mrb[0].mxu0
    %7970 = vdwg.mxu0
    %v7972 = vsel %vm7647, %v7891, 0
    %v7975 = vsel %vm7651, %v7968, 0
    %7977 = vmatprep.subr.mxu0 0.0
    %7978 = vmatpush1.msra.mxu0 %v7975
    %7979 = vmatprep.subr.mxu0 0.0
    %7980 = vmatpush1.msra.mxu0 0.0
    %7981 = vmatprep.subr.mxu0 0.0
    %7982 = vmatpush1.msra.mxu0 0.0
    %7983 = vmatprep.subr.mxu0 0.0
    %7984 = vmatpush1.msra.mxu0 0.0
    %7985 = vmatprep.subr.mxu0 0.0
    %7986 = vmatpush1.msra.mxu0 0.0
    %7987 = vmatprep.subr.mxu0 0.0
    %7988 = vmatpush1.msra.mxu0 0.0
    %7989 = vmatprep.subr.mxu0 0.0
    %7990 = vmatpush1.msra.mxu0 0.0
    %7991 = vmatprep.subr.mxu0 0.0
    %7992 = vmatpush1.msra.mxu0 0.0
    %7993 = vmatprep.subr.mxu0 0.0
    %7994 = vmatpush1.msra.mxu0 0.0
    %7995 = vmatprep.subr.mxu0 0.0
    %7996 = vmatpush1.msra.mxu0 0.0
    %7997 = vmatprep.subr.mxu0 0.0
    %7998 = vmatpush1.msra.mxu0 0.0
    %7999 = vmatprep.subr.mxu0 0.0
    %8000 = vmatpush1.msra.mxu0 0.0
    %8001 = vmatprep.subr.mxu0 0.0
    %8002 = vmatpush1.msra.mxu0 0.0
    %8003 = vmatprep.subr.mxu0 0.0
    %8004 = vmatpush1.msra.mxu0 0.0
    %8005 = vmatprep.subr.mxu0 0.0
    %8006 = vmatpush1.msra.mxu0 0.0
    %8007 = vmatprep.subr.mxu0 0.0
    %8008 = vmatpush1.msra.mxu0 0.0
    %8009 = vmatprep.subr.mxu0 0.0
    %8010 = vmatpush1.msra.mxu0 0.0
    %8011 = vmatprep.subr.mxu0 0.0
    %8012 = vmatpush1.msra.mxu0 0.0
    %8013 = vmatprep.subr.mxu0 0.0
    %8014 = vmatpush1.msra.mxu0 0.0
    %8015 = vmatprep.subr.mxu0 0.0
    %8016 = vmatpush1.msra.mxu0 0.0
    %8017 = vmatprep.subr.mxu0 0.0
    %8018 = vmatpush1.msra.mxu0 0.0
    %8019 = vmatprep.subr.mxu0 0.0
    %8020 = vmatpush1.msra.mxu0 0.0
    %8021 = vmatprep.subr.mxu0 0.0
    %8022 = vmatpush1.msra.mxu0 0.0
    %8023 = vmatprep.subr.mxu0 0.0
    %8024 = vmatpush1.msra.mxu0 0.0
    %8025 = vmatprep.subr.mxu0 0.0
    %8026 = vmatpush1.msra.mxu0 0.0
    %8027 = vmatprep.subr.mxu0 0.0
    %8028 = vmatpush1.msra.mxu0 0.0
    %8029 = vmatprep.subr.mxu0 0.0
    %8030 = vmatpush1.msra.mxu0 0.0
    %8031 = vmatprep.subr.mxu0 0.0
    %8032 = vmatpush1.msra.mxu0 0.0
    %8033 = vmatprep.subr.mxu0 0.0
    %8034 = vmatpush1.msra.mxu0 0.0
    %8035 = vmatprep.subr.mxu0 0.0
    %8036 = vmatpush1.msra.mxu0 0.0
    %8037 = vmatprep.subr.mxu0 0.0
    %8038 = vmatpush1.msra.mxu0 0.0
    %8039 = vmatprep.subr.mxu0 0.0
    %8040 = vmatpush1.msra.mxu0 0.0
    %8041 = vmatprep.mubr.f32.mxu0 0.0
    %8042 = vmatmul.mubr.f32.gmra.mrb[0].mxu0 %v7972
    %v8043 = vpop.f32.mrb[0].mxu0
    %v8044 = vadd.f32 0.0, %v8043
    %v8045 = vpop.f32.mrb[0].mxu0
    %8046 = vdwg.mxu0
    %v8047 = vadd.f32 %v7889, %v8044
    %8048 = vst [vmem:[%s57] sm:$0xff] %v5852
    %8049 = vst [vmem:[%s57 + $0x8] sm:$0xff] %v5853
    %8050 = vst [vmem:[%s57 + $0x10] sm:$0xff] %v5854
    %8051 = vst [vmem:[%s57 + $0x18] sm:$0xff] %v5855
    %8052 = vst [vmem:[%s57 + $0x20] sm:$0xff] %v5856
    %8053 = vst [vmem:[%s57 + $0x28] sm:$0xff] %v5857
    %8054 = vst [vmem:[%s57 + $0x30] sm:$0xff] %v5858
    %8055 = vst [vmem:[%s57 + $0x38] sm:$0xff] %v5859
    %8056 = vst [vmem:[%s57 + $0x40] sm:$0xff] %v5860
    %8057 = vst [vmem:[%s57 + $0x48] sm:$0xff] %v5861
    %8058 = vst [vmem:[%s57 + $0x50] sm:$0xff] %v5862
    %8059 = vst [vmem:[%s57 + $0x58] sm:$0xff] %v5863
    %8060 = vst [vmem:[%s57 + $0x60] sm:$0xff] %v5864
    %8061 = vst [vmem:[%s57 + $0x68] sm:$0xff] %v5865
    %8062 = vst [vmem:[%s57 + $0x70] sm:$0xff] %v5866
    %8063 = vst [vmem:[%s57 + $0x78] sm:$0xff] %v5867
    %8064 = vst [vmem:[%s59] sm:$0xff] %v6570
    %8065 = vst [vmem:[%s59 + $0x8] sm:$0xff] %v6571
    %8066 = vst [vmem:[%s59 + $0x10] sm:$0xff] %v6572
    %8067 = vst [vmem:[%s59 + $0x18] sm:$0xff] %v6573
    %8068 = vst [vmem:[%s61] sm:$0xff] %v7067
    %vm8069 = vcmask 519168
    %8070 = vst.msk [vmem:[%s63] sm:$0xf] %vm8069, %v7561
    %vm8071 = vcmask 254976
    %8072 = vst.msk [vmem:[#allocation35] sm:$0x3] %vm8071, %v8047
    // Predicated region
    $region198: #{fwd.1} parent=1 // pred_check
      _
    $region199: #{fwd.1} parent=1 // pred_check_branch
      %8074 = sbr.rel (0) target = $region201
    $region200: #{fwd.1} parent=1 // pred_region
      _
    $region201: #{fwd.1} parent=1 // pred_fallthru
      _
    // Predicated region
    $region202: #{fwd.1} parent=1 // pred_check
      _
    $region203: #{fwd.1} parent=1 // pred_check_branch
      %8076 = sbr.rel (0) target = $region205
    $region204: #{fwd.1} parent=1 // pred_region
      _
    $region205: #{fwd.1} parent=1 // pred_fallthru
      _
    // Predicated region
    $region206: #{fwd.1} parent=1 // pred_check
      _
    $region207: #{fwd.1} parent=1 // pred_check_branch
      %8078 = sbr.rel (0) target = $region209
    $region208: #{fwd.1} parent=1 // pred_region
      _
    $region209: #{fwd.1} parent=1 // pred_fallthru
      _
    // Predicated region
    $region210: #{fwd.1} parent=1 // pred_check
      _
    $region211: #{fwd.1} parent=1 // pred_check_branch
      %8080 = sbr.rel (0) target = $region213
    $region212: #{fwd.1} parent=1 // pred_region
      _
    $region213: #{fwd.1} parent=1 // pred_fallthru
      _
    // Predicated region
    $region214: #{fwd.1} parent=1 // pred_check
      _
    $region215: #{fwd.1} parent=1 // pred_check_branch
      %8082 = sbr.rel (0) target = $region217
    $region216: #{fwd.1} parent=1 // pred_region
      %s8084 = ssub.s32 32, 32
      %8085 = vsyncadd [#allocation4], %s8084
      %s8087 = sshll.u32 [#allocation35], 4
      %s8088 = int_to_ptr.vmem [resolvable:$true] %s8087
      %8090 = dma.vmem_to_hbm [thread:$0]  %s8088, 32, %s65, [#allocation4]
    $region217: #{fwd.1} parent=1 // pred_fallthru
      _
    // Predicated region
    $region218: #{fwd.1} parent=1 // pred_check
      _
    $region219: #{fwd.1} parent=1 // pred_check_branch
      %8092 = sbr.rel (0) target = $region221
    $region220: #{fwd.1} parent=1 // pred_region
      _
    $region221: #{fwd.1} parent=1 // pred_fallthru
      _
    // Predicated region
    $region222: #{fwd.1} parent=1 // pred_check
      _
    $region223: #{fwd.1} parent=1 // pred_check_branch
      %8094 = sbr.rel (0) target = $region225
    $region224: #{fwd.1} parent=1 // pred_region
      _
    $region225: #{fwd.1} parent=1 // pred_fallthru
      _
    // Predicated region
    $region226: #{fwd.1} parent=1 // pred_check
      _
    $region227: #{fwd.1} parent=1 // pred_check_branch
      %8096 = sbr.rel (0) target = $region229
    $region228: #{fwd.1} parent=1 // pred_region
      _
    $region229: #{fwd.1} parent=1 // pred_fallthru
      _
    // Predicated region
    $region230: #{fwd.1} parent=1 // pred_check
      _
    $region231: #{fwd.1} parent=1 // pred_check_branch
      %8098 = sbr.rel (0) target = $region233
    $region232: #{fwd.1} parent=1 // pred_region
      _
    $region233: #{fwd.1} parent=1 // pred_fallthru
      _
    // Predicated region
    $region234: #{fwd.1} parent=1 // pred_check
      _
    $region235: #{fwd.1} parent=1 // pred_check_branch
      %8100 = sbr.rel (0) target = $region237
    $region236: #{fwd.1} parent=1 // pred_region
      %8101 = dma.done [#allocation4], 32
    $region237: #{fwd.1} parent=1 // pred_fallthru
      _
    %8102 = vsyncpa [#allocation3], 1
    %8103 = vsyncpa [#allocation6], 1
    %8104 = vsyncpa [#allocation9], 1
    %8105 = vsyncpa [#allocation12], 1
    %8106 = vsyncpa [#allocation15], 1
    %8107 = vsyncpa [#allocation18], 1
    %8108 = vsyncpa [#allocation21], 1
    %8109 = vsyncpa [#allocation24], 1
    %8110 = vsyncpa [#allocation27], 1
    %8111 = vsyncpa [#allocation30], 1
    %8112 = vsyncpa [#allocation33], 1
    %8113 = vsyncpa [#allocation4], 1

</llo_original>
